<compile_context>
chip_gen: v7x
topology: tpu7x:2x2x1
jax: 0.10.0
libtpu: 0.0.40
codegen_flags: <defaults>
</compile_context>

<pallas_src>
import functools
import math

import jax
import jax.numpy as jnp
from jax.experimental import pallas as pl
from jax.experimental.pallas import tpu as pltpu


# ----------------------------- Pallas kernel ------------------------------ #
def fused_speech_embedding_kernel(xph_ref, w1v_ref, w1g_ref, b1v_ref, b1g_ref,
                                  w2v_ref, w2g_ref, b2v_ref, b2g_ref,
                                  o_ref, hodd_ref):
    """Two fused conv1d(k=3, s=2, pad=1) + GLU layers, time on the lane axis.

    xph_ref : (4, F, T2+1)  4-phase split of the zero-padded input for one batch
                            element; phase q row u holds x_pad[:, 4*u + q].
    w1v/w1g : (3, C1h, F)   layer-1 value / gate weights, one slab per conv tap.
    b1v/b1g : (C1h, 1)
    w2v/w2g : (3, C2h, C1h) layer-2 weights (sqrt(emb) folded into the value half).
    b2v/b2g : (C2h, 1)
    o_ref   : (1, C2h, T2)  NCW output block (lane-dense in time).
    hodd_ref: (C1h, T2+1)   VMEM scratch: shift the odd-phase activation by one
                            frame to build the layer-2 left tap (conv left pad).
    """
    T2 = o_ref.shape[2]
    dot = functools.partial(jnp.dot, preferred_element_type=jnp.float32,
                            precision=jax.lax.Precision.HIGHEST)

    def conv_glu(wv_ref, wg_ref, bv, bg, taps):
        # taps: tuple of 3 arrays (C_in, T2); value/gate never slice a matmul.
        v, g = bv, bg
        for k, t in enumerate(taps):
            v = v + dot(wv_ref[k], t)
            g = g + dot(wg_ref[k], t)
        return v * jax.nn.sigmoid(g)

    xp0 = xph_ref[0]            # (F, T2 + 1)
    xp1 = xph_ref[1]
    xp2 = xph_ref[2]
    xp3 = xph_ref[3]
    b1v = b1v_ref[...]
    b1g = b1g_ref[...]

    # Layer-1 output h[t1] split by parity so both stride-2 convolutions need
    # only unit-stride lane slices:
    #   h[2u]   uses x_pad[4u+0 .. 4u+2]  -> phases (0, 1, 2) at u
    #   h[2u+1] uses x_pad[4u+2 .. 4u+4]  -> phases (2, 3) at u and phase 0 at u+1
    h_even = conv_glu(w1v_ref, w1g_ref, b1v, b1g,
                      (xp0[:, :T2], xp1[:, :T2], xp2[:, :T2]))          # (C1h,T2)
    h_odd = conv_glu(w1v_ref, w1g_ref, b1v, b1g,
                     (xp2[:, :T2], xp3[:, :T2], xp0[:, 1:T2 + 1]))      # (C1h,T2)

    # Layer-2 taps on h (pad=1, stride=2):  h[2t-1], h[2t], h[2t+1]
    #   = h_odd[t-1] (zero at t=0, the conv left pad), h_even[t], h_odd[t].
    c1h = h_odd.shape[0]
    hodd_ref[:, 0:1] = jnp.zeros((c1h, 1), jnp.float32)
    hodd_ref[:, 1:] = h_odd
    h_prev = hodd_ref[:, :T2]                                           # h_odd[t-1]

    # sqrt(emb_size) is already folded into w2v / b2v.
    o_ref[0] = conv_glu(w2v_ref, w2g_ref, b2v_ref[...], b2g_ref[...],
                        (h_prev, h_even, h_odd))


# ------------------------------- wrapper ----------------------------------- #
def speech_embedding_forward(src, params, emb_size, sinusoidalpos=True):
    """src: (B, T, audio_feature_size) f32 -> (B, T // 4, emb_size) f32."""
    B, T, F = src.shape
    assert T % 4 == 0, "fused kernel assumes frame count divisible by 4"
    (w1, b1), (w2, b2) = params
    assert w1.shape[2] == 3 and w2.shape[2] == 3, "kernel specialized for k=3"
    C1, C2 = w1.shape[0], w2.shape[0]
    C1h, C2h = C1 // 2, C2 // 2
    T1, T2 = T // 2, T // 4
    Up = T2 + 1
    scale = math.sqrt(emb_size) if sinusoidalpos else 1.0

    # --- parameter prep: per-tap (K, C_half, C_in), GLU value/gate pre-split,
    #     sqrt(emb_size) folded into the last layer's value half. ---
    w1v = jnp.transpose(w1[:C1h], (2, 0, 1))            # (3, C1h, F)
    w1g = jnp.transpose(w1[C1h:], (2, 0, 1))
    b1v = b1[:C1h].reshape(C1h, 1)
    b1g = b1[C1h:].reshape(C1h, 1)
    w2v = jnp.transpose(w2[:C2h], (2, 0, 1)) * scale    # (3, C2h, C1h), scale folded
    w2g = jnp.transpose(w2[C2h:], (2, 0, 1))
    b2v = (b2[:C2h] * scale).reshape(C2h, 1)
    b2g = b2[C2h:].reshape(C2h, 1)

    # --- 4-phase split of the conv-padded input (time stays on the lane axis;
    #     turns both stride-2 im2cols into unit-stride slices in the kernel). ---
    x = jnp.transpose(src, (0, 2, 1))                   # (B, F, T)   NCW
    x_pad = jnp.pad(x, ((0, 0), (0, 0), (1, 3)))        # (B, F, 4*Up); 1 conv pad
    x_ph = jnp.transpose(x_pad.reshape(B, F, Up, 4), (0, 3, 1, 2))    # (B,4,F,Up)
    x_ph = x_ph.reshape(B * 4, F, Up)                   # phases of batch b at rows 4b..4b+3

    def full_spec(arr):
        nd = arr.ndim
        return pl.BlockSpec(arr.shape, lambda b, _nd=nd: (0,) * _nd)

    flops = 2 * B * (T1 * C1 * F * 3 + T2 * C2 * C1h * 3)
    transcendentals = B * (C1h * T1 + C2h * T2)
    bytes_accessed = 4 * (x_ph.size + w1v.size + w1g.size + b1v.size + b1g.size
                          + w2v.size + w2g.size + b2v.size + b2g.size
                          + B * C2h * T2)

    out_ncw = pl.pallas_call(
        fused_speech_embedding_kernel,
        out_shape=jax.ShapeDtypeStruct((B, C2h, T2), jnp.float32),
        grid=(B,),
        in_specs=[
            pl.BlockSpec((4, F, Up), lambda b: (b, 0, 0)),   # this batch's 4 phases
            full_spec(w1v), full_spec(w1g), full_spec(b1v), full_spec(b1g),
            full_spec(w2v), full_spec(w2g), full_spec(b2v), full_spec(b2g),
        ],
        out_specs=pl.BlockSpec((1, C2h, T2), lambda b: (b, 0, 0)),
        scratch_shapes=[pltpu.VMEM((C1h, T2 + 1), jnp.float32)],
        compiler_params=pltpu.CompilerParams(dimension_semantics=("parallel",)),
        cost_estimate=pl.CostEstimate(flops=int(flops),
                                      transcendentals=int(transcendentals),
                                      bytes_accessed=int(bytes_accessed)),
    )(x_ph, w1v, w1g, b1v, b1g, w2v, w2g, b2v, b2g)

    # Kernel emits NCW (channels, time) with time lane-dense; final transpose to
    # the module's (B, T_out, emb_size) API is tiny XLA glue.
    return jnp.transpose(out_ncw, (0, 2, 1))


# ------------------------------ reference ---------------------------------- #
def ref_forward(src, params, kernel_sizes, strides, emb_size, sinusoidalpos=True):
    """Pure-JAX reference (lax.conv) mirroring the PyTorch module semantics."""
    x = jnp.transpose(src, (0, 2, 1))
    for (w, b), k, s in zip(params, kernel_sizes, strides):
        pad = k // 2
        y = jax.lax.conv_general_dilated(
            x, w, window_strides=(s,), padding=[(pad, pad)],
            dimension_numbers=("NCH", "OIH", "NCH"),
            precision=jax.lax.Precision.HIGHEST)
        y = y + b[None, :, None]
        c = y.shape[1] // 2
        x = y[:, :c] * jax.nn.sigmoid(y[:, c:])        # GLU along channel dim
    out = jnp.transpose(x, (0, 2, 1))
    if sinusoidalpos:
        out = out * math.sqrt(emb_size)
    return out


def init_params(key, audio_feature_size, conv_channels, kernel_sizes):
    """Deterministic kaiming-normal weights + uniform biases (torch-style)."""
    params = []
    in_c = audio_feature_size
    for k, c in zip(kernel_sizes, conv_channels):
        key, kw, kb = jax.random.split(key, 3)
        fan_in = in_c * k
        w = jax.random.normal(kw, (c, in_c, k), jnp.float32) * math.sqrt(2.0 / fan_in)
        bound = 1.0 / math.sqrt(fan_in)
        b = jax.random.uniform(kb, (c,), jnp.float32, -bound, bound)
        params.append((w, b))
        in_c = c // 2  # GLU halves the channels fed into the next layer
    return params, key


if __name__ == "__main__":
    batch, seq_len = 2, 32
    audio_feature_size = 8
    conv_kernel_sizes = [3, 3]
    conv_channels = [32, 64]
    strides = [2, 2]
    emb_size = conv_channels[-1] // 2  # 32, matches args.emb_size convention

    key = jax.random.PRNGKey(0)
    params, key = init_params(key, audio_feature_size, conv_channels, conv_kernel_sizes)
    key, ksrc = jax.random.split(key)
    src = jax.random.normal(ksrc, (batch, seq_len, audio_feature_size), jnp.float32)

    out = speech_embedding_forward(src, params, emb_size, sinusoidalpos=True)
    out = jax.block_until_ready(out)

    ref = jax.block_until_ready(
        ref_forward(src, params, conv_kernel_sizes, strides, emb_size, sinusoidalpos=True))

    assert out.shape == (batch, seq_len // 4, emb_size), out.shape
    max_err = float(jnp.max(jnp.abs(out - ref)))
    assert jnp.allclose(out, ref, rtol=1e-4, atol=1e-4), max_err
    print("KERNEL_OK")
</pallas_src>

<mosaic_0001>
module attributes {stable_mosaic.version = 11 : i64} {
  func.func @fused_speech_embedding_kernel(%arg0: i32, %arg1: memref<4x8x9xf32, #tpu.memory_space<vmem>>, %arg2: memref<3x16x8xf32, #tpu.memory_space<vmem>>, %arg3: memref<3x16x8xf32, #tpu.memory_space<vmem>>, %arg4: memref<16x1xf32, #tpu.memory_space<vmem>>, %arg5: memref<16x1xf32, #tpu.memory_space<vmem>>, %arg6: memref<3x32x16xf32, #tpu.memory_space<vmem>>, %arg7: memref<3x32x16xf32, #tpu.memory_space<vmem>>, %arg8: memref<32x1xf32, #tpu.memory_space<vmem>>, %arg9: memref<32x1xf32, #tpu.memory_space<vmem>>, %arg10: memref<1x32x8xf32, #tpu.memory_space<vmem>>, %arg11: memref<16x9xf32, #tpu.memory_space<vmem>>) attributes {dimension_semantics = [#tpu.dimension_semantics<parallel>], iteration_bounds = array<i64: 2>, scalar_prefetch = 0 : i64, scratch_operands = 1 : i64, tpu.core_type = #tpu.core_type<tc>, window_params = [{transform_indices = @transform_0, window_bounds = array<i64: 4, 8, 9>}, {pipeline_mode = #tpu.pipeline_mode<synchronous>, transform_indices = @transform_1, window_bounds = array<i64: 3, 16, 8>}, {pipeline_mode = #tpu.pipeline_mode<synchronous>, transform_indices = @transform_2, window_bounds = array<i64: 3, 16, 8>}, {pipeline_mode = #tpu.pipeline_mode<synchronous>, transform_indices = @transform_3, window_bounds = array<i64: 16, 1>}, {pipeline_mode = #tpu.pipeline_mode<synchronous>, transform_indices = @transform_4, window_bounds = array<i64: 16, 1>}, {pipeline_mode = #tpu.pipeline_mode<synchronous>, transform_indices = @transform_5, window_bounds = array<i64: 3, 32, 16>}, {pipeline_mode = #tpu.pipeline_mode<synchronous>, transform_indices = @transform_6, window_bounds = array<i64: 3, 32, 16>}, {pipeline_mode = #tpu.pipeline_mode<synchronous>, transform_indices = @transform_7, window_bounds = array<i64: 32, 1>}, {pipeline_mode = #tpu.pipeline_mode<synchronous>, transform_indices = @transform_8, window_bounds = array<i64: 32, 1>}, {transform_indices = @transform_9, window_bounds = array<i64: 1, 32, 8>}]} {
    %c0 = arith.constant 0 : index
    %c0_0 = arith.constant 0 : index
    %c0_1 = arith.constant 0 : index
    %0 = vector.load %arg1[%c0, %c0_0, %c0_1] : memref<4x8x9xf32, #tpu.memory_space<vmem>>, vector<1x8x9xf32>
    %1 = vector.shape_cast %0 : vector<1x8x9xf32> to vector<8x9xf32>
    %c1 = arith.constant 1 : index
    %c0_2 = arith.constant 0 : index
    %c0_3 = arith.constant 0 : index
    %2 = vector.load %arg1[%c1, %c0_2, %c0_3] : memref<4x8x9xf32, #tpu.memory_space<vmem>>, vector<1x8x9xf32>
    %3 = vector.shape_cast %2 : vector<1x8x9xf32> to vector<8x9xf32>
    %c2 = arith.constant 2 : index
    %c0_4 = arith.constant 0 : index
    %c0_5 = arith.constant 0 : index
    %4 = vector.load %arg1[%c2, %c0_4, %c0_5] : memref<4x8x9xf32, #tpu.memory_space<vmem>>, vector<1x8x9xf32>
    %5 = vector.shape_cast %4 : vector<1x8x9xf32> to vector<8x9xf32>
    %c3 = arith.constant 3 : index
    %c0_6 = arith.constant 0 : index
    %c0_7 = arith.constant 0 : index
    %6 = vector.load %arg1[%c3, %c0_6, %c0_7] : memref<4x8x9xf32, #tpu.memory_space<vmem>>, vector<1x8x9xf32>
    %7 = vector.shape_cast %6 : vector<1x8x9xf32> to vector<8x9xf32>
    %c0_8 = arith.constant 0 : index
    %c0_9 = arith.constant 0 : index
    %8 = vector.load %arg4[%c0_8, %c0_9] : memref<16x1xf32, #tpu.memory_space<vmem>>, vector<16x1xf32>
    %c0_10 = arith.constant 0 : index
    %c0_11 = arith.constant 0 : index
    %9 = vector.load %arg5[%c0_10, %c0_11] : memref<16x1xf32, #tpu.memory_space<vmem>>, vector<16x1xf32>
    %10 = vector.extract_strided_slice %1 {offsets = [0, 0], sizes = [8, 8], strides = [1, 1]} : vector<8x9xf32> to vector<8x8xf32>
    %11 = vector.extract_strided_slice %3 {offsets = [0, 0], sizes = [8, 8], strides = [1, 1]} : vector<8x9xf32> to vector<8x8xf32>
    %12 = vector.extract_strided_slice %5 {offsets = [0, 0], sizes = [8, 8], strides = [1, 1]} : vector<8x9xf32> to vector<8x8xf32>
    %c0_12 = arith.constant 0 : index
    %c0_13 = arith.constant 0 : index
    %c0_14 = arith.constant 0 : index
    %13 = vector.load %arg2[%c0_12, %c0_13, %c0_14] : memref<3x16x8xf32, #tpu.memory_space<vmem>>, vector<1x16x8xf32>
    %14 = vector.shape_cast %13 : vector<1x16x8xf32> to vector<16x8xf32>
    %cst = arith.constant dense<0.000000e+00> : vector<16x8xf32>
    %15 = tpu.matmul %14, %10, %cst {dimension_numbers = #tpu.dot_dimension_numbers<[1], [0], [0], [1], [0, 0, 1, 1], [], []>, precision = #tpu.contract_precision<fp32>} : vector<16x8xf32>, vector<8x8xf32>, vector<16x8xf32> -> vector<16x8xf32>
    %16 = vector.broadcast %8 : vector<16x1xf32> to vector<16x8xf32>
    %17 = arith.addf %16, %15 : vector<16x8xf32>
    %c0_15 = arith.constant 0 : index
    %c0_16 = arith.constant 0 : index
    %c0_17 = arith.constant 0 : index
    %18 = vector.load %arg3[%c0_15, %c0_16, %c0_17] : memref<3x16x8xf32, #tpu.memory_space<vmem>>, vector<1x16x8xf32>
    %19 = vector.shape_cast %18 : vector<1x16x8xf32> to vector<16x8xf32>
    %cst_18 = arith.constant dense<0.000000e+00> : vector<16x8xf32>
    %20 = tpu.matmul %19, %10, %cst_18 {dimension_numbers = #tpu.dot_dimension_numbers<[1], [0], [0], [1], [0, 0, 1, 1], [], []>, precision = #tpu.contract_precision<fp32>} : vector<16x8xf32>, vector<8x8xf32>, vector<16x8xf32> -> vector<16x8xf32>
    %21 = vector.broadcast %9 : vector<16x1xf32> to vector<16x8xf32>
    %22 = arith.addf %21, %20 : vector<16x8xf32>
    %c1_19 = arith.constant 1 : index
    %c0_20 = arith.constant 0 : index
    %c0_21 = arith.constant 0 : index
    %23 = vector.load %arg2[%c1_19, %c0_20, %c0_21] : memref<3x16x8xf32, #tpu.memory_space<vmem>>, vector<1x16x8xf32>
    %24 = vector.shape_cast %23 : vector<1x16x8xf32> to vector<16x8xf32>
    %cst_22 = arith.constant dense<0.000000e+00> : vector<16x8xf32>
    %25 = tpu.matmul %24, %11, %cst_22 {dimension_numbers = #tpu.dot_dimension_numbers<[1], [0], [0], [1], [0, 0, 1, 1], [], []>, precision = #tpu.contract_precision<fp32>} : vector<16x8xf32>, vector<8x8xf32>, vector<16x8xf32> -> vector<16x8xf32>
    %26 = arith.addf %17, %25 : vector<16x8xf32>
    %c1_23 = arith.constant 1 : index
    %c0_24 = arith.constant 0 : index
    %c0_25 = arith.constant 0 : index
    %27 = vector.load %arg3[%c1_23, %c0_24, %c0_25] : memref<3x16x8xf32, #tpu.memory_space<vmem>>, vector<1x16x8xf32>
    %28 = vector.shape_cast %27 : vector<1x16x8xf32> to vector<16x8xf32>
    %cst_26 = arith.constant dense<0.000000e+00> : vector<16x8xf32>
    %29 = tpu.matmul %28, %11, %cst_26 {dimension_numbers = #tpu.dot_dimension_numbers<[1], [0], [0], [1], [0, 0, 1, 1], [], []>, precision = #tpu.contract_precision<fp32>} : vector<16x8xf32>, vector<8x8xf32>, vector<16x8xf32> -> vector<16x8xf32>
    %30 = arith.addf %22, %29 : vector<16x8xf32>
    %c2_27 = arith.constant 2 : index
    %c0_28 = arith.constant 0 : index
    %c0_29 = arith.constant 0 : index
    %31 = vector.load %arg2[%c2_27, %c0_28, %c0_29] : memref<3x16x8xf32, #tpu.memory_space<vmem>>, vector<1x16x8xf32>
    %32 = vector.shape_cast %31 : vector<1x16x8xf32> to vector<16x8xf32>
    %cst_30 = arith.constant dense<0.000000e+00> : vector<16x8xf32>
    %33 = tpu.matmul %32, %12, %cst_30 {dimension_numbers = #tpu.dot_dimension_numbers<[1], [0], [0], [1], [0, 0, 1, 1], [], []>, precision = #tpu.contract_precision<fp32>} : vector<16x8xf32>, vector<8x8xf32>, vector<16x8xf32> -> vector<16x8xf32>
    %34 = arith.addf %26, %33 : vector<16x8xf32>
    %c2_31 = arith.constant 2 : index
    %c0_32 = arith.constant 0 : index
    %c0_33 = arith.constant 0 : index
    %35 = vector.load %arg3[%c2_31, %c0_32, %c0_33] : memref<3x16x8xf32, #tpu.memory_space<vmem>>, vector<1x16x8xf32>
    %36 = vector.shape_cast %35 : vector<1x16x8xf32> to vector<16x8xf32>
    %cst_34 = arith.constant dense<0.000000e+00> : vector<16x8xf32>
    %37 = tpu.matmul %36, %12, %cst_34 {dimension_numbers = #tpu.dot_dimension_numbers<[1], [0], [0], [1], [0, 0, 1, 1], [], []>, precision = #tpu.contract_precision<fp32>} : vector<16x8xf32>, vector<8x8xf32>, vector<16x8xf32> -> vector<16x8xf32>
    %38 = arith.addf %30, %37 : vector<16x8xf32>
    %39 = arith.negf %38 : vector<16x8xf32>
    %40 = math.exp %39 : vector<16x8xf32>
    %cst_35 = arith.constant 1.000000e+00 : f32
    %41 = vector.broadcast %cst_35 : f32 to vector<16x8xf32>
    %42 = arith.addf %41, %40 : vector<16x8xf32>
    %43 = arith.divf %41, %42 : vector<16x8xf32>
    %44 = arith.mulf %34, %43 : vector<16x8xf32>
    %45 = vector.extract_strided_slice %5 {offsets = [0, 0], sizes = [8, 8], strides = [1, 1]} : vector<8x9xf32> to vector<8x8xf32>
    %46 = vector.extract_strided_slice %7 {offsets = [0, 0], sizes = [8, 8], strides = [1, 1]} : vector<8x9xf32> to vector<8x8xf32>
    %47 = vector.extract_strided_slice %1 {offsets = [0, 1], sizes = [8, 8], strides = [1, 1]} : vector<8x9xf32> to vector<8x8xf32>
    %c0_36 = arith.constant 0 : index
    %c0_37 = arith.constant 0 : index
    %c0_38 = arith.constant 0 : index
    %48 = vector.load %arg2[%c0_36, %c0_37, %c0_38] : memref<3x16x8xf32, #tpu.memory_space<vmem>>, vector<1x16x8xf32>
    %49 = vector.shape_cast %48 : vector<1x16x8xf32> to vector<16x8xf32>
    %cst_39 = arith.constant dense<0.000000e+00> : vector<16x8xf32>
    %50 = tpu.matmul %49, %45, %cst_39 {dimension_numbers = #tpu.dot_dimension_numbers<[1], [0], [0], [1], [0, 0, 1, 1], [], []>, precision = #tpu.contract_precision<fp32>} : vector<16x8xf32>, vector<8x8xf32>, vector<16x8xf32> -> vector<16x8xf32>
    %51 = vector.broadcast %8 : vector<16x1xf32> to vector<16x8xf32>
    %52 = arith.addf %51, %50 : vector<16x8xf32>
    %c0_40 = arith.constant 0 : index
    %c0_41 = arith.constant 0 : index
    %c0_42 = arith.constant 0 : index
    %53 = vector.load %arg3[%c0_40, %c0_41, %c0_42] : memref<3x16x8xf32, #tpu.memory_space<vmem>>, vector<1x16x8xf32>
    %54 = vector.shape_cast %53 : vector<1x16x8xf32> to vector<16x8xf32>
    %cst_43 = arith.constant dense<0.000000e+00> : vector<16x8xf32>
    %55 = tpu.matmul %54, %45, %cst_43 {dimension_numbers = #tpu.dot_dimension_numbers<[1], [0], [0], [1], [0, 0, 1, 1], [], []>, precision = #tpu.contract_precision<fp32>} : vector<16x8xf32>, vector<8x8xf32>, vector<16x8xf32> -> vector<16x8xf32>
    %56 = vector.broadcast %9 : vector<16x1xf32> to vector<16x8xf32>
    %57 = arith.addf %56, %55 : vector<16x8xf32>
    %c1_44 = arith.constant 1 : index
    %c0_45 = arith.constant 0 : index
    %c0_46 = arith.constant 0 : index
    %58 = vector.load %arg2[%c1_44, %c0_45, %c0_46] : memref<3x16x8xf32, #tpu.memory_space<vmem>>, vector<1x16x8xf32>
    %59 = vector.shape_cast %58 : vector<1x16x8xf32> to vector<16x8xf32>
    %cst_47 = arith.constant dense<0.000000e+00> : vector<16x8xf32>
    %60 = tpu.matmul %59, %46, %cst_47 {dimension_numbers = #tpu.dot_dimension_numbers<[1], [0], [0], [1], [0, 0, 1, 1], [], []>, precision = #tpu.contract_precision<fp32>} : vector<16x8xf32>, vector<8x8xf32>, vector<16x8xf32> -> vector<16x8xf32>
    %61 = arith.addf %52, %60 : vector<16x8xf32>
    %c1_48 = arith.constant 1 : index
    %c0_49 = arith.constant 0 : index
    %c0_50 = arith.constant 0 : index
    %62 = vector.load %arg3[%c1_48, %c0_49, %c0_50] : memref<3x16x8xf32, #tpu.memory_space<vmem>>, vector<1x16x8xf32>
    %63 = vector.shape_cast %62 : vector<1x16x8xf32> to vector<16x8xf32>
    %cst_51 = arith.constant dense<0.000000e+00> : vector<16x8xf32>
    %64 = tpu.matmul %63, %46, %cst_51 {dimension_numbers = #tpu.dot_dimension_numbers<[1], [0], [0], [1], [0, 0, 1, 1], [], []>, precision = #tpu.contract_precision<fp32>} : vector<16x8xf32>, vector<8x8xf32>, vector<16x8xf32> -> vector<16x8xf32>
    %65 = arith.addf %57, %64 : vector<16x8xf32>
    %c2_52 = arith.constant 2 : index
    %c0_53 = arith.constant 0 : index
    %c0_54 = arith.constant 0 : index
    %66 = vector.load %arg2[%c2_52, %c0_53, %c0_54] : memref<3x16x8xf32, #tpu.memory_space<vmem>>, vector<1x16x8xf32>
    %67 = vector.shape_cast %66 : vector<1x16x8xf32> to vector<16x8xf32>
    %cst_55 = arith.constant dense<0.000000e+00> : vector<16x8xf32>
    %68 = tpu.matmul %67, %47, %cst_55 {dimension_numbers = #tpu.dot_dimension_numbers<[1], [0], [0], [1], [0, 0, 1, 1], [], []>, precision = #tpu.contract_precision<fp32>} : vector<16x8xf32>, vector<8x8xf32>, vector<16x8xf32> -> vector<16x8xf32>
    %69 = arith.addf %61, %68 : vector<16x8xf32>
    %c2_56 = arith.constant 2 : index
    %c0_57 = arith.constant 0 : index
    %c0_58 = arith.constant 0 : index
    %70 = vector.load %arg3[%c2_56, %c0_57, %c0_58] : memref<3x16x8xf32, #tpu.memory_space<vmem>>, vector<1x16x8xf32>
    %71 = vector.shape_cast %70 : vector<1x16x8xf32> to vector<16x8xf32>
    %cst_59 = arith.constant dense<0.000000e+00> : vector<16x8xf32>
    %72 = tpu.matmul %71, %47, %cst_59 {dimension_numbers = #tpu.dot_dimension_numbers<[1], [0], [0], [1], [0, 0, 1, 1], [], []>, precision = #tpu.contract_precision<fp32>} : vector<16x8xf32>, vector<8x8xf32>, vector<16x8xf32> -> vector<16x8xf32>
    %73 = arith.addf %65, %72 : vector<16x8xf32>
    %74 = arith.negf %73 : vector<16x8xf32>
    %75 = math.exp %74 : vector<16x8xf32>
    %cst_60 = arith.constant 1.000000e+00 : f32
    %76 = vector.broadcast %cst_60 : f32 to vector<16x8xf32>
    %77 = arith.addf %76, %75 : vector<16x8xf32>
    %78 = arith.divf %76, %77 : vector<16x8xf32>
    %79 = arith.mulf %69, %78 : vector<16x8xf32>
    %cst_61 = arith.constant 0.000000e+00 : f32
    %80 = vector.broadcast %cst_61 : f32 to vector<16x1xf32>
    %c0_62 = arith.constant 0 : index
    %c0_63 = arith.constant 0 : index
    %81 = vector.load %arg11[%c0_62, %c0_63] : memref<16x9xf32, #tpu.memory_space<vmem>>, vector<16x1xf32>
    tpu.vector_store %arg11[%c0_62, %c0_63], %80 {strides = array<i32>} : memref<16x9xf32, #tpu.memory_space<vmem>>, vector<16x1xf32>,
    %c0_64 = arith.constant 0 : index
    %c1_65 = arith.constant 1 : index
    %82 = vector.load %arg11[%c0_64, %c1_65] : memref<16x9xf32, #tpu.memory_space<vmem>>, vector<16x8xf32>
    tpu.vector_store %arg11[%c0_64, %c1_65], %79 {strides = array<i32>} : memref<16x9xf32, #tpu.memory_space<vmem>>, vector<16x8xf32>,
    %c0_66 = arith.constant 0 : index
    %c0_67 = arith.constant 0 : index
    %83 = vector.load %arg11[%c0_66, %c0_67] : memref<16x9xf32, #tpu.memory_space<vmem>>, vector<16x8xf32>
    %c0_68 = arith.constant 0 : index
    %c0_69 = arith.constant 0 : index
    %84 = vector.load %arg8[%c0_68, %c0_69] : memref<32x1xf32, #tpu.memory_space<vmem>>, vector<32x1xf32>
    %c0_70 = arith.constant 0 : index
    %c0_71 = arith.constant 0 : index
    %85 = vector.load %arg9[%c0_70, %c0_71] : memref<32x1xf32, #tpu.memory_space<vmem>>, vector<32x1xf32>
    %c0_72 = arith.constant 0 : index
    %c0_73 = arith.constant 0 : index
    %c0_74 = arith.constant 0 : index
    %86 = vector.load %arg6[%c0_72, %c0_73, %c0_74] : memref<3x32x16xf32, #tpu.memory_space<vmem>>, vector<1x32x16xf32>
    %87 = vector.shape_cast %86 : vector<1x32x16xf32> to vector<32x16xf32>
    %cst_75 = arith.constant dense<0.000000e+00> : vector<32x8xf32>
    %88 = tpu.matmul %87, %83, %cst_75 {dimension_numbers = #tpu.dot_dimension_numbers<[1], [0], [0], [1], [0, 0, 1, 1], [], []>, precision = #tpu.contract_precision<fp32>} : vector<32x16xf32>, vector<16x8xf32>, vector<32x8xf32> -> vector<32x8xf32>
    %89 = vector.broadcast %84 : vector<32x1xf32> to vector<32x8xf32>
    %90 = arith.addf %89, %88 : vector<32x8xf32>
    %c0_76 = arith.constant 0 : index
    %c0_77 = arith.constant 0 : index
    %c0_78 = arith.constant 0 : index
    %91 = vector.load %arg7[%c0_76, %c0_77, %c0_78] : memref<3x32x16xf32, #tpu.memory_space<vmem>>, vector<1x32x16xf32>
    %92 = vector.shape_cast %91 : vector<1x32x16xf32> to vector<32x16xf32>
    %cst_79 = arith.constant dense<0.000000e+00> : vector<32x8xf32>
    %93 = tpu.matmul %92, %83, %cst_79 {dimension_numbers = #tpu.dot_dimension_numbers<[1], [0], [0], [1], [0, 0, 1, 1], [], []>, precision = #tpu.contract_precision<fp32>} : vector<32x16xf32>, vector<16x8xf32>, vector<32x8xf32> -> vector<32x8xf32>
    %94 = vector.broadcast %85 : vector<32x1xf32> to vector<32x8xf32>
    %95 = arith.addf %94, %93 : vector<32x8xf32>
    %c1_80 = arith.constant 1 : index
    %c0_81 = arith.constant 0 : index
    %c0_82 = arith.constant 0 : index
    %96 = vector.load %arg6[%c1_80, %c0_81, %c0_82] : memref<3x32x16xf32, #tpu.memory_space<vmem>>, vector<1x32x16xf32>
    %97 = vector.shape_cast %96 : vector<1x32x16xf32> to vector<32x16xf32>
    %cst_83 = arith.constant dense<0.000000e+00> : vector<32x8xf32>
    %98 = tpu.matmul %97, %44, %cst_83 {dimension_numbers = #tpu.dot_dimension_numbers<[1], [0], [0], [1], [0, 0, 1, 1], [], []>, precision = #tpu.contract_precision<fp32>} : vector<32x16xf32>, vector<16x8xf32>, vector<32x8xf32> -> vector<32x8xf32>
    %99 = arith.addf %90, %98 : vector<32x8xf32>
    %c1_84 = arith.constant 1 : index
    %c0_85 = arith.constant 0 : index
    %c0_86 = arith.constant 0 : index
    %100 = vector.load %arg7[%c1_84, %c0_85, %c0_86] : memref<3x32x16xf32, #tpu.memory_space<vmem>>, vector<1x32x16xf32>
    %101 = vector.shape_cast %100 : vector<1x32x16xf32> to vector<32x16xf32>
    %cst_87 = arith.constant dense<0.000000e+00> : vector<32x8xf32>
    %102 = tpu.matmul %101, %44, %cst_87 {dimension_numbers = #tpu.dot_dimension_numbers<[1], [0], [0], [1], [0, 0, 1, 1], [], []>, precision = #tpu.contract_precision<fp32>} : vector<32x16xf32>, vector<16x8xf32>, vector<32x8xf32> -> vector<32x8xf32>
    %103 = arith.addf %95, %102 : vector<32x8xf32>
    %c2_88 = arith.constant 2 : index
    %c0_89 = arith.constant 0 : index
    %c0_90 = arith.constant 0 : index
    %104 = vector.load %arg6[%c2_88, %c0_89, %c0_90] : memref<3x32x16xf32, #tpu.memory_space<vmem>>, vector<1x32x16xf32>
    %105 = vector.shape_cast %104 : vector<1x32x16xf32> to vector<32x16xf32>
    %cst_91 = arith.constant dense<0.000000e+00> : vector<32x8xf32>
    %106 = tpu.matmul %105, %79, %cst_91 {dimension_numbers = #tpu.dot_dimension_numbers<[1], [0], [0], [1], [0, 0, 1, 1], [], []>, precision = #tpu.contract_precision<fp32>} : vector<32x16xf32>, vector<16x8xf32>, vector<32x8xf32> -> vector<32x8xf32>
    %107 = arith.addf %99, %106 : vector<32x8xf32>
    %c2_92 = arith.constant 2 : index
    %c0_93 = arith.constant 0 : index
    %c0_94 = arith.constant 0 : index
    %108 = vector.load %arg7[%c2_92, %c0_93, %c0_94] : memref<3x32x16xf32, #tpu.memory_space<vmem>>, vector<1x32x16xf32>
    %109 = vector.shape_cast %108 : vector<1x32x16xf32> to vector<32x16xf32>
    %cst_95 = arith.constant dense<0.000000e+00> : vector<32x8xf32>
    %110 = tpu.matmul %109, %79, %cst_95 {dimension_numbers = #tpu.dot_dimension_numbers<[1], [0], [0], [1], [0, 0, 1, 1], [], []>, precision = #tpu.contract_precision<fp32>} : vector<32x16xf32>, vector<16x8xf32>, vector<32x8xf32> -> vector<32x8xf32>
    %111 = arith.addf %103, %110 : vector<32x8xf32>
    %112 = arith.negf %111 : vector<32x8xf32>
    %113 = math.exp %112 : vector<32x8xf32>
    %cst_96 = arith.constant 1.000000e+00 : f32
    %114 = vector.broadcast %cst_96 : f32 to vector<32x8xf32>
    %115 = arith.addf %114, %113 : vector<32x8xf32>
    %116 = arith.divf %114, %115 : vector<32x8xf32>
    %117 = arith.mulf %107, %116 : vector<32x8xf32>
    %c0_97 = arith.constant 0 : index
    %c0_98 = arith.constant 0 : index
    %c0_99 = arith.constant 0 : index
    %118 = vector.load %arg10[%c0_97, %c0_98, %c0_99] : memref<1x32x8xf32, #tpu.memory_space<vmem>>, vector<1x32x8xf32>
    %119 = vector.shape_cast %118 : vector<1x32x8xf32> to vector<32x8xf32>
    %120 = vector.shape_cast %117 : vector<32x8xf32> to vector<1x32x8xf32>
    tpu.vector_store %arg10[%c0_97, %c0_98, %c0_99], %120 {strides = array<i32>} : memref<1x32x8xf32, #tpu.memory_space<vmem>>, vector<1x32x8xf32>,
    return
  }
  func.func @transform_0(%arg0: i32) -> (i32, i32, i32) {
    %c0_i32 = arith.constant 0 : i32
    %c0_i32_0 = arith.constant 0 : i32
    %c0_i32_1 = arith.constant 0 : i32
    return %arg0, %c0_i32, %c0_i32_0 : i32, i32, i32
  }
  func.func @transform_1(%arg0: i32) -> (i32, i32, i32) {
    %c0_i32 = arith.constant 0 : i32
    %c0_i32_0 = arith.constant 0 : i32
    %c0_i32_1 = arith.constant 0 : i32
    %c0_i32_2 = arith.constant 0 : i32
    return %c0_i32, %c0_i32_0, %c0_i32_1 : i32, i32, i32
  }
  func.func @transform_2(%arg0: i32) -> (i32, i32, i32) {
    %c0_i32 = arith.constant 0 : i32
    %c0_i32_0 = arith.constant 0 : i32
    %c0_i32_1 = arith.constant 0 : i32
    %c0_i32_2 = arith.constant 0 : i32
    return %c0_i32, %c0_i32_0, %c0_i32_1 : i32, i32, i32
  }
  func.func @transform_3(%arg0: i32) -> (i32, i32) {
    %c0_i32 = arith.constant 0 : i32
    %c0_i32_0 = arith.constant 0 : i32
    %c0_i32_1 = arith.constant 0 : i32
    return %c0_i32, %c0_i32_0 : i32, i32
  }
  func.func @transform_4(%arg0: i32) -> (i32, i32) {
    %c0_i32 = arith.constant 0 : i32
    %c0_i32_0 = arith.constant 0 : i32
    %c0_i32_1 = arith.constant 0 : i32
    return %c0_i32, %c0_i32_0 : i32, i32
  }
  func.func @transform_5(%arg0: i32) -> (i32, i32, i32) {
    %c0_i32 = arith.constant 0 : i32
    %c0_i32_0 = arith.constant 0 : i32
    %c0_i32_1 = arith.constant 0 : i32
    %c0_i32_2 = arith.constant 0 : i32
    return %c0_i32, %c0_i32_0, %c0_i32_1 : i32, i32, i32
  }
  func.func @transform_6(%arg0: i32) -> (i32, i32, i32) {
    %c0_i32 = arith.constant 0 : i32
    %c0_i32_0 = arith.constant 0 : i32
    %c0_i32_1 = arith.constant 0 : i32
    %c0_i32_2 = arith.constant 0 : i32
    return %c0_i32, %c0_i32_0, %c0_i32_1 : i32, i32, i32
  }
  func.func @transform_7(%arg0: i32) -> (i32, i32) {
    %c0_i32 = arith.constant 0 : i32
    %c0_i32_0 = arith.constant 0 : i32
    %c0_i32_1 = arith.constant 0 : i32
    return %c0_i32, %c0_i32_0 : i32, i32
  }
  func.func @transform_8(%arg0: i32) -> (i32, i32) {
    %c0_i32 = arith.constant 0 : i32
    %c0_i32_0 = arith.constant 0 : i32
    %c0_i32_1 = arith.constant 0 : i32
    return %c0_i32, %c0_i32_0 : i32, i32
  }
  func.func @transform_9(%arg0: i32) -> (i32, i32, i32) {
    %c0_i32 = arith.constant 0 : i32
    %c0_i32_0 = arith.constant 0 : i32
    %c0_i32_1 = arith.constant 0 : i32
    return %arg0, %c0_i32, %c0_i32_0 : i32, i32, i32
  }
}

</mosaic_0001>

<llo_original>
// kernel: tpu_custom_call.1
$region0: #{tpu_custom_call.1}
  #allocation0 [shape = 'u32[]', space=smem, size = 0x4, offset = 0x4, fixed_abs, tag = 'smem constant byte address 0x4 - core index']
  #allocation1 [shape = 'u32[144,128]{1,0:T(1,128)}', space=vmem, size = 0x12000, scoped, tag = 'internal scratch']
  #allocation2 [shape = 'f32[16,9]{1,0:T(8,128)}', space=vmem, size = 0x2000, scoped, tag = 'scratch operand']
  %s0 = inlined_call_operand.vmem [shape: f32[8,8,9], index: 0, kind: input, shape index: {}]
  %s1 = inlined_call_operand.vmem [shape: f32[3,16,8], index: 1, kind: input, shape index: {}]
  %s2 = inlined_call_operand.vmem [shape: f32[3,16,8], index: 2, kind: input, shape index: {}]
  %s3 = inlined_call_operand.vmem [shape: f32[16,1], index: 3, kind: input, shape index: {}]
  %s4 = inlined_call_operand.vmem [shape: f32[16,1], index: 4, kind: input, shape index: {}]
  %s5 = inlined_call_operand.vmem [shape: f32[3,32,16], index: 5, kind: input, shape index: {}]
  %s6 = inlined_call_operand.vmem [shape: f32[3,32,16], index: 6, kind: input, shape index: {}]
  %s7 = inlined_call_operand.vmem [shape: f32[32,1], index: 7, kind: input, shape index: {}]
  %s8 = inlined_call_operand.vmem [shape: f32[32,1], index: 8, kind: input, shape index: {}]
  %s9 = inlined_call_operand.vmem [shape: f32[2,32,8], index: 9, kind: output, shape index: {}]
  %s10 = sld [smem:[#allocation0]]
  $region69: #{tpu_custom_call.1} parent=0
    _
  %s12 = ssub.s32 1, %s10
  %s13 = scalar_select 0, %s12, %s10
  loop: start=0, step=1, limit=4
  $region2: #{tpu_custom_call.1} parent=0 // loop_pre_header
    _
  $region3: #{tpu_custom_call.1} parent=0 // loop_header
    %s15 = sphi 0, %s19
    %p16 = scmp.ge.s32.totalorder %s15, 4
    %s25 = sphi 0, %s27
    %s28 = sphi 0, %s25
    %s29 = sphi 0, %s28
    %s45 = sphi 0, %s29
    %s49 = sphi 0, %s49
    %s51 = sphi 0, %s49
    %s52 = sphi 0, %s51
    %s66 = sphi 0, %s52
    %s70 = sphi 0, %s70
    %s72 = sphi 0, %s70
    %s73 = sphi 0, %s72
    %s87 = sphi 0, %s73
    %s91 = sphi 0, %s91
    %s93 = sphi 0, %s91
    %s94 = sphi 0, %s93
    %s108 = sphi 0, %s94
    %s112 = sphi 0, %s112
    %s114 = sphi 0, %s112
    %s115 = sphi 0, %s114
    %s129 = sphi 0, %s115
    %s133 = sphi 0, %s133
    %s135 = sphi 0, %s133
    %s136 = sphi 0, %s135
    %s150 = sphi 0, %s136
    %s154 = sphi 0, %s154
    %s156 = sphi 0, %s154
    %s157 = sphi 0, %s156
    %s171 = sphi 0, %s157
    %s175 = sphi 0, %s175
    %s177 = sphi 0, %s175
    %s178 = sphi 0, %s177
    %s192 = sphi 0, %s178
    %s196 = sphi 0, %s196
    %s198 = sphi 0, %s196
    %s199 = sphi 0, %s198
    %s213 = sphi 0, %s199
    %s219 = sphi 0, %s221
    %s222 = sphi 0, %s219
    %s223 = sphi 0, %s222
    %s239 = sphi 0, %s223
  $region4: #{tpu_custom_call.1} parent=0 // loop_header_branch
    %18 = sbr.rel (%p16) target = $region8
  $region5: #{tpu_custom_call.1} parent=0 // loop_body
    %s20 = ssub.s32 %s15, 1
    %s21 = ssub.s32 %s15, 2
    %s22 = sadd.s32 %s15, 1
    %s23 = ssub.s32 %s15, %s22
    %p24 = scmp.eq.s32.totalorder %s23, 0
    %s26 = sadd.s32 %s25, 1
    %s27 = scalar_select %p24, %s25, %s26
    %p30 = pneg %p24
    %p31 = scmp.eq.s32.totalorder %s15, 1
    %p32 = por %p30, %p31
    %p33 = scmp.ne.s32.totalorder %s25, %s28
    %p34 = scmp.eq.s32.totalorder %s15, 0
    %p35 = por %p33, %p34
    %p36 = scmp.ne.s32.totalorder %s25, %s28
    %p37 = scmp.eq.s32.totalorder %s20, 1
    %p38 = por %p36, %p37
    %p39 = scmp.ne.s32.totalorder %s28, %s29
    %p40 = scmp.eq.s32.totalorder %s20, 0
    %p41 = por %p39, %p40
    %p42 = scmp.ne.s32.totalorder %s28, %s29
    %p43 = scmp.eq.s32.totalorder %s21, 1
    %p44 = por %p42, %p43
    %p46 = scmp.ne.s32.totalorder %s29, %s45
    %p47 = scmp.eq.s32.totalorder %s21, 0
    %p48 = por %p46, %p47
    %s50 = sadd.s32 %s49, 1
    %p53 = scmp.eq.s32.totalorder %s15, 1
    %p54 = scmp.ne.s32.totalorder %s49, %s51
    %p55 = scmp.eq.s32.totalorder %s15, 0
    %p56 = por %p54, %p55
    %p57 = scmp.ne.s32.totalorder %s49, %s51
    %p58 = scmp.eq.s32.totalorder %s20, 1
    %p59 = por %p57, %p58
    %p60 = scmp.ne.s32.totalorder %s51, %s52
    %p61 = scmp.eq.s32.totalorder %s20, 0
    %p62 = por %p60, %p61
    %p63 = scmp.ne.s32.totalorder %s51, %s52
    %p64 = scmp.eq.s32.totalorder %s21, 1
    %p65 = por %p63, %p64
    %p67 = scmp.ne.s32.totalorder %s52, %s66
    %p68 = scmp.eq.s32.totalorder %s21, 0
    %p69 = por %p67, %p68
    %s71 = sadd.s32 %s70, 1
    %p74 = scmp.eq.s32.totalorder %s15, 1
    %p75 = scmp.ne.s32.totalorder %s70, %s72
    %p76 = scmp.eq.s32.totalorder %s15, 0
    %p77 = por %p75, %p76
    %p78 = scmp.ne.s32.totalorder %s70, %s72
    %p79 = scmp.eq.s32.totalorder %s20, 1
    %p80 = por %p78, %p79
    %p81 = scmp.ne.s32.totalorder %s72, %s73
    %p82 = scmp.eq.s32.totalorder %s20, 0
    %p83 = por %p81, %p82
    %p84 = scmp.ne.s32.totalorder %s72, %s73
    %p85 = scmp.eq.s32.totalorder %s21, 1
    %p86 = por %p84, %p85
    %p88 = scmp.ne.s32.totalorder %s73, %s87
    %p89 = scmp.eq.s32.totalorder %s21, 0
    %p90 = por %p88, %p89
    %s92 = sadd.s32 %s91, 1
    %p95 = scmp.eq.s32.totalorder %s15, 1
    %p96 = scmp.ne.s32.totalorder %s91, %s93
    %p97 = scmp.eq.s32.totalorder %s15, 0
    %p98 = por %p96, %p97
    %p99 = scmp.ne.s32.totalorder %s91, %s93
    %p100 = scmp.eq.s32.totalorder %s20, 1
    %p101 = por %p99, %p100
    %p102 = scmp.ne.s32.totalorder %s93, %s94
    %p103 = scmp.eq.s32.totalorder %s20, 0
    %p104 = por %p102, %p103
    %p105 = scmp.ne.s32.totalorder %s93, %s94
    %p106 = scmp.eq.s32.totalorder %s21, 1
    %p107 = por %p105, %p106
    %p109 = scmp.ne.s32.totalorder %s94, %s108
    %p110 = scmp.eq.s32.totalorder %s21, 0
    %p111 = por %p109, %p110
    %s113 = sadd.s32 %s112, 1
    %p116 = scmp.eq.s32.totalorder %s15, 1
    %p117 = scmp.ne.s32.totalorder %s112, %s114
    %p118 = scmp.eq.s32.totalorder %s15, 0
    %p119 = por %p117, %p118
    %p120 = scmp.ne.s32.totalorder %s112, %s114
    %p121 = scmp.eq.s32.totalorder %s20, 1
    %p122 = por %p120, %p121
    %p123 = scmp.ne.s32.totalorder %s114, %s115
    %p124 = scmp.eq.s32.totalorder %s20, 0
    %p125 = por %p123, %p124
    %p126 = scmp.ne.s32.totalorder %s114, %s115
    %p127 = scmp.eq.s32.totalorder %s21, 1
    %p128 = por %p126, %p127
    %p130 = scmp.ne.s32.totalorder %s115, %s129
    %p131 = scmp.eq.s32.totalorder %s21, 0
    %p132 = por %p130, %p131
    %s134 = sadd.s32 %s133, 1
    %p137 = scmp.eq.s32.totalorder %s15, 1
    %p138 = scmp.ne.s32.totalorder %s133, %s135
    %p139 = scmp.eq.s32.totalorder %s15, 0
    %p140 = por %p138, %p139
    %p141 = scmp.ne.s32.totalorder %s133, %s135
    %p142 = scmp.eq.s32.totalorder %s20, 1
    %p143 = por %p141, %p142
    %p144 = scmp.ne.s32.totalorder %s135, %s136
    %p145 = scmp.eq.s32.totalorder %s20, 0
    %p146 = por %p144, %p145
    %p147 = scmp.ne.s32.totalorder %s135, %s136
    %p148 = scmp.eq.s32.totalorder %s21, 1
    %p149 = por %p147, %p148
    %p151 = scmp.ne.s32.totalorder %s136, %s150
    %p152 = scmp.eq.s32.totalorder %s21, 0
    %p153 = por %p151, %p152
    %s155 = sadd.s32 %s154, 1
    %p158 = scmp.eq.s32.totalorder %s15, 1
    %p159 = scmp.ne.s32.totalorder %s154, %s156
    %p160 = scmp.eq.s32.totalorder %s15, 0
    %p161 = por %p159, %p160
    %p162 = scmp.ne.s32.totalorder %s154, %s156
    %p163 = scmp.eq.s32.totalorder %s20, 1
    %p164 = por %p162, %p163
    %p165 = scmp.ne.s32.totalorder %s156, %s157
    %p166 = scmp.eq.s32.totalorder %s20, 0
    %p167 = por %p165, %p166
    %p168 = scmp.ne.s32.totalorder %s156, %s157
    %p169 = scmp.eq.s32.totalorder %s21, 1
    %p170 = por %p168, %p169
    %p172 = scmp.ne.s32.totalorder %s157, %s171
    %p173 = scmp.eq.s32.totalorder %s21, 0
    %p174 = por %p172, %p173
    %s176 = sadd.s32 %s175, 1
    %p179 = scmp.eq.s32.totalorder %s15, 1
    %p180 = scmp.ne.s32.totalorder %s175, %s177
    %p181 = scmp.eq.s32.totalorder %s15, 0
    %p182 = por %p180, %p181
    %p183 = scmp.ne.s32.totalorder %s175, %s177
    %p184 = scmp.eq.s32.totalorder %s20, 1
    %p185 = por %p183, %p184
    %p186 = scmp.ne.s32.totalorder %s177, %s178
    %p187 = scmp.eq.s32.totalorder %s20, 0
    %p188 = por %p186, %p187
    %p189 = scmp.ne.s32.totalorder %s177, %s178
    %p190 = scmp.eq.s32.totalorder %s21, 1
    %p191 = por %p189, %p190
    %p193 = scmp.ne.s32.totalorder %s178, %s192
    %p194 = scmp.eq.s32.totalorder %s21, 0
    %p195 = por %p193, %p194
    %s197 = sadd.s32 %s196, 1
    %p200 = scmp.eq.s32.totalorder %s15, 1
    %p201 = scmp.ne.s32.totalorder %s196, %s198
    %p202 = scmp.eq.s32.totalorder %s15, 0
    %p203 = por %p201, %p202
    %p204 = scmp.ne.s32.totalorder %s196, %s198
    %p205 = scmp.eq.s32.totalorder %s20, 1
    %p206 = por %p204, %p205
    %p207 = scmp.ne.s32.totalorder %s198, %s199
    %p208 = scmp.eq.s32.totalorder %s20, 0
    %p209 = por %p207, %p208
    %p210 = scmp.ne.s32.totalorder %s198, %s199
    %p211 = scmp.eq.s32.totalorder %s21, 1
    %p212 = por %p210, %p211
    %p214 = scmp.ne.s32.totalorder %s199, %s213
    %p215 = scmp.eq.s32.totalorder %s21, 0
    %p216 = por %p214, %p215
    %s217 = ssub.s32 %s15, %s22
    %p218 = scmp.eq.s32.totalorder %s217, 0
    %s220 = sadd.s32 %s219, 1
    %s221 = scalar_select %p218, %s219, %s220
    %p224 = pneg %p218
    %p225 = scmp.eq.s32.totalorder %s15, 1
    %p226 = por %p224, %p225
    %p227 = scmp.ne.s32.totalorder %s219, %s222
    %p228 = scmp.eq.s32.totalorder %s15, 0
    %p229 = por %p227, %p228
    %p230 = scmp.ne.s32.totalorder %s219, %s222
    %p231 = scmp.eq.s32.totalorder %s20, 1
    %p232 = por %p230, %p231
    %p233 = scmp.ne.s32.totalorder %s222, %s223
    %p234 = scmp.eq.s32.totalorder %s20, 0
    %p235 = por %p233, %p234
    %p236 = scmp.ne.s32.totalorder %s222, %s223
    %p237 = scmp.eq.s32.totalorder %s21, 1
    %p238 = por %p236, %p237
    %p240 = scmp.ne.s32.totalorder %s223, %s239
    %p241 = scmp.eq.s32.totalorder %s21, 0
    %p242 = por %p240, %p241
    %p243 = scmp.le.s32.totalorder 1, %s15
    %p244 = scmp.lt.s32.totalorder %s15, 3
    %p245 = pnand %p243, %p244
    %p246 = pneg %p245
    // Predicated region
    $region9: #{tpu_custom_call.1} parent=5 // pred_check
      _
    $region10: #{tpu_custom_call.1} parent=5 // pred_check_branch
      %248 = sbr.rel (%p245) target = $region12
    $region11: #{tpu_custom_call.1} parent=5 // pred_region
      %s249 = ssub.s32 %s15, 1
      // Predicated region
      $region13: #{tpu_custom_call.1} parent=11 // pred_check
        %p250 = pneg %p62
      $region14: #{tpu_custom_call.1} parent=11 // pred_check_branch
        %252 = sbr.rel (%p250) target = $region16
      $region15: #{tpu_custom_call.1} parent=11 // pred_region
        _
      $region16: #{tpu_custom_call.1} parent=11 // pred_fallthru
        _
      // Predicated region
      $region17: #{tpu_custom_call.1} parent=11 // pred_check
        %p253 = pneg %p83
      $region18: #{tpu_custom_call.1} parent=11 // pred_check_branch
        %255 = sbr.rel (%p253) target = $region20
      $region19: #{tpu_custom_call.1} parent=11 // pred_region
        _
      $region20: #{tpu_custom_call.1} parent=11 // pred_fallthru
        _
      // Predicated region
      $region21: #{tpu_custom_call.1} parent=11 // pred_check
        %p256 = pneg %p104
      $region22: #{tpu_custom_call.1} parent=11 // pred_check_branch
        %258 = sbr.rel (%p256) target = $region24
      $region23: #{tpu_custom_call.1} parent=11 // pred_region
        _
      $region24: #{tpu_custom_call.1} parent=11 // pred_fallthru
        _
      // Predicated region
      $region25: #{tpu_custom_call.1} parent=11 // pred_check
        %p259 = pneg %p125
      $region26: #{tpu_custom_call.1} parent=11 // pred_check_branch
        %261 = sbr.rel (%p259) target = $region28
      $region27: #{tpu_custom_call.1} parent=11 // pred_region
        _
      $region28: #{tpu_custom_call.1} parent=11 // pred_fallthru
        _
      // Predicated region
      $region29: #{tpu_custom_call.1} parent=11 // pred_check
        %p262 = pneg %p146
      $region30: #{tpu_custom_call.1} parent=11 // pred_check_branch
        %264 = sbr.rel (%p262) target = $region32
      $region31: #{tpu_custom_call.1} parent=11 // pred_region
        _
      $region32: #{tpu_custom_call.1} parent=11 // pred_fallthru
        _
      // Predicated region
      $region33: #{tpu_custom_call.1} parent=11 // pred_check
        %p265 = pneg %p167
      $region34: #{tpu_custom_call.1} parent=11 // pred_check_branch
        %267 = sbr.rel (%p265) target = $region36
      $region35: #{tpu_custom_call.1} parent=11 // pred_region
        _
      $region36: #{tpu_custom_call.1} parent=11 // pred_fallthru
        _
      // Predicated region
      $region37: #{tpu_custom_call.1} parent=11 // pred_check
        %p268 = pneg %p188
      $region38: #{tpu_custom_call.1} parent=11 // pred_check_branch
        %270 = sbr.rel (%p268) target = $region40
      $region39: #{tpu_custom_call.1} parent=11 // pred_region
        _
      $region40: #{tpu_custom_call.1} parent=11 // pred_fallthru
        _
      // Predicated region
      $region41: #{tpu_custom_call.1} parent=11 // pred_check
        %p271 = pneg %p209
      $region42: #{tpu_custom_call.1} parent=11 // pred_check_branch
        %273 = sbr.rel (%p271) target = $region44
      $region43: #{tpu_custom_call.1} parent=11 // pred_region
        _
      $region44: #{tpu_custom_call.1} parent=11 // pred_fallthru
        _
    $region12: #{tpu_custom_call.1} parent=5 // pred_fallthru
      _
    %p274 = scmp.lt.s32.totalorder %s15, 2
    // Predicated region
    $region45: #{tpu_custom_call.1} parent=5 // pred_check
      %p275 = pneg %p274
    $region46: #{tpu_custom_call.1} parent=5 // pred_check_branch
      %277 = sbr.rel (%p275) target = $region48
    $region47: #{tpu_custom_call.1} parent=5 // pred_region
      // Predicated region
      $region49: #{tpu_custom_call.1} parent=47 // pred_check
        %p278 = pneg %p35
      $region50: #{tpu_custom_call.1} parent=47 // pred_check_branch
        %280 = sbr.rel (%p278) target = $region52
      $region51: #{tpu_custom_call.1} parent=47 // pred_region
        %s281 = smul.u32 4, %s15
        %p282 = scmp.lt.s32.totalorder %s281, 7
        %s283 = scalar_select %p282, %s281, 7
        %s284 = smul.addr %s283, 8
        %s285 = scalar_lea.vmem %s0, %s284
        %s286 = smul.u32 4, %s15
      $region52: #{tpu_custom_call.1} parent=47 // pred_fallthru
        _
    $region48: #{tpu_custom_call.1} parent=5 // pred_fallthru
      _
    %p287 = scmp.le.s32.totalorder 1, %s15
    %p288 = scmp.lt.s32.totalorder %s15, 3
    %p289 = pnand %p287, %p288
    %p290 = pneg %p289
    // Predicated region
    $region53: #{tpu_custom_call.1} parent=5 // pred_check
      _
    $region54: #{tpu_custom_call.1} parent=5 // pred_check_branch
      %292 = sbr.rel (%p289) target = $region56
    $region55: #{tpu_custom_call.1} parent=5 // pred_region
      %s293 = ssub.s32 %s15, 1
      %s294 = smul.u32 4, %s20
      %p295 = scmp.lt.s32.totalorder %s294, 7
      %s296 = scalar_select %p295, %s294, 7
      %s297 = smul.addr %s296, 8
      %s298 = scalar_lea.vmem %s0, %s297
      %p299 = pneg %p41
      %p300 = pneg %p38
      %p301 = pneg %p62
      %p302 = pneg %p59
      %p303 = pneg %p83
      %p304 = pneg %p80
      %p305 = pneg %p104
      %p306 = pneg %p101
      %p307 = pneg %p125
      %p308 = pneg %p122
      %p309 = pneg %p146
      %p310 = pneg %p143
      %p311 = pneg %p167
      %p312 = pneg %p164
      %p313 = pneg %p188
      %p314 = pneg %p185
      %p315 = pneg %p209
      %p316 = pneg %p206
      %p317 = pneg %p235
      %p318 = pneg %p232
      %p319 = scmp.lt.s32.totalorder %s20, 1
      %s320 = scalar_select %p319, %s20, 1
      %s321 = smul.addr %s320, 4
      %s322 = smul.addr %s321, 8
      %s323 = scalar_lea.vmem %s9, %s322
      %s324 = smul.u32 4, %s20
      %p325 = scmp.lt.s32.totalorder %s324, 7
      %s326 = scalar_select %p325, %s324, 7
      %s327 = smul.addr %s326, 8
      %s328 = scalar_lea.vmem %s0, %s327
      %s329 = smul.u32 4, %s20
      %p330 = scmp.lt.s32.totalorder %s20, 1
      %s331 = scalar_select %p330, %s20, 1
      %s332 = smul.addr %s331, 4
      %s333 = smul.addr %s332, 8
      %s334 = scalar_lea.vmem %s9, %s333
      %v335 = vld [vmem:[%s328] sm:$0xff]
      %s336 = scalar_lea.vmem %s328, 8
      %v337 = vld [vmem:[%s336] sm:$0xff]
      %s338 = scalar_lea.vmem %s328, 16
      %v339 = vld [vmem:[%s338] sm:$0xff]
      %s340 = scalar_lea.vmem %s328, 24
      %v341 = vld [vmem:[%s340] sm:$0xff]
      %v342 = vld [vmem:[%s3] sm:$0xff]
      %v343 = vld [vmem:[%s3 + $0x8] sm:$0xff]
      %v344 = vld [vmem:[%s4] sm:$0xff]
      %v345 = vld [vmem:[%s4 + $0x8] sm:$0xff]
      %v346 = vld [vmem:[%s1] sm:$0xff]
      %v347 = vld [vmem:[%s1 + $0x8] sm:$0xff]
      %vm348 = vcmask 64512
      %v350 = vsel %vm348, %v346, 0
      %v353 = vsel %vm348, %v347, 0
      %355 = vmatprep.subr.mxu0 0.0
      %v356 = vand.u32 %v335, 4294901760
      %357 = vmatpush1.msra.mxu0 %v356
      %358 = vmatprep.subr.mxu0 0.0
      %359 = vmatpush1.msra.mxu0 0.0
      %360 = vmatprep.subr.mxu0 0.0
      %361 = vmatpush1.msra.mxu0 0.0
      %362 = vmatprep.subr.mxu0 0.0
      %363 = vmatpush1.msra.mxu0 0.0
      %364 = vmatprep.subr.mxu0 0.0
      %365 = vmatpush1.msra.mxu0 0.0
      %366 = vmatprep.subr.mxu0 0.0
      %367 = vmatpush1.msra.mxu0 0.0
      %368 = vmatprep.subr.mxu0 0.0
      %369 = vmatpush1.msra.mxu0 0.0
      %370 = vmatprep.subr.mxu0 0.0
      %371 = vmatpush1.msra.mxu0 0.0
      %372 = vmatprep.subr.mxu0 0.0
      %373 = vmatpush1.msra.mxu0 0.0
      %374 = vmatprep.subr.mxu0 0.0
      %375 = vmatpush1.msra.mxu0 0.0
      %376 = vmatprep.subr.mxu0 0.0
      %377 = vmatpush1.msra.mxu0 0.0
      %378 = vmatprep.subr.mxu0 0.0
      %379 = vmatpush1.msra.mxu0 0.0
      %380 = vmatprep.subr.mxu0 0.0
      %381 = vmatpush1.msra.mxu0 0.0
      %382 = vmatprep.subr.mxu0 0.0
      %383 = vmatpush1.msra.mxu0 0.0
      %384 = vmatprep.subr.mxu0 0.0
      %385 = vmatpush1.msra.mxu0 0.0
      %386 = vmatprep.subr.mxu0 0.0
      %387 = vmatpush1.msra.mxu0 0.0
      %388 = vmatprep.subr.mxu0 0.0
      %389 = vmatpush1.msra.mxu0 0.0
      %390 = vmatprep.subr.mxu0 0.0
      %391 = vmatpush1.msra.mxu0 0.0
      %392 = vmatprep.subr.mxu0 0.0
      %393 = vmatpush1.msra.mxu0 0.0
      %394 = vmatprep.subr.mxu0 0.0
      %395 = vmatpush1.msra.mxu0 0.0
      %396 = vmatprep.subr.mxu0 0.0
      %397 = vmatpush1.msra.mxu0 0.0
      %398 = vmatprep.subr.mxu0 0.0
      %399 = vmatpush1.msra.mxu0 0.0
      %400 = vmatprep.subr.mxu0 0.0
      %401 = vmatpush1.msra.mxu0 0.0
      %402 = vmatprep.subr.mxu0 0.0
      %403 = vmatpush1.msra.mxu0 0.0
      %404 = vmatprep.subr.mxu0 0.0
      %405 = vmatpush1.msra.mxu0 0.0
      %406 = vmatprep.subr.mxu0 0.0
      %407 = vmatpush1.msra.mxu0 0.0
      %408 = vmatprep.subr.mxu0 0.0
      %409 = vmatpush1.msra.mxu0 0.0
      %410 = vmatprep.subr.mxu0 0.0
      %411 = vmatpush1.msra.mxu0 0.0
      %412 = vmatprep.subr.mxu0 0.0
      %413 = vmatpush1.msra.mxu0 0.0
      %414 = vmatprep.subr.mxu0 0.0
      %415 = vmatpush1.msra.mxu0 0.0
      %416 = vmatprep.subr.mxu0 0.0
      %417 = vmatpush1.msra.mxu0 0.0
      %418 = vmatprep.subr.mxu0 0.0
      %419 = vmatpush1.msra.mxu0 0.0
      %420 = vmatprep.mubr.f32.mxu0 0.0
      %v421 = vand.u32 %v350, 4294901760
      %v422 = vsub.f32 %v350, %v421
      %v423 = vand.u32 %v422, 4294901760
      %v424 = vsub.f32 %v422, %v423
      %v425 = vand.u32 %v424, 4294901760
      %426 = vmatmul.mubr.f32.gmra.mrb[0].mxu0 %v425
      %v427 = vpop.f32.mrb[0].mxu0
      %v428 = vadd.f32 0.0, %v427
      %v429 = vpop.f32.mrb[0].mxu0
      %430 = vmatprep.mubr.f32.mxu0 0.0
      %v431 = vand.u32 %v353, 4294901760
      %v432 = vsub.f32 %v353, %v431
      %v433 = vand.u32 %v432, 4294901760
      %v434 = vsub.f32 %v432, %v433
      %v435 = vand.u32 %v434, 4294901760
      %436 = vmatmul.mubr.f32.gmra.mrb[0].mxu0 %v435
      %v437 = vpop.f32.mrb[0].mxu0
      %v438 = vadd.f32 0.0, %v437
      %v439 = vpop.f32.mrb[0].mxu0
      %440 = vdwg.mxu0
      %441 = vmatprep.subr.mxu0 0.0
      %v442 = vand.u32 %v335, 4294901760
      %v443 = vsub.f32 %v335, %v442
      %v444 = vand.u32 %v443, 4294901760
      %v445 = vsub.f32 %v443, %v444
      %v446 = vand.u32 %v445, 4294901760
      %447 = vmatpush1.msra.mxu0 %v446
      %448 = vmatprep.subr.mxu0 0.0
      %449 = vmatpush1.msra.mxu0 0.0
      %450 = vmatprep.subr.mxu0 0.0
      %451 = vmatpush1.msra.mxu0 0.0
      %452 = vmatprep.subr.mxu0 0.0
      %453 = vmatpush1.msra.mxu0 0.0
      %454 = vmatprep.subr.mxu0 0.0
      %455 = vmatpush1.msra.mxu0 0.0
      %456 = vmatprep.subr.mxu0 0.0
      %457 = vmatpush1.msra.mxu0 0.0
      %458 = vmatprep.subr.mxu0 0.0
      %459 = vmatpush1.msra.mxu0 0.0
      %460 = vmatprep.subr.mxu0 0.0
      %461 = vmatpush1.msra.mxu0 0.0
      %462 = vmatprep.subr.mxu0 0.0
      %463 = vmatpush1.msra.mxu0 0.0
      %464 = vmatprep.subr.mxu0 0.0
      %465 = vmatpush1.msra.mxu0 0.0
      %466 = vmatprep.subr.mxu0 0.0
      %467 = vmatpush1.msra.mxu0 0.0
      %468 = vmatprep.subr.mxu0 0.0
      %469 = vmatpush1.msra.mxu0 0.0
      %470 = vmatprep.subr.mxu0 0.0
      %471 = vmatpush1.msra.mxu0 0.0
      %472 = vmatprep.subr.mxu0 0.0
      %473 = vmatpush1.msra.mxu0 0.0
      %474 = vmatprep.subr.mxu0 0.0
      %475 = vmatpush1.msra.mxu0 0.0
      %476 = vmatprep.subr.mxu0 0.0
      %477 = vmatpush1.msra.mxu0 0.0
      %478 = vmatprep.subr.mxu0 0.0
      %479 = vmatpush1.msra.mxu0 0.0
      %480 = vmatprep.subr.mxu0 0.0
      %481 = vmatpush1.msra.mxu0 0.0
      %482 = vmatprep.subr.mxu0 0.0
      %483 = vmatpush1.msra.mxu0 0.0
      %484 = vmatprep.subr.mxu0 0.0
      %485 = vmatpush1.msra.mxu0 0.0
      %486 = vmatprep.subr.mxu0 0.0
      %487 = vmatpush1.msra.mxu0 0.0
      %488 = vmatprep.subr.mxu0 0.0
      %489 = vmatpush1.msra.mxu0 0.0
      %490 = vmatprep.subr.mxu0 0.0
      %491 = vmatpush1.msra.mxu0 0.0
      %492 = vmatprep.subr.mxu0 0.0
      %493 = vmatpush1.msra.mxu0 0.0
      %494 = vmatprep.subr.mxu0 0.0
      %495 = vmatpush1.msra.mxu0 0.0
      %496 = vmatprep.subr.mxu0 0.0
      %497 = vmatpush1.msra.mxu0 0.0
      %498 = vmatprep.subr.mxu0 0.0
      %499 = vmatpush1.msra.mxu0 0.0
      %500 = vmatprep.subr.mxu0 0.0
      %501 = vmatpush1.msra.mxu0 0.0
      %502 = vmatprep.subr.mxu0 0.0
      %503 = vmatpush1.msra.mxu0 0.0
      %504 = vmatprep.subr.mxu0 0.0
      %505 = vmatpush1.msra.mxu0 0.0
      %506 = vmatprep.subr.mxu0 0.0
      %507 = vmatpush1.msra.mxu0 0.0
      %508 = vmatprep.subr.mxu0 0.0
      %509 = vmatpush1.msra.mxu0 0.0
      %510 = vmatprep.mubr.f32.mxu0 0.0
      %v511 = vand.u32 %v350, 4294901760
      %512 = vmatmul.mubr.f32.gmra.mrb[0].mxu0 %v511
      %v513 = vpop.f32.mrb[0].mxu0
      %v514 = vadd.f32 %v428, %v513
      %v515 = vpop.f32.mrb[0].mxu0
      %516 = vmatprep.mubr.f32.mxu0 0.0
      %v517 = vand.u32 %v353, 4294901760
      %518 = vmatmul.mubr.f32.gmra.mrb[0].mxu0 %v517
      %v519 = vpop.f32.mrb[0].mxu0
      %v520 = vadd.f32 %v438, %v519
      %v521 = vpop.f32.mrb[0].mxu0
      %522 = vdwg.mxu0
      %523 = vmatprep.subr.mxu0 0.0
      %v524 = vand.u32 %v335, 4294901760
      %v525 = vsub.f32 %v335, %v524
      %526 = vmatpush1.msra.mxu0 %v525
      %527 = vmatprep.subr.mxu0 0.0
      %528 = vmatpush1.msra.mxu0 0.0
      %529 = vmatprep.subr.mxu0 0.0
      %530 = vmatpush1.msra.mxu0 0.0
      %531 = vmatprep.subr.mxu0 0.0
      %532 = vmatpush1.msra.mxu0 0.0
      %533 = vmatprep.subr.mxu0 0.0
      %534 = vmatpush1.msra.mxu0 0.0
      %535 = vmatprep.subr.mxu0 0.0
      %536 = vmatpush1.msra.mxu0 0.0
      %537 = vmatprep.subr.mxu0 0.0
      %538 = vmatpush1.msra.mxu0 0.0
      %539 = vmatprep.subr.mxu0 0.0
      %540 = vmatpush1.msra.mxu0 0.0
      %541 = vmatprep.subr.mxu0 0.0
      %542 = vmatpush1.msra.mxu0 0.0
      %543 = vmatprep.subr.mxu0 0.0
      %544 = vmatpush1.msra.mxu0 0.0
      %545 = vmatprep.subr.mxu0 0.0
      %546 = vmatpush1.msra.mxu0 0.0
      %547 = vmatprep.subr.mxu0 0.0
      %548 = vmatpush1.msra.mxu0 0.0
      %549 = vmatprep.subr.mxu0 0.0
      %550 = vmatpush1.msra.mxu0 0.0
      %551 = vmatprep.subr.mxu0 0.0
      %552 = vmatpush1.msra.mxu0 0.0
      %553 = vmatprep.subr.mxu0 0.0
      %554 = vmatpush1.msra.mxu0 0.0
      %555 = vmatprep.subr.mxu0 0.0
      %556 = vmatpush1.msra.mxu0 0.0
      %557 = vmatprep.subr.mxu0 0.0
      %558 = vmatpush1.msra.mxu0 0.0
      %559 = vmatprep.subr.mxu0 0.0
      %560 = vmatpush1.msra.mxu0 0.0
      %561 = vmatprep.subr.mxu0 0.0
      %562 = vmatpush1.msra.mxu0 0.0
      %563 = vmatprep.subr.mxu0 0.0
      %564 = vmatpush1.msra.mxu0 0.0
      %565 = vmatprep.subr.mxu0 0.0
      %566 = vmatpush1.msra.mxu0 0.0
      %567 = vmatprep.subr.mxu0 0.0
      %568 = vmatpush1.msra.mxu0 0.0
      %569 = vmatprep.subr.mxu0 0.0
      %570 = vmatpush1.msra.mxu0 0.0
      %571 = vmatprep.subr.mxu0 0.0
      %572 = vmatpush1.msra.mxu0 0.0
      %573 = vmatprep.subr.mxu0 0.0
      %574 = vmatpush1.msra.mxu0 0.0
      %575 = vmatprep.subr.mxu0 0.0
      %576 = vmatpush1.msra.mxu0 0.0
      %577 = vmatprep.subr.mxu0 0.0
      %578 = vmatpush1.msra.mxu0 0.0
      %579 = vmatprep.subr.mxu0 0.0
      %580 = vmatpush1.msra.mxu0 0.0
      %581 = vmatprep.subr.mxu0 0.0
      %582 = vmatpush1.msra.mxu0 0.0
      %583 = vmatprep.subr.mxu0 0.0
      %584 = vmatpush1.msra.mxu0 0.0
      %585 = vmatprep.subr.mxu0 0.0
      %586 = vmatpush1.msra.mxu0 0.0
      %587 = vmatprep.subr.mxu0 0.0
      %588 = vmatpush1.msra.mxu0 0.0
      %589 = vmatprep.mubr.f32.mxu0 0.0
      %v590 = vand.u32 %v350, 4294901760
      %v591 = vsub.f32 %v350, %v590
      %592 = vmatmul.mubr.f32.gmra.mrb[0].mxu0 %v591
      %v593 = vpop.f32.mrb[0].mxu0
      %v594 = vadd.f32 %v514, %v593
      %v595 = vpop.f32.mrb[0].mxu0
      %596 = vmatprep.mubr.f32.mxu0 0.0
      %v597 = vand.u32 %v353, 4294901760
      %v598 = vsub.f32 %v353, %v597
      %599 = vmatmul.mubr.f32.gmra.mrb[0].mxu0 %v598
      %v600 = vpop.f32.mrb[0].mxu0
      %v601 = vadd.f32 %v520, %v600
      %v602 = vpop.f32.mrb[0].mxu0
      %603 = vdwg.mxu0
      %604 = vmatprep.subr.mxu0 0.0
      %v605 = vand.u32 %v335, 4294901760
      %606 = vmatpush1.msra.mxu0 %v605
      %607 = vmatprep.subr.mxu0 0.0
      %608 = vmatpush1.msra.mxu0 0.0
      %609 = vmatprep.subr.mxu0 0.0
      %610 = vmatpush1.msra.mxu0 0.0
      %611 = vmatprep.subr.mxu0 0.0
      %612 = vmatpush1.msra.mxu0 0.0
      %613 = vmatprep.subr.mxu0 0.0
      %614 = vmatpush1.msra.mxu0 0.0
      %615 = vmatprep.subr.mxu0 0.0
      %616 = vmatpush1.msra.mxu0 0.0
      %617 = vmatprep.subr.mxu0 0.0
      %618 = vmatpush1.msra.mxu0 0.0
      %619 = vmatprep.subr.mxu0 0.0
      %620 = vmatpush1.msra.mxu0 0.0
      %621 = vmatprep.subr.mxu0 0.0
      %622 = vmatpush1.msra.mxu0 0.0
      %623 = vmatprep.subr.mxu0 0.0
      %624 = vmatpush1.msra.mxu0 0.0
      %625 = vmatprep.subr.mxu0 0.0
      %626 = vmatpush1.msra.mxu0 0.0
      %627 = vmatprep.subr.mxu0 0.0
      %628 = vmatpush1.msra.mxu0 0.0
      %629 = vmatprep.subr.mxu0 0.0
      %630 = vmatpush1.msra.mxu0 0.0
      %631 = vmatprep.subr.mxu0 0.0
      %632 = vmatpush1.msra.mxu0 0.0
      %633 = vmatprep.subr.mxu0 0.0
      %634 = vmatpush1.msra.mxu0 0.0
      %635 = vmatprep.subr.mxu0 0.0
      %636 = vmatpush1.msra.mxu0 0.0
      %637 = vmatprep.subr.mxu0 0.0
      %638 = vmatpush1.msra.mxu0 0.0
      %639 = vmatprep.subr.mxu0 0.0
      %640 = vmatpush1.msra.mxu0 0.0
      %641 = vmatprep.subr.mxu0 0.0
      %642 = vmatpush1.msra.mxu0 0.0
      %643 = vmatprep.subr.mxu0 0.0
      %644 = vmatpush1.msra.mxu0 0.0
      %645 = vmatprep.subr.mxu0 0.0
      %646 = vmatpush1.msra.mxu0 0.0
      %647 = vmatprep.subr.mxu0 0.0
      %648 = vmatpush1.msra.mxu0 0.0
      %649 = vmatprep.subr.mxu0 0.0
      %650 = vmatpush1.msra.mxu0 0.0
      %651 = vmatprep.subr.mxu0 0.0
      %652 = vmatpush1.msra.mxu0 0.0
      %653 = vmatprep.subr.mxu0 0.0
      %654 = vmatpush1.msra.mxu0 0.0
      %655 = vmatprep.subr.mxu0 0.0
      %656 = vmatpush1.msra.mxu0 0.0
      %657 = vmatprep.subr.mxu0 0.0
      %658 = vmatpush1.msra.mxu0 0.0
      %659 = vmatprep.subr.mxu0 0.0
      %660 = vmatpush1.msra.mxu0 0.0
      %661 = vmatprep.subr.mxu0 0.0
      %662 = vmatpush1.msra.mxu0 0.0
      %663 = vmatprep.subr.mxu0 0.0
      %664 = vmatpush1.msra.mxu0 0.0
      %665 = vmatprep.subr.mxu0 0.0
      %666 = vmatpush1.msra.mxu0 0.0
      %667 = vmatprep.subr.mxu0 0.0
      %668 = vmatpush1.msra.mxu0 0.0
      %669 = vmatprep.mubr.f32.mxu0 0.0
      %v670 = vand.u32 %v350, 4294901760
      %v671 = vsub.f32 %v350, %v670
      %v672 = vand.u32 %v671, 4294901760
      %673 = vmatmul.mubr.f32.gmra.mrb[0].mxu0 %v672
      %v674 = vpop.f32.mrb[0].mxu0
      %v675 = vadd.f32 %v594, %v674
      %v676 = vpop.f32.mrb[0].mxu0
      %677 = vmatprep.mubr.f32.mxu0 0.0
      %v678 = vand.u32 %v353, 4294901760
      %v679 = vsub.f32 %v353, %v678
      %v680 = vand.u32 %v679, 4294901760
      %681 = vmatmul.mubr.f32.gmra.mrb[0].mxu0 %v680
      %v682 = vpop.f32.mrb[0].mxu0
      %v683 = vadd.f32 %v601, %v682
      %v684 = vpop.f32.mrb[0].mxu0
      %685 = vdwg.mxu0
      %686 = vmatprep.subr.mxu0 0.0
      %v687 = vand.u32 %v335, 4294901760
      %v688 = vsub.f32 %v335, %v687
      %v689 = vand.u32 %v688, 4294901760
      %690 = vmatpush1.msra.mxu0 %v689
      %691 = vmatprep.subr.mxu0 0.0
      %692 = vmatpush1.msra.mxu0 0.0
      %693 = vmatprep.subr.mxu0 0.0
      %694 = vmatpush1.msra.mxu0 0.0
      %695 = vmatprep.subr.mxu0 0.0
      %696 = vmatpush1.msra.mxu0 0.0
      %697 = vmatprep.subr.mxu0 0.0
      %698 = vmatpush1.msra.mxu0 0.0
      %699 = vmatprep.subr.mxu0 0.0
      %700 = vmatpush1.msra.mxu0 0.0
      %701 = vmatprep.subr.mxu0 0.0
      %702 = vmatpush1.msra.mxu0 0.0
      %703 = vmatprep.subr.mxu0 0.0
      %704 = vmatpush1.msra.mxu0 0.0
      %705 = vmatprep.subr.mxu0 0.0
      %706 = vmatpush1.msra.mxu0 0.0
      %707 = vmatprep.subr.mxu0 0.0
      %708 = vmatpush1.msra.mxu0 0.0
      %709 = vmatprep.subr.mxu0 0.0
      %710 = vmatpush1.msra.mxu0 0.0
      %711 = vmatprep.subr.mxu0 0.0
      %712 = vmatpush1.msra.mxu0 0.0
      %713 = vmatprep.subr.mxu0 0.0
      %714 = vmatpush1.msra.mxu0 0.0
      %715 = vmatprep.subr.mxu0 0.0
      %716 = vmatpush1.msra.mxu0 0.0
      %717 = vmatprep.subr.mxu0 0.0
      %718 = vmatpush1.msra.mxu0 0.0
      %719 = vmatprep.subr.mxu0 0.0
      %720 = vmatpush1.msra.mxu0 0.0
      %721 = vmatprep.subr.mxu0 0.0
      %722 = vmatpush1.msra.mxu0 0.0
      %723 = vmatprep.subr.mxu0 0.0
      %724 = vmatpush1.msra.mxu0 0.0
      %725 = vmatprep.subr.mxu0 0.0
      %726 = vmatpush1.msra.mxu0 0.0
      %727 = vmatprep.subr.mxu0 0.0
      %728 = vmatpush1.msra.mxu0 0.0
      %729 = vmatprep.subr.mxu0 0.0
      %730 = vmatpush1.msra.mxu0 0.0
      %731 = vmatprep.subr.mxu0 0.0
      %732 = vmatpush1.msra.mxu0 0.0
      %733 = vmatprep.subr.mxu0 0.0
      %734 = vmatpush1.msra.mxu0 0.0
      %735 = vmatprep.subr.mxu0 0.0
      %736 = vmatpush1.msra.mxu0 0.0
      %737 = vmatprep.subr.mxu0 0.0
      %738 = vmatpush1.msra.mxu0 0.0
      %739 = vmatprep.subr.mxu0 0.0
      %740 = vmatpush1.msra.mxu0 0.0
      %741 = vmatprep.subr.mxu0 0.0
      %742 = vmatpush1.msra.mxu0 0.0
      %743 = vmatprep.subr.mxu0 0.0
      %744 = vmatpush1.msra.mxu0 0.0
      %745 = vmatprep.subr.mxu0 0.0
      %746 = vmatpush1.msra.mxu0 0.0
      %747 = vmatprep.subr.mxu0 0.0
      %748 = vmatpush1.msra.mxu0 0.0
      %749 = vmatprep.subr.mxu0 0.0
      %750 = vmatpush1.msra.mxu0 0.0
      %751 = vmatprep.subr.mxu0 0.0
      %752 = vmatpush1.msra.mxu0 0.0
      %753 = vmatprep.mubr.f32.mxu0 0.0
      %v754 = vand.u32 %v350, 4294901760
      %755 = vmatmul.mubr.f32.gmra.mrb[0].mxu0 %v754
      %v756 = vpop.f32.mrb[0].mxu0
      %v757 = vadd.f32 %v675, %v756
      %v758 = vpop.f32.mrb[0].mxu0
      %759 = vmatprep.mubr.f32.mxu0 0.0
      %v760 = vand.u32 %v353, 4294901760
      %761 = vmatmul.mubr.f32.gmra.mrb[0].mxu0 %v760
      %v762 = vpop.f32.mrb[0].mxu0
      %v763 = vadd.f32 %v683, %v762
      %v764 = vpop.f32.mrb[0].mxu0
      %765 = vdwg.mxu0
      %766 = vmatprep.subr.mxu0 0.0
      %v767 = vand.u32 %v335, 4294901760
      %768 = vmatpush1.msra.mxu0 %v767
      %769 = vmatprep.subr.mxu0 0.0
      %770 = vmatpush1.msra.mxu0 0.0
      %771 = vmatprep.subr.mxu0 0.0
      %772 = vmatpush1.msra.mxu0 0.0
      %773 = vmatprep.subr.mxu0 0.0
      %774 = vmatpush1.msra.mxu0 0.0
      %775 = vmatprep.subr.mxu0 0.0
      %776 = vmatpush1.msra.mxu0 0.0
      %777 = vmatprep.subr.mxu0 0.0
      %778 = vmatpush1.msra.mxu0 0.0
      %779 = vmatprep.subr.mxu0 0.0
      %780 = vmatpush1.msra.mxu0 0.0
      %781 = vmatprep.subr.mxu0 0.0
      %782 = vmatpush1.msra.mxu0 0.0
      %783 = vmatprep.subr.mxu0 0.0
      %784 = vmatpush1.msra.mxu0 0.0
      %785 = vmatprep.subr.mxu0 0.0
      %786 = vmatpush1.msra.mxu0 0.0
      %787 = vmatprep.subr.mxu0 0.0
      %788 = vmatpush1.msra.mxu0 0.0
      %789 = vmatprep.subr.mxu0 0.0
      %790 = vmatpush1.msra.mxu0 0.0
      %791 = vmatprep.subr.mxu0 0.0
      %792 = vmatpush1.msra.mxu0 0.0
      %793 = vmatprep.subr.mxu0 0.0
      %794 = vmatpush1.msra.mxu0 0.0
      %795 = vmatprep.subr.mxu0 0.0
      %796 = vmatpush1.msra.mxu0 0.0
      %797 = vmatprep.subr.mxu0 0.0
      %798 = vmatpush1.msra.mxu0 0.0
      %799 = vmatprep.subr.mxu0 0.0
      %800 = vmatpush1.msra.mxu0 0.0
      %801 = vmatprep.subr.mxu0 0.0
      %802 = vmatpush1.msra.mxu0 0.0
      %803 = vmatprep.subr.mxu0 0.0
      %804 = vmatpush1.msra.mxu0 0.0
      %805 = vmatprep.subr.mxu0 0.0
      %806 = vmatpush1.msra.mxu0 0.0
      %807 = vmatprep.subr.mxu0 0.0
      %808 = vmatpush1.msra.mxu0 0.0
      %809 = vmatprep.subr.mxu0 0.0
      %810 = vmatpush1.msra.mxu0 0.0
      %811 = vmatprep.subr.mxu0 0.0
      %812 = vmatpush1.msra.mxu0 0.0
      %813 = vmatprep.subr.mxu0 0.0
      %814 = vmatpush1.msra.mxu0 0.0
      %815 = vmatprep.subr.mxu0 0.0
      %816 = vmatpush1.msra.mxu0 0.0
      %817 = vmatprep.subr.mxu0 0.0
      %818 = vmatpush1.msra.mxu0 0.0
      %819 = vmatprep.subr.mxu0 0.0
      %820 = vmatpush1.msra.mxu0 0.0
      %821 = vmatprep.subr.mxu0 0.0
      %822 = vmatpush1.msra.mxu0 0.0
      %823 = vmatprep.subr.mxu0 0.0
      %824 = vmatpush1.msra.mxu0 0.0
      %825 = vmatprep.subr.mxu0 0.0
      %826 = vmatpush1.msra.mxu0 0.0
      %827 = vmatprep.subr.mxu0 0.0
      %828 = vmatpush1.msra.mxu0 0.0
      %829 = vmatprep.subr.mxu0 0.0
      %830 = vmatpush1.msra.mxu0 0.0
      %831 = vmatprep.mubr.f32.mxu0 0.0
      %v832 = vand.u32 %v350, 4294901760
      %833 = vmatmul.mubr.f32.gmra.mrb[0].mxu0 %v832
      %v834 = vpop.f32.mrb[0].mxu0
      %v835 = vadd.f32 %v757, %v834
      %v836 = vpop.f32.mrb[0].mxu0
      %837 = vmatprep.mubr.f32.mxu0 0.0
      %v838 = vand.u32 %v353, 4294901760
      %839 = vmatmul.mubr.f32.gmra.mrb[0].mxu0 %v838
      %v840 = vpop.f32.mrb[0].mxu0
      %v841 = vadd.f32 %v763, %v840
      %v842 = vpop.f32.mrb[0].mxu0
      %843 = vdwg.mxu0
      %845 = vset.pattern.permute.xlu0 0
      %846 = vperm.xlu0 %845, %v342
      %v847 = vpop.permute.xlu0 %846
      %850 = vset.pattern.permute.xlu0 0
      %851 = vperm.xlu0 %850, %v343
      %v852 = vpop.permute.xlu0 %851
      %v854 = vadd.f32 %v847, %v835
      %v855 = vadd.f32 %v852, %v841
      %v856 = vld [vmem:[%s2] sm:$0xff]
      %v857 = vld [vmem:[%s2 + $0x8] sm:$0xff]
      %v859 = vsel %vm348, %v856, 0
      %v862 = vsel %vm348, %v857, 0
      %864 = vmatprep.subr.mxu0 0.0
      %v865 = vand.u32 %v335, 4294901760
      %866 = vmatpush1.msra.mxu0 %v865
      %867 = vmatprep.subr.mxu0 0.0
      %868 = vmatpush1.msra.mxu0 0.0
      %869 = vmatprep.subr.mxu0 0.0
      %870 = vmatpush1.msra.mxu0 0.0
      %871 = vmatprep.subr.mxu0 0.0
      %872 = vmatpush1.msra.mxu0 0.0
      %873 = vmatprep.subr.mxu0 0.0
      %874 = vmatpush1.msra.mxu0 0.0
      %875 = vmatprep.subr.mxu0 0.0
      %876 = vmatpush1.msra.mxu0 0.0
      %877 = vmatprep.subr.mxu0 0.0
      %878 = vmatpush1.msra.mxu0 0.0
      %879 = vmatprep.subr.mxu0 0.0
      %880 = vmatpush1.msra.mxu0 0.0
      %881 = vmatprep.subr.mxu0 0.0
      %882 = vmatpush1.msra.mxu0 0.0
      %883 = vmatprep.subr.mxu0 0.0
      %884 = vmatpush1.msra.mxu0 0.0
      %885 = vmatprep.subr.mxu0 0.0
      %886 = vmatpush1.msra.mxu0 0.0
      %887 = vmatprep.subr.mxu0 0.0
      %888 = vmatpush1.msra.mxu0 0.0
      %889 = vmatprep.subr.mxu0 0.0
      %890 = vmatpush1.msra.mxu0 0.0
      %891 = vmatprep.subr.mxu0 0.0
      %892 = vmatpush1.msra.mxu0 0.0
      %893 = vmatprep.subr.mxu0 0.0
      %894 = vmatpush1.msra.mxu0 0.0
      %895 = vmatprep.subr.mxu0 0.0
      %896 = vmatpush1.msra.mxu0 0.0
      %897 = vmatprep.subr.mxu0 0.0
      %898 = vmatpush1.msra.mxu0 0.0
      %899 = vmatprep.subr.mxu0 0.0
      %900 = vmatpush1.msra.mxu0 0.0
      %901 = vmatprep.subr.mxu0 0.0
      %902 = vmatpush1.msra.mxu0 0.0
      %903 = vmatprep.subr.mxu0 0.0
      %904 = vmatpush1.msra.mxu0 0.0
      %905 = vmatprep.subr.mxu0 0.0
      %906 = vmatpush1.msra.mxu0 0.0
      %907 = vmatprep.subr.mxu0 0.0
      %908 = vmatpush1.msra.mxu0 0.0
      %909 = vmatprep.subr.mxu0 0.0
      %910 = vmatpush1.msra.mxu0 0.0
      %911 = vmatprep.subr.mxu0 0.0
      %912 = vmatpush1.msra.mxu0 0.0
      %913 = vmatprep.subr.mxu0 0.0
      %914 = vmatpush1.msra.mxu0 0.0
      %915 = vmatprep.subr.mxu0 0.0
      %916 = vmatpush1.msra.mxu0 0.0
      %917 = vmatprep.subr.mxu0 0.0
      %918 = vmatpush1.msra.mxu0 0.0
      %919 = vmatprep.subr.mxu0 0.0
      %920 = vmatpush1.msra.mxu0 0.0
      %921 = vmatprep.subr.mxu0 0.0
      %922 = vmatpush1.msra.mxu0 0.0
      %923 = vmatprep.subr.mxu0 0.0
      %924 = vmatpush1.msra.mxu0 0.0
      %925 = vmatprep.subr.mxu0 0.0
      %926 = vmatpush1.msra.mxu0 0.0
      %927 = vmatprep.subr.mxu0 0.0
      %928 = vmatpush1.msra.mxu0 0.0
      %929 = vmatprep.mubr.f32.mxu0 0.0
      %v930 = vand.u32 %v859, 4294901760
      %v931 = vsub.f32 %v859, %v930
      %v932 = vand.u32 %v931, 4294901760
      %v933 = vsub.f32 %v931, %v932
      %v934 = vand.u32 %v933, 4294901760
      %935 = vmatmul.mubr.f32.gmra.mrb[0].mxu0 %v934
      %v936 = vpop.f32.mrb[0].mxu0
      %v937 = vadd.f32 0.0, %v936
      %v938 = vpop.f32.mrb[0].mxu0
      %939 = vmatprep.mubr.f32.mxu0 0.0
      %v940 = vand.u32 %v862, 4294901760
      %v941 = vsub.f32 %v862, %v940
      %v942 = vand.u32 %v941, 4294901760
      %v943 = vsub.f32 %v941, %v942
      %v944 = vand.u32 %v943, 4294901760
      %945 = vmatmul.mubr.f32.gmra.mrb[0].mxu0 %v944
      %v946 = vpop.f32.mrb[0].mxu0
      %v947 = vadd.f32 0.0, %v946
      %v948 = vpop.f32.mrb[0].mxu0
      %949 = vdwg.mxu0
      %950 = vmatprep.subr.mxu0 0.0
      %v951 = vand.u32 %v335, 4294901760
      %v952 = vsub.f32 %v335, %v951
      %v953 = vand.u32 %v952, 4294901760
      %v954 = vsub.f32 %v952, %v953
      %v955 = vand.u32 %v954, 4294901760
      %956 = vmatpush1.msra.mxu0 %v955
      %957 = vmatprep.subr.mxu0 0.0
      %958 = vmatpush1.msra.mxu0 0.0
      %959 = vmatprep.subr.mxu0 0.0
      %960 = vmatpush1.msra.mxu0 0.0
      %961 = vmatprep.subr.mxu0 0.0
      %962 = vmatpush1.msra.mxu0 0.0
      %963 = vmatprep.subr.mxu0 0.0
      %964 = vmatpush1.msra.mxu0 0.0
      %965 = vmatprep.subr.mxu0 0.0
      %966 = vmatpush1.msra.mxu0 0.0
      %967 = vmatprep.subr.mxu0 0.0
      %968 = vmatpush1.msra.mxu0 0.0
      %969 = vmatprep.subr.mxu0 0.0
      %970 = vmatpush1.msra.mxu0 0.0
      %971 = vmatprep.subr.mxu0 0.0
      %972 = vmatpush1.msra.mxu0 0.0
      %973 = vmatprep.subr.mxu0 0.0
      %974 = vmatpush1.msra.mxu0 0.0
      %975 = vmatprep.subr.mxu0 0.0
      %976 = vmatpush1.msra.mxu0 0.0
      %977 = vmatprep.subr.mxu0 0.0
      %978 = vmatpush1.msra.mxu0 0.0
      %979 = vmatprep.subr.mxu0 0.0
      %980 = vmatpush1.msra.mxu0 0.0
      %981 = vmatprep.subr.mxu0 0.0
      %982 = vmatpush1.msra.mxu0 0.0
      %983 = vmatprep.subr.mxu0 0.0
      %984 = vmatpush1.msra.mxu0 0.0
      %985 = vmatprep.subr.mxu0 0.0
      %986 = vmatpush1.msra.mxu0 0.0
      %987 = vmatprep.subr.mxu0 0.0
      %988 = vmatpush1.msra.mxu0 0.0
      %989 = vmatprep.subr.mxu0 0.0
      %990 = vmatpush1.msra.mxu0 0.0
      %991 = vmatprep.subr.mxu0 0.0
      %992 = vmatpush1.msra.mxu0 0.0
      %993 = vmatprep.subr.mxu0 0.0
      %994 = vmatpush1.msra.mxu0 0.0
      %995 = vmatprep.subr.mxu0 0.0
      %996 = vmatpush1.msra.mxu0 0.0
      %997 = vmatprep.subr.mxu0 0.0
      %998 = vmatpush1.msra.mxu0 0.0
      %999 = vmatprep.subr.mxu0 0.0
      %1000 = vmatpush1.msra.mxu0 0.0
      %1001 = vmatprep.subr.mxu0 0.0
      %1002 = vmatpush1.msra.mxu0 0.0
      %1003 = vmatprep.subr.mxu0 0.0
      %1004 = vmatpush1.msra.mxu0 0.0
      %1005 = vmatprep.subr.mxu0 0.0
      %1006 = vmatpush1.msra.mxu0 0.0
      %1007 = vmatprep.subr.mxu0 0.0
      %1008 = vmatpush1.msra.mxu0 0.0
      %1009 = vmatprep.subr.mxu0 0.0
      %1010 = vmatpush1.msra.mxu0 0.0
      %1011 = vmatprep.subr.mxu0 0.0
      %1012 = vmatpush1.msra.mxu0 0.0
      %1013 = vmatprep.subr.mxu0 0.0
      %1014 = vmatpush1.msra.mxu0 0.0
      %1015 = vmatprep.subr.mxu0 0.0
      %1016 = vmatpush1.msra.mxu0 0.0
      %1017 = vmatprep.subr.mxu0 0.0
      %1018 = vmatpush1.msra.mxu0 0.0
      %1019 = vmatprep.mubr.f32.mxu0 0.0
      %v1020 = vand.u32 %v859, 4294901760
      %1021 = vmatmul.mubr.f32.gmra.mrb[0].mxu0 %v1020
      %v1022 = vpop.f32.mrb[0].mxu0
      %v1023 = vadd.f32 %v937, %v1022
      %v1024 = vpop.f32.mrb[0].mxu0
      %1025 = vmatprep.mubr.f32.mxu0 0.0
      %v1026 = vand.u32 %v862, 4294901760
      %1027 = vmatmul.mubr.f32.gmra.mrb[0].mxu0 %v1026
      %v1028 = vpop.f32.mrb[0].mxu0
      %v1029 = vadd.f32 %v947, %v1028
      %v1030 = vpop.f32.mrb[0].mxu0
      %1031 = vdwg.mxu0
      %1032 = vmatprep.subr.mxu0 0.0
      %v1033 = vand.u32 %v335, 4294901760
      %v1034 = vsub.f32 %v335, %v1033
      %1035 = vmatpush1.msra.mxu0 %v1034
      %1036 = vmatprep.subr.mxu0 0.0
      %1037 = vmatpush1.msra.mxu0 0.0
      %1038 = vmatprep.subr.mxu0 0.0
      %1039 = vmatpush1.msra.mxu0 0.0
      %1040 = vmatprep.subr.mxu0 0.0
      %1041 = vmatpush1.msra.mxu0 0.0
      %1042 = vmatprep.subr.mxu0 0.0
      %1043 = vmatpush1.msra.mxu0 0.0
      %1044 = vmatprep.subr.mxu0 0.0
      %1045 = vmatpush1.msra.mxu0 0.0
      %1046 = vmatprep.subr.mxu0 0.0
      %1047 = vmatpush1.msra.mxu0 0.0
      %1048 = vmatprep.subr.mxu0 0.0
      %1049 = vmatpush1.msra.mxu0 0.0
      %1050 = vmatprep.subr.mxu0 0.0
      %1051 = vmatpush1.msra.mxu0 0.0
      %1052 = vmatprep.subr.mxu0 0.0
      %1053 = vmatpush1.msra.mxu0 0.0
      %1054 = vmatprep.subr.mxu0 0.0
      %1055 = vmatpush1.msra.mxu0 0.0
      %1056 = vmatprep.subr.mxu0 0.0
      %1057 = vmatpush1.msra.mxu0 0.0
      %1058 = vmatprep.subr.mxu0 0.0
      %1059 = vmatpush1.msra.mxu0 0.0
      %1060 = vmatprep.subr.mxu0 0.0
      %1061 = vmatpush1.msra.mxu0 0.0
      %1062 = vmatprep.subr.mxu0 0.0
      %1063 = vmatpush1.msra.mxu0 0.0
      %1064 = vmatprep.subr.mxu0 0.0
      %1065 = vmatpush1.msra.mxu0 0.0
      %1066 = vmatprep.subr.mxu0 0.0
      %1067 = vmatpush1.msra.mxu0 0.0
      %1068 = vmatprep.subr.mxu0 0.0
      %1069 = vmatpush1.msra.mxu0 0.0
      %1070 = vmatprep.subr.mxu0 0.0
      %1071 = vmatpush1.msra.mxu0 0.0
      %1072 = vmatprep.subr.mxu0 0.0
      %1073 = vmatpush1.msra.mxu0 0.0
      %1074 = vmatprep.subr.mxu0 0.0
      %1075 = vmatpush1.msra.mxu0 0.0
      %1076 = vmatprep.subr.mxu0 0.0
      %1077 = vmatpush1.msra.mxu0 0.0
      %1078 = vmatprep.subr.mxu0 0.0
      %1079 = vmatpush1.msra.mxu0 0.0
      %1080 = vmatprep.subr.mxu0 0.0
      %1081 = vmatpush1.msra.mxu0 0.0
      %1082 = vmatprep.subr.mxu0 0.0
      %1083 = vmatpush1.msra.mxu0 0.0
      %1084 = vmatprep.subr.mxu0 0.0
      %1085 = vmatpush1.msra.mxu0 0.0
      %1086 = vmatprep.subr.mxu0 0.0
      %1087 = vmatpush1.msra.mxu0 0.0
      %1088 = vmatprep.subr.mxu0 0.0
      %1089 = vmatpush1.msra.mxu0 0.0
      %1090 = vmatprep.subr.mxu0 0.0
      %1091 = vmatpush1.msra.mxu0 0.0
      %1092 = vmatprep.subr.mxu0 0.0
      %1093 = vmatpush1.msra.mxu0 0.0
      %1094 = vmatprep.subr.mxu0 0.0
      %1095 = vmatpush1.msra.mxu0 0.0
      %1096 = vmatprep.subr.mxu0 0.0
      %1097 = vmatpush1.msra.mxu0 0.0
      %1098 = vmatprep.mubr.f32.mxu0 0.0
      %v1099 = vand.u32 %v859, 4294901760
      %v1100 = vsub.f32 %v859, %v1099
      %1101 = vmatmul.mubr.f32.gmra.mrb[0].mxu0 %v1100
      %v1102 = vpop.f32.mrb[0].mxu0
      %v1103 = vadd.f32 %v1023, %v1102
      %v1104 = vpop.f32.mrb[0].mxu0
      %1105 = vmatprep.mubr.f32.mxu0 0.0
      %v1106 = vand.u32 %v862, 4294901760
      %v1107 = vsub.f32 %v862, %v1106
      %1108 = vmatmul.mubr.f32.gmra.mrb[0].mxu0 %v1107
      %v1109 = vpop.f32.mrb[0].mxu0
      %v1110 = vadd.f32 %v1029, %v1109
      %v1111 = vpop.f32.mrb[0].mxu0
      %1112 = vdwg.mxu0
      %1113 = vmatprep.subr.mxu0 0.0
      %v1114 = vand.u32 %v335, 4294901760
      %1115 = vmatpush1.msra.mxu0 %v1114
      %1116 = vmatprep.subr.mxu0 0.0
      %1117 = vmatpush1.msra.mxu0 0.0
      %1118 = vmatprep.subr.mxu0 0.0
      %1119 = vmatpush1.msra.mxu0 0.0
      %1120 = vmatprep.subr.mxu0 0.0
      %1121 = vmatpush1.msra.mxu0 0.0
      %1122 = vmatprep.subr.mxu0 0.0
      %1123 = vmatpush1.msra.mxu0 0.0
      %1124 = vmatprep.subr.mxu0 0.0
      %1125 = vmatpush1.msra.mxu0 0.0
      %1126 = vmatprep.subr.mxu0 0.0
      %1127 = vmatpush1.msra.mxu0 0.0
      %1128 = vmatprep.subr.mxu0 0.0
      %1129 = vmatpush1.msra.mxu0 0.0
      %1130 = vmatprep.subr.mxu0 0.0
      %1131 = vmatpush1.msra.mxu0 0.0
      %1132 = vmatprep.subr.mxu0 0.0
      %1133 = vmatpush1.msra.mxu0 0.0
      %1134 = vmatprep.subr.mxu0 0.0
      %1135 = vmatpush1.msra.mxu0 0.0
      %1136 = vmatprep.subr.mxu0 0.0
      %1137 = vmatpush1.msra.mxu0 0.0
      %1138 = vmatprep.subr.mxu0 0.0
      %1139 = vmatpush1.msra.mxu0 0.0
      %1140 = vmatprep.subr.mxu0 0.0
      %1141 = vmatpush1.msra.mxu0 0.0
      %1142 = vmatprep.subr.mxu0 0.0
      %1143 = vmatpush1.msra.mxu0 0.0
      %1144 = vmatprep.subr.mxu0 0.0
      %1145 = vmatpush1.msra.mxu0 0.0
      %1146 = vmatprep.subr.mxu0 0.0
      %1147 = vmatpush1.msra.mxu0 0.0
      %1148 = vmatprep.subr.mxu0 0.0
      %1149 = vmatpush1.msra.mxu0 0.0
      %1150 = vmatprep.subr.mxu0 0.0
      %1151 = vmatpush1.msra.mxu0 0.0
      %1152 = vmatprep.subr.mxu0 0.0
      %1153 = vmatpush1.msra.mxu0 0.0
      %1154 = vmatprep.subr.mxu0 0.0
      %1155 = vmatpush1.msra.mxu0 0.0
      %1156 = vmatprep.subr.mxu0 0.0
      %1157 = vmatpush1.msra.mxu0 0.0
      %1158 = vmatprep.subr.mxu0 0.0
      %1159 = vmatpush1.msra.mxu0 0.0
      %1160 = vmatprep.subr.mxu0 0.0
      %1161 = vmatpush1.msra.mxu0 0.0
      %1162 = vmatprep.subr.mxu0 0.0
      %1163 = vmatpush1.msra.mxu0 0.0
      %1164 = vmatprep.subr.mxu0 0.0
      %1165 = vmatpush1.msra.mxu0 0.0
      %1166 = vmatprep.subr.mxu0 0.0
      %1167 = vmatpush1.msra.mxu0 0.0
      %1168 = vmatprep.subr.mxu0 0.0
      %1169 = vmatpush1.msra.mxu0 0.0
      %1170 = vmatprep.subr.mxu0 0.0
      %1171 = vmatpush1.msra.mxu0 0.0
      %1172 = vmatprep.subr.mxu0 0.0
      %1173 = vmatpush1.msra.mxu0 0.0
      %1174 = vmatprep.subr.mxu0 0.0
      %1175 = vmatpush1.msra.mxu0 0.0
      %1176 = vmatprep.subr.mxu0 0.0
      %1177 = vmatpush1.msra.mxu0 0.0
      %1178 = vmatprep.mubr.f32.mxu0 0.0
      %v1179 = vand.u32 %v859, 4294901760
      %v1180 = vsub.f32 %v859, %v1179
      %v1181 = vand.u32 %v1180, 4294901760
      %1182 = vmatmul.mubr.f32.gmra.mrb[0].mxu0 %v1181
      %v1183 = vpop.f32.mrb[0].mxu0
      %v1184 = vadd.f32 %v1103, %v1183
      %v1185 = vpop.f32.mrb[0].mxu0
      %1186 = vmatprep.mubr.f32.mxu0 0.0
      %v1187 = vand.u32 %v862, 4294901760
      %v1188 = vsub.f32 %v862, %v1187
      %v1189 = vand.u32 %v1188, 4294901760
      %1190 = vmatmul.mubr.f32.gmra.mrb[0].mxu0 %v1189
      %v1191 = vpop.f32.mrb[0].mxu0
      %v1192 = vadd.f32 %v1110, %v1191
      %v1193 = vpop.f32.mrb[0].mxu0
      %1194 = vdwg.mxu0
      %1195 = vmatprep.subr.mxu0 0.0
      %v1196 = vand.u32 %v335, 4294901760
      %v1197 = vsub.f32 %v335, %v1196
      %v1198 = vand.u32 %v1197, 4294901760
      %1199 = vmatpush1.msra.mxu0 %v1198
      %1200 = vmatprep.subr.mxu0 0.0
      %1201 = vmatpush1.msra.mxu0 0.0
      %1202 = vmatprep.subr.mxu0 0.0
      %1203 = vmatpush1.msra.mxu0 0.0
      %1204 = vmatprep.subr.mxu0 0.0
      %1205 = vmatpush1.msra.mxu0 0.0
      %1206 = vmatprep.subr.mxu0 0.0
      %1207 = vmatpush1.msra.mxu0 0.0
      %1208 = vmatprep.subr.mxu0 0.0
      %1209 = vmatpush1.msra.mxu0 0.0
      %1210 = vmatprep.subr.mxu0 0.0
      %1211 = vmatpush1.msra.mxu0 0.0
      %1212 = vmatprep.subr.mxu0 0.0
      %1213 = vmatpush1.msra.mxu0 0.0
      %1214 = vmatprep.subr.mxu0 0.0
      %1215 = vmatpush1.msra.mxu0 0.0
      %1216 = vmatprep.subr.mxu0 0.0
      %1217 = vmatpush1.msra.mxu0 0.0
      %1218 = vmatprep.subr.mxu0 0.0
      %1219 = vmatpush1.msra.mxu0 0.0
      %1220 = vmatprep.subr.mxu0 0.0
      %1221 = vmatpush1.msra.mxu0 0.0
      %1222 = vmatprep.subr.mxu0 0.0
      %1223 = vmatpush1.msra.mxu0 0.0
      %1224 = vmatprep.subr.mxu0 0.0
      %1225 = vmatpush1.msra.mxu0 0.0
      %1226 = vmatprep.subr.mxu0 0.0
      %1227 = vmatpush1.msra.mxu0 0.0
      %1228 = vmatprep.subr.mxu0 0.0
      %1229 = vmatpush1.msra.mxu0 0.0
      %1230 = vmatprep.subr.mxu0 0.0
      %1231 = vmatpush1.msra.mxu0 0.0
      %1232 = vmatprep.subr.mxu0 0.0
      %1233 = vmatpush1.msra.mxu0 0.0
      %1234 = vmatprep.subr.mxu0 0.0
      %1235 = vmatpush1.msra.mxu0 0.0
      %1236 = vmatprep.subr.mxu0 0.0
      %1237 = vmatpush1.msra.mxu0 0.0
      %1238 = vmatprep.subr.mxu0 0.0
      %1239 = vmatpush1.msra.mxu0 0.0
      %1240 = vmatprep.subr.mxu0 0.0
      %1241 = vmatpush1.msra.mxu0 0.0
      %1242 = vmatprep.subr.mxu0 0.0
      %1243 = vmatpush1.msra.mxu0 0.0
      %1244 = vmatprep.subr.mxu0 0.0
      %1245 = vmatpush1.msra.mxu0 0.0
      %1246 = vmatprep.subr.mxu0 0.0
      %1247 = vmatpush1.msra.mxu0 0.0
      %1248 = vmatprep.subr.mxu0 0.0
      %1249 = vmatpush1.msra.mxu0 0.0
      %1250 = vmatprep.subr.mxu0 0.0
      %1251 = vmatpush1.msra.mxu0 0.0
      %1252 = vmatprep.subr.mxu0 0.0
      %1253 = vmatpush1.msra.mxu0 0.0
      %1254 = vmatprep.subr.mxu0 0.0
      %1255 = vmatpush1.msra.mxu0 0.0
      %1256 = vmatprep.subr.mxu0 0.0
      %1257 = vmatpush1.msra.mxu0 0.0
      %1258 = vmatprep.subr.mxu0 0.0
      %1259 = vmatpush1.msra.mxu0 0.0
      %1260 = vmatprep.subr.mxu0 0.0
      %1261 = vmatpush1.msra.mxu0 0.0
      %1262 = vmatprep.mubr.f32.mxu0 0.0
      %v1263 = vand.u32 %v859, 4294901760
      %1264 = vmatmul.mubr.f32.gmra.mrb[0].mxu0 %v1263
      %v1265 = vpop.f32.mrb[0].mxu0
      %v1266 = vadd.f32 %v1184, %v1265
      %v1267 = vpop.f32.mrb[0].mxu0
      %1268 = vmatprep.mubr.f32.mxu0 0.0
      %v1269 = vand.u32 %v862, 4294901760
      %1270 = vmatmul.mubr.f32.gmra.mrb[0].mxu0 %v1269
      %v1271 = vpop.f32.mrb[0].mxu0
      %v1272 = vadd.f32 %v1192, %v1271
      %v1273 = vpop.f32.mrb[0].mxu0
      %1274 = vdwg.mxu0
      %1275 = vmatprep.subr.mxu0 0.0
      %v1276 = vand.u32 %v335, 4294901760
      %1277 = vmatpush1.msra.mxu0 %v1276
      %1278 = vmatprep.subr.mxu0 0.0
      %1279 = vmatpush1.msra.mxu0 0.0
      %1280 = vmatprep.subr.mxu0 0.0
      %1281 = vmatpush1.msra.mxu0 0.0
      %1282 = vmatprep.subr.mxu0 0.0
      %1283 = vmatpush1.msra.mxu0 0.0
      %1284 = vmatprep.subr.mxu0 0.0
      %1285 = vmatpush1.msra.mxu0 0.0
      %1286 = vmatprep.subr.mxu0 0.0
      %1287 = vmatpush1.msra.mxu0 0.0
      %1288 = vmatprep.subr.mxu0 0.0
      %1289 = vmatpush1.msra.mxu0 0.0
      %1290 = vmatprep.subr.mxu0 0.0
      %1291 = vmatpush1.msra.mxu0 0.0
      %1292 = vmatprep.subr.mxu0 0.0
      %1293 = vmatpush1.msra.mxu0 0.0
      %1294 = vmatprep.subr.mxu0 0.0
      %1295 = vmatpush1.msra.mxu0 0.0
      %1296 = vmatprep.subr.mxu0 0.0
      %1297 = vmatpush1.msra.mxu0 0.0
      %1298 = vmatprep.subr.mxu0 0.0
      %1299 = vmatpush1.msra.mxu0 0.0
      %1300 = vmatprep.subr.mxu0 0.0
      %1301 = vmatpush1.msra.mxu0 0.0
      %1302 = vmatprep.subr.mxu0 0.0
      %1303 = vmatpush1.msra.mxu0 0.0
      %1304 = vmatprep.subr.mxu0 0.0
      %1305 = vmatpush1.msra.mxu0 0.0
      %1306 = vmatprep.subr.mxu0 0.0
      %1307 = vmatpush1.msra.mxu0 0.0
      %1308 = vmatprep.subr.mxu0 0.0
      %1309 = vmatpush1.msra.mxu0 0.0
      %1310 = vmatprep.subr.mxu0 0.0
      %1311 = vmatpush1.msra.mxu0 0.0
      %1312 = vmatprep.subr.mxu0 0.0
      %1313 = vmatpush1.msra.mxu0 0.0
      %1314 = vmatprep.subr.mxu0 0.0
      %1315 = vmatpush1.msra.mxu0 0.0
      %1316 = vmatprep.subr.mxu0 0.0
      %1317 = vmatpush1.msra.mxu0 0.0
      %1318 = vmatprep.subr.mxu0 0.0
      %1319 = vmatpush1.msra.mxu0 0.0
      %1320 = vmatprep.subr.mxu0 0.0
      %1321 = vmatpush1.msra.mxu0 0.0
      %1322 = vmatprep.subr.mxu0 0.0
      %1323 = vmatpush1.msra.mxu0 0.0
      %1324 = vmatprep.subr.mxu0 0.0
      %1325 = vmatpush1.msra.mxu0 0.0
      %1326 = vmatprep.subr.mxu0 0.0
      %1327 = vmatpush1.msra.mxu0 0.0
      %1328 = vmatprep.subr.mxu0 0.0
      %1329 = vmatpush1.msra.mxu0 0.0
      %1330 = vmatprep.subr.mxu0 0.0
      %1331 = vmatpush1.msra.mxu0 0.0
      %1332 = vmatprep.subr.mxu0 0.0
      %1333 = vmatpush1.msra.mxu0 0.0
      %1334 = vmatprep.subr.mxu0 0.0
      %1335 = vmatpush1.msra.mxu0 0.0
      %1336 = vmatprep.subr.mxu0 0.0
      %1337 = vmatpush1.msra.mxu0 0.0
      %1338 = vmatprep.subr.mxu0 0.0
      %1339 = vmatpush1.msra.mxu0 0.0
      %1340 = vmatprep.mubr.f32.mxu0 0.0
      %v1341 = vand.u32 %v859, 4294901760
      %1342 = vmatmul.mubr.f32.gmra.mrb[0].mxu0 %v1341
      %v1343 = vpop.f32.mrb[0].mxu0
      %v1344 = vadd.f32 %v1266, %v1343
      %v1345 = vpop.f32.mrb[0].mxu0
      %1346 = vmatprep.mubr.f32.mxu0 0.0
      %v1347 = vand.u32 %v862, 4294901760
      %1348 = vmatmul.mubr.f32.gmra.mrb[0].mxu0 %v1347
      %v1349 = vpop.f32.mrb[0].mxu0
      %v1350 = vadd.f32 %v1272, %v1349
      %v1351 = vpop.f32.mrb[0].mxu0
      %1352 = vdwg.mxu0
      %1354 = vset.pattern.permute.xlu0 0
      %1355 = vperm.xlu0 %1354, %v344
      %v1356 = vpop.permute.xlu0 %1355
      %1359 = vset.pattern.permute.xlu0 0
      %1360 = vperm.xlu0 %1359, %v345
      %v1361 = vpop.permute.xlu0 %1360
      %v1363 = vadd.f32 %v1356, %v1344
      %v1364 = vadd.f32 %v1361, %v1350
      %s1365 = scalar_lea.vmem %s1, 16
      %v1366 = vld [vmem:[%s1365] sm:$0xff]
      %v1367 = vld [vmem:[%s1365 + $0x8] sm:$0xff]
      %v1369 = vsel %vm348, %v1366, 0
      %v1372 = vsel %vm348, %v1367, 0
      %1374 = vmatprep.subr.mxu0 0.0
      %v1375 = vand.u32 %v337, 4294901760
      %1376 = vmatpush1.msra.mxu0 %v1375
      %1377 = vmatprep.subr.mxu0 0.0
      %1378 = vmatpush1.msra.mxu0 0.0
      %1379 = vmatprep.subr.mxu0 0.0
      %1380 = vmatpush1.msra.mxu0 0.0
      %1381 = vmatprep.subr.mxu0 0.0
      %1382 = vmatpush1.msra.mxu0 0.0
      %1383 = vmatprep.subr.mxu0 0.0
      %1384 = vmatpush1.msra.mxu0 0.0
      %1385 = vmatprep.subr.mxu0 0.0
      %1386 = vmatpush1.msra.mxu0 0.0
      %1387 = vmatprep.subr.mxu0 0.0
      %1388 = vmatpush1.msra.mxu0 0.0
      %1389 = vmatprep.subr.mxu0 0.0
      %1390 = vmatpush1.msra.mxu0 0.0
      %1391 = vmatprep.subr.mxu0 0.0
      %1392 = vmatpush1.msra.mxu0 0.0
      %1393 = vmatprep.subr.mxu0 0.0
      %1394 = vmatpush1.msra.mxu0 0.0
      %1395 = vmatprep.subr.mxu0 0.0
      %1396 = vmatpush1.msra.mxu0 0.0
      %1397 = vmatprep.subr.mxu0 0.0
      %1398 = vmatpush1.msra.mxu0 0.0
      %1399 = vmatprep.subr.mxu0 0.0
      %1400 = vmatpush1.msra.mxu0 0.0
      %1401 = vmatprep.subr.mxu0 0.0
      %1402 = vmatpush1.msra.mxu0 0.0
      %1403 = vmatprep.subr.mxu0 0.0
      %1404 = vmatpush1.msra.mxu0 0.0
      %1405 = vmatprep.subr.mxu0 0.0
      %1406 = vmatpush1.msra.mxu0 0.0
      %1407 = vmatprep.subr.mxu0 0.0
      %1408 = vmatpush1.msra.mxu0 0.0
      %1409 = vmatprep.subr.mxu0 0.0
      %1410 = vmatpush1.msra.mxu0 0.0
      %1411 = vmatprep.subr.mxu0 0.0
      %1412 = vmatpush1.msra.mxu0 0.0
      %1413 = vmatprep.subr.mxu0 0.0
      %1414 = vmatpush1.msra.mxu0 0.0
      %1415 = vmatprep.subr.mxu0 0.0
      %1416 = vmatpush1.msra.mxu0 0.0
      %1417 = vmatprep.subr.mxu0 0.0
      %1418 = vmatpush1.msra.mxu0 0.0
      %1419 = vmatprep.subr.mxu0 0.0
      %1420 = vmatpush1.msra.mxu0 0.0
      %1421 = vmatprep.subr.mxu0 0.0
      %1422 = vmatpush1.msra.mxu0 0.0
      %1423 = vmatprep.subr.mxu0 0.0
      %1424 = vmatpush1.msra.mxu0 0.0
      %1425 = vmatprep.subr.mxu0 0.0
      %1426 = vmatpush1.msra.mxu0 0.0
      %1427 = vmatprep.subr.mxu0 0.0
      %1428 = vmatpush1.msra.mxu0 0.0
      %1429 = vmatprep.subr.mxu0 0.0
      %1430 = vmatpush1.msra.mxu0 0.0
      %1431 = vmatprep.subr.mxu0 0.0
      %1432 = vmatpush1.msra.mxu0 0.0
      %1433 = vmatprep.subr.mxu0 0.0
      %1434 = vmatpush1.msra.mxu0 0.0
      %1435 = vmatprep.subr.mxu0 0.0
      %1436 = vmatpush1.msra.mxu0 0.0
      %1437 = vmatprep.subr.mxu0 0.0
      %1438 = vmatpush1.msra.mxu0 0.0
      %1439 = vmatprep.mubr.f32.mxu0 0.0
      %v1440 = vand.u32 %v1369, 4294901760
      %v1441 = vsub.f32 %v1369, %v1440
      %v1442 = vand.u32 %v1441, 4294901760
      %v1443 = vsub.f32 %v1441, %v1442
      %v1444 = vand.u32 %v1443, 4294901760
      %1445 = vmatmul.mubr.f32.gmra.mrb[0].mxu0 %v1444
      %v1446 = vpop.f32.mrb[0].mxu0
      %v1447 = vadd.f32 0.0, %v1446
      %v1448 = vpop.f32.mrb[0].mxu0
      %1449 = vmatprep.mubr.f32.mxu0 0.0
      %v1450 = vand.u32 %v1372, 4294901760
      %v1451 = vsub.f32 %v1372, %v1450
      %v1452 = vand.u32 %v1451, 4294901760
      %v1453 = vsub.f32 %v1451, %v1452
      %v1454 = vand.u32 %v1453, 4294901760
      %1455 = vmatmul.mubr.f32.gmra.mrb[0].mxu0 %v1454
      %v1456 = vpop.f32.mrb[0].mxu0
      %v1457 = vadd.f32 0.0, %v1456
      %v1458 = vpop.f32.mrb[0].mxu0
      %1459 = vdwg.mxu0
      %1460 = vmatprep.subr.mxu0 0.0
      %v1461 = vand.u32 %v337, 4294901760
      %v1462 = vsub.f32 %v337, %v1461
      %v1463 = vand.u32 %v1462, 4294901760
      %v1464 = vsub.f32 %v1462, %v1463
      %v1465 = vand.u32 %v1464, 4294901760
      %1466 = vmatpush1.msra.mxu0 %v1465
      %1467 = vmatprep.subr.mxu0 0.0
      %1468 = vmatpush1.msra.mxu0 0.0
      %1469 = vmatprep.subr.mxu0 0.0
      %1470 = vmatpush1.msra.mxu0 0.0
      %1471 = vmatprep.subr.mxu0 0.0
      %1472 = vmatpush1.msra.mxu0 0.0
      %1473 = vmatprep.subr.mxu0 0.0
      %1474 = vmatpush1.msra.mxu0 0.0
      %1475 = vmatprep.subr.mxu0 0.0
      %1476 = vmatpush1.msra.mxu0 0.0
      %1477 = vmatprep.subr.mxu0 0.0
      %1478 = vmatpush1.msra.mxu0 0.0
      %1479 = vmatprep.subr.mxu0 0.0
      %1480 = vmatpush1.msra.mxu0 0.0
      %1481 = vmatprep.subr.mxu0 0.0
      %1482 = vmatpush1.msra.mxu0 0.0
      %1483 = vmatprep.subr.mxu0 0.0
      %1484 = vmatpush1.msra.mxu0 0.0
      %1485 = vmatprep.subr.mxu0 0.0
      %1486 = vmatpush1.msra.mxu0 0.0
      %1487 = vmatprep.subr.mxu0 0.0
      %1488 = vmatpush1.msra.mxu0 0.0
      %1489 = vmatprep.subr.mxu0 0.0
      %1490 = vmatpush1.msra.mxu0 0.0
      %1491 = vmatprep.subr.mxu0 0.0
      %1492 = vmatpush1.msra.mxu0 0.0
      %1493 = vmatprep.subr.mxu0 0.0
      %1494 = vmatpush1.msra.mxu0 0.0
      %1495 = vmatprep.subr.mxu0 0.0
      %1496 = vmatpush1.msra.mxu0 0.0
      %1497 = vmatprep.subr.mxu0 0.0
      %1498 = vmatpush1.msra.mxu0 0.0
      %1499 = vmatprep.subr.mxu0 0.0
      %1500 = vmatpush1.msra.mxu0 0.0
      %1501 = vmatprep.subr.mxu0 0.0
      %1502 = vmatpush1.msra.mxu0 0.0
      %1503 = vmatprep.subr.mxu0 0.0
      %1504 = vmatpush1.msra.mxu0 0.0
      %1505 = vmatprep.subr.mxu0 0.0
      %1506 = vmatpush1.msra.mxu0 0.0
      %1507 = vmatprep.subr.mxu0 0.0
      %1508 = vmatpush1.msra.mxu0 0.0
      %1509 = vmatprep.subr.mxu0 0.0
      %1510 = vmatpush1.msra.mxu0 0.0
      %1511 = vmatprep.subr.mxu0 0.0
      %1512 = vmatpush1.msra.mxu0 0.0
      %1513 = vmatprep.subr.mxu0 0.0
      %1514 = vmatpush1.msra.mxu0 0.0
      %1515 = vmatprep.subr.mxu0 0.0
      %1516 = vmatpush1.msra.mxu0 0.0
      %1517 = vmatprep.subr.mxu0 0.0
      %1518 = vmatpush1.msra.mxu0 0.0
      %1519 = vmatprep.subr.mxu0 0.0
      %1520 = vmatpush1.msra.mxu0 0.0
      %1521 = vmatprep.subr.mxu0 0.0
      %1522 = vmatpush1.msra.mxu0 0.0
      %1523 = vmatprep.subr.mxu0 0.0
      %1524 = vmatpush1.msra.mxu0 0.0
      %1525 = vmatprep.subr.mxu0 0.0
      %1526 = vmatpush1.msra.mxu0 0.0
      %1527 = vmatprep.subr.mxu0 0.0
      %1528 = vmatpush1.msra.mxu0 0.0
      %1529 = vmatprep.mubr.f32.mxu0 0.0
      %v1530 = vand.u32 %v1369, 4294901760
      %1531 = vmatmul.mubr.f32.gmra.mrb[0].mxu0 %v1530
      %v1532 = vpop.f32.mrb[0].mxu0
      %v1533 = vadd.f32 %v1447, %v1532
      %v1534 = vpop.f32.mrb[0].mxu0
      %1535 = vmatprep.mubr.f32.mxu0 0.0
      %v1536 = vand.u32 %v1372, 4294901760
      %1537 = vmatmul.mubr.f32.gmra.mrb[0].mxu0 %v1536
      %v1538 = vpop.f32.mrb[0].mxu0
      %v1539 = vadd.f32 %v1457, %v1538
      %v1540 = vpop.f32.mrb[0].mxu0
      %1541 = vdwg.mxu0
      %1542 = vmatprep.subr.mxu0 0.0
      %v1543 = vand.u32 %v337, 4294901760
      %v1544 = vsub.f32 %v337, %v1543
      %1545 = vmatpush1.msra.mxu0 %v1544
      %1546 = vmatprep.subr.mxu0 0.0
      %1547 = vmatpush1.msra.mxu0 0.0
      %1548 = vmatprep.subr.mxu0 0.0
      %1549 = vmatpush1.msra.mxu0 0.0
      %1550 = vmatprep.subr.mxu0 0.0
      %1551 = vmatpush1.msra.mxu0 0.0
      %1552 = vmatprep.subr.mxu0 0.0
      %1553 = vmatpush1.msra.mxu0 0.0
      %1554 = vmatprep.subr.mxu0 0.0
      %1555 = vmatpush1.msra.mxu0 0.0
      %1556 = vmatprep.subr.mxu0 0.0
      %1557 = vmatpush1.msra.mxu0 0.0
      %1558 = vmatprep.subr.mxu0 0.0
      %1559 = vmatpush1.msra.mxu0 0.0
      %1560 = vmatprep.subr.mxu0 0.0
      %1561 = vmatpush1.msra.mxu0 0.0
      %1562 = vmatprep.subr.mxu0 0.0
      %1563 = vmatpush1.msra.mxu0 0.0
      %1564 = vmatprep.subr.mxu0 0.0
      %1565 = vmatpush1.msra.mxu0 0.0
      %1566 = vmatprep.subr.mxu0 0.0
      %1567 = vmatpush1.msra.mxu0 0.0
      %1568 = vmatprep.subr.mxu0 0.0
      %1569 = vmatpush1.msra.mxu0 0.0
      %1570 = vmatprep.subr.mxu0 0.0
      %1571 = vmatpush1.msra.mxu0 0.0
      %1572 = vmatprep.subr.mxu0 0.0
      %1573 = vmatpush1.msra.mxu0 0.0
      %1574 = vmatprep.subr.mxu0 0.0
      %1575 = vmatpush1.msra.mxu0 0.0
      %1576 = vmatprep.subr.mxu0 0.0
      %1577 = vmatpush1.msra.mxu0 0.0
      %1578 = vmatprep.subr.mxu0 0.0
      %1579 = vmatpush1.msra.mxu0 0.0
      %1580 = vmatprep.subr.mxu0 0.0
      %1581 = vmatpush1.msra.mxu0 0.0
      %1582 = vmatprep.subr.mxu0 0.0
      %1583 = vmatpush1.msra.mxu0 0.0
      %1584 = vmatprep.subr.mxu0 0.0
      %1585 = vmatpush1.msra.mxu0 0.0
      %1586 = vmatprep.subr.mxu0 0.0
      %1587 = vmatpush1.msra.mxu0 0.0
      %1588 = vmatprep.subr.mxu0 0.0
      %1589 = vmatpush1.msra.mxu0 0.0
      %1590 = vmatprep.subr.mxu0 0.0
      %1591 = vmatpush1.msra.mxu0 0.0
      %1592 = vmatprep.subr.mxu0 0.0
      %1593 = vmatpush1.msra.mxu0 0.0
      %1594 = vmatprep.subr.mxu0 0.0
      %1595 = vmatpush1.msra.mxu0 0.0
      %1596 = vmatprep.subr.mxu0 0.0
      %1597 = vmatpush1.msra.mxu0 0.0
      %1598 = vmatprep.subr.mxu0 0.0
      %1599 = vmatpush1.msra.mxu0 0.0
      %1600 = vmatprep.subr.mxu0 0.0
      %1601 = vmatpush1.msra.mxu0 0.0
      %1602 = vmatprep.subr.mxu0 0.0
      %1603 = vmatpush1.msra.mxu0 0.0
      %1604 = vmatprep.subr.mxu0 0.0
      %1605 = vmatpush1.msra.mxu0 0.0
      %1606 = vmatprep.subr.mxu0 0.0
      %1607 = vmatpush1.msra.mxu0 0.0
      %1608 = vmatprep.mubr.f32.mxu0 0.0
      %v1609 = vand.u32 %v1369, 4294901760
      %v1610 = vsub.f32 %v1369, %v1609
      %1611 = vmatmul.mubr.f32.gmra.mrb[0].mxu0 %v1610
      %v1612 = vpop.f32.mrb[0].mxu0
      %v1613 = vadd.f32 %v1533, %v1612
      %v1614 = vpop.f32.mrb[0].mxu0
      %1615 = vmatprep.mubr.f32.mxu0 0.0
      %v1616 = vand.u32 %v1372, 4294901760
      %v1617 = vsub.f32 %v1372, %v1616
      %1618 = vmatmul.mubr.f32.gmra.mrb[0].mxu0 %v1617
      %v1619 = vpop.f32.mrb[0].mxu0
      %v1620 = vadd.f32 %v1539, %v1619
      %v1621 = vpop.f32.mrb[0].mxu0
      %1622 = vdwg.mxu0
      %1623 = vmatprep.subr.mxu0 0.0
      %v1624 = vand.u32 %v337, 4294901760
      %1625 = vmatpush1.msra.mxu0 %v1624
      %1626 = vmatprep.subr.mxu0 0.0
      %1627 = vmatpush1.msra.mxu0 0.0
      %1628 = vmatprep.subr.mxu0 0.0
      %1629 = vmatpush1.msra.mxu0 0.0
      %1630 = vmatprep.subr.mxu0 0.0
      %1631 = vmatpush1.msra.mxu0 0.0
      %1632 = vmatprep.subr.mxu0 0.0
      %1633 = vmatpush1.msra.mxu0 0.0
      %1634 = vmatprep.subr.mxu0 0.0
      %1635 = vmatpush1.msra.mxu0 0.0
      %1636 = vmatprep.subr.mxu0 0.0
      %1637 = vmatpush1.msra.mxu0 0.0
      %1638 = vmatprep.subr.mxu0 0.0
      %1639 = vmatpush1.msra.mxu0 0.0
      %1640 = vmatprep.subr.mxu0 0.0
      %1641 = vmatpush1.msra.mxu0 0.0
      %1642 = vmatprep.subr.mxu0 0.0
      %1643 = vmatpush1.msra.mxu0 0.0
      %1644 = vmatprep.subr.mxu0 0.0
      %1645 = vmatpush1.msra.mxu0 0.0
      %1646 = vmatprep.subr.mxu0 0.0
      %1647 = vmatpush1.msra.mxu0 0.0
      %1648 = vmatprep.subr.mxu0 0.0
      %1649 = vmatpush1.msra.mxu0 0.0
      %1650 = vmatprep.subr.mxu0 0.0
      %1651 = vmatpush1.msra.mxu0 0.0
      %1652 = vmatprep.subr.mxu0 0.0
      %1653 = vmatpush1.msra.mxu0 0.0
      %1654 = vmatprep.subr.mxu0 0.0
      %1655 = vmatpush1.msra.mxu0 0.0
      %1656 = vmatprep.subr.mxu0 0.0
      %1657 = vmatpush1.msra.mxu0 0.0
      %1658 = vmatprep.subr.mxu0 0.0
      %1659 = vmatpush1.msra.mxu0 0.0
      %1660 = vmatprep.subr.mxu0 0.0
      %1661 = vmatpush1.msra.mxu0 0.0
      %1662 = vmatprep.subr.mxu0 0.0
      %1663 = vmatpush1.msra.mxu0 0.0
      %1664 = vmatprep.subr.mxu0 0.0
      %1665 = vmatpush1.msra.mxu0 0.0
      %1666 = vmatprep.subr.mxu0 0.0
      %1667 = vmatpush1.msra.mxu0 0.0
      %1668 = vmatprep.subr.mxu0 0.0
      %1669 = vmatpush1.msra.mxu0 0.0
      %1670 = vmatprep.subr.mxu0 0.0
      %1671 = vmatpush1.msra.mxu0 0.0
      %1672 = vmatprep.subr.mxu0 0.0
      %1673 = vmatpush1.msra.mxu0 0.0
      %1674 = vmatprep.subr.mxu0 0.0
      %1675 = vmatpush1.msra.mxu0 0.0
      %1676 = vmatprep.subr.mxu0 0.0
      %1677 = vmatpush1.msra.mxu0 0.0
      %1678 = vmatprep.subr.mxu0 0.0
      %1679 = vmatpush1.msra.mxu0 0.0
      %1680 = vmatprep.subr.mxu0 0.0
      %1681 = vmatpush1.msra.mxu0 0.0
      %1682 = vmatprep.subr.mxu0 0.0
      %1683 = vmatpush1.msra.mxu0 0.0
      %1684 = vmatprep.subr.mxu0 0.0
      %1685 = vmatpush1.msra.mxu0 0.0
      %1686 = vmatprep.subr.mxu0 0.0
      %1687 = vmatpush1.msra.mxu0 0.0
      %1688 = vmatprep.mubr.f32.mxu0 0.0
      %v1689 = vand.u32 %v1369, 4294901760
      %v1690 = vsub.f32 %v1369, %v1689
      %v1691 = vand.u32 %v1690, 4294901760
      %1692 = vmatmul.mubr.f32.gmra.mrb[0].mxu0 %v1691
      %v1693 = vpop.f32.mrb[0].mxu0
      %v1694 = vadd.f32 %v1613, %v1693
      %v1695 = vpop.f32.mrb[0].mxu0
      %1696 = vmatprep.mubr.f32.mxu0 0.0
      %v1697 = vand.u32 %v1372, 4294901760
      %v1698 = vsub.f32 %v1372, %v1697
      %v1699 = vand.u32 %v1698, 4294901760
      %1700 = vmatmul.mubr.f32.gmra.mrb[0].mxu0 %v1699
      %v1701 = vpop.f32.mrb[0].mxu0
      %v1702 = vadd.f32 %v1620, %v1701
      %v1703 = vpop.f32.mrb[0].mxu0
      %1704 = vdwg.mxu0
      %1705 = vmatprep.subr.mxu0 0.0
      %v1706 = vand.u32 %v337, 4294901760
      %v1707 = vsub.f32 %v337, %v1706
      %v1708 = vand.u32 %v1707, 4294901760
      %1709 = vmatpush1.msra.mxu0 %v1708
      %1710 = vmatprep.subr.mxu0 0.0
      %1711 = vmatpush1.msra.mxu0 0.0
      %1712 = vmatprep.subr.mxu0 0.0
      %1713 = vmatpush1.msra.mxu0 0.0
      %1714 = vmatprep.subr.mxu0 0.0
      %1715 = vmatpush1.msra.mxu0 0.0
      %1716 = vmatprep.subr.mxu0 0.0
      %1717 = vmatpush1.msra.mxu0 0.0
      %1718 = vmatprep.subr.mxu0 0.0
      %1719 = vmatpush1.msra.mxu0 0.0
      %1720 = vmatprep.subr.mxu0 0.0
      %1721 = vmatpush1.msra.mxu0 0.0
      %1722 = vmatprep.subr.mxu0 0.0
      %1723 = vmatpush1.msra.mxu0 0.0
      %1724 = vmatprep.subr.mxu0 0.0
      %1725 = vmatpush1.msra.mxu0 0.0
      %1726 = vmatprep.subr.mxu0 0.0
      %1727 = vmatpush1.msra.mxu0 0.0
      %1728 = vmatprep.subr.mxu0 0.0
      %1729 = vmatpush1.msra.mxu0 0.0
      %1730 = vmatprep.subr.mxu0 0.0
      %1731 = vmatpush1.msra.mxu0 0.0
      %1732 = vmatprep.subr.mxu0 0.0
      %1733 = vmatpush1.msra.mxu0 0.0
      %1734 = vmatprep.subr.mxu0 0.0
      %1735 = vmatpush1.msra.mxu0 0.0
      %1736 = vmatprep.subr.mxu0 0.0
      %1737 = vmatpush1.msra.mxu0 0.0
      %1738 = vmatprep.subr.mxu0 0.0
      %1739 = vmatpush1.msra.mxu0 0.0
      %1740 = vmatprep.subr.mxu0 0.0
      %1741 = vmatpush1.msra.mxu0 0.0
      %1742 = vmatprep.subr.mxu0 0.0
      %1743 = vmatpush1.msra.mxu0 0.0
      %1744 = vmatprep.subr.mxu0 0.0
      %1745 = vmatpush1.msra.mxu0 0.0
      %1746 = vmatprep.subr.mxu0 0.0
      %1747 = vmatpush1.msra.mxu0 0.0
      %1748 = vmatprep.subr.mxu0 0.0
      %1749 = vmatpush1.msra.mxu0 0.0
      %1750 = vmatprep.subr.mxu0 0.0
      %1751 = vmatpush1.msra.mxu0 0.0
      %1752 = vmatprep.subr.mxu0 0.0
      %1753 = vmatpush1.msra.mxu0 0.0
      %1754 = vmatprep.subr.mxu0 0.0
      %1755 = vmatpush1.msra.mxu0 0.0
      %1756 = vmatprep.subr.mxu0 0.0
      %1757 = vmatpush1.msra.mxu0 0.0
      %1758 = vmatprep.subr.mxu0 0.0
      %1759 = vmatpush1.msra.mxu0 0.0
      %1760 = vmatprep.subr.mxu0 0.0
      %1761 = vmatpush1.msra.mxu0 0.0
      %1762 = vmatprep.subr.mxu0 0.0
      %1763 = vmatpush1.msra.mxu0 0.0
      %1764 = vmatprep.subr.mxu0 0.0
      %1765 = vmatpush1.msra.mxu0 0.0
      %1766 = vmatprep.subr.mxu0 0.0
      %1767 = vmatpush1.msra.mxu0 0.0
      %1768 = vmatprep.subr.mxu0 0.0
      %1769 = vmatpush1.msra.mxu0 0.0
      %1770 = vmatprep.subr.mxu0 0.0
      %1771 = vmatpush1.msra.mxu0 0.0
      %1772 = vmatprep.mubr.f32.mxu0 0.0
      %v1773 = vand.u32 %v1369, 4294901760
      %1774 = vmatmul.mubr.f32.gmra.mrb[0].mxu0 %v1773
      %v1775 = vpop.f32.mrb[0].mxu0
      %v1776 = vadd.f32 %v1694, %v1775
      %v1777 = vpop.f32.mrb[0].mxu0
      %1778 = vmatprep.mubr.f32.mxu0 0.0
      %v1779 = vand.u32 %v1372, 4294901760
      %1780 = vmatmul.mubr.f32.gmra.mrb[0].mxu0 %v1779
      %v1781 = vpop.f32.mrb[0].mxu0
      %v1782 = vadd.f32 %v1702, %v1781
      %v1783 = vpop.f32.mrb[0].mxu0
      %1784 = vdwg.mxu0
      %1785 = vmatprep.subr.mxu0 0.0
      %v1786 = vand.u32 %v337, 4294901760
      %1787 = vmatpush1.msra.mxu0 %v1786
      %1788 = vmatprep.subr.mxu0 0.0
      %1789 = vmatpush1.msra.mxu0 0.0
      %1790 = vmatprep.subr.mxu0 0.0
      %1791 = vmatpush1.msra.mxu0 0.0
      %1792 = vmatprep.subr.mxu0 0.0
      %1793 = vmatpush1.msra.mxu0 0.0
      %1794 = vmatprep.subr.mxu0 0.0
      %1795 = vmatpush1.msra.mxu0 0.0
      %1796 = vmatprep.subr.mxu0 0.0
      %1797 = vmatpush1.msra.mxu0 0.0
      %1798 = vmatprep.subr.mxu0 0.0
      %1799 = vmatpush1.msra.mxu0 0.0
      %1800 = vmatprep.subr.mxu0 0.0
      %1801 = vmatpush1.msra.mxu0 0.0
      %1802 = vmatprep.subr.mxu0 0.0
      %1803 = vmatpush1.msra.mxu0 0.0
      %1804 = vmatprep.subr.mxu0 0.0
      %1805 = vmatpush1.msra.mxu0 0.0
      %1806 = vmatprep.subr.mxu0 0.0
      %1807 = vmatpush1.msra.mxu0 0.0
      %1808 = vmatprep.subr.mxu0 0.0
      %1809 = vmatpush1.msra.mxu0 0.0
      %1810 = vmatprep.subr.mxu0 0.0
      %1811 = vmatpush1.msra.mxu0 0.0
      %1812 = vmatprep.subr.mxu0 0.0
      %1813 = vmatpush1.msra.mxu0 0.0
      %1814 = vmatprep.subr.mxu0 0.0
      %1815 = vmatpush1.msra.mxu0 0.0
      %1816 = vmatprep.subr.mxu0 0.0
      %1817 = vmatpush1.msra.mxu0 0.0
      %1818 = vmatprep.subr.mxu0 0.0
      %1819 = vmatpush1.msra.mxu0 0.0
      %1820 = vmatprep.subr.mxu0 0.0
      %1821 = vmatpush1.msra.mxu0 0.0
      %1822 = vmatprep.subr.mxu0 0.0
      %1823 = vmatpush1.msra.mxu0 0.0
      %1824 = vmatprep.subr.mxu0 0.0
      %1825 = vmatpush1.msra.mxu0 0.0
      %1826 = vmatprep.subr.mxu0 0.0
      %1827 = vmatpush1.msra.mxu0 0.0
      %1828 = vmatprep.subr.mxu0 0.0
      %1829 = vmatpush1.msra.mxu0 0.0
      %1830 = vmatprep.subr.mxu0 0.0
      %1831 = vmatpush1.msra.mxu0 0.0
      %1832 = vmatprep.subr.mxu0 0.0
      %1833 = vmatpush1.msra.mxu0 0.0
      %1834 = vmatprep.subr.mxu0 0.0
      %1835 = vmatpush1.msra.mxu0 0.0
      %1836 = vmatprep.subr.mxu0 0.0
      %1837 = vmatpush1.msra.mxu0 0.0
      %1838 = vmatprep.subr.mxu0 0.0
      %1839 = vmatpush1.msra.mxu0 0.0
      %1840 = vmatprep.subr.mxu0 0.0
      %1841 = vmatpush1.msra.mxu0 0.0
      %1842 = vmatprep.subr.mxu0 0.0
      %1843 = vmatpush1.msra.mxu0 0.0
      %1844 = vmatprep.subr.mxu0 0.0
      %1845 = vmatpush1.msra.mxu0 0.0
      %1846 = vmatprep.subr.mxu0 0.0
      %1847 = vmatpush1.msra.mxu0 0.0
      %1848 = vmatprep.subr.mxu0 0.0
      %1849 = vmatpush1.msra.mxu0 0.0
      %1850 = vmatprep.mubr.f32.mxu0 0.0
      %v1851 = vand.u32 %v1369, 4294901760
      %1852 = vmatmul.mubr.f32.gmra.mrb[0].mxu0 %v1851
      %v1853 = vpop.f32.mrb[0].mxu0
      %v1854 = vadd.f32 %v1776, %v1853
      %v1855 = vpop.f32.mrb[0].mxu0
      %1856 = vmatprep.mubr.f32.mxu0 0.0
      %v1857 = vand.u32 %v1372, 4294901760
      %1858 = vmatmul.mubr.f32.gmra.mrb[0].mxu0 %v1857
      %v1859 = vpop.f32.mrb[0].mxu0
      %v1860 = vadd.f32 %v1782, %v1859
      %v1861 = vpop.f32.mrb[0].mxu0
      %1862 = vdwg.mxu0
      %v1863 = vadd.f32 %v854, %v1854
      %v1864 = vadd.f32 %v855, %v1860
      %s1865 = scalar_lea.vmem %s2, 16
      %v1866 = vld [vmem:[%s1865] sm:$0xff]
      %v1867 = vld [vmem:[%s1865 + $0x8] sm:$0xff]
      %v1869 = vsel %vm348, %v1866, 0
      %v1872 = vsel %vm348, %v1867, 0
      %1874 = vmatprep.subr.mxu0 0.0
      %v1875 = vand.u32 %v337, 4294901760
      %1876 = vmatpush1.msra.mxu0 %v1875
      %1877 = vmatprep.subr.mxu0 0.0
      %1878 = vmatpush1.msra.mxu0 0.0
      %1879 = vmatprep.subr.mxu0 0.0
      %1880 = vmatpush1.msra.mxu0 0.0
      %1881 = vmatprep.subr.mxu0 0.0
      %1882 = vmatpush1.msra.mxu0 0.0
      %1883 = vmatprep.subr.mxu0 0.0
      %1884 = vmatpush1.msra.mxu0 0.0
      %1885 = vmatprep.subr.mxu0 0.0
      %1886 = vmatpush1.msra.mxu0 0.0
      %1887 = vmatprep.subr.mxu0 0.0
      %1888 = vmatpush1.msra.mxu0 0.0
      %1889 = vmatprep.subr.mxu0 0.0
      %1890 = vmatpush1.msra.mxu0 0.0
      %1891 = vmatprep.subr.mxu0 0.0
      %1892 = vmatpush1.msra.mxu0 0.0
      %1893 = vmatprep.subr.mxu0 0.0
      %1894 = vmatpush1.msra.mxu0 0.0
      %1895 = vmatprep.subr.mxu0 0.0
      %1896 = vmatpush1.msra.mxu0 0.0
      %1897 = vmatprep.subr.mxu0 0.0
      %1898 = vmatpush1.msra.mxu0 0.0
      %1899 = vmatprep.subr.mxu0 0.0
      %1900 = vmatpush1.msra.mxu0 0.0
      %1901 = vmatprep.subr.mxu0 0.0
      %1902 = vmatpush1.msra.mxu0 0.0
      %1903 = vmatprep.subr.mxu0 0.0
      %1904 = vmatpush1.msra.mxu0 0.0
      %1905 = vmatprep.subr.mxu0 0.0
      %1906 = vmatpush1.msra.mxu0 0.0
      %1907 = vmatprep.subr.mxu0 0.0
      %1908 = vmatpush1.msra.mxu0 0.0
      %1909 = vmatprep.subr.mxu0 0.0
      %1910 = vmatpush1.msra.mxu0 0.0
      %1911 = vmatprep.subr.mxu0 0.0
      %1912 = vmatpush1.msra.mxu0 0.0
      %1913 = vmatprep.subr.mxu0 0.0
      %1914 = vmatpush1.msra.mxu0 0.0
      %1915 = vmatprep.subr.mxu0 0.0
      %1916 = vmatpush1.msra.mxu0 0.0
      %1917 = vmatprep.subr.mxu0 0.0
      %1918 = vmatpush1.msra.mxu0 0.0
      %1919 = vmatprep.subr.mxu0 0.0
      %1920 = vmatpush1.msra.mxu0 0.0
      %1921 = vmatprep.subr.mxu0 0.0
      %1922 = vmatpush1.msra.mxu0 0.0
      %1923 = vmatprep.subr.mxu0 0.0
      %1924 = vmatpush1.msra.mxu0 0.0
      %1925 = vmatprep.subr.mxu0 0.0
      %1926 = vmatpush1.msra.mxu0 0.0
      %1927 = vmatprep.subr.mxu0 0.0
      %1928 = vmatpush1.msra.mxu0 0.0
      %1929 = vmatprep.subr.mxu0 0.0
      %1930 = vmatpush1.msra.mxu0 0.0
      %1931 = vmatprep.subr.mxu0 0.0
      %1932 = vmatpush1.msra.mxu0 0.0
      %1933 = vmatprep.subr.mxu0 0.0
      %1934 = vmatpush1.msra.mxu0 0.0
      %1935 = vmatprep.subr.mxu0 0.0
      %1936 = vmatpush1.msra.mxu0 0.0
      %1937 = vmatprep.subr.mxu0 0.0
      %1938 = vmatpush1.msra.mxu0 0.0
      %1939 = vmatprep.mubr.f32.mxu0 0.0
      %v1940 = vand.u32 %v1869, 4294901760
      %v1941 = vsub.f32 %v1869, %v1940
      %v1942 = vand.u32 %v1941, 4294901760
      %v1943 = vsub.f32 %v1941, %v1942
      %v1944 = vand.u32 %v1943, 4294901760
      %1945 = vmatmul.mubr.f32.gmra.mrb[0].mxu0 %v1944
      %v1946 = vpop.f32.mrb[0].mxu0
      %v1947 = vadd.f32 0.0, %v1946
      %v1948 = vpop.f32.mrb[0].mxu0
      %1949 = vmatprep.mubr.f32.mxu0 0.0
      %v1950 = vand.u32 %v1872, 4294901760
      %v1951 = vsub.f32 %v1872, %v1950
      %v1952 = vand.u32 %v1951, 4294901760
      %v1953 = vsub.f32 %v1951, %v1952
      %v1954 = vand.u32 %v1953, 4294901760
      %1955 = vmatmul.mubr.f32.gmra.mrb[0].mxu0 %v1954
      %v1956 = vpop.f32.mrb[0].mxu0
      %v1957 = vadd.f32 0.0, %v1956
      %v1958 = vpop.f32.mrb[0].mxu0
      %1959 = vdwg.mxu0
      %1960 = vmatprep.subr.mxu0 0.0
      %v1961 = vand.u32 %v337, 4294901760
      %v1962 = vsub.f32 %v337, %v1961
      %v1963 = vand.u32 %v1962, 4294901760
      %v1964 = vsub.f32 %v1962, %v1963
      %v1965 = vand.u32 %v1964, 4294901760
      %1966 = vmatpush1.msra.mxu0 %v1965
      %1967 = vmatprep.subr.mxu0 0.0
      %1968 = vmatpush1.msra.mxu0 0.0
      %1969 = vmatprep.subr.mxu0 0.0
      %1970 = vmatpush1.msra.mxu0 0.0
      %1971 = vmatprep.subr.mxu0 0.0
      %1972 = vmatpush1.msra.mxu0 0.0
      %1973 = vmatprep.subr.mxu0 0.0
      %1974 = vmatpush1.msra.mxu0 0.0
      %1975 = vmatprep.subr.mxu0 0.0
      %1976 = vmatpush1.msra.mxu0 0.0
      %1977 = vmatprep.subr.mxu0 0.0
      %1978 = vmatpush1.msra.mxu0 0.0
      %1979 = vmatprep.subr.mxu0 0.0
      %1980 = vmatpush1.msra.mxu0 0.0
      %1981 = vmatprep.subr.mxu0 0.0
      %1982 = vmatpush1.msra.mxu0 0.0
      %1983 = vmatprep.subr.mxu0 0.0
      %1984 = vmatpush1.msra.mxu0 0.0
      %1985 = vmatprep.subr.mxu0 0.0
      %1986 = vmatpush1.msra.mxu0 0.0
      %1987 = vmatprep.subr.mxu0 0.0
      %1988 = vmatpush1.msra.mxu0 0.0
      %1989 = vmatprep.subr.mxu0 0.0
      %1990 = vmatpush1.msra.mxu0 0.0
      %1991 = vmatprep.subr.mxu0 0.0
      %1992 = vmatpush1.msra.mxu0 0.0
      %1993 = vmatprep.subr.mxu0 0.0
      %1994 = vmatpush1.msra.mxu0 0.0
      %1995 = vmatprep.subr.mxu0 0.0
      %1996 = vmatpush1.msra.mxu0 0.0
      %1997 = vmatprep.subr.mxu0 0.0
      %1998 = vmatpush1.msra.mxu0 0.0
      %1999 = vmatprep.subr.mxu0 0.0
      %2000 = vmatpush1.msra.mxu0 0.0
      %2001 = vmatprep.subr.mxu0 0.0
      %2002 = vmatpush1.msra.mxu0 0.0
      %2003 = vmatprep.subr.mxu0 0.0
      %2004 = vmatpush1.msra.mxu0 0.0
      %2005 = vmatprep.subr.mxu0 0.0
      %2006 = vmatpush1.msra.mxu0 0.0
      %2007 = vmatprep.subr.mxu0 0.0
      %2008 = vmatpush1.msra.mxu0 0.0
      %2009 = vmatprep.subr.mxu0 0.0
      %2010 = vmatpush1.msra.mxu0 0.0
      %2011 = vmatprep.subr.mxu0 0.0
      %2012 = vmatpush1.msra.mxu0 0.0
      %2013 = vmatprep.subr.mxu0 0.0
      %2014 = vmatpush1.msra.mxu0 0.0
      %2015 = vmatprep.subr.mxu0 0.0
      %2016 = vmatpush1.msra.mxu0 0.0
      %2017 = vmatprep.subr.mxu0 0.0
      %2018 = vmatpush1.msra.mxu0 0.0
      %2019 = vmatprep.subr.mxu0 0.0
      %2020 = vmatpush1.msra.mxu0 0.0
      %2021 = vmatprep.subr.mxu0 0.0
      %2022 = vmatpush1.msra.mxu0 0.0
      %2023 = vmatprep.subr.mxu0 0.0
      %2024 = vmatpush1.msra.mxu0 0.0
      %2025 = vmatprep.subr.mxu0 0.0
      %2026 = vmatpush1.msra.mxu0 0.0
      %2027 = vmatprep.subr.mxu0 0.0
      %2028 = vmatpush1.msra.mxu0 0.0
      %2029 = vmatprep.mubr.f32.mxu0 0.0
      %v2030 = vand.u32 %v1869, 4294901760
      %2031 = vmatmul.mubr.f32.gmra.mrb[0].mxu0 %v2030
      %v2032 = vpop.f32.mrb[0].mxu0
      %v2033 = vadd.f32 %v1947, %v2032
      %v2034 = vpop.f32.mrb[0].mxu0
      %2035 = vmatprep.mubr.f32.mxu0 0.0
      %v2036 = vand.u32 %v1872, 4294901760
      %2037 = vmatmul.mubr.f32.gmra.mrb[0].mxu0 %v2036
      %v2038 = vpop.f32.mrb[0].mxu0
      %v2039 = vadd.f32 %v1957, %v2038
      %v2040 = vpop.f32.mrb[0].mxu0
      %2041 = vdwg.mxu0
      %2042 = vmatprep.subr.mxu0 0.0
      %v2043 = vand.u32 %v337, 4294901760
      %v2044 = vsub.f32 %v337, %v2043
      %2045 = vmatpush1.msra.mxu0 %v2044
      %2046 = vmatprep.subr.mxu0 0.0
      %2047 = vmatpush1.msra.mxu0 0.0
      %2048 = vmatprep.subr.mxu0 0.0
      %2049 = vmatpush1.msra.mxu0 0.0
      %2050 = vmatprep.subr.mxu0 0.0
      %2051 = vmatpush1.msra.mxu0 0.0
      %2052 = vmatprep.subr.mxu0 0.0
      %2053 = vmatpush1.msra.mxu0 0.0
      %2054 = vmatprep.subr.mxu0 0.0
      %2055 = vmatpush1.msra.mxu0 0.0
      %2056 = vmatprep.subr.mxu0 0.0
      %2057 = vmatpush1.msra.mxu0 0.0
      %2058 = vmatprep.subr.mxu0 0.0
      %2059 = vmatpush1.msra.mxu0 0.0
      %2060 = vmatprep.subr.mxu0 0.0
      %2061 = vmatpush1.msra.mxu0 0.0
      %2062 = vmatprep.subr.mxu0 0.0
      %2063 = vmatpush1.msra.mxu0 0.0
      %2064 = vmatprep.subr.mxu0 0.0
      %2065 = vmatpush1.msra.mxu0 0.0
      %2066 = vmatprep.subr.mxu0 0.0
      %2067 = vmatpush1.msra.mxu0 0.0
      %2068 = vmatprep.subr.mxu0 0.0
      %2069 = vmatpush1.msra.mxu0 0.0
      %2070 = vmatprep.subr.mxu0 0.0
      %2071 = vmatpush1.msra.mxu0 0.0
      %2072 = vmatprep.subr.mxu0 0.0
      %2073 = vmatpush1.msra.mxu0 0.0
      %2074 = vmatprep.subr.mxu0 0.0
      %2075 = vmatpush1.msra.mxu0 0.0
      %2076 = vmatprep.subr.mxu0 0.0
      %2077 = vmatpush1.msra.mxu0 0.0
      %2078 = vmatprep.subr.mxu0 0.0
      %2079 = vmatpush1.msra.mxu0 0.0
      %2080 = vmatprep.subr.mxu0 0.0
      %2081 = vmatpush1.msra.mxu0 0.0
      %2082 = vmatprep.subr.mxu0 0.0
      %2083 = vmatpush1.msra.mxu0 0.0
      %2084 = vmatprep.subr.mxu0 0.0
      %2085 = vmatpush1.msra.mxu0 0.0
      %2086 = vmatprep.subr.mxu0 0.0
      %2087 = vmatpush1.msra.mxu0 0.0
      %2088 = vmatprep.subr.mxu0 0.0
      %2089 = vmatpush1.msra.mxu0 0.0
      %2090 = vmatprep.subr.mxu0 0.0
      %2091 = vmatpush1.msra.mxu0 0.0
      %2092 = vmatprep.subr.mxu0 0.0
      %2093 = vmatpush1.msra.mxu0 0.0
      %2094 = vmatprep.subr.mxu0 0.0
      %2095 = vmatpush1.msra.mxu0 0.0
      %2096 = vmatprep.subr.mxu0 0.0
      %2097 = vmatpush1.msra.mxu0 0.0
      %2098 = vmatprep.subr.mxu0 0.0
      %2099 = vmatpush1.msra.mxu0 0.0
      %2100 = vmatprep.subr.mxu0 0.0
      %2101 = vmatpush1.msra.mxu0 0.0
      %2102 = vmatprep.subr.mxu0 0.0
      %2103 = vmatpush1.msra.mxu0 0.0
      %2104 = vmatprep.subr.mxu0 0.0
      %2105 = vmatpush1.msra.mxu0 0.0
      %2106 = vmatprep.subr.mxu0 0.0
      %2107 = vmatpush1.msra.mxu0 0.0
      %2108 = vmatprep.mubr.f32.mxu0 0.0
      %v2109 = vand.u32 %v1869, 4294901760
      %v2110 = vsub.f32 %v1869, %v2109
      %2111 = vmatmul.mubr.f32.gmra.mrb[0].mxu0 %v2110
      %v2112 = vpop.f32.mrb[0].mxu0
      %v2113 = vadd.f32 %v2033, %v2112
      %v2114 = vpop.f32.mrb[0].mxu0
      %2115 = vmatprep.mubr.f32.mxu0 0.0
      %v2116 = vand.u32 %v1872, 4294901760
      %v2117 = vsub.f32 %v1872, %v2116
      %2118 = vmatmul.mubr.f32.gmra.mrb[0].mxu0 %v2117
      %v2119 = vpop.f32.mrb[0].mxu0
      %v2120 = vadd.f32 %v2039, %v2119
      %v2121 = vpop.f32.mrb[0].mxu0
      %2122 = vdwg.mxu0
      %2123 = vmatprep.subr.mxu0 0.0
      %v2124 = vand.u32 %v337, 4294901760
      %2125 = vmatpush1.msra.mxu0 %v2124
      %2126 = vmatprep.subr.mxu0 0.0
      %2127 = vmatpush1.msra.mxu0 0.0
      %2128 = vmatprep.subr.mxu0 0.0
      %2129 = vmatpush1.msra.mxu0 0.0
      %2130 = vmatprep.subr.mxu0 0.0
      %2131 = vmatpush1.msra.mxu0 0.0
      %2132 = vmatprep.subr.mxu0 0.0
      %2133 = vmatpush1.msra.mxu0 0.0
      %2134 = vmatprep.subr.mxu0 0.0
      %2135 = vmatpush1.msra.mxu0 0.0
      %2136 = vmatprep.subr.mxu0 0.0
      %2137 = vmatpush1.msra.mxu0 0.0
      %2138 = vmatprep.subr.mxu0 0.0
      %2139 = vmatpush1.msra.mxu0 0.0
      %2140 = vmatprep.subr.mxu0 0.0
      %2141 = vmatpush1.msra.mxu0 0.0
      %2142 = vmatprep.subr.mxu0 0.0
      %2143 = vmatpush1.msra.mxu0 0.0
      %2144 = vmatprep.subr.mxu0 0.0
      %2145 = vmatpush1.msra.mxu0 0.0
      %2146 = vmatprep.subr.mxu0 0.0
      %2147 = vmatpush1.msra.mxu0 0.0
      %2148 = vmatprep.subr.mxu0 0.0
      %2149 = vmatpush1.msra.mxu0 0.0
      %2150 = vmatprep.subr.mxu0 0.0
      %2151 = vmatpush1.msra.mxu0 0.0
      %2152 = vmatprep.subr.mxu0 0.0
      %2153 = vmatpush1.msra.mxu0 0.0
      %2154 = vmatprep.subr.mxu0 0.0
      %2155 = vmatpush1.msra.mxu0 0.0
      %2156 = vmatprep.subr.mxu0 0.0
      %2157 = vmatpush1.msra.mxu0 0.0
      %2158 = vmatprep.subr.mxu0 0.0
      %2159 = vmatpush1.msra.mxu0 0.0
      %2160 = vmatprep.subr.mxu0 0.0
      %2161 = vmatpush1.msra.mxu0 0.0
      %2162 = vmatprep.subr.mxu0 0.0
      %2163 = vmatpush1.msra.mxu0 0.0
      %2164 = vmatprep.subr.mxu0 0.0
      %2165 = vmatpush1.msra.mxu0 0.0
      %2166 = vmatprep.subr.mxu0 0.0
      %2167 = vmatpush1.msra.mxu0 0.0
      %2168 = vmatprep.subr.mxu0 0.0
      %2169 = vmatpush1.msra.mxu0 0.0
      %2170 = vmatprep.subr.mxu0 0.0
      %2171 = vmatpush1.msra.mxu0 0.0
      %2172 = vmatprep.subr.mxu0 0.0
      %2173 = vmatpush1.msra.mxu0 0.0
      %2174 = vmatprep.subr.mxu0 0.0
      %2175 = vmatpush1.msra.mxu0 0.0
      %2176 = vmatprep.subr.mxu0 0.0
      %2177 = vmatpush1.msra.mxu0 0.0
      %2178 = vmatprep.subr.mxu0 0.0
      %2179 = vmatpush1.msra.mxu0 0.0
      %2180 = vmatprep.subr.mxu0 0.0
      %2181 = vmatpush1.msra.mxu0 0.0
      %2182 = vmatprep.subr.mxu0 0.0
      %2183 = vmatpush1.msra.mxu0 0.0
      %2184 = vmatprep.subr.mxu0 0.0
      %2185 = vmatpush1.msra.mxu0 0.0
      %2186 = vmatprep.subr.mxu0 0.0
      %2187 = vmatpush1.msra.mxu0 0.0
      %2188 = vmatprep.mubr.f32.mxu0 0.0
      %v2189 = vand.u32 %v1869, 4294901760
      %v2190 = vsub.f32 %v1869, %v2189
      %v2191 = vand.u32 %v2190, 4294901760
      %2192 = vmatmul.mubr.f32.gmra.mrb[0].mxu0 %v2191
      %v2193 = vpop.f32.mrb[0].mxu0
      %v2194 = vadd.f32 %v2113, %v2193
      %v2195 = vpop.f32.mrb[0].mxu0
      %2196 = vmatprep.mubr.f32.mxu0 0.0
      %v2197 = vand.u32 %v1872, 4294901760
      %v2198 = vsub.f32 %v1872, %v2197
      %v2199 = vand.u32 %v2198, 4294901760
      %2200 = vmatmul.mubr.f32.gmra.mrb[0].mxu0 %v2199
      %v2201 = vpop.f32.mrb[0].mxu0
      %v2202 = vadd.f32 %v2120, %v2201
      %v2203 = vpop.f32.mrb[0].mxu0
      %2204 = vdwg.mxu0
      %2205 = vmatprep.subr.mxu0 0.0
      %v2206 = vand.u32 %v337, 4294901760
      %v2207 = vsub.f32 %v337, %v2206
      %v2208 = vand.u32 %v2207, 4294901760
      %2209 = vmatpush1.msra.mxu0 %v2208
      %2210 = vmatprep.subr.mxu0 0.0
      %2211 = vmatpush1.msra.mxu0 0.0
      %2212 = vmatprep.subr.mxu0 0.0
      %2213 = vmatpush1.msra.mxu0 0.0
      %2214 = vmatprep.subr.mxu0 0.0
      %2215 = vmatpush1.msra.mxu0 0.0
      %2216 = vmatprep.subr.mxu0 0.0
      %2217 = vmatpush1.msra.mxu0 0.0
      %2218 = vmatprep.subr.mxu0 0.0
      %2219 = vmatpush1.msra.mxu0 0.0
      %2220 = vmatprep.subr.mxu0 0.0
      %2221 = vmatpush1.msra.mxu0 0.0
      %2222 = vmatprep.subr.mxu0 0.0
      %2223 = vmatpush1.msra.mxu0 0.0
      %2224 = vmatprep.subr.mxu0 0.0
      %2225 = vmatpush1.msra.mxu0 0.0
      %2226 = vmatprep.subr.mxu0 0.0
      %2227 = vmatpush1.msra.mxu0 0.0
      %2228 = vmatprep.subr.mxu0 0.0
      %2229 = vmatpush1.msra.mxu0 0.0
      %2230 = vmatprep.subr.mxu0 0.0
      %2231 = vmatpush1.msra.mxu0 0.0
      %2232 = vmatprep.subr.mxu0 0.0
      %2233 = vmatpush1.msra.mxu0 0.0
      %2234 = vmatprep.subr.mxu0 0.0
      %2235 = vmatpush1.msra.mxu0 0.0
      %2236 = vmatprep.subr.mxu0 0.0
      %2237 = vmatpush1.msra.mxu0 0.0
      %2238 = vmatprep.subr.mxu0 0.0
      %2239 = vmatpush1.msra.mxu0 0.0
      %2240 = vmatprep.subr.mxu0 0.0
      %2241 = vmatpush1.msra.mxu0 0.0
      %2242 = vmatprep.subr.mxu0 0.0
      %2243 = vmatpush1.msra.mxu0 0.0
      %2244 = vmatprep.subr.mxu0 0.0
      %2245 = vmatpush1.msra.mxu0 0.0
      %2246 = vmatprep.subr.mxu0 0.0
      %2247 = vmatpush1.msra.mxu0 0.0
      %2248 = vmatprep.subr.mxu0 0.0
      %2249 = vmatpush1.msra.mxu0 0.0
      %2250 = vmatprep.subr.mxu0 0.0
      %2251 = vmatpush1.msra.mxu0 0.0
      %2252 = vmatprep.subr.mxu0 0.0
      %2253 = vmatpush1.msra.mxu0 0.0
      %2254 = vmatprep.subr.mxu0 0.0
      %2255 = vmatpush1.msra.mxu0 0.0
      %2256 = vmatprep.subr.mxu0 0.0
      %2257 = vmatpush1.msra.mxu0 0.0
      %2258 = vmatprep.subr.mxu0 0.0
      %2259 = vmatpush1.msra.mxu0 0.0
      %2260 = vmatprep.subr.mxu0 0.0
      %2261 = vmatpush1.msra.mxu0 0.0
      %2262 = vmatprep.subr.mxu0 0.0
      %2263 = vmatpush1.msra.mxu0 0.0
      %2264 = vmatprep.subr.mxu0 0.0
      %2265 = vmatpush1.msra.mxu0 0.0
      %2266 = vmatprep.subr.mxu0 0.0
      %2267 = vmatpush1.msra.mxu0 0.0
      %2268 = vmatprep.subr.mxu0 0.0
      %2269 = vmatpush1.msra.mxu0 0.0
      %2270 = vmatprep.subr.mxu0 0.0
      %2271 = vmatpush1.msra.mxu0 0.0
      %2272 = vmatprep.mubr.f32.mxu0 0.0
      %v2273 = vand.u32 %v1869, 4294901760
      %2274 = vmatmul.mubr.f32.gmra.mrb[0].mxu0 %v2273
      %v2275 = vpop.f32.mrb[0].mxu0
      %v2276 = vadd.f32 %v2194, %v2275
      %v2277 = vpop.f32.mrb[0].mxu0
      %2278 = vmatprep.mubr.f32.mxu0 0.0
      %v2279 = vand.u32 %v1872, 4294901760
      %2280 = vmatmul.mubr.f32.gmra.mrb[0].mxu0 %v2279
      %v2281 = vpop.f32.mrb[0].mxu0
      %v2282 = vadd.f32 %v2202, %v2281
      %v2283 = vpop.f32.mrb[0].mxu0
      %2284 = vdwg.mxu0
      %2285 = vmatprep.subr.mxu0 0.0
      %v2286 = vand.u32 %v337, 4294901760
      %2287 = vmatpush1.msra.mxu0 %v2286
      %2288 = vmatprep.subr.mxu0 0.0
      %2289 = vmatpush1.msra.mxu0 0.0
      %2290 = vmatprep.subr.mxu0 0.0
      %2291 = vmatpush1.msra.mxu0 0.0
      %2292 = vmatprep.subr.mxu0 0.0
      %2293 = vmatpush1.msra.mxu0 0.0
      %2294 = vmatprep.subr.mxu0 0.0
      %2295 = vmatpush1.msra.mxu0 0.0
      %2296 = vmatprep.subr.mxu0 0.0
      %2297 = vmatpush1.msra.mxu0 0.0
      %2298 = vmatprep.subr.mxu0 0.0
      %2299 = vmatpush1.msra.mxu0 0.0
      %2300 = vmatprep.subr.mxu0 0.0
      %2301 = vmatpush1.msra.mxu0 0.0
      %2302 = vmatprep.subr.mxu0 0.0
      %2303 = vmatpush1.msra.mxu0 0.0
      %2304 = vmatprep.subr.mxu0 0.0
      %2305 = vmatpush1.msra.mxu0 0.0
      %2306 = vmatprep.subr.mxu0 0.0
      %2307 = vmatpush1.msra.mxu0 0.0
      %2308 = vmatprep.subr.mxu0 0.0
      %2309 = vmatpush1.msra.mxu0 0.0
      %2310 = vmatprep.subr.mxu0 0.0
      %2311 = vmatpush1.msra.mxu0 0.0
      %2312 = vmatprep.subr.mxu0 0.0
      %2313 = vmatpush1.msra.mxu0 0.0
      %2314 = vmatprep.subr.mxu0 0.0
      %2315 = vmatpush1.msra.mxu0 0.0
      %2316 = vmatprep.subr.mxu0 0.0
      %2317 = vmatpush1.msra.mxu0 0.0
      %2318 = vmatprep.subr.mxu0 0.0
      %2319 = vmatpush1.msra.mxu0 0.0
      %2320 = vmatprep.subr.mxu0 0.0
      %2321 = vmatpush1.msra.mxu0 0.0
      %2322 = vmatprep.subr.mxu0 0.0
      %2323 = vmatpush1.msra.mxu0 0.0
      %2324 = vmatprep.subr.mxu0 0.0
      %2325 = vmatpush1.msra.mxu0 0.0
      %2326 = vmatprep.subr.mxu0 0.0
      %2327 = vmatpush1.msra.mxu0 0.0
      %2328 = vmatprep.subr.mxu0 0.0
      %2329 = vmatpush1.msra.mxu0 0.0
      %2330 = vmatprep.subr.mxu0 0.0
      %2331 = vmatpush1.msra.mxu0 0.0
      %2332 = vmatprep.subr.mxu0 0.0
      %2333 = vmatpush1.msra.mxu0 0.0
      %2334 = vmatprep.subr.mxu0 0.0
      %2335 = vmatpush1.msra.mxu0 0.0
      %2336 = vmatprep.subr.mxu0 0.0
      %2337 = vmatpush1.msra.mxu0 0.0
      %2338 = vmatprep.subr.mxu0 0.0
      %2339 = vmatpush1.msra.mxu0 0.0
      %2340 = vmatprep.subr.mxu0 0.0
      %2341 = vmatpush1.msra.mxu0 0.0
      %2342 = vmatprep.subr.mxu0 0.0
      %2343 = vmatpush1.msra.mxu0 0.0
      %2344 = vmatprep.subr.mxu0 0.0
      %2345 = vmatpush1.msra.mxu0 0.0
      %2346 = vmatprep.subr.mxu0 0.0
      %2347 = vmatpush1.msra.mxu0 0.0
      %2348 = vmatprep.subr.mxu0 0.0
      %2349 = vmatpush1.msra.mxu0 0.0
      %2350 = vmatprep.mubr.f32.mxu0 0.0
      %v2351 = vand.u32 %v1869, 4294901760
      %2352 = vmatmul.mubr.f32.gmra.mrb[0].mxu0 %v2351
      %v2353 = vpop.f32.mrb[0].mxu0
      %v2354 = vadd.f32 %v2276, %v2353
      %v2355 = vpop.f32.mrb[0].mxu0
      %2356 = vmatprep.mubr.f32.mxu0 0.0
      %v2357 = vand.u32 %v1872, 4294901760
      %2358 = vmatmul.mubr.f32.gmra.mrb[0].mxu0 %v2357
      %v2359 = vpop.f32.mrb[0].mxu0
      %v2360 = vadd.f32 %v2282, %v2359
      %v2361 = vpop.f32.mrb[0].mxu0
      %2362 = vdwg.mxu0
      %v2363 = vadd.f32 %v1363, %v2354
      %v2364 = vadd.f32 %v1364, %v2360
      %s2365 = scalar_lea.vmem %s1, 32
      %v2366 = vld [vmem:[%s2365] sm:$0xff]
      %v2367 = vld [vmem:[%s2365 + $0x8] sm:$0xff]
      %v2369 = vsel %vm348, %v2366, 0
      %v2372 = vsel %vm348, %v2367, 0
      %2374 = vmatprep.subr.mxu0 0.0
      %v2375 = vand.u32 %v339, 4294901760
      %2376 = vmatpush1.msra.mxu0 %v2375
      %2377 = vmatprep.subr.mxu0 0.0
      %2378 = vmatpush1.msra.mxu0 0.0
      %2379 = vmatprep.subr.mxu0 0.0
      %2380 = vmatpush1.msra.mxu0 0.0
      %2381 = vmatprep.subr.mxu0 0.0
      %2382 = vmatpush1.msra.mxu0 0.0
      %2383 = vmatprep.subr.mxu0 0.0
      %2384 = vmatpush1.msra.mxu0 0.0
      %2385 = vmatprep.subr.mxu0 0.0
      %2386 = vmatpush1.msra.mxu0 0.0
      %2387 = vmatprep.subr.mxu0 0.0
      %2388 = vmatpush1.msra.mxu0 0.0
      %2389 = vmatprep.subr.mxu0 0.0
      %2390 = vmatpush1.msra.mxu0 0.0
      %2391 = vmatprep.subr.mxu0 0.0
      %2392 = vmatpush1.msra.mxu0 0.0
      %2393 = vmatprep.subr.mxu0 0.0
      %2394 = vmatpush1.msra.mxu0 0.0
      %2395 = vmatprep.subr.mxu0 0.0
      %2396 = vmatpush1.msra.mxu0 0.0
      %2397 = vmatprep.subr.mxu0 0.0
      %2398 = vmatpush1.msra.mxu0 0.0
      %2399 = vmatprep.subr.mxu0 0.0
      %2400 = vmatpush1.msra.mxu0 0.0
      %2401 = vmatprep.subr.mxu0 0.0
      %2402 = vmatpush1.msra.mxu0 0.0
      %2403 = vmatprep.subr.mxu0 0.0
      %2404 = vmatpush1.msra.mxu0 0.0
      %2405 = vmatprep.subr.mxu0 0.0
      %2406 = vmatpush1.msra.mxu0 0.0
      %2407 = vmatprep.subr.mxu0 0.0
      %2408 = vmatpush1.msra.mxu0 0.0
      %2409 = vmatprep.subr.mxu0 0.0
      %2410 = vmatpush1.msra.mxu0 0.0
      %2411 = vmatprep.subr.mxu0 0.0
      %2412 = vmatpush1.msra.mxu0 0.0
      %2413 = vmatprep.subr.mxu0 0.0
      %2414 = vmatpush1.msra.mxu0 0.0
      %2415 = vmatprep.subr.mxu0 0.0
      %2416 = vmatpush1.msra.mxu0 0.0
      %2417 = vmatprep.subr.mxu0 0.0
      %2418 = vmatpush1.msra.mxu0 0.0
      %2419 = vmatprep.subr.mxu0 0.0
      %2420 = vmatpush1.msra.mxu0 0.0
      %2421 = vmatprep.subr.mxu0 0.0
      %2422 = vmatpush1.msra.mxu0 0.0
      %2423 = vmatprep.subr.mxu0 0.0
      %2424 = vmatpush1.msra.mxu0 0.0
      %2425 = vmatprep.subr.mxu0 0.0
      %2426 = vmatpush1.msra.mxu0 0.0
      %2427 = vmatprep.subr.mxu0 0.0
      %2428 = vmatpush1.msra.mxu0 0.0
      %2429 = vmatprep.subr.mxu0 0.0
      %2430 = vmatpush1.msra.mxu0 0.0
      %2431 = vmatprep.subr.mxu0 0.0
      %2432 = vmatpush1.msra.mxu0 0.0
      %2433 = vmatprep.subr.mxu0 0.0
      %2434 = vmatpush1.msra.mxu0 0.0
      %2435 = vmatprep.subr.mxu0 0.0
      %2436 = vmatpush1.msra.mxu0 0.0
      %2437 = vmatprep.subr.mxu0 0.0
      %2438 = vmatpush1.msra.mxu0 0.0
      %2439 = vmatprep.mubr.f32.mxu0 0.0
      %v2440 = vand.u32 %v2369, 4294901760
      %v2441 = vsub.f32 %v2369, %v2440
      %v2442 = vand.u32 %v2441, 4294901760
      %v2443 = vsub.f32 %v2441, %v2442
      %v2444 = vand.u32 %v2443, 4294901760
      %2445 = vmatmul.mubr.f32.gmra.mrb[0].mxu0 %v2444
      %v2446 = vpop.f32.mrb[0].mxu0
      %v2447 = vadd.f32 0.0, %v2446
      %v2448 = vpop.f32.mrb[0].mxu0
      %2449 = vmatprep.mubr.f32.mxu0 0.0
      %v2450 = vand.u32 %v2372, 4294901760
      %v2451 = vsub.f32 %v2372, %v2450
      %v2452 = vand.u32 %v2451, 4294901760
      %v2453 = vsub.f32 %v2451, %v2452
      %v2454 = vand.u32 %v2453, 4294901760
      %2455 = vmatmul.mubr.f32.gmra.mrb[0].mxu0 %v2454
      %v2456 = vpop.f32.mrb[0].mxu0
      %v2457 = vadd.f32 0.0, %v2456
      %v2458 = vpop.f32.mrb[0].mxu0
      %2459 = vdwg.mxu0
      %2460 = vmatprep.subr.mxu0 0.0
      %v2461 = vand.u32 %v339, 4294901760
      %v2462 = vsub.f32 %v339, %v2461
      %v2463 = vand.u32 %v2462, 4294901760
      %v2464 = vsub.f32 %v2462, %v2463
      %v2465 = vand.u32 %v2464, 4294901760
      %2466 = vmatpush1.msra.mxu0 %v2465
      %2467 = vmatprep.subr.mxu0 0.0
      %2468 = vmatpush1.msra.mxu0 0.0
      %2469 = vmatprep.subr.mxu0 0.0
      %2470 = vmatpush1.msra.mxu0 0.0
      %2471 = vmatprep.subr.mxu0 0.0
      %2472 = vmatpush1.msra.mxu0 0.0
      %2473 = vmatprep.subr.mxu0 0.0
      %2474 = vmatpush1.msra.mxu0 0.0
      %2475 = vmatprep.subr.mxu0 0.0
      %2476 = vmatpush1.msra.mxu0 0.0
      %2477 = vmatprep.subr.mxu0 0.0
      %2478 = vmatpush1.msra.mxu0 0.0
      %2479 = vmatprep.subr.mxu0 0.0
      %2480 = vmatpush1.msra.mxu0 0.0
      %2481 = vmatprep.subr.mxu0 0.0
      %2482 = vmatpush1.msra.mxu0 0.0
      %2483 = vmatprep.subr.mxu0 0.0
      %2484 = vmatpush1.msra.mxu0 0.0
      %2485 = vmatprep.subr.mxu0 0.0
      %2486 = vmatpush1.msra.mxu0 0.0
      %2487 = vmatprep.subr.mxu0 0.0
      %2488 = vmatpush1.msra.mxu0 0.0
      %2489 = vmatprep.subr.mxu0 0.0
      %2490 = vmatpush1.msra.mxu0 0.0
      %2491 = vmatprep.subr.mxu0 0.0
      %2492 = vmatpush1.msra.mxu0 0.0
      %2493 = vmatprep.subr.mxu0 0.0
      %2494 = vmatpush1.msra.mxu0 0.0
      %2495 = vmatprep.subr.mxu0 0.0
      %2496 = vmatpush1.msra.mxu0 0.0
      %2497 = vmatprep.subr.mxu0 0.0
      %2498 = vmatpush1.msra.mxu0 0.0
      %2499 = vmatprep.subr.mxu0 0.0
      %2500 = vmatpush1.msra.mxu0 0.0
      %2501 = vmatprep.subr.mxu0 0.0
      %2502 = vmatpush1.msra.mxu0 0.0
      %2503 = vmatprep.subr.mxu0 0.0
      %2504 = vmatpush1.msra.mxu0 0.0
      %2505 = vmatprep.subr.mxu0 0.0
      %2506 = vmatpush1.msra.mxu0 0.0
      %2507 = vmatprep.subr.mxu0 0.0
      %2508 = vmatpush1.msra.mxu0 0.0
      %2509 = vmatprep.subr.mxu0 0.0
      %2510 = vmatpush1.msra.mxu0 0.0
      %2511 = vmatprep.subr.mxu0 0.0
      %2512 = vmatpush1.msra.mxu0 0.0
      %2513 = vmatprep.subr.mxu0 0.0
      %2514 = vmatpush1.msra.mxu0 0.0
      %2515 = vmatprep.subr.mxu0 0.0
      %2516 = vmatpush1.msra.mxu0 0.0
      %2517 = vmatprep.subr.mxu0 0.0
      %2518 = vmatpush1.msra.mxu0 0.0
      %2519 = vmatprep.subr.mxu0 0.0
      %2520 = vmatpush1.msra.mxu0 0.0
      %2521 = vmatprep.subr.mxu0 0.0
      %2522 = vmatpush1.msra.mxu0 0.0
      %2523 = vmatprep.subr.mxu0 0.0
      %2524 = vmatpush1.msra.mxu0 0.0
      %2525 = vmatprep.subr.mxu0 0.0
      %2526 = vmatpush1.msra.mxu0 0.0
      %2527 = vmatprep.subr.mxu0 0.0
      %2528 = vmatpush1.msra.mxu0 0.0
      %2529 = vmatprep.mubr.f32.mxu0 0.0
      %v2530 = vand.u32 %v2369, 4294901760
      %2531 = vmatmul.mubr.f32.gmra.mrb[0].mxu0 %v2530
      %v2532 = vpop.f32.mrb[0].mxu0
      %v2533 = vadd.f32 %v2447, %v2532
      %v2534 = vpop.f32.mrb[0].mxu0
      %2535 = vmatprep.mubr.f32.mxu0 0.0
      %v2536 = vand.u32 %v2372, 4294901760
      %2537 = vmatmul.mubr.f32.gmra.mrb[0].mxu0 %v2536
      %v2538 = vpop.f32.mrb[0].mxu0
      %v2539 = vadd.f32 %v2457, %v2538
      %v2540 = vpop.f32.mrb[0].mxu0
      %2541 = vdwg.mxu0
      %2542 = vmatprep.subr.mxu0 0.0
      %v2543 = vand.u32 %v339, 4294901760
      %v2544 = vsub.f32 %v339, %v2543
      %2545 = vmatpush1.msra.mxu0 %v2544
      %2546 = vmatprep.subr.mxu0 0.0
      %2547 = vmatpush1.msra.mxu0 0.0
      %2548 = vmatprep.subr.mxu0 0.0
      %2549 = vmatpush1.msra.mxu0 0.0
      %2550 = vmatprep.subr.mxu0 0.0
      %2551 = vmatpush1.msra.mxu0 0.0
      %2552 = vmatprep.subr.mxu0 0.0
      %2553 = vmatpush1.msra.mxu0 0.0
      %2554 = vmatprep.subr.mxu0 0.0
      %2555 = vmatpush1.msra.mxu0 0.0
      %2556 = vmatprep.subr.mxu0 0.0
      %2557 = vmatpush1.msra.mxu0 0.0
      %2558 = vmatprep.subr.mxu0 0.0
      %2559 = vmatpush1.msra.mxu0 0.0
      %2560 = vmatprep.subr.mxu0 0.0
      %2561 = vmatpush1.msra.mxu0 0.0
      %2562 = vmatprep.subr.mxu0 0.0
      %2563 = vmatpush1.msra.mxu0 0.0
      %2564 = vmatprep.subr.mxu0 0.0
      %2565 = vmatpush1.msra.mxu0 0.0
      %2566 = vmatprep.subr.mxu0 0.0
      %2567 = vmatpush1.msra.mxu0 0.0
      %2568 = vmatprep.subr.mxu0 0.0
      %2569 = vmatpush1.msra.mxu0 0.0
      %2570 = vmatprep.subr.mxu0 0.0
      %2571 = vmatpush1.msra.mxu0 0.0
      %2572 = vmatprep.subr.mxu0 0.0
      %2573 = vmatpush1.msra.mxu0 0.0
      %2574 = vmatprep.subr.mxu0 0.0
      %2575 = vmatpush1.msra.mxu0 0.0
      %2576 = vmatprep.subr.mxu0 0.0
      %2577 = vmatpush1.msra.mxu0 0.0
      %2578 = vmatprep.subr.mxu0 0.0
      %2579 = vmatpush1.msra.mxu0 0.0
      %2580 = vmatprep.subr.mxu0 0.0
      %2581 = vmatpush1.msra.mxu0 0.0
      %2582 = vmatprep.subr.mxu0 0.0
      %2583 = vmatpush1.msra.mxu0 0.0
      %2584 = vmatprep.subr.mxu0 0.0
      %2585 = vmatpush1.msra.mxu0 0.0
      %2586 = vmatprep.subr.mxu0 0.0
      %2587 = vmatpush1.msra.mxu0 0.0
      %2588 = vmatprep.subr.mxu0 0.0
      %2589 = vmatpush1.msra.mxu0 0.0
      %2590 = vmatprep.subr.mxu0 0.0
      %2591 = vmatpush1.msra.mxu0 0.0
      %2592 = vmatprep.subr.mxu0 0.0
      %2593 = vmatpush1.msra.mxu0 0.0
      %2594 = vmatprep.subr.mxu0 0.0
      %2595 = vmatpush1.msra.mxu0 0.0
      %2596 = vmatprep.subr.mxu0 0.0
      %2597 = vmatpush1.msra.mxu0 0.0
      %2598 = vmatprep.subr.mxu0 0.0
      %2599 = vmatpush1.msra.mxu0 0.0
      %2600 = vmatprep.subr.mxu0 0.0
      %2601 = vmatpush1.msra.mxu0 0.0
      %2602 = vmatprep.subr.mxu0 0.0
      %2603 = vmatpush1.msra.mxu0 0.0
      %2604 = vmatprep.subr.mxu0 0.0
      %2605 = vmatpush1.msra.mxu0 0.0
      %2606 = vmatprep.subr.mxu0 0.0
      %2607 = vmatpush1.msra.mxu0 0.0
      %2608 = vmatprep.mubr.f32.mxu0 0.0
      %v2609 = vand.u32 %v2369, 4294901760
      %v2610 = vsub.f32 %v2369, %v2609
      %2611 = vmatmul.mubr.f32.gmra.mrb[0].mxu0 %v2610
      %v2612 = vpop.f32.mrb[0].mxu0
      %v2613 = vadd.f32 %v2533, %v2612
      %v2614 = vpop.f32.mrb[0].mxu0
      %2615 = vmatprep.mubr.f32.mxu0 0.0
      %v2616 = vand.u32 %v2372, 4294901760
      %v2617 = vsub.f32 %v2372, %v2616
      %2618 = vmatmul.mubr.f32.gmra.mrb[0].mxu0 %v2617
      %v2619 = vpop.f32.mrb[0].mxu0
      %v2620 = vadd.f32 %v2539, %v2619
      %v2621 = vpop.f32.mrb[0].mxu0
      %2622 = vdwg.mxu0
      %2623 = vmatprep.subr.mxu0 0.0
      %v2624 = vand.u32 %v339, 4294901760
      %2625 = vmatpush1.msra.mxu0 %v2624
      %2626 = vmatprep.subr.mxu0 0.0
      %2627 = vmatpush1.msra.mxu0 0.0
      %2628 = vmatprep.subr.mxu0 0.0
      %2629 = vmatpush1.msra.mxu0 0.0
      %2630 = vmatprep.subr.mxu0 0.0
      %2631 = vmatpush1.msra.mxu0 0.0
      %2632 = vmatprep.subr.mxu0 0.0
      %2633 = vmatpush1.msra.mxu0 0.0
      %2634 = vmatprep.subr.mxu0 0.0
      %2635 = vmatpush1.msra.mxu0 0.0
      %2636 = vmatprep.subr.mxu0 0.0
      %2637 = vmatpush1.msra.mxu0 0.0
      %2638 = vmatprep.subr.mxu0 0.0
      %2639 = vmatpush1.msra.mxu0 0.0
      %2640 = vmatprep.subr.mxu0 0.0
      %2641 = vmatpush1.msra.mxu0 0.0
      %2642 = vmatprep.subr.mxu0 0.0
      %2643 = vmatpush1.msra.mxu0 0.0
      %2644 = vmatprep.subr.mxu0 0.0
      %2645 = vmatpush1.msra.mxu0 0.0
      %2646 = vmatprep.subr.mxu0 0.0
      %2647 = vmatpush1.msra.mxu0 0.0
      %2648 = vmatprep.subr.mxu0 0.0
      %2649 = vmatpush1.msra.mxu0 0.0
      %2650 = vmatprep.subr.mxu0 0.0
      %2651 = vmatpush1.msra.mxu0 0.0
      %2652 = vmatprep.subr.mxu0 0.0
      %2653 = vmatpush1.msra.mxu0 0.0
      %2654 = vmatprep.subr.mxu0 0.0
      %2655 = vmatpush1.msra.mxu0 0.0
      %2656 = vmatprep.subr.mxu0 0.0
      %2657 = vmatpush1.msra.mxu0 0.0
      %2658 = vmatprep.subr.mxu0 0.0
      %2659 = vmatpush1.msra.mxu0 0.0
      %2660 = vmatprep.subr.mxu0 0.0
      %2661 = vmatpush1.msra.mxu0 0.0
      %2662 = vmatprep.subr.mxu0 0.0
      %2663 = vmatpush1.msra.mxu0 0.0
      %2664 = vmatprep.subr.mxu0 0.0
      %2665 = vmatpush1.msra.mxu0 0.0
      %2666 = vmatprep.subr.mxu0 0.0
      %2667 = vmatpush1.msra.mxu0 0.0
      %2668 = vmatprep.subr.mxu0 0.0
      %2669 = vmatpush1.msra.mxu0 0.0
      %2670 = vmatprep.subr.mxu0 0.0
      %2671 = vmatpush1.msra.mxu0 0.0
      %2672 = vmatprep.subr.mxu0 0.0
      %2673 = vmatpush1.msra.mxu0 0.0
      %2674 = vmatprep.subr.mxu0 0.0
      %2675 = vmatpush1.msra.mxu0 0.0
      %2676 = vmatprep.subr.mxu0 0.0
      %2677 = vmatpush1.msra.mxu0 0.0
      %2678 = vmatprep.subr.mxu0 0.0
      %2679 = vmatpush1.msra.mxu0 0.0
      %2680 = vmatprep.subr.mxu0 0.0
      %2681 = vmatpush1.msra.mxu0 0.0
      %2682 = vmatprep.subr.mxu0 0.0
      %2683 = vmatpush1.msra.mxu0 0.0
      %2684 = vmatprep.subr.mxu0 0.0
      %2685 = vmatpush1.msra.mxu0 0.0
      %2686 = vmatprep.subr.mxu0 0.0
      %2687 = vmatpush1.msra.mxu0 0.0
      %2688 = vmatprep.mubr.f32.mxu0 0.0
      %v2689 = vand.u32 %v2369, 4294901760
      %v2690 = vsub.f32 %v2369, %v2689
      %v2691 = vand.u32 %v2690, 4294901760
      %2692 = vmatmul.mubr.f32.gmra.mrb[0].mxu0 %v2691
      %v2693 = vpop.f32.mrb[0].mxu0
      %v2694 = vadd.f32 %v2613, %v2693
      %v2695 = vpop.f32.mrb[0].mxu0
      %2696 = vmatprep.mubr.f32.mxu0 0.0
      %v2697 = vand.u32 %v2372, 4294901760
      %v2698 = vsub.f32 %v2372, %v2697
      %v2699 = vand.u32 %v2698, 4294901760
      %2700 = vmatmul.mubr.f32.gmra.mrb[0].mxu0 %v2699
      %v2701 = vpop.f32.mrb[0].mxu0
      %v2702 = vadd.f32 %v2620, %v2701
      %v2703 = vpop.f32.mrb[0].mxu0
      %2704 = vdwg.mxu0
      %2705 = vmatprep.subr.mxu0 0.0
      %v2706 = vand.u32 %v339, 4294901760
      %v2707 = vsub.f32 %v339, %v2706
      %v2708 = vand.u32 %v2707, 4294901760
      %2709 = vmatpush1.msra.mxu0 %v2708
      %2710 = vmatprep.subr.mxu0 0.0
      %2711 = vmatpush1.msra.mxu0 0.0
      %2712 = vmatprep.subr.mxu0 0.0
      %2713 = vmatpush1.msra.mxu0 0.0
      %2714 = vmatprep.subr.mxu0 0.0
      %2715 = vmatpush1.msra.mxu0 0.0
      %2716 = vmatprep.subr.mxu0 0.0
      %2717 = vmatpush1.msra.mxu0 0.0
      %2718 = vmatprep.subr.mxu0 0.0
      %2719 = vmatpush1.msra.mxu0 0.0
      %2720 = vmatprep.subr.mxu0 0.0
      %2721 = vmatpush1.msra.mxu0 0.0
      %2722 = vmatprep.subr.mxu0 0.0
      %2723 = vmatpush1.msra.mxu0 0.0
      %2724 = vmatprep.subr.mxu0 0.0
      %2725 = vmatpush1.msra.mxu0 0.0
      %2726 = vmatprep.subr.mxu0 0.0
      %2727 = vmatpush1.msra.mxu0 0.0
      %2728 = vmatprep.subr.mxu0 0.0
      %2729 = vmatpush1.msra.mxu0 0.0
      %2730 = vmatprep.subr.mxu0 0.0
      %2731 = vmatpush1.msra.mxu0 0.0
      %2732 = vmatprep.subr.mxu0 0.0
      %2733 = vmatpush1.msra.mxu0 0.0
      %2734 = vmatprep.subr.mxu0 0.0
      %2735 = vmatpush1.msra.mxu0 0.0
      %2736 = vmatprep.subr.mxu0 0.0
      %2737 = vmatpush1.msra.mxu0 0.0
      %2738 = vmatprep.subr.mxu0 0.0
      %2739 = vmatpush1.msra.mxu0 0.0
      %2740 = vmatprep.subr.mxu0 0.0
      %2741 = vmatpush1.msra.mxu0 0.0
      %2742 = vmatprep.subr.mxu0 0.0
      %2743 = vmatpush1.msra.mxu0 0.0
      %2744 = vmatprep.subr.mxu0 0.0
      %2745 = vmatpush1.msra.mxu0 0.0
      %2746 = vmatprep.subr.mxu0 0.0
      %2747 = vmatpush1.msra.mxu0 0.0
      %2748 = vmatprep.subr.mxu0 0.0
      %2749 = vmatpush1.msra.mxu0 0.0
      %2750 = vmatprep.subr.mxu0 0.0
      %2751 = vmatpush1.msra.mxu0 0.0
      %2752 = vmatprep.subr.mxu0 0.0
      %2753 = vmatpush1.msra.mxu0 0.0
      %2754 = vmatprep.subr.mxu0 0.0
      %2755 = vmatpush1.msra.mxu0 0.0
      %2756 = vmatprep.subr.mxu0 0.0
      %2757 = vmatpush1.msra.mxu0 0.0
      %2758 = vmatprep.subr.mxu0 0.0
      %2759 = vmatpush1.msra.mxu0 0.0
      %2760 = vmatprep.subr.mxu0 0.0
      %2761 = vmatpush1.msra.mxu0 0.0
      %2762 = vmatprep.subr.mxu0 0.0
      %2763 = vmatpush1.msra.mxu0 0.0
      %2764 = vmatprep.subr.mxu0 0.0
      %2765 = vmatpush1.msra.mxu0 0.0
      %2766 = vmatprep.subr.mxu0 0.0
      %2767 = vmatpush1.msra.mxu0 0.0
      %2768 = vmatprep.subr.mxu0 0.0
      %2769 = vmatpush1.msra.mxu0 0.0
      %2770 = vmatprep.subr.mxu0 0.0
      %2771 = vmatpush1.msra.mxu0 0.0
      %2772 = vmatprep.mubr.f32.mxu0 0.0
      %v2773 = vand.u32 %v2369, 4294901760
      %2774 = vmatmul.mubr.f32.gmra.mrb[0].mxu0 %v2773
      %v2775 = vpop.f32.mrb[0].mxu0
      %v2776 = vadd.f32 %v2694, %v2775
      %v2777 = vpop.f32.mrb[0].mxu0
      %2778 = vmatprep.mubr.f32.mxu0 0.0
      %v2779 = vand.u32 %v2372, 4294901760
      %2780 = vmatmul.mubr.f32.gmra.mrb[0].mxu0 %v2779
      %v2781 = vpop.f32.mrb[0].mxu0
      %v2782 = vadd.f32 %v2702, %v2781
      %v2783 = vpop.f32.mrb[0].mxu0
      %2784 = vdwg.mxu0
      %2785 = vmatprep.subr.mxu0 0.0
      %v2786 = vand.u32 %v339, 4294901760
      %2787 = vmatpush1.msra.mxu0 %v2786
      %2788 = vmatprep.subr.mxu0 0.0
      %2789 = vmatpush1.msra.mxu0 0.0
      %2790 = vmatprep.subr.mxu0 0.0
      %2791 = vmatpush1.msra.mxu0 0.0
      %2792 = vmatprep.subr.mxu0 0.0
      %2793 = vmatpush1.msra.mxu0 0.0
      %2794 = vmatprep.subr.mxu0 0.0
      %2795 = vmatpush1.msra.mxu0 0.0
      %2796 = vmatprep.subr.mxu0 0.0
      %2797 = vmatpush1.msra.mxu0 0.0
      %2798 = vmatprep.subr.mxu0 0.0
      %2799 = vmatpush1.msra.mxu0 0.0
      %2800 = vmatprep.subr.mxu0 0.0
      %2801 = vmatpush1.msra.mxu0 0.0
      %2802 = vmatprep.subr.mxu0 0.0
      %2803 = vmatpush1.msra.mxu0 0.0
      %2804 = vmatprep.subr.mxu0 0.0
      %2805 = vmatpush1.msra.mxu0 0.0
      %2806 = vmatprep.subr.mxu0 0.0
      %2807 = vmatpush1.msra.mxu0 0.0
      %2808 = vmatprep.subr.mxu0 0.0
      %2809 = vmatpush1.msra.mxu0 0.0
      %2810 = vmatprep.subr.mxu0 0.0
      %2811 = vmatpush1.msra.mxu0 0.0
      %2812 = vmatprep.subr.mxu0 0.0
      %2813 = vmatpush1.msra.mxu0 0.0
      %2814 = vmatprep.subr.mxu0 0.0
      %2815 = vmatpush1.msra.mxu0 0.0
      %2816 = vmatprep.subr.mxu0 0.0
      %2817 = vmatpush1.msra.mxu0 0.0
      %2818 = vmatprep.subr.mxu0 0.0
      %2819 = vmatpush1.msra.mxu0 0.0
      %2820 = vmatprep.subr.mxu0 0.0
      %2821 = vmatpush1.msra.mxu0 0.0
      %2822 = vmatprep.subr.mxu0 0.0
      %2823 = vmatpush1.msra.mxu0 0.0
      %2824 = vmatprep.subr.mxu0 0.0
      %2825 = vmatpush1.msra.mxu0 0.0
      %2826 = vmatprep.subr.mxu0 0.0
      %2827 = vmatpush1.msra.mxu0 0.0
      %2828 = vmatprep.subr.mxu0 0.0
      %2829 = vmatpush1.msra.mxu0 0.0
      %2830 = vmatprep.subr.mxu0 0.0
      %2831 = vmatpush1.msra.mxu0 0.0
      %2832 = vmatprep.subr.mxu0 0.0
      %2833 = vmatpush1.msra.mxu0 0.0
      %2834 = vmatprep.subr.mxu0 0.0
      %2835 = vmatpush1.msra.mxu0 0.0
      %2836 = vmatprep.subr.mxu0 0.0
      %2837 = vmatpush1.msra.mxu0 0.0
      %2838 = vmatprep.subr.mxu0 0.0
      %2839 = vmatpush1.msra.mxu0 0.0
      %2840 = vmatprep.subr.mxu0 0.0
      %2841 = vmatpush1.msra.mxu0 0.0
      %2842 = vmatprep.subr.mxu0 0.0
      %2843 = vmatpush1.msra.mxu0 0.0
      %2844 = vmatprep.subr.mxu0 0.0
      %2845 = vmatpush1.msra.mxu0 0.0
      %2846 = vmatprep.subr.mxu0 0.0
      %2847 = vmatpush1.msra.mxu0 0.0
      %2848 = vmatprep.subr.mxu0 0.0
      %2849 = vmatpush1.msra.mxu0 0.0
      %2850 = vmatprep.mubr.f32.mxu0 0.0
      %v2851 = vand.u32 %v2369, 4294901760
      %2852 = vmatmul.mubr.f32.gmra.mrb[0].mxu0 %v2851
      %v2853 = vpop.f32.mrb[0].mxu0
      %v2854 = vadd.f32 %v2776, %v2853
      %v2855 = vpop.f32.mrb[0].mxu0
      %2856 = vmatprep.mubr.f32.mxu0 0.0
      %v2857 = vand.u32 %v2372, 4294901760
      %2858 = vmatmul.mubr.f32.gmra.mrb[0].mxu0 %v2857
      %v2859 = vpop.f32.mrb[0].mxu0
      %v2860 = vadd.f32 %v2782, %v2859
      %v2861 = vpop.f32.mrb[0].mxu0
      %2862 = vdwg.mxu0
      %v2863 = vadd.f32 %v1863, %v2854
      %v2864 = vadd.f32 %v1864, %v2860
      %s2865 = scalar_lea.vmem %s2, 32
      %v2866 = vld [vmem:[%s2865] sm:$0xff]
      %v2867 = vld [vmem:[%s2865 + $0x8] sm:$0xff]
      %v2869 = vsel %vm348, %v2866, 0
      %v2872 = vsel %vm348, %v2867, 0
      %2874 = vmatprep.subr.mxu0 0.0
      %v2875 = vand.u32 %v339, 4294901760
      %2876 = vmatpush1.msra.mxu0 %v2875
      %2877 = vmatprep.subr.mxu0 0.0
      %2878 = vmatpush1.msra.mxu0 0.0
      %2879 = vmatprep.subr.mxu0 0.0
      %2880 = vmatpush1.msra.mxu0 0.0
      %2881 = vmatprep.subr.mxu0 0.0
      %2882 = vmatpush1.msra.mxu0 0.0
      %2883 = vmatprep.subr.mxu0 0.0
      %2884 = vmatpush1.msra.mxu0 0.0
      %2885 = vmatprep.subr.mxu0 0.0
      %2886 = vmatpush1.msra.mxu0 0.0
      %2887 = vmatprep.subr.mxu0 0.0
      %2888 = vmatpush1.msra.mxu0 0.0
      %2889 = vmatprep.subr.mxu0 0.0
      %2890 = vmatpush1.msra.mxu0 0.0
      %2891 = vmatprep.subr.mxu0 0.0
      %2892 = vmatpush1.msra.mxu0 0.0
      %2893 = vmatprep.subr.mxu0 0.0
      %2894 = vmatpush1.msra.mxu0 0.0
      %2895 = vmatprep.subr.mxu0 0.0
      %2896 = vmatpush1.msra.mxu0 0.0
      %2897 = vmatprep.subr.mxu0 0.0
      %2898 = vmatpush1.msra.mxu0 0.0
      %2899 = vmatprep.subr.mxu0 0.0
      %2900 = vmatpush1.msra.mxu0 0.0
      %2901 = vmatprep.subr.mxu0 0.0
      %2902 = vmatpush1.msra.mxu0 0.0
      %2903 = vmatprep.subr.mxu0 0.0
      %2904 = vmatpush1.msra.mxu0 0.0
      %2905 = vmatprep.subr.mxu0 0.0
      %2906 = vmatpush1.msra.mxu0 0.0
      %2907 = vmatprep.subr.mxu0 0.0
      %2908 = vmatpush1.msra.mxu0 0.0
      %2909 = vmatprep.subr.mxu0 0.0
      %2910 = vmatpush1.msra.mxu0 0.0
      %2911 = vmatprep.subr.mxu0 0.0
      %2912 = vmatpush1.msra.mxu0 0.0
      %2913 = vmatprep.subr.mxu0 0.0
      %2914 = vmatpush1.msra.mxu0 0.0
      %2915 = vmatprep.subr.mxu0 0.0
      %2916 = vmatpush1.msra.mxu0 0.0
      %2917 = vmatprep.subr.mxu0 0.0
      %2918 = vmatpush1.msra.mxu0 0.0
      %2919 = vmatprep.subr.mxu0 0.0
      %2920 = vmatpush1.msra.mxu0 0.0
      %2921 = vmatprep.subr.mxu0 0.0
      %2922 = vmatpush1.msra.mxu0 0.0
      %2923 = vmatprep.subr.mxu0 0.0
      %2924 = vmatpush1.msra.mxu0 0.0
      %2925 = vmatprep.subr.mxu0 0.0
      %2926 = vmatpush1.msra.mxu0 0.0
      %2927 = vmatprep.subr.mxu0 0.0
      %2928 = vmatpush1.msra.mxu0 0.0
      %2929 = vmatprep.subr.mxu0 0.0
      %2930 = vmatpush1.msra.mxu0 0.0
      %2931 = vmatprep.subr.mxu0 0.0
      %2932 = vmatpush1.msra.mxu0 0.0
      %2933 = vmatprep.subr.mxu0 0.0
      %2934 = vmatpush1.msra.mxu0 0.0
      %2935 = vmatprep.subr.mxu0 0.0
      %2936 = vmatpush1.msra.mxu0 0.0
      %2937 = vmatprep.subr.mxu0 0.0
      %2938 = vmatpush1.msra.mxu0 0.0
      %2939 = vmatprep.mubr.f32.mxu0 0.0
      %v2940 = vand.u32 %v2869, 4294901760
      %v2941 = vsub.f32 %v2869, %v2940
      %v2942 = vand.u32 %v2941, 4294901760
      %v2943 = vsub.f32 %v2941, %v2942
      %v2944 = vand.u32 %v2943, 4294901760
      %2945 = vmatmul.mubr.f32.gmra.mrb[0].mxu0 %v2944
      %v2946 = vpop.f32.mrb[0].mxu0
      %v2947 = vadd.f32 0.0, %v2946
      %v2948 = vpop.f32.mrb[0].mxu0
      %2949 = vmatprep.mubr.f32.mxu0 0.0
      %v2950 = vand.u32 %v2872, 4294901760
      %v2951 = vsub.f32 %v2872, %v2950
      %v2952 = vand.u32 %v2951, 4294901760
      %v2953 = vsub.f32 %v2951, %v2952
      %v2954 = vand.u32 %v2953, 4294901760
      %2955 = vmatmul.mubr.f32.gmra.mrb[0].mxu0 %v2954
      %v2956 = vpop.f32.mrb[0].mxu0
      %v2957 = vadd.f32 0.0, %v2956
      %v2958 = vpop.f32.mrb[0].mxu0
      %2959 = vdwg.mxu0
      %2960 = vmatprep.subr.mxu0 0.0
      %v2961 = vand.u32 %v339, 4294901760
      %v2962 = vsub.f32 %v339, %v2961
      %v2963 = vand.u32 %v2962, 4294901760
      %v2964 = vsub.f32 %v2962, %v2963
      %v2965 = vand.u32 %v2964, 4294901760
      %2966 = vmatpush1.msra.mxu0 %v2965
      %2967 = vmatprep.subr.mxu0 0.0
      %2968 = vmatpush1.msra.mxu0 0.0
      %2969 = vmatprep.subr.mxu0 0.0
      %2970 = vmatpush1.msra.mxu0 0.0
      %2971 = vmatprep.subr.mxu0 0.0
      %2972 = vmatpush1.msra.mxu0 0.0
      %2973 = vmatprep.subr.mxu0 0.0
      %2974 = vmatpush1.msra.mxu0 0.0
      %2975 = vmatprep.subr.mxu0 0.0
      %2976 = vmatpush1.msra.mxu0 0.0
      %2977 = vmatprep.subr.mxu0 0.0
      %2978 = vmatpush1.msra.mxu0 0.0
      %2979 = vmatprep.subr.mxu0 0.0
      %2980 = vmatpush1.msra.mxu0 0.0
      %2981 = vmatprep.subr.mxu0 0.0
      %2982 = vmatpush1.msra.mxu0 0.0
      %2983 = vmatprep.subr.mxu0 0.0
      %2984 = vmatpush1.msra.mxu0 0.0
      %2985 = vmatprep.subr.mxu0 0.0
      %2986 = vmatpush1.msra.mxu0 0.0
      %2987 = vmatprep.subr.mxu0 0.0
      %2988 = vmatpush1.msra.mxu0 0.0
      %2989 = vmatprep.subr.mxu0 0.0
      %2990 = vmatpush1.msra.mxu0 0.0
      %2991 = vmatprep.subr.mxu0 0.0
      %2992 = vmatpush1.msra.mxu0 0.0
      %2993 = vmatprep.subr.mxu0 0.0
      %2994 = vmatpush1.msra.mxu0 0.0
      %2995 = vmatprep.subr.mxu0 0.0
      %2996 = vmatpush1.msra.mxu0 0.0
      %2997 = vmatprep.subr.mxu0 0.0
      %2998 = vmatpush1.msra.mxu0 0.0
      %2999 = vmatprep.subr.mxu0 0.0
      %3000 = vmatpush1.msra.mxu0 0.0
      %3001 = vmatprep.subr.mxu0 0.0
      %3002 = vmatpush1.msra.mxu0 0.0
      %3003 = vmatprep.subr.mxu0 0.0
      %3004 = vmatpush1.msra.mxu0 0.0
      %3005 = vmatprep.subr.mxu0 0.0
      %3006 = vmatpush1.msra.mxu0 0.0
      %3007 = vmatprep.subr.mxu0 0.0
      %3008 = vmatpush1.msra.mxu0 0.0
      %3009 = vmatprep.subr.mxu0 0.0
      %3010 = vmatpush1.msra.mxu0 0.0
      %3011 = vmatprep.subr.mxu0 0.0
      %3012 = vmatpush1.msra.mxu0 0.0
      %3013 = vmatprep.subr.mxu0 0.0
      %3014 = vmatpush1.msra.mxu0 0.0
      %3015 = vmatprep.subr.mxu0 0.0
      %3016 = vmatpush1.msra.mxu0 0.0
      %3017 = vmatprep.subr.mxu0 0.0
      %3018 = vmatpush1.msra.mxu0 0.0
      %3019 = vmatprep.subr.mxu0 0.0
      %3020 = vmatpush1.msra.mxu0 0.0
      %3021 = vmatprep.subr.mxu0 0.0
      %3022 = vmatpush1.msra.mxu0 0.0
      %3023 = vmatprep.subr.mxu0 0.0
      %3024 = vmatpush1.msra.mxu0 0.0
      %3025 = vmatprep.subr.mxu0 0.0
      %3026 = vmatpush1.msra.mxu0 0.0
      %3027 = vmatprep.subr.mxu0 0.0
      %3028 = vmatpush1.msra.mxu0 0.0
      %3029 = vmatprep.mubr.f32.mxu0 0.0
      %v3030 = vand.u32 %v2869, 4294901760
      %3031 = vmatmul.mubr.f32.gmra.mrb[0].mxu0 %v3030
      %v3032 = vpop.f32.mrb[0].mxu0
      %v3033 = vadd.f32 %v2947, %v3032
      %v3034 = vpop.f32.mrb[0].mxu0
      %3035 = vmatprep.mubr.f32.mxu0 0.0
      %v3036 = vand.u32 %v2872, 4294901760
      %3037 = vmatmul.mubr.f32.gmra.mrb[0].mxu0 %v3036
      %v3038 = vpop.f32.mrb[0].mxu0
      %v3039 = vadd.f32 %v2957, %v3038
      %v3040 = vpop.f32.mrb[0].mxu0
      %3041 = vdwg.mxu0
      %3042 = vmatprep.subr.mxu0 0.0
      %v3043 = vand.u32 %v339, 4294901760
      %v3044 = vsub.f32 %v339, %v3043
      %3045 = vmatpush1.msra.mxu0 %v3044
      %3046 = vmatprep.subr.mxu0 0.0
      %3047 = vmatpush1.msra.mxu0 0.0
      %3048 = vmatprep.subr.mxu0 0.0
      %3049 = vmatpush1.msra.mxu0 0.0
      %3050 = vmatprep.subr.mxu0 0.0
      %3051 = vmatpush1.msra.mxu0 0.0
      %3052 = vmatprep.subr.mxu0 0.0
      %3053 = vmatpush1.msra.mxu0 0.0
      %3054 = vmatprep.subr.mxu0 0.0
      %3055 = vmatpush1.msra.mxu0 0.0
      %3056 = vmatprep.subr.mxu0 0.0
      %3057 = vmatpush1.msra.mxu0 0.0
      %3058 = vmatprep.subr.mxu0 0.0
      %3059 = vmatpush1.msra.mxu0 0.0
      %3060 = vmatprep.subr.mxu0 0.0
      %3061 = vmatpush1.msra.mxu0 0.0
      %3062 = vmatprep.subr.mxu0 0.0
      %3063 = vmatpush1.msra.mxu0 0.0
      %3064 = vmatprep.subr.mxu0 0.0
      %3065 = vmatpush1.msra.mxu0 0.0
      %3066 = vmatprep.subr.mxu0 0.0
      %3067 = vmatpush1.msra.mxu0 0.0
      %3068 = vmatprep.subr.mxu0 0.0
      %3069 = vmatpush1.msra.mxu0 0.0
      %3070 = vmatprep.subr.mxu0 0.0
      %3071 = vmatpush1.msra.mxu0 0.0
      %3072 = vmatprep.subr.mxu0 0.0
      %3073 = vmatpush1.msra.mxu0 0.0
      %3074 = vmatprep.subr.mxu0 0.0
      %3075 = vmatpush1.msra.mxu0 0.0
      %3076 = vmatprep.subr.mxu0 0.0
      %3077 = vmatpush1.msra.mxu0 0.0
      %3078 = vmatprep.subr.mxu0 0.0
      %3079 = vmatpush1.msra.mxu0 0.0
      %3080 = vmatprep.subr.mxu0 0.0
      %3081 = vmatpush1.msra.mxu0 0.0
      %3082 = vmatprep.subr.mxu0 0.0
      %3083 = vmatpush1.msra.mxu0 0.0
      %3084 = vmatprep.subr.mxu0 0.0
      %3085 = vmatpush1.msra.mxu0 0.0
      %3086 = vmatprep.subr.mxu0 0.0
      %3087 = vmatpush1.msra.mxu0 0.0
      %3088 = vmatprep.subr.mxu0 0.0
      %3089 = vmatpush1.msra.mxu0 0.0
      %3090 = vmatprep.subr.mxu0 0.0
      %3091 = vmatpush1.msra.mxu0 0.0
      %3092 = vmatprep.subr.mxu0 0.0
      %3093 = vmatpush1.msra.mxu0 0.0
      %3094 = vmatprep.subr.mxu0 0.0
      %3095 = vmatpush1.msra.mxu0 0.0
      %3096 = vmatprep.subr.mxu0 0.0
      %3097 = vmatpush1.msra.mxu0 0.0
      %3098 = vmatprep.subr.mxu0 0.0
      %3099 = vmatpush1.msra.mxu0 0.0
      %3100 = vmatprep.subr.mxu0 0.0
      %3101 = vmatpush1.msra.mxu0 0.0
      %3102 = vmatprep.subr.mxu0 0.0
      %3103 = vmatpush1.msra.mxu0 0.0
      %3104 = vmatprep.subr.mxu0 0.0
      %3105 = vmatpush1.msra.mxu0 0.0
      %3106 = vmatprep.subr.mxu0 0.0
      %3107 = vmatpush1.msra.mxu0 0.0
      %3108 = vmatprep.mubr.f32.mxu0 0.0
      %v3109 = vand.u32 %v2869, 4294901760
      %v3110 = vsub.f32 %v2869, %v3109
      %3111 = vmatmul.mubr.f32.gmra.mrb[0].mxu0 %v3110
      %v3112 = vpop.f32.mrb[0].mxu0
      %v3113 = vadd.f32 %v3033, %v3112
      %v3114 = vpop.f32.mrb[0].mxu0
      %3115 = vmatprep.mubr.f32.mxu0 0.0
      %v3116 = vand.u32 %v2872, 4294901760
      %v3117 = vsub.f32 %v2872, %v3116
      %3118 = vmatmul.mubr.f32.gmra.mrb[0].mxu0 %v3117
      %v3119 = vpop.f32.mrb[0].mxu0
      %v3120 = vadd.f32 %v3039, %v3119
      %v3121 = vpop.f32.mrb[0].mxu0
      %3122 = vdwg.mxu0
      %3123 = vmatprep.subr.mxu0 0.0
      %v3124 = vand.u32 %v339, 4294901760
      %3125 = vmatpush1.msra.mxu0 %v3124
      %3126 = vmatprep.subr.mxu0 0.0
      %3127 = vmatpush1.msra.mxu0 0.0
      %3128 = vmatprep.subr.mxu0 0.0
      %3129 = vmatpush1.msra.mxu0 0.0
      %3130 = vmatprep.subr.mxu0 0.0
      %3131 = vmatpush1.msra.mxu0 0.0
      %3132 = vmatprep.subr.mxu0 0.0
      %3133 = vmatpush1.msra.mxu0 0.0
      %3134 = vmatprep.subr.mxu0 0.0
      %3135 = vmatpush1.msra.mxu0 0.0
      %3136 = vmatprep.subr.mxu0 0.0
      %3137 = vmatpush1.msra.mxu0 0.0
      %3138 = vmatprep.subr.mxu0 0.0
      %3139 = vmatpush1.msra.mxu0 0.0
      %3140 = vmatprep.subr.mxu0 0.0
      %3141 = vmatpush1.msra.mxu0 0.0
      %3142 = vmatprep.subr.mxu0 0.0
      %3143 = vmatpush1.msra.mxu0 0.0
      %3144 = vmatprep.subr.mxu0 0.0
      %3145 = vmatpush1.msra.mxu0 0.0
      %3146 = vmatprep.subr.mxu0 0.0
      %3147 = vmatpush1.msra.mxu0 0.0
      %3148 = vmatprep.subr.mxu0 0.0
      %3149 = vmatpush1.msra.mxu0 0.0
      %3150 = vmatprep.subr.mxu0 0.0
      %3151 = vmatpush1.msra.mxu0 0.0
      %3152 = vmatprep.subr.mxu0 0.0
      %3153 = vmatpush1.msra.mxu0 0.0
      %3154 = vmatprep.subr.mxu0 0.0
      %3155 = vmatpush1.msra.mxu0 0.0
      %3156 = vmatprep.subr.mxu0 0.0
      %3157 = vmatpush1.msra.mxu0 0.0
      %3158 = vmatprep.subr.mxu0 0.0
      %3159 = vmatpush1.msra.mxu0 0.0
      %3160 = vmatprep.subr.mxu0 0.0
      %3161 = vmatpush1.msra.mxu0 0.0
      %3162 = vmatprep.subr.mxu0 0.0
      %3163 = vmatpush1.msra.mxu0 0.0
      %3164 = vmatprep.subr.mxu0 0.0
      %3165 = vmatpush1.msra.mxu0 0.0
      %3166 = vmatprep.subr.mxu0 0.0
      %3167 = vmatpush1.msra.mxu0 0.0
      %3168 = vmatprep.subr.mxu0 0.0
      %3169 = vmatpush1.msra.mxu0 0.0
      %3170 = vmatprep.subr.mxu0 0.0
      %3171 = vmatpush1.msra.mxu0 0.0
      %3172 = vmatprep.subr.mxu0 0.0
      %3173 = vmatpush1.msra.mxu0 0.0
      %3174 = vmatprep.subr.mxu0 0.0
      %3175 = vmatpush1.msra.mxu0 0.0
      %3176 = vmatprep.subr.mxu0 0.0
      %3177 = vmatpush1.msra.mxu0 0.0
      %3178 = vmatprep.subr.mxu0 0.0
      %3179 = vmatpush1.msra.mxu0 0.0
      %3180 = vmatprep.subr.mxu0 0.0
      %3181 = vmatpush1.msra.mxu0 0.0
      %3182 = vmatprep.subr.mxu0 0.0
      %3183 = vmatpush1.msra.mxu0 0.0
      %3184 = vmatprep.subr.mxu0 0.0
      %3185 = vmatpush1.msra.mxu0 0.0
      %3186 = vmatprep.subr.mxu0 0.0
      %3187 = vmatpush1.msra.mxu0 0.0
      %3188 = vmatprep.mubr.f32.mxu0 0.0
      %v3189 = vand.u32 %v2869, 4294901760
      %v3190 = vsub.f32 %v2869, %v3189
      %v3191 = vand.u32 %v3190, 4294901760
      %3192 = vmatmul.mubr.f32.gmra.mrb[0].mxu0 %v3191
      %v3193 = vpop.f32.mrb[0].mxu0
      %v3194 = vadd.f32 %v3113, %v3193
      %v3195 = vpop.f32.mrb[0].mxu0
      %3196 = vmatprep.mubr.f32.mxu0 0.0
      %v3197 = vand.u32 %v2872, 4294901760
      %v3198 = vsub.f32 %v2872, %v3197
      %v3199 = vand.u32 %v3198, 4294901760
      %3200 = vmatmul.mubr.f32.gmra.mrb[0].mxu0 %v3199
      %v3201 = vpop.f32.mrb[0].mxu0
      %v3202 = vadd.f32 %v3120, %v3201
      %v3203 = vpop.f32.mrb[0].mxu0
      %3204 = vdwg.mxu0
      %3205 = vmatprep.subr.mxu0 0.0
      %v3206 = vand.u32 %v339, 4294901760
      %v3207 = vsub.f32 %v339, %v3206
      %v3208 = vand.u32 %v3207, 4294901760
      %3209 = vmatpush1.msra.mxu0 %v3208
      %3210 = vmatprep.subr.mxu0 0.0
      %3211 = vmatpush1.msra.mxu0 0.0
      %3212 = vmatprep.subr.mxu0 0.0
      %3213 = vmatpush1.msra.mxu0 0.0
      %3214 = vmatprep.subr.mxu0 0.0
      %3215 = vmatpush1.msra.mxu0 0.0
      %3216 = vmatprep.subr.mxu0 0.0
      %3217 = vmatpush1.msra.mxu0 0.0
      %3218 = vmatprep.subr.mxu0 0.0
      %3219 = vmatpush1.msra.mxu0 0.0
      %3220 = vmatprep.subr.mxu0 0.0
      %3221 = vmatpush1.msra.mxu0 0.0
      %3222 = vmatprep.subr.mxu0 0.0
      %3223 = vmatpush1.msra.mxu0 0.0
      %3224 = vmatprep.subr.mxu0 0.0
      %3225 = vmatpush1.msra.mxu0 0.0
      %3226 = vmatprep.subr.mxu0 0.0
      %3227 = vmatpush1.msra.mxu0 0.0
      %3228 = vmatprep.subr.mxu0 0.0
      %3229 = vmatpush1.msra.mxu0 0.0
      %3230 = vmatprep.subr.mxu0 0.0
      %3231 = vmatpush1.msra.mxu0 0.0
      %3232 = vmatprep.subr.mxu0 0.0
      %3233 = vmatpush1.msra.mxu0 0.0
      %3234 = vmatprep.subr.mxu0 0.0
      %3235 = vmatpush1.msra.mxu0 0.0
      %3236 = vmatprep.subr.mxu0 0.0
      %3237 = vmatpush1.msra.mxu0 0.0
      %3238 = vmatprep.subr.mxu0 0.0
      %3239 = vmatpush1.msra.mxu0 0.0
      %3240 = vmatprep.subr.mxu0 0.0
      %3241 = vmatpush1.msra.mxu0 0.0
      %3242 = vmatprep.subr.mxu0 0.0
      %3243 = vmatpush1.msra.mxu0 0.0
      %3244 = vmatprep.subr.mxu0 0.0
      %3245 = vmatpush1.msra.mxu0 0.0
      %3246 = vmatprep.subr.mxu0 0.0
      %3247 = vmatpush1.msra.mxu0 0.0
      %3248 = vmatprep.subr.mxu0 0.0
      %3249 = vmatpush1.msra.mxu0 0.0
      %3250 = vmatprep.subr.mxu0 0.0
      %3251 = vmatpush1.msra.mxu0 0.0
      %3252 = vmatprep.subr.mxu0 0.0
      %3253 = vmatpush1.msra.mxu0 0.0
      %3254 = vmatprep.subr.mxu0 0.0
      %3255 = vmatpush1.msra.mxu0 0.0
      %3256 = vmatprep.subr.mxu0 0.0
      %3257 = vmatpush1.msra.mxu0 0.0
      %3258 = vmatprep.subr.mxu0 0.0
      %3259 = vmatpush1.msra.mxu0 0.0
      %3260 = vmatprep.subr.mxu0 0.0
      %3261 = vmatpush1.msra.mxu0 0.0
      %3262 = vmatprep.subr.mxu0 0.0
      %3263 = vmatpush1.msra.mxu0 0.0
      %3264 = vmatprep.subr.mxu0 0.0
      %3265 = vmatpush1.msra.mxu0 0.0
      %3266 = vmatprep.subr.mxu0 0.0
      %3267 = vmatpush1.msra.mxu0 0.0
      %3268 = vmatprep.subr.mxu0 0.0
      %3269 = vmatpush1.msra.mxu0 0.0
      %3270 = vmatprep.subr.mxu0 0.0
      %3271 = vmatpush1.msra.mxu0 0.0
      %3272 = vmatprep.mubr.f32.mxu0 0.0
      %v3273 = vand.u32 %v2869, 4294901760
      %3274 = vmatmul.mubr.f32.gmra.mrb[0].mxu0 %v3273
      %v3275 = vpop.f32.mrb[0].mxu0
      %v3276 = vadd.f32 %v3194, %v3275
      %v3277 = vpop.f32.mrb[0].mxu0
      %3278 = vmatprep.mubr.f32.mxu0 0.0
      %v3279 = vand.u32 %v2872, 4294901760
      %3280 = vmatmul.mubr.f32.gmra.mrb[0].mxu0 %v3279
      %v3281 = vpop.f32.mrb[0].mxu0
      %v3282 = vadd.f32 %v3202, %v3281
      %v3283 = vpop.f32.mrb[0].mxu0
      %3284 = vdwg.mxu0
      %3285 = vmatprep.subr.mxu0 0.0
      %v3286 = vand.u32 %v339, 4294901760
      %3287 = vmatpush1.msra.mxu0 %v3286
      %3288 = vmatprep.subr.mxu0 0.0
      %3289 = vmatpush1.msra.mxu0 0.0
      %3290 = vmatprep.subr.mxu0 0.0
      %3291 = vmatpush1.msra.mxu0 0.0
      %3292 = vmatprep.subr.mxu0 0.0
      %3293 = vmatpush1.msra.mxu0 0.0
      %3294 = vmatprep.subr.mxu0 0.0
      %3295 = vmatpush1.msra.mxu0 0.0
      %3296 = vmatprep.subr.mxu0 0.0
      %3297 = vmatpush1.msra.mxu0 0.0
      %3298 = vmatprep.subr.mxu0 0.0
      %3299 = vmatpush1.msra.mxu0 0.0
      %3300 = vmatprep.subr.mxu0 0.0
      %3301 = vmatpush1.msra.mxu0 0.0
      %3302 = vmatprep.subr.mxu0 0.0
      %3303 = vmatpush1.msra.mxu0 0.0
      %3304 = vmatprep.subr.mxu0 0.0
      %3305 = vmatpush1.msra.mxu0 0.0
      %3306 = vmatprep.subr.mxu0 0.0
      %3307 = vmatpush1.msra.mxu0 0.0
      %3308 = vmatprep.subr.mxu0 0.0
      %3309 = vmatpush1.msra.mxu0 0.0
      %3310 = vmatprep.subr.mxu0 0.0
      %3311 = vmatpush1.msra.mxu0 0.0
      %3312 = vmatprep.subr.mxu0 0.0
      %3313 = vmatpush1.msra.mxu0 0.0
      %3314 = vmatprep.subr.mxu0 0.0
      %3315 = vmatpush1.msra.mxu0 0.0
      %3316 = vmatprep.subr.mxu0 0.0
      %3317 = vmatpush1.msra.mxu0 0.0
      %3318 = vmatprep.subr.mxu0 0.0
      %3319 = vmatpush1.msra.mxu0 0.0
      %3320 = vmatprep.subr.mxu0 0.0
      %3321 = vmatpush1.msra.mxu0 0.0
      %3322 = vmatprep.subr.mxu0 0.0
      %3323 = vmatpush1.msra.mxu0 0.0
      %3324 = vmatprep.subr.mxu0 0.0
      %3325 = vmatpush1.msra.mxu0 0.0
      %3326 = vmatprep.subr.mxu0 0.0
      %3327 = vmatpush1.msra.mxu0 0.0
      %3328 = vmatprep.subr.mxu0 0.0
      %3329 = vmatpush1.msra.mxu0 0.0
      %3330 = vmatprep.subr.mxu0 0.0
      %3331 = vmatpush1.msra.mxu0 0.0
      %3332 = vmatprep.subr.mxu0 0.0
      %3333 = vmatpush1.msra.mxu0 0.0
      %3334 = vmatprep.subr.mxu0 0.0
      %3335 = vmatpush1.msra.mxu0 0.0
      %3336 = vmatprep.subr.mxu0 0.0
      %3337 = vmatpush1.msra.mxu0 0.0
      %3338 = vmatprep.subr.mxu0 0.0
      %3339 = vmatpush1.msra.mxu0 0.0
      %3340 = vmatprep.subr.mxu0 0.0
      %3341 = vmatpush1.msra.mxu0 0.0
      %3342 = vmatprep.subr.mxu0 0.0
      %3343 = vmatpush1.msra.mxu0 0.0
      %3344 = vmatprep.subr.mxu0 0.0
      %3345 = vmatpush1.msra.mxu0 0.0
      %3346 = vmatprep.subr.mxu0 0.0
      %3347 = vmatpush1.msra.mxu0 0.0
      %3348 = vmatprep.subr.mxu0 0.0
      %3349 = vmatpush1.msra.mxu0 0.0
      %3350 = vmatprep.mubr.f32.mxu0 0.0
      %v3351 = vand.u32 %v2869, 4294901760
      %3352 = vmatmul.mubr.f32.gmra.mrb[0].mxu0 %v3351
      %v3353 = vpop.f32.mrb[0].mxu0
      %v3354 = vadd.f32 %v3276, %v3353
      %v3355 = vpop.f32.mrb[0].mxu0
      %3356 = vmatprep.mubr.f32.mxu0 0.0
      %v3357 = vand.u32 %v2872, 4294901760
      %3358 = vmatmul.mubr.f32.gmra.mrb[0].mxu0 %v3357
      %v3359 = vpop.f32.mrb[0].mxu0
      %v3360 = vadd.f32 %v3282, %v3359
      %v3361 = vpop.f32.mrb[0].mxu0
      %3362 = vdwg.mxu0
      %v3363 = vadd.f32 %v2363, %v3354
      %v3364 = vadd.f32 %v2364, %v3360
      %v3365 = vxor.u32 %v3363, 2147483648
      %v3366 = vxor.u32 %v3364, 2147483648
      %v3367 = vmul.f32 %v3365, 1.442695
      %v3368 = vpow.pop %v3367
      %v3369 = vmul.f32 %v3366, 1.442695
      %v3370 = vpow.pop %v3369
      %v3371 = vadd.f32 %v3368, 1.0
      %v3372 = vadd.f32 %v3370, 1.0
      %v3373 = vrcp.pop %v3371
      %v3374 = vmul.f32 1.0, %v3373
      %v3375 = vrcp.pop %v3372
      %v3376 = vmul.f32 1.0, %v3375
      %v3377 = vmul.f32 %v2863, %v3374
      %v3378 = vmul.f32 %v2864, %v3376
      %3379 = vmatprep.subr.mxu0 0.0
      %v3380 = vand.u32 %v339, 4294901760
      %3381 = vmatpush1.msra.mxu0 %v3380
      %3382 = vmatprep.subr.mxu0 0.0
      %3383 = vmatpush1.msra.mxu0 0.0
      %3384 = vmatprep.subr.mxu0 0.0
      %3385 = vmatpush1.msra.mxu0 0.0
      %3386 = vmatprep.subr.mxu0 0.0
      %3387 = vmatpush1.msra.mxu0 0.0
      %3388 = vmatprep.subr.mxu0 0.0
      %3389 = vmatpush1.msra.mxu0 0.0
      %3390 = vmatprep.subr.mxu0 0.0
      %3391 = vmatpush1.msra.mxu0 0.0
      %3392 = vmatprep.subr.mxu0 0.0
      %3393 = vmatpush1.msra.mxu0 0.0
      %3394 = vmatprep.subr.mxu0 0.0
      %3395 = vmatpush1.msra.mxu0 0.0
      %3396 = vmatprep.subr.mxu0 0.0
      %3397 = vmatpush1.msra.mxu0 0.0
      %3398 = vmatprep.subr.mxu0 0.0
      %3399 = vmatpush1.msra.mxu0 0.0
      %3400 = vmatprep.subr.mxu0 0.0
      %3401 = vmatpush1.msra.mxu0 0.0
      %3402 = vmatprep.subr.mxu0 0.0
      %3403 = vmatpush1.msra.mxu0 0.0
      %3404 = vmatprep.subr.mxu0 0.0
      %3405 = vmatpush1.msra.mxu0 0.0
      %3406 = vmatprep.subr.mxu0 0.0
      %3407 = vmatpush1.msra.mxu0 0.0
      %3408 = vmatprep.subr.mxu0 0.0
      %3409 = vmatpush1.msra.mxu0 0.0
      %3410 = vmatprep.subr.mxu0 0.0
      %3411 = vmatpush1.msra.mxu0 0.0
      %3412 = vmatprep.subr.mxu0 0.0
      %3413 = vmatpush1.msra.mxu0 0.0
      %3414 = vmatprep.subr.mxu0 0.0
      %3415 = vmatpush1.msra.mxu0 0.0
      %3416 = vmatprep.subr.mxu0 0.0
      %3417 = vmatpush1.msra.mxu0 0.0
      %3418 = vmatprep.subr.mxu0 0.0
      %3419 = vmatpush1.msra.mxu0 0.0
      %3420 = vmatprep.subr.mxu0 0.0
      %3421 = vmatpush1.msra.mxu0 0.0
      %3422 = vmatprep.subr.mxu0 0.0
      %3423 = vmatpush1.msra.mxu0 0.0
      %3424 = vmatprep.subr.mxu0 0.0
      %3425 = vmatpush1.msra.mxu0 0.0
      %3426 = vmatprep.subr.mxu0 0.0
      %3427 = vmatpush1.msra.mxu0 0.0
      %3428 = vmatprep.subr.mxu0 0.0
      %3429 = vmatpush1.msra.mxu0 0.0
      %3430 = vmatprep.subr.mxu0 0.0
      %3431 = vmatpush1.msra.mxu0 0.0
      %3432 = vmatprep.subr.mxu0 0.0
      %3433 = vmatpush1.msra.mxu0 0.0
      %3434 = vmatprep.subr.mxu0 0.0
      %3435 = vmatpush1.msra.mxu0 0.0
      %3436 = vmatprep.subr.mxu0 0.0
      %3437 = vmatpush1.msra.mxu0 0.0
      %3438 = vmatprep.subr.mxu0 0.0
      %3439 = vmatpush1.msra.mxu0 0.0
      %3440 = vmatprep.subr.mxu0 0.0
      %3441 = vmatpush1.msra.mxu0 0.0
      %3442 = vmatprep.subr.mxu0 0.0
      %3443 = vmatpush1.msra.mxu0 0.0
      %3444 = vmatprep.mubr.f32.mxu0 0.0
      %v3445 = vand.u32 %v350, 4294901760
      %v3446 = vsub.f32 %v350, %v3445
      %v3447 = vand.u32 %v3446, 4294901760
      %v3448 = vsub.f32 %v3446, %v3447
      %v3449 = vand.u32 %v3448, 4294901760
      %3450 = vmatmul.mubr.f32.gmra.mrb[0].mxu0 %v3449
      %v3451 = vpop.f32.mrb[0].mxu0
      %v3452 = vadd.f32 0.0, %v3451
      %v3453 = vpop.f32.mrb[0].mxu0
      %3454 = vmatprep.mubr.f32.mxu0 0.0
      %v3455 = vand.u32 %v353, 4294901760
      %v3456 = vsub.f32 %v353, %v3455
      %v3457 = vand.u32 %v3456, 4294901760
      %v3458 = vsub.f32 %v3456, %v3457
      %v3459 = vand.u32 %v3458, 4294901760
      %3460 = vmatmul.mubr.f32.gmra.mrb[0].mxu0 %v3459
      %v3461 = vpop.f32.mrb[0].mxu0
      %v3462 = vadd.f32 0.0, %v3461
      %v3463 = vpop.f32.mrb[0].mxu0
      %3464 = vdwg.mxu0
      %3465 = vmatprep.subr.mxu0 0.0
      %v3466 = vand.u32 %v339, 4294901760
      %v3467 = vsub.f32 %v339, %v3466
      %v3468 = vand.u32 %v3467, 4294901760
      %v3469 = vsub.f32 %v3467, %v3468
      %v3470 = vand.u32 %v3469, 4294901760
      %3471 = vmatpush1.msra.mxu0 %v3470
      %3472 = vmatprep.subr.mxu0 0.0
      %3473 = vmatpush1.msra.mxu0 0.0
      %3474 = vmatprep.subr.mxu0 0.0
      %3475 = vmatpush1.msra.mxu0 0.0
      %3476 = vmatprep.subr.mxu0 0.0
      %3477 = vmatpush1.msra.mxu0 0.0
      %3478 = vmatprep.subr.mxu0 0.0
      %3479 = vmatpush1.msra.mxu0 0.0
      %3480 = vmatprep.subr.mxu0 0.0
      %3481 = vmatpush1.msra.mxu0 0.0
      %3482 = vmatprep.subr.mxu0 0.0
      %3483 = vmatpush1.msra.mxu0 0.0
      %3484 = vmatprep.subr.mxu0 0.0
      %3485 = vmatpush1.msra.mxu0 0.0
      %3486 = vmatprep.subr.mxu0 0.0
      %3487 = vmatpush1.msra.mxu0 0.0
      %3488 = vmatprep.subr.mxu0 0.0
      %3489 = vmatpush1.msra.mxu0 0.0
      %3490 = vmatprep.subr.mxu0 0.0
      %3491 = vmatpush1.msra.mxu0 0.0
      %3492 = vmatprep.subr.mxu0 0.0
      %3493 = vmatpush1.msra.mxu0 0.0
      %3494 = vmatprep.subr.mxu0 0.0
      %3495 = vmatpush1.msra.mxu0 0.0
      %3496 = vmatprep.subr.mxu0 0.0
      %3497 = vmatpush1.msra.mxu0 0.0
      %3498 = vmatprep.subr.mxu0 0.0
      %3499 = vmatpush1.msra.mxu0 0.0
      %3500 = vmatprep.subr.mxu0 0.0
      %3501 = vmatpush1.msra.mxu0 0.0
      %3502 = vmatprep.subr.mxu0 0.0
      %3503 = vmatpush1.msra.mxu0 0.0
      %3504 = vmatprep.subr.mxu0 0.0
      %3505 = vmatpush1.msra.mxu0 0.0
      %3506 = vmatprep.subr.mxu0 0.0
      %3507 = vmatpush1.msra.mxu0 0.0
      %3508 = vmatprep.subr.mxu0 0.0
      %3509 = vmatpush1.msra.mxu0 0.0
      %3510 = vmatprep.subr.mxu0 0.0
      %3511 = vmatpush1.msra.mxu0 0.0
      %3512 = vmatprep.subr.mxu0 0.0
      %3513 = vmatpush1.msra.mxu0 0.0
      %3514 = vmatprep.subr.mxu0 0.0
      %3515 = vmatpush1.msra.mxu0 0.0
      %3516 = vmatprep.subr.mxu0 0.0
      %3517 = vmatpush1.msra.mxu0 0.0
      %3518 = vmatprep.subr.mxu0 0.0
      %3519 = vmatpush1.msra.mxu0 0.0
      %3520 = vmatprep.subr.mxu0 0.0
      %3521 = vmatpush1.msra.mxu0 0.0
      %3522 = vmatprep.subr.mxu0 0.0
      %3523 = vmatpush1.msra.mxu0 0.0
      %3524 = vmatprep.subr.mxu0 0.0
      %3525 = vmatpush1.msra.mxu0 0.0
      %3526 = vmatprep.subr.mxu0 0.0
      %3527 = vmatpush1.msra.mxu0 0.0
      %3528 = vmatprep.subr.mxu0 0.0
      %3529 = vmatpush1.msra.mxu0 0.0
      %3530 = vmatprep.subr.mxu0 0.0
      %3531 = vmatpush1.msra.mxu0 0.0
      %3532 = vmatprep.subr.mxu0 0.0
      %3533 = vmatpush1.msra.mxu0 0.0
      %3534 = vmatprep.mubr.f32.mxu0 0.0
      %v3535 = vand.u32 %v350, 4294901760
      %3536 = vmatmul.mubr.f32.gmra.mrb[0].mxu0 %v3535
      %v3537 = vpop.f32.mrb[0].mxu0
      %v3538 = vadd.f32 %v3452, %v3537
      %v3539 = vpop.f32.mrb[0].mxu0
      %3540 = vmatprep.mubr.f32.mxu0 0.0
      %v3541 = vand.u32 %v353, 4294901760
      %3542 = vmatmul.mubr.f32.gmra.mrb[0].mxu0 %v3541
      %v3543 = vpop.f32.mrb[0].mxu0
      %v3544 = vadd.f32 %v3462, %v3543
      %v3545 = vpop.f32.mrb[0].mxu0
      %3546 = vdwg.mxu0
      %3547 = vmatprep.subr.mxu0 0.0
      %v3548 = vand.u32 %v339, 4294901760
      %v3549 = vsub.f32 %v339, %v3548
      %3550 = vmatpush1.msra.mxu0 %v3549
      %3551 = vmatprep.subr.mxu0 0.0
      %3552 = vmatpush1.msra.mxu0 0.0
      %3553 = vmatprep.subr.mxu0 0.0
      %3554 = vmatpush1.msra.mxu0 0.0
      %3555 = vmatprep.subr.mxu0 0.0
      %3556 = vmatpush1.msra.mxu0 0.0
      %3557 = vmatprep.subr.mxu0 0.0
      %3558 = vmatpush1.msra.mxu0 0.0
      %3559 = vmatprep.subr.mxu0 0.0
      %3560 = vmatpush1.msra.mxu0 0.0
      %3561 = vmatprep.subr.mxu0 0.0
      %3562 = vmatpush1.msra.mxu0 0.0
      %3563 = vmatprep.subr.mxu0 0.0
      %3564 = vmatpush1.msra.mxu0 0.0
      %3565 = vmatprep.subr.mxu0 0.0
      %3566 = vmatpush1.msra.mxu0 0.0
      %3567 = vmatprep.subr.mxu0 0.0
      %3568 = vmatpush1.msra.mxu0 0.0
      %3569 = vmatprep.subr.mxu0 0.0
      %3570 = vmatpush1.msra.mxu0 0.0
      %3571 = vmatprep.subr.mxu0 0.0
      %3572 = vmatpush1.msra.mxu0 0.0
      %3573 = vmatprep.subr.mxu0 0.0
      %3574 = vmatpush1.msra.mxu0 0.0
      %3575 = vmatprep.subr.mxu0 0.0
      %3576 = vmatpush1.msra.mxu0 0.0
      %3577 = vmatprep.subr.mxu0 0.0
      %3578 = vmatpush1.msra.mxu0 0.0
      %3579 = vmatprep.subr.mxu0 0.0
      %3580 = vmatpush1.msra.mxu0 0.0
      %3581 = vmatprep.subr.mxu0 0.0
      %3582 = vmatpush1.msra.mxu0 0.0
      %3583 = vmatprep.subr.mxu0 0.0
      %3584 = vmatpush1.msra.mxu0 0.0
      %3585 = vmatprep.subr.mxu0 0.0
      %3586 = vmatpush1.msra.mxu0 0.0
      %3587 = vmatprep.subr.mxu0 0.0
      %3588 = vmatpush1.msra.mxu0 0.0
      %3589 = vmatprep.subr.mxu0 0.0
      %3590 = vmatpush1.msra.mxu0 0.0
      %3591 = vmatprep.subr.mxu0 0.0
      %3592 = vmatpush1.msra.mxu0 0.0
      %3593 = vmatprep.subr.mxu0 0.0
      %3594 = vmatpush1.msra.mxu0 0.0
      %3595 = vmatprep.subr.mxu0 0.0
      %3596 = vmatpush1.msra.mxu0 0.0
      %3597 = vmatprep.subr.mxu0 0.0
      %3598 = vmatpush1.msra.mxu0 0.0
      %3599 = vmatprep.subr.mxu0 0.0
      %3600 = vmatpush1.msra.mxu0 0.0
      %3601 = vmatprep.subr.mxu0 0.0
      %3602 = vmatpush1.msra.mxu0 0.0
      %3603 = vmatprep.subr.mxu0 0.0
      %3604 = vmatpush1.msra.mxu0 0.0
      %3605 = vmatprep.subr.mxu0 0.0
      %3606 = vmatpush1.msra.mxu0 0.0
      %3607 = vmatprep.subr.mxu0 0.0
      %3608 = vmatpush1.msra.mxu0 0.0
      %3609 = vmatprep.subr.mxu0 0.0
      %3610 = vmatpush1.msra.mxu0 0.0
      %3611 = vmatprep.subr.mxu0 0.0
      %3612 = vmatpush1.msra.mxu0 0.0
      %3613 = vmatprep.mubr.f32.mxu0 0.0
      %v3614 = vand.u32 %v350, 4294901760
      %v3615 = vsub.f32 %v350, %v3614
      %3616 = vmatmul.mubr.f32.gmra.mrb[0].mxu0 %v3615
      %v3617 = vpop.f32.mrb[0].mxu0
      %v3618 = vadd.f32 %v3538, %v3617
      %v3619 = vpop.f32.mrb[0].mxu0
      %3620 = vmatprep.mubr.f32.mxu0 0.0
      %v3621 = vand.u32 %v353, 4294901760
      %v3622 = vsub.f32 %v353, %v3621
      %3623 = vmatmul.mubr.f32.gmra.mrb[0].mxu0 %v3622
      %v3624 = vpop.f32.mrb[0].mxu0
      %v3625 = vadd.f32 %v3544, %v3624
      %v3626 = vpop.f32.mrb[0].mxu0
      %3627 = vdwg.mxu0
      %3628 = vmatprep.subr.mxu0 0.0
      %v3629 = vand.u32 %v339, 4294901760
      %3630 = vmatpush1.msra.mxu0 %v3629
      %3631 = vmatprep.subr.mxu0 0.0
      %3632 = vmatpush1.msra.mxu0 0.0
      %3633 = vmatprep.subr.mxu0 0.0
      %3634 = vmatpush1.msra.mxu0 0.0
      %3635 = vmatprep.subr.mxu0 0.0
      %3636 = vmatpush1.msra.mxu0 0.0
      %3637 = vmatprep.subr.mxu0 0.0
      %3638 = vmatpush1.msra.mxu0 0.0
      %3639 = vmatprep.subr.mxu0 0.0
      %3640 = vmatpush1.msra.mxu0 0.0
      %3641 = vmatprep.subr.mxu0 0.0
      %3642 = vmatpush1.msra.mxu0 0.0
      %3643 = vmatprep.subr.mxu0 0.0
      %3644 = vmatpush1.msra.mxu0 0.0
      %3645 = vmatprep.subr.mxu0 0.0
      %3646 = vmatpush1.msra.mxu0 0.0
      %3647 = vmatprep.subr.mxu0 0.0
      %3648 = vmatpush1.msra.mxu0 0.0
      %3649 = vmatprep.subr.mxu0 0.0
      %3650 = vmatpush1.msra.mxu0 0.0
      %3651 = vmatprep.subr.mxu0 0.0
      %3652 = vmatpush1.msra.mxu0 0.0
      %3653 = vmatprep.subr.mxu0 0.0
      %3654 = vmatpush1.msra.mxu0 0.0
      %3655 = vmatprep.subr.mxu0 0.0
      %3656 = vmatpush1.msra.mxu0 0.0
      %3657 = vmatprep.subr.mxu0 0.0
      %3658 = vmatpush1.msra.mxu0 0.0
      %3659 = vmatprep.subr.mxu0 0.0
      %3660 = vmatpush1.msra.mxu0 0.0
      %3661 = vmatprep.subr.mxu0 0.0
      %3662 = vmatpush1.msra.mxu0 0.0
      %3663 = vmatprep.subr.mxu0 0.0
      %3664 = vmatpush1.msra.mxu0 0.0
      %3665 = vmatprep.subr.mxu0 0.0
      %3666 = vmatpush1.msra.mxu0 0.0
      %3667 = vmatprep.subr.mxu0 0.0
      %3668 = vmatpush1.msra.mxu0 0.0
      %3669 = vmatprep.subr.mxu0 0.0
      %3670 = vmatpush1.msra.mxu0 0.0
      %3671 = vmatprep.subr.mxu0 0.0
      %3672 = vmatpush1.msra.mxu0 0.0
      %3673 = vmatprep.subr.mxu0 0.0
      %3674 = vmatpush1.msra.mxu0 0.0
      %3675 = vmatprep.subr.mxu0 0.0
      %3676 = vmatpush1.msra.mxu0 0.0
      %3677 = vmatprep.subr.mxu0 0.0
      %3678 = vmatpush1.msra.mxu0 0.0
      %3679 = vmatprep.subr.mxu0 0.0
      %3680 = vmatpush1.msra.mxu0 0.0
      %3681 = vmatprep.subr.mxu0 0.0
      %3682 = vmatpush1.msra.mxu0 0.0
      %3683 = vmatprep.subr.mxu0 0.0
      %3684 = vmatpush1.msra.mxu0 0.0
      %3685 = vmatprep.subr.mxu0 0.0
      %3686 = vmatpush1.msra.mxu0 0.0
      %3687 = vmatprep.subr.mxu0 0.0
      %3688 = vmatpush1.msra.mxu0 0.0
      %3689 = vmatprep.subr.mxu0 0.0
      %3690 = vmatpush1.msra.mxu0 0.0
      %3691 = vmatprep.subr.mxu0 0.0
      %3692 = vmatpush1.msra.mxu0 0.0
      %3693 = vmatprep.mubr.f32.mxu0 0.0
      %v3694 = vand.u32 %v350, 4294901760
      %v3695 = vsub.f32 %v350, %v3694
      %v3696 = vand.u32 %v3695, 4294901760
      %3697 = vmatmul.mubr.f32.gmra.mrb[0].mxu0 %v3696
      %v3698 = vpop.f32.mrb[0].mxu0
      %v3699 = vadd.f32 %v3618, %v3698
      %v3700 = vpop.f32.mrb[0].mxu0
      %3701 = vmatprep.mubr.f32.mxu0 0.0
      %v3702 = vand.u32 %v353, 4294901760
      %v3703 = vsub.f32 %v353, %v3702
      %v3704 = vand.u32 %v3703, 4294901760
      %3705 = vmatmul.mubr.f32.gmra.mrb[0].mxu0 %v3704
      %v3706 = vpop.f32.mrb[0].mxu0
      %v3707 = vadd.f32 %v3625, %v3706
      %v3708 = vpop.f32.mrb[0].mxu0
      %3709 = vdwg.mxu0
      %3710 = vmatprep.subr.mxu0 0.0
      %v3711 = vand.u32 %v339, 4294901760
      %v3712 = vsub.f32 %v339, %v3711
      %v3713 = vand.u32 %v3712, 4294901760
      %3714 = vmatpush1.msra.mxu0 %v3713
      %3715 = vmatprep.subr.mxu0 0.0
      %3716 = vmatpush1.msra.mxu0 0.0
      %3717 = vmatprep.subr.mxu0 0.0
      %3718 = vmatpush1.msra.mxu0 0.0
      %3719 = vmatprep.subr.mxu0 0.0
      %3720 = vmatpush1.msra.mxu0 0.0
      %3721 = vmatprep.subr.mxu0 0.0
      %3722 = vmatpush1.msra.mxu0 0.0
      %3723 = vmatprep.subr.mxu0 0.0
      %3724 = vmatpush1.msra.mxu0 0.0
      %3725 = vmatprep.subr.mxu0 0.0
      %3726 = vmatpush1.msra.mxu0 0.0
      %3727 = vmatprep.subr.mxu0 0.0
      %3728 = vmatpush1.msra.mxu0 0.0
      %3729 = vmatprep.subr.mxu0 0.0
      %3730 = vmatpush1.msra.mxu0 0.0
      %3731 = vmatprep.subr.mxu0 0.0
      %3732 = vmatpush1.msra.mxu0 0.0
      %3733 = vmatprep.subr.mxu0 0.0
      %3734 = vmatpush1.msra.mxu0 0.0
      %3735 = vmatprep.subr.mxu0 0.0
      %3736 = vmatpush1.msra.mxu0 0.0
      %3737 = vmatprep.subr.mxu0 0.0
      %3738 = vmatpush1.msra.mxu0 0.0
      %3739 = vmatprep.subr.mxu0 0.0
      %3740 = vmatpush1.msra.mxu0 0.0
      %3741 = vmatprep.subr.mxu0 0.0
      %3742 = vmatpush1.msra.mxu0 0.0
      %3743 = vmatprep.subr.mxu0 0.0
      %3744 = vmatpush1.msra.mxu0 0.0
      %3745 = vmatprep.subr.mxu0 0.0
      %3746 = vmatpush1.msra.mxu0 0.0
      %3747 = vmatprep.subr.mxu0 0.0
      %3748 = vmatpush1.msra.mxu0 0.0
      %3749 = vmatprep.subr.mxu0 0.0
      %3750 = vmatpush1.msra.mxu0 0.0
      %3751 = vmatprep.subr.mxu0 0.0
      %3752 = vmatpush1.msra.mxu0 0.0
      %3753 = vmatprep.subr.mxu0 0.0
      %3754 = vmatpush1.msra.mxu0 0.0
      %3755 = vmatprep.subr.mxu0 0.0
      %3756 = vmatpush1.msra.mxu0 0.0
      %3757 = vmatprep.subr.mxu0 0.0
      %3758 = vmatpush1.msra.mxu0 0.0
      %3759 = vmatprep.subr.mxu0 0.0
      %3760 = vmatpush1.msra.mxu0 0.0
      %3761 = vmatprep.subr.mxu0 0.0
      %3762 = vmatpush1.msra.mxu0 0.0
      %3763 = vmatprep.subr.mxu0 0.0
      %3764 = vmatpush1.msra.mxu0 0.0
      %3765 = vmatprep.subr.mxu0 0.0
      %3766 = vmatpush1.msra.mxu0 0.0
      %3767 = vmatprep.subr.mxu0 0.0
      %3768 = vmatpush1.msra.mxu0 0.0
      %3769 = vmatprep.subr.mxu0 0.0
      %3770 = vmatpush1.msra.mxu0 0.0
      %3771 = vmatprep.subr.mxu0 0.0
      %3772 = vmatpush1.msra.mxu0 0.0
      %3773 = vmatprep.subr.mxu0 0.0
      %3774 = vmatpush1.msra.mxu0 0.0
      %3775 = vmatprep.subr.mxu0 0.0
      %3776 = vmatpush1.msra.mxu0 0.0
      %3777 = vmatprep.mubr.f32.mxu0 0.0
      %v3778 = vand.u32 %v350, 4294901760
      %3779 = vmatmul.mubr.f32.gmra.mrb[0].mxu0 %v3778
      %v3780 = vpop.f32.mrb[0].mxu0
      %v3781 = vadd.f32 %v3699, %v3780
      %v3782 = vpop.f32.mrb[0].mxu0
      %3783 = vmatprep.mubr.f32.mxu0 0.0
      %v3784 = vand.u32 %v353, 4294901760
      %3785 = vmatmul.mubr.f32.gmra.mrb[0].mxu0 %v3784
      %v3786 = vpop.f32.mrb[0].mxu0
      %v3787 = vadd.f32 %v3707, %v3786
      %v3788 = vpop.f32.mrb[0].mxu0
      %3789 = vdwg.mxu0
      %3790 = vmatprep.subr.mxu0 0.0
      %v3791 = vand.u32 %v339, 4294901760
      %3792 = vmatpush1.msra.mxu0 %v3791
      %3793 = vmatprep.subr.mxu0 0.0
      %3794 = vmatpush1.msra.mxu0 0.0
      %3795 = vmatprep.subr.mxu0 0.0
      %3796 = vmatpush1.msra.mxu0 0.0
      %3797 = vmatprep.subr.mxu0 0.0
      %3798 = vmatpush1.msra.mxu0 0.0
      %3799 = vmatprep.subr.mxu0 0.0
      %3800 = vmatpush1.msra.mxu0 0.0
      %3801 = vmatprep.subr.mxu0 0.0
      %3802 = vmatpush1.msra.mxu0 0.0
      %3803 = vmatprep.subr.mxu0 0.0
      %3804 = vmatpush1.msra.mxu0 0.0
      %3805 = vmatprep.subr.mxu0 0.0
      %3806 = vmatpush1.msra.mxu0 0.0
      %3807 = vmatprep.subr.mxu0 0.0
      %3808 = vmatpush1.msra.mxu0 0.0
      %3809 = vmatprep.subr.mxu0 0.0
      %3810 = vmatpush1.msra.mxu0 0.0
      %3811 = vmatprep.subr.mxu0 0.0
      %3812 = vmatpush1.msra.mxu0 0.0
      %3813 = vmatprep.subr.mxu0 0.0
      %3814 = vmatpush1.msra.mxu0 0.0
      %3815 = vmatprep.subr.mxu0 0.0
      %3816 = vmatpush1.msra.mxu0 0.0
      %3817 = vmatprep.subr.mxu0 0.0
      %3818 = vmatpush1.msra.mxu0 0.0
      %3819 = vmatprep.subr.mxu0 0.0
      %3820 = vmatpush1.msra.mxu0 0.0
      %3821 = vmatprep.subr.mxu0 0.0
      %3822 = vmatpush1.msra.mxu0 0.0
      %3823 = vmatprep.subr.mxu0 0.0
      %3824 = vmatpush1.msra.mxu0 0.0
      %3825 = vmatprep.subr.mxu0 0.0
      %3826 = vmatpush1.msra.mxu0 0.0
      %3827 = vmatprep.subr.mxu0 0.0
      %3828 = vmatpush1.msra.mxu0 0.0
      %3829 = vmatprep.subr.mxu0 0.0
      %3830 = vmatpush1.msra.mxu0 0.0
      %3831 = vmatprep.subr.mxu0 0.0
      %3832 = vmatpush1.msra.mxu0 0.0
      %3833 = vmatprep.subr.mxu0 0.0
      %3834 = vmatpush1.msra.mxu0 0.0
      %3835 = vmatprep.subr.mxu0 0.0
      %3836 = vmatpush1.msra.mxu0 0.0
      %3837 = vmatprep.subr.mxu0 0.0
      %3838 = vmatpush1.msra.mxu0 0.0
      %3839 = vmatprep.subr.mxu0 0.0
      %3840 = vmatpush1.msra.mxu0 0.0
      %3841 = vmatprep.subr.mxu0 0.0
      %3842 = vmatpush1.msra.mxu0 0.0
      %3843 = vmatprep.subr.mxu0 0.0
      %3844 = vmatpush1.msra.mxu0 0.0
      %3845 = vmatprep.subr.mxu0 0.0
      %3846 = vmatpush1.msra.mxu0 0.0
      %3847 = vmatprep.subr.mxu0 0.0
      %3848 = vmatpush1.msra.mxu0 0.0
      %3849 = vmatprep.subr.mxu0 0.0
      %3850 = vmatpush1.msra.mxu0 0.0
      %3851 = vmatprep.subr.mxu0 0.0
      %3852 = vmatpush1.msra.mxu0 0.0
      %3853 = vmatprep.subr.mxu0 0.0
      %3854 = vmatpush1.msra.mxu0 0.0
      %3855 = vmatprep.mubr.f32.mxu0 0.0
      %v3856 = vand.u32 %v350, 4294901760
      %3857 = vmatmul.mubr.f32.gmra.mrb[0].mxu0 %v3856
      %v3858 = vpop.f32.mrb[0].mxu0
      %v3859 = vadd.f32 %v3781, %v3858
      %v3860 = vpop.f32.mrb[0].mxu0
      %3861 = vmatprep.mubr.f32.mxu0 0.0
      %v3862 = vand.u32 %v353, 4294901760
      %3863 = vmatmul.mubr.f32.gmra.mrb[0].mxu0 %v3862
      %v3864 = vpop.f32.mrb[0].mxu0
      %v3865 = vadd.f32 %v3787, %v3864
      %v3866 = vpop.f32.mrb[0].mxu0
      %3867 = vdwg.mxu0
      %v3868 = vadd.f32 %v847, %v3859
      %v3869 = vadd.f32 %v852, %v3865
      %3870 = vmatprep.subr.mxu0 0.0
      %v3871 = vand.u32 %v339, 4294901760
      %3872 = vmatpush1.msra.mxu0 %v3871
      %3873 = vmatprep.subr.mxu0 0.0
      %3874 = vmatpush1.msra.mxu0 0.0
      %3875 = vmatprep.subr.mxu0 0.0
      %3876 = vmatpush1.msra.mxu0 0.0
      %3877 = vmatprep.subr.mxu0 0.0
      %3878 = vmatpush1.msra.mxu0 0.0
      %3879 = vmatprep.subr.mxu0 0.0
      %3880 = vmatpush1.msra.mxu0 0.0
      %3881 = vmatprep.subr.mxu0 0.0
      %3882 = vmatpush1.msra.mxu0 0.0
      %3883 = vmatprep.subr.mxu0 0.0
      %3884 = vmatpush1.msra.mxu0 0.0
      %3885 = vmatprep.subr.mxu0 0.0
      %3886 = vmatpush1.msra.mxu0 0.0
      %3887 = vmatprep.subr.mxu0 0.0
      %3888 = vmatpush1.msra.mxu0 0.0
      %3889 = vmatprep.subr.mxu0 0.0
      %3890 = vmatpush1.msra.mxu0 0.0
      %3891 = vmatprep.subr.mxu0 0.0
      %3892 = vmatpush1.msra.mxu0 0.0
      %3893 = vmatprep.subr.mxu0 0.0
      %3894 = vmatpush1.msra.mxu0 0.0
      %3895 = vmatprep.subr.mxu0 0.0
      %3896 = vmatpush1.msra.mxu0 0.0
      %3897 = vmatprep.subr.mxu0 0.0
      %3898 = vmatpush1.msra.mxu0 0.0
      %3899 = vmatprep.subr.mxu0 0.0
      %3900 = vmatpush1.msra.mxu0 0.0
      %3901 = vmatprep.subr.mxu0 0.0
      %3902 = vmatpush1.msra.mxu0 0.0
      %3903 = vmatprep.subr.mxu0 0.0
      %3904 = vmatpush1.msra.mxu0 0.0
      %3905 = vmatprep.subr.mxu0 0.0
      %3906 = vmatpush1.msra.mxu0 0.0
      %3907 = vmatprep.subr.mxu0 0.0
      %3908 = vmatpush1.msra.mxu0 0.0
      %3909 = vmatprep.subr.mxu0 0.0
      %3910 = vmatpush1.msra.mxu0 0.0
      %3911 = vmatprep.subr.mxu0 0.0
      %3912 = vmatpush1.msra.mxu0 0.0
      %3913 = vmatprep.subr.mxu0 0.0
      %3914 = vmatpush1.msra.mxu0 0.0
      %3915 = vmatprep.subr.mxu0 0.0
      %3916 = vmatpush1.msra.mxu0 0.0
      %3917 = vmatprep.subr.mxu0 0.0
      %3918 = vmatpush1.msra.mxu0 0.0
      %3919 = vmatprep.subr.mxu0 0.0
      %3920 = vmatpush1.msra.mxu0 0.0
      %3921 = vmatprep.subr.mxu0 0.0
      %3922 = vmatpush1.msra.mxu0 0.0
      %3923 = vmatprep.subr.mxu0 0.0
      %3924 = vmatpush1.msra.mxu0 0.0
      %3925 = vmatprep.subr.mxu0 0.0
      %3926 = vmatpush1.msra.mxu0 0.0
      %3927 = vmatprep.subr.mxu0 0.0
      %3928 = vmatpush1.msra.mxu0 0.0
      %3929 = vmatprep.subr.mxu0 0.0
      %3930 = vmatpush1.msra.mxu0 0.0
      %3931 = vmatprep.subr.mxu0 0.0
      %3932 = vmatpush1.msra.mxu0 0.0
      %3933 = vmatprep.subr.mxu0 0.0
      %3934 = vmatpush1.msra.mxu0 0.0
      %3935 = vmatprep.mubr.f32.mxu0 0.0
      %v3936 = vand.u32 %v859, 4294901760
      %v3937 = vsub.f32 %v859, %v3936
      %v3938 = vand.u32 %v3937, 4294901760
      %v3939 = vsub.f32 %v3937, %v3938
      %v3940 = vand.u32 %v3939, 4294901760
      %3941 = vmatmul.mubr.f32.gmra.mrb[0].mxu0 %v3940
      %v3942 = vpop.f32.mrb[0].mxu0
      %v3943 = vadd.f32 0.0, %v3942
      %v3944 = vpop.f32.mrb[0].mxu0
      %3945 = vmatprep.mubr.f32.mxu0 0.0
      %v3946 = vand.u32 %v862, 4294901760
      %v3947 = vsub.f32 %v862, %v3946
      %v3948 = vand.u32 %v3947, 4294901760
      %v3949 = vsub.f32 %v3947, %v3948
      %v3950 = vand.u32 %v3949, 4294901760
      %3951 = vmatmul.mubr.f32.gmra.mrb[0].mxu0 %v3950
      %v3952 = vpop.f32.mrb[0].mxu0
      %v3953 = vadd.f32 0.0, %v3952
      %v3954 = vpop.f32.mrb[0].mxu0
      %3955 = vdwg.mxu0
      %3956 = vmatprep.subr.mxu0 0.0
      %v3957 = vand.u32 %v339, 4294901760
      %v3958 = vsub.f32 %v339, %v3957
      %v3959 = vand.u32 %v3958, 4294901760
      %v3960 = vsub.f32 %v3958, %v3959
      %v3961 = vand.u32 %v3960, 4294901760
      %3962 = vmatpush1.msra.mxu0 %v3961
      %3963 = vmatprep.subr.mxu0 0.0
      %3964 = vmatpush1.msra.mxu0 0.0
      %3965 = vmatprep.subr.mxu0 0.0
      %3966 = vmatpush1.msra.mxu0 0.0
      %3967 = vmatprep.subr.mxu0 0.0
      %3968 = vmatpush1.msra.mxu0 0.0
      %3969 = vmatprep.subr.mxu0 0.0
      %3970 = vmatpush1.msra.mxu0 0.0
      %3971 = vmatprep.subr.mxu0 0.0
      %3972 = vmatpush1.msra.mxu0 0.0
      %3973 = vmatprep.subr.mxu0 0.0
      %3974 = vmatpush1.msra.mxu0 0.0
      %3975 = vmatprep.subr.mxu0 0.0
      %3976 = vmatpush1.msra.mxu0 0.0
      %3977 = vmatprep.subr.mxu0 0.0
      %3978 = vmatpush1.msra.mxu0 0.0
      %3979 = vmatprep.subr.mxu0 0.0
      %3980 = vmatpush1.msra.mxu0 0.0
      %3981 = vmatprep.subr.mxu0 0.0
      %3982 = vmatpush1.msra.mxu0 0.0
      %3983 = vmatprep.subr.mxu0 0.0
      %3984 = vmatpush1.msra.mxu0 0.0
      %3985 = vmatprep.subr.mxu0 0.0
      %3986 = vmatpush1.msra.mxu0 0.0
      %3987 = vmatprep.subr.mxu0 0.0
      %3988 = vmatpush1.msra.mxu0 0.0
      %3989 = vmatprep.subr.mxu0 0.0
      %3990 = vmatpush1.msra.mxu0 0.0
      %3991 = vmatprep.subr.mxu0 0.0
      %3992 = vmatpush1.msra.mxu0 0.0
      %3993 = vmatprep.subr.mxu0 0.0
      %3994 = vmatpush1.msra.mxu0 0.0
      %3995 = vmatprep.subr.mxu0 0.0
      %3996 = vmatpush1.msra.mxu0 0.0
      %3997 = vmatprep.subr.mxu0 0.0
      %3998 = vmatpush1.msra.mxu0 0.0
      %3999 = vmatprep.subr.mxu0 0.0
      %4000 = vmatpush1.msra.mxu0 0.0
      %4001 = vmatprep.subr.mxu0 0.0
      %4002 = vmatpush1.msra.mxu0 0.0
      %4003 = vmatprep.subr.mxu0 0.0
      %4004 = vmatpush1.msra.mxu0 0.0
      %4005 = vmatprep.subr.mxu0 0.0
      %4006 = vmatpush1.msra.mxu0 0.0
      %4007 = vmatprep.subr.mxu0 0.0
      %4008 = vmatpush1.msra.mxu0 0.0
      %4009 = vmatprep.subr.mxu0 0.0
      %4010 = vmatpush1.msra.mxu0 0.0
      %4011 = vmatprep.subr.mxu0 0.0
      %4012 = vmatpush1.msra.mxu0 0.0
      %4013 = vmatprep.subr.mxu0 0.0
      %4014 = vmatpush1.msra.mxu0 0.0
      %4015 = vmatprep.subr.mxu0 0.0
      %4016 = vmatpush1.msra.mxu0 0.0
      %4017 = vmatprep.subr.mxu0 0.0
      %4018 = vmatpush1.msra.mxu0 0.0
      %4019 = vmatprep.subr.mxu0 0.0
      %4020 = vmatpush1.msra.mxu0 0.0
      %4021 = vmatprep.subr.mxu0 0.0
      %4022 = vmatpush1.msra.mxu0 0.0
      %4023 = vmatprep.subr.mxu0 0.0
      %4024 = vmatpush1.msra.mxu0 0.0
      %4025 = vmatprep.mubr.f32.mxu0 0.0
      %v4026 = vand.u32 %v859, 4294901760
      %4027 = vmatmul.mubr.f32.gmra.mrb[0].mxu0 %v4026
      %v4028 = vpop.f32.mrb[0].mxu0
      %v4029 = vadd.f32 %v3943, %v4028
      %v4030 = vpop.f32.mrb[0].mxu0
      %4031 = vmatprep.mubr.f32.mxu0 0.0
      %v4032 = vand.u32 %v862, 4294901760
      %4033 = vmatmul.mubr.f32.gmra.mrb[0].mxu0 %v4032
      %v4034 = vpop.f32.mrb[0].mxu0
      %v4035 = vadd.f32 %v3953, %v4034
      %v4036 = vpop.f32.mrb[0].mxu0
      %4037 = vdwg.mxu0
      %4038 = vmatprep.subr.mxu0 0.0
      %v4039 = vand.u32 %v339, 4294901760
      %v4040 = vsub.f32 %v339, %v4039
      %4041 = vmatpush1.msra.mxu0 %v4040
      %4042 = vmatprep.subr.mxu0 0.0
      %4043 = vmatpush1.msra.mxu0 0.0
      %4044 = vmatprep.subr.mxu0 0.0
      %4045 = vmatpush1.msra.mxu0 0.0
      %4046 = vmatprep.subr.mxu0 0.0
      %4047 = vmatpush1.msra.mxu0 0.0
      %4048 = vmatprep.subr.mxu0 0.0
      %4049 = vmatpush1.msra.mxu0 0.0
      %4050 = vmatprep.subr.mxu0 0.0
      %4051 = vmatpush1.msra.mxu0 0.0
      %4052 = vmatprep.subr.mxu0 0.0
      %4053 = vmatpush1.msra.mxu0 0.0
      %4054 = vmatprep.subr.mxu0 0.0
      %4055 = vmatpush1.msra.mxu0 0.0
      %4056 = vmatprep.subr.mxu0 0.0
      %4057 = vmatpush1.msra.mxu0 0.0
      %4058 = vmatprep.subr.mxu0 0.0
      %4059 = vmatpush1.msra.mxu0 0.0
      %4060 = vmatprep.subr.mxu0 0.0
      %4061 = vmatpush1.msra.mxu0 0.0
      %4062 = vmatprep.subr.mxu0 0.0
      %4063 = vmatpush1.msra.mxu0 0.0
      %4064 = vmatprep.subr.mxu0 0.0
      %4065 = vmatpush1.msra.mxu0 0.0
      %4066 = vmatprep.subr.mxu0 0.0
      %4067 = vmatpush1.msra.mxu0 0.0
      %4068 = vmatprep.subr.mxu0 0.0
      %4069 = vmatpush1.msra.mxu0 0.0
      %4070 = vmatprep.subr.mxu0 0.0
      %4071 = vmatpush1.msra.mxu0 0.0
      %4072 = vmatprep.subr.mxu0 0.0
      %4073 = vmatpush1.msra.mxu0 0.0
      %4074 = vmatprep.subr.mxu0 0.0
      %4075 = vmatpush1.msra.mxu0 0.0
      %4076 = vmatprep.subr.mxu0 0.0
      %4077 = vmatpush1.msra.mxu0 0.0
      %4078 = vmatprep.subr.mxu0 0.0
      %4079 = vmatpush1.msra.mxu0 0.0
      %4080 = vmatprep.subr.mxu0 0.0
      %4081 = vmatpush1.msra.mxu0 0.0
      %4082 = vmatprep.subr.mxu0 0.0
      %4083 = vmatpush1.msra.mxu0 0.0
      %4084 = vmatprep.subr.mxu0 0.0
      %4085 = vmatpush1.msra.mxu0 0.0
      %4086 = vmatprep.subr.mxu0 0.0
      %4087 = vmatpush1.msra.mxu0 0.0
      %4088 = vmatprep.subr.mxu0 0.0
      %4089 = vmatpush1.msra.mxu0 0.0
      %4090 = vmatprep.subr.mxu0 0.0
      %4091 = vmatpush1.msra.mxu0 0.0
      %4092 = vmatprep.subr.mxu0 0.0
      %4093 = vmatpush1.msra.mxu0 0.0
      %4094 = vmatprep.subr.mxu0 0.0
      %4095 = vmatpush1.msra.mxu0 0.0
      %4096 = vmatprep.subr.mxu0 0.0
      %4097 = vmatpush1.msra.mxu0 0.0
      %4098 = vmatprep.subr.mxu0 0.0
      %4099 = vmatpush1.msra.mxu0 0.0
      %4100 = vmatprep.subr.mxu0 0.0
      %4101 = vmatpush1.msra.mxu0 0.0
      %4102 = vmatprep.subr.mxu0 0.0
      %4103 = vmatpush1.msra.mxu0 0.0
      %4104 = vmatprep.mubr.f32.mxu0 0.0
      %v4105 = vand.u32 %v859, 4294901760
      %v4106 = vsub.f32 %v859, %v4105
      %4107 = vmatmul.mubr.f32.gmra.mrb[0].mxu0 %v4106
      %v4108 = vpop.f32.mrb[0].mxu0
      %v4109 = vadd.f32 %v4029, %v4108
      %v4110 = vpop.f32.mrb[0].mxu0
      %4111 = vmatprep.mubr.f32.mxu0 0.0
      %v4112 = vand.u32 %v862, 4294901760
      %v4113 = vsub.f32 %v862, %v4112
      %4114 = vmatmul.mubr.f32.gmra.mrb[0].mxu0 %v4113
      %v4115 = vpop.f32.mrb[0].mxu0
      %v4116 = vadd.f32 %v4035, %v4115
      %v4117 = vpop.f32.mrb[0].mxu0
      %4118 = vdwg.mxu0
      %4119 = vmatprep.subr.mxu0 0.0
      %v4120 = vand.u32 %v339, 4294901760
      %4121 = vmatpush1.msra.mxu0 %v4120
      %4122 = vmatprep.subr.mxu0 0.0
      %4123 = vmatpush1.msra.mxu0 0.0
      %4124 = vmatprep.subr.mxu0 0.0
      %4125 = vmatpush1.msra.mxu0 0.0
      %4126 = vmatprep.subr.mxu0 0.0
      %4127 = vmatpush1.msra.mxu0 0.0
      %4128 = vmatprep.subr.mxu0 0.0
      %4129 = vmatpush1.msra.mxu0 0.0
      %4130 = vmatprep.subr.mxu0 0.0
      %4131 = vmatpush1.msra.mxu0 0.0
      %4132 = vmatprep.subr.mxu0 0.0
      %4133 = vmatpush1.msra.mxu0 0.0
      %4134 = vmatprep.subr.mxu0 0.0
      %4135 = vmatpush1.msra.mxu0 0.0
      %4136 = vmatprep.subr.mxu0 0.0
      %4137 = vmatpush1.msra.mxu0 0.0
      %4138 = vmatprep.subr.mxu0 0.0
      %4139 = vmatpush1.msra.mxu0 0.0
      %4140 = vmatprep.subr.mxu0 0.0
      %4141 = vmatpush1.msra.mxu0 0.0
      %4142 = vmatprep.subr.mxu0 0.0
      %4143 = vmatpush1.msra.mxu0 0.0
      %4144 = vmatprep.subr.mxu0 0.0
      %4145 = vmatpush1.msra.mxu0 0.0
      %4146 = vmatprep.subr.mxu0 0.0
      %4147 = vmatpush1.msra.mxu0 0.0
      %4148 = vmatprep.subr.mxu0 0.0
      %4149 = vmatpush1.msra.mxu0 0.0
      %4150 = vmatprep.subr.mxu0 0.0
      %4151 = vmatpush1.msra.mxu0 0.0
      %4152 = vmatprep.subr.mxu0 0.0
      %4153 = vmatpush1.msra.mxu0 0.0
      %4154 = vmatprep.subr.mxu0 0.0
      %4155 = vmatpush1.msra.mxu0 0.0
      %4156 = vmatprep.subr.mxu0 0.0
      %4157 = vmatpush1.msra.mxu0 0.0
      %4158 = vmatprep.subr.mxu0 0.0
      %4159 = vmatpush1.msra.mxu0 0.0
      %4160 = vmatprep.subr.mxu0 0.0
      %4161 = vmatpush1.msra.mxu0 0.0
      %4162 = vmatprep.subr.mxu0 0.0
      %4163 = vmatpush1.msra.mxu0 0.0
      %4164 = vmatprep.subr.mxu0 0.0
      %4165 = vmatpush1.msra.mxu0 0.0
      %4166 = vmatprep.subr.mxu0 0.0
      %4167 = vmatpush1.msra.mxu0 0.0
      %4168 = vmatprep.subr.mxu0 0.0
      %4169 = vmatpush1.msra.mxu0 0.0
      %4170 = vmatprep.subr.mxu0 0.0
      %4171 = vmatpush1.msra.mxu0 0.0
      %4172 = vmatprep.subr.mxu0 0.0
      %4173 = vmatpush1.msra.mxu0 0.0
      %4174 = vmatprep.subr.mxu0 0.0
      %4175 = vmatpush1.msra.mxu0 0.0
      %4176 = vmatprep.subr.mxu0 0.0
      %4177 = vmatpush1.msra.mxu0 0.0
      %4178 = vmatprep.subr.mxu0 0.0
      %4179 = vmatpush1.msra.mxu0 0.0
      %4180 = vmatprep.subr.mxu0 0.0
      %4181 = vmatpush1.msra.mxu0 0.0
      %4182 = vmatprep.subr.mxu0 0.0
      %4183 = vmatpush1.msra.mxu0 0.0
      %4184 = vmatprep.mubr.f32.mxu0 0.0
      %v4185 = vand.u32 %v859, 4294901760
      %v4186 = vsub.f32 %v859, %v4185
      %v4187 = vand.u32 %v4186, 4294901760
      %4188 = vmatmul.mubr.f32.gmra.mrb[0].mxu0 %v4187
      %v4189 = vpop.f32.mrb[0].mxu0
      %v4190 = vadd.f32 %v4109, %v4189
      %v4191 = vpop.f32.mrb[0].mxu0
      %4192 = vmatprep.mubr.f32.mxu0 0.0
      %v4193 = vand.u32 %v862, 4294901760
      %v4194 = vsub.f32 %v862, %v4193
      %v4195 = vand.u32 %v4194, 4294901760
      %4196 = vmatmul.mubr.f32.gmra.mrb[0].mxu0 %v4195
      %v4197 = vpop.f32.mrb[0].mxu0
      %v4198 = vadd.f32 %v4116, %v4197
      %v4199 = vpop.f32.mrb[0].mxu0
      %4200 = vdwg.mxu0
      %4201 = vmatprep.subr.mxu0 0.0
      %v4202 = vand.u32 %v339, 4294901760
      %v4203 = vsub.f32 %v339, %v4202
      %v4204 = vand.u32 %v4203, 4294901760
      %4205 = vmatpush1.msra.mxu0 %v4204
      %4206 = vmatprep.subr.mxu0 0.0
      %4207 = vmatpush1.msra.mxu0 0.0
      %4208 = vmatprep.subr.mxu0 0.0
      %4209 = vmatpush1.msra.mxu0 0.0
      %4210 = vmatprep.subr.mxu0 0.0
      %4211 = vmatpush1.msra.mxu0 0.0
      %4212 = vmatprep.subr.mxu0 0.0
      %4213 = vmatpush1.msra.mxu0 0.0
      %4214 = vmatprep.subr.mxu0 0.0
      %4215 = vmatpush1.msra.mxu0 0.0
      %4216 = vmatprep.subr.mxu0 0.0
      %4217 = vmatpush1.msra.mxu0 0.0
      %4218 = vmatprep.subr.mxu0 0.0
      %4219 = vmatpush1.msra.mxu0 0.0
      %4220 = vmatprep.subr.mxu0 0.0
      %4221 = vmatpush1.msra.mxu0 0.0
      %4222 = vmatprep.subr.mxu0 0.0
      %4223 = vmatpush1.msra.mxu0 0.0
      %4224 = vmatprep.subr.mxu0 0.0
      %4225 = vmatpush1.msra.mxu0 0.0
      %4226 = vmatprep.subr.mxu0 0.0
      %4227 = vmatpush1.msra.mxu0 0.0
      %4228 = vmatprep.subr.mxu0 0.0
      %4229 = vmatpush1.msra.mxu0 0.0
      %4230 = vmatprep.subr.mxu0 0.0
      %4231 = vmatpush1.msra.mxu0 0.0
      %4232 = vmatprep.subr.mxu0 0.0
      %4233 = vmatpush1.msra.mxu0 0.0
      %4234 = vmatprep.subr.mxu0 0.0
      %4235 = vmatpush1.msra.mxu0 0.0
      %4236 = vmatprep.subr.mxu0 0.0
      %4237 = vmatpush1.msra.mxu0 0.0
      %4238 = vmatprep.subr.mxu0 0.0
      %4239 = vmatpush1.msra.mxu0 0.0
      %4240 = vmatprep.subr.mxu0 0.0
      %4241 = vmatpush1.msra.mxu0 0.0
      %4242 = vmatprep.subr.mxu0 0.0
      %4243 = vmatpush1.msra.mxu0 0.0
      %4244 = vmatprep.subr.mxu0 0.0
      %4245 = vmatpush1.msra.mxu0 0.0
      %4246 = vmatprep.subr.mxu0 0.0
      %4247 = vmatpush1.msra.mxu0 0.0
      %4248 = vmatprep.subr.mxu0 0.0
      %4249 = vmatpush1.msra.mxu0 0.0
      %4250 = vmatprep.subr.mxu0 0.0
      %4251 = vmatpush1.msra.mxu0 0.0
      %4252 = vmatprep.subr.mxu0 0.0
      %4253 = vmatpush1.msra.mxu0 0.0
      %4254 = vmatprep.subr.mxu0 0.0
      %4255 = vmatpush1.msra.mxu0 0.0
      %4256 = vmatprep.subr.mxu0 0.0
      %4257 = vmatpush1.msra.mxu0 0.0
      %4258 = vmatprep.subr.mxu0 0.0
      %4259 = vmatpush1.msra.mxu0 0.0
      %4260 = vmatprep.subr.mxu0 0.0
      %4261 = vmatpush1.msra.mxu0 0.0
      %4262 = vmatprep.subr.mxu0 0.0
      %4263 = vmatpush1.msra.mxu0 0.0
      %4264 = vmatprep.subr.mxu0 0.0
      %4265 = vmatpush1.msra.mxu0 0.0
      %4266 = vmatprep.subr.mxu0 0.0
      %4267 = vmatpush1.msra.mxu0 0.0
      %4268 = vmatprep.mubr.f32.mxu0 0.0
      %v4269 = vand.u32 %v859, 4294901760
      %4270 = vmatmul.mubr.f32.gmra.mrb[0].mxu0 %v4269
      %v4271 = vpop.f32.mrb[0].mxu0
      %v4272 = vadd.f32 %v4190, %v4271
      %v4273 = vpop.f32.mrb[0].mxu0
      %4274 = vmatprep.mubr.f32.mxu0 0.0
      %v4275 = vand.u32 %v862, 4294901760
      %4276 = vmatmul.mubr.f32.gmra.mrb[0].mxu0 %v4275
      %v4277 = vpop.f32.mrb[0].mxu0
      %v4278 = vadd.f32 %v4198, %v4277
      %v4279 = vpop.f32.mrb[0].mxu0
      %4280 = vdwg.mxu0
      %4281 = vmatprep.subr.mxu0 0.0
      %v4282 = vand.u32 %v339, 4294901760
      %4283 = vmatpush1.msra.mxu0 %v4282
      %4284 = vmatprep.subr.mxu0 0.0
      %4285 = vmatpush1.msra.mxu0 0.0
      %4286 = vmatprep.subr.mxu0 0.0
      %4287 = vmatpush1.msra.mxu0 0.0
      %4288 = vmatprep.subr.mxu0 0.0
      %4289 = vmatpush1.msra.mxu0 0.0
      %4290 = vmatprep.subr.mxu0 0.0
      %4291 = vmatpush1.msra.mxu0 0.0
      %4292 = vmatprep.subr.mxu0 0.0
      %4293 = vmatpush1.msra.mxu0 0.0
      %4294 = vmatprep.subr.mxu0 0.0
      %4295 = vmatpush1.msra.mxu0 0.0
      %4296 = vmatprep.subr.mxu0 0.0
      %4297 = vmatpush1.msra.mxu0 0.0
      %4298 = vmatprep.subr.mxu0 0.0
      %4299 = vmatpush1.msra.mxu0 0.0
      %4300 = vmatprep.subr.mxu0 0.0
      %4301 = vmatpush1.msra.mxu0 0.0
      %4302 = vmatprep.subr.mxu0 0.0
      %4303 = vmatpush1.msra.mxu0 0.0
      %4304 = vmatprep.subr.mxu0 0.0
      %4305 = vmatpush1.msra.mxu0 0.0
      %4306 = vmatprep.subr.mxu0 0.0
      %4307 = vmatpush1.msra.mxu0 0.0
      %4308 = vmatprep.subr.mxu0 0.0
      %4309 = vmatpush1.msra.mxu0 0.0
      %4310 = vmatprep.subr.mxu0 0.0
      %4311 = vmatpush1.msra.mxu0 0.0
      %4312 = vmatprep.subr.mxu0 0.0
      %4313 = vmatpush1.msra.mxu0 0.0
      %4314 = vmatprep.subr.mxu0 0.0
      %4315 = vmatpush1.msra.mxu0 0.0
      %4316 = vmatprep.subr.mxu0 0.0
      %4317 = vmatpush1.msra.mxu0 0.0
      %4318 = vmatprep.subr.mxu0 0.0
      %4319 = vmatpush1.msra.mxu0 0.0
      %4320 = vmatprep.subr.mxu0 0.0
      %4321 = vmatpush1.msra.mxu0 0.0
      %4322 = vmatprep.subr.mxu0 0.0
      %4323 = vmatpush1.msra.mxu0 0.0
      %4324 = vmatprep.subr.mxu0 0.0
      %4325 = vmatpush1.msra.mxu0 0.0
      %4326 = vmatprep.subr.mxu0 0.0
      %4327 = vmatpush1.msra.mxu0 0.0
      %4328 = vmatprep.subr.mxu0 0.0
      %4329 = vmatpush1.msra.mxu0 0.0
      %4330 = vmatprep.subr.mxu0 0.0
      %4331 = vmatpush1.msra.mxu0 0.0
      %4332 = vmatprep.subr.mxu0 0.0
      %4333 = vmatpush1.msra.mxu0 0.0
      %4334 = vmatprep.subr.mxu0 0.0
      %4335 = vmatpush1.msra.mxu0 0.0
      %4336 = vmatprep.subr.mxu0 0.0
      %4337 = vmatpush1.msra.mxu0 0.0
      %4338 = vmatprep.subr.mxu0 0.0
      %4339 = vmatpush1.msra.mxu0 0.0
      %4340 = vmatprep.subr.mxu0 0.0
      %4341 = vmatpush1.msra.mxu0 0.0
      %4342 = vmatprep.subr.mxu0 0.0
      %4343 = vmatpush1.msra.mxu0 0.0
      %4344 = vmatprep.subr.mxu0 0.0
      %4345 = vmatpush1.msra.mxu0 0.0
      %4346 = vmatprep.mubr.f32.mxu0 0.0
      %v4347 = vand.u32 %v859, 4294901760
      %4348 = vmatmul.mubr.f32.gmra.mrb[0].mxu0 %v4347
      %v4349 = vpop.f32.mrb[0].mxu0
      %v4350 = vadd.f32 %v4272, %v4349
      %v4351 = vpop.f32.mrb[0].mxu0
      %4352 = vmatprep.mubr.f32.mxu0 0.0
      %v4353 = vand.u32 %v862, 4294901760
      %4354 = vmatmul.mubr.f32.gmra.mrb[0].mxu0 %v4353
      %v4355 = vpop.f32.mrb[0].mxu0
      %v4356 = vadd.f32 %v4278, %v4355
      %v4357 = vpop.f32.mrb[0].mxu0
      %4358 = vdwg.mxu0
      %v4359 = vadd.f32 %v1356, %v4350
      %v4360 = vadd.f32 %v1361, %v4356
      %4361 = vmatprep.subr.mxu0 0.0
      %v4362 = vand.u32 %v341, 4294901760
      %4363 = vmatpush1.msra.mxu0 %v4362
      %4364 = vmatprep.subr.mxu0 0.0
      %4365 = vmatpush1.msra.mxu0 0.0
      %4366 = vmatprep.subr.mxu0 0.0
      %4367 = vmatpush1.msra.mxu0 0.0
      %4368 = vmatprep.subr.mxu0 0.0
      %4369 = vmatpush1.msra.mxu0 0.0
      %4370 = vmatprep.subr.mxu0 0.0
      %4371 = vmatpush1.msra.mxu0 0.0
      %4372 = vmatprep.subr.mxu0 0.0
      %4373 = vmatpush1.msra.mxu0 0.0
      %4374 = vmatprep.subr.mxu0 0.0
      %4375 = vmatpush1.msra.mxu0 0.0
      %4376 = vmatprep.subr.mxu0 0.0
      %4377 = vmatpush1.msra.mxu0 0.0
      %4378 = vmatprep.subr.mxu0 0.0
      %4379 = vmatpush1.msra.mxu0 0.0
      %4380 = vmatprep.subr.mxu0 0.0
      %4381 = vmatpush1.msra.mxu0 0.0
      %4382 = vmatprep.subr.mxu0 0.0
      %4383 = vmatpush1.msra.mxu0 0.0
      %4384 = vmatprep.subr.mxu0 0.0
      %4385 = vmatpush1.msra.mxu0 0.0
      %4386 = vmatprep.subr.mxu0 0.0
      %4387 = vmatpush1.msra.mxu0 0.0
      %4388 = vmatprep.subr.mxu0 0.0
      %4389 = vmatpush1.msra.mxu0 0.0
      %4390 = vmatprep.subr.mxu0 0.0
      %4391 = vmatpush1.msra.mxu0 0.0
      %4392 = vmatprep.subr.mxu0 0.0
      %4393 = vmatpush1.msra.mxu0 0.0
      %4394 = vmatprep.subr.mxu0 0.0
      %4395 = vmatpush1.msra.mxu0 0.0
      %4396 = vmatprep.subr.mxu0 0.0
      %4397 = vmatpush1.msra.mxu0 0.0
      %4398 = vmatprep.subr.mxu0 0.0
      %4399 = vmatpush1.msra.mxu0 0.0
      %4400 = vmatprep.subr.mxu0 0.0
      %4401 = vmatpush1.msra.mxu0 0.0
      %4402 = vmatprep.subr.mxu0 0.0
      %4403 = vmatpush1.msra.mxu0 0.0
      %4404 = vmatprep.subr.mxu0 0.0
      %4405 = vmatpush1.msra.mxu0 0.0
      %4406 = vmatprep.subr.mxu0 0.0
      %4407 = vmatpush1.msra.mxu0 0.0
      %4408 = vmatprep.subr.mxu0 0.0
      %4409 = vmatpush1.msra.mxu0 0.0
      %4410 = vmatprep.subr.mxu0 0.0
      %4411 = vmatpush1.msra.mxu0 0.0
      %4412 = vmatprep.subr.mxu0 0.0
      %4413 = vmatpush1.msra.mxu0 0.0
      %4414 = vmatprep.subr.mxu0 0.0
      %4415 = vmatpush1.msra.mxu0 0.0
      %4416 = vmatprep.subr.mxu0 0.0
      %4417 = vmatpush1.msra.mxu0 0.0
      %4418 = vmatprep.subr.mxu0 0.0
      %4419 = vmatpush1.msra.mxu0 0.0
      %4420 = vmatprep.subr.mxu0 0.0
      %4421 = vmatpush1.msra.mxu0 0.0
      %4422 = vmatprep.subr.mxu0 0.0
      %4423 = vmatpush1.msra.mxu0 0.0
      %4424 = vmatprep.subr.mxu0 0.0
      %4425 = vmatpush1.msra.mxu0 0.0
      %4426 = vmatprep.mubr.f32.mxu0 0.0
      %v4427 = vand.u32 %v1369, 4294901760
      %v4428 = vsub.f32 %v1369, %v4427
      %v4429 = vand.u32 %v4428, 4294901760
      %v4430 = vsub.f32 %v4428, %v4429
      %v4431 = vand.u32 %v4430, 4294901760
      %4432 = vmatmul.mubr.f32.gmra.mrb[0].mxu0 %v4431
      %v4433 = vpop.f32.mrb[0].mxu0
      %v4434 = vadd.f32 0.0, %v4433
      %v4435 = vpop.f32.mrb[0].mxu0
      %4436 = vmatprep.mubr.f32.mxu0 0.0
      %v4437 = vand.u32 %v1372, 4294901760
      %v4438 = vsub.f32 %v1372, %v4437
      %v4439 = vand.u32 %v4438, 4294901760
      %v4440 = vsub.f32 %v4438, %v4439
      %v4441 = vand.u32 %v4440, 4294901760
      %4442 = vmatmul.mubr.f32.gmra.mrb[0].mxu0 %v4441
      %v4443 = vpop.f32.mrb[0].mxu0
      %v4444 = vadd.f32 0.0, %v4443
      %v4445 = vpop.f32.mrb[0].mxu0
      %4446 = vdwg.mxu0
      %4447 = vmatprep.subr.mxu0 0.0
      %v4448 = vand.u32 %v341, 4294901760
      %v4449 = vsub.f32 %v341, %v4448
      %v4450 = vand.u32 %v4449, 4294901760
      %v4451 = vsub.f32 %v4449, %v4450
      %v4452 = vand.u32 %v4451, 4294901760
      %4453 = vmatpush1.msra.mxu0 %v4452
      %4454 = vmatprep.subr.mxu0 0.0
      %4455 = vmatpush1.msra.mxu0 0.0
      %4456 = vmatprep.subr.mxu0 0.0
      %4457 = vmatpush1.msra.mxu0 0.0
      %4458 = vmatprep.subr.mxu0 0.0
      %4459 = vmatpush1.msra.mxu0 0.0
      %4460 = vmatprep.subr.mxu0 0.0
      %4461 = vmatpush1.msra.mxu0 0.0
      %4462 = vmatprep.subr.mxu0 0.0
      %4463 = vmatpush1.msra.mxu0 0.0
      %4464 = vmatprep.subr.mxu0 0.0
      %4465 = vmatpush1.msra.mxu0 0.0
      %4466 = vmatprep.subr.mxu0 0.0
      %4467 = vmatpush1.msra.mxu0 0.0
      %4468 = vmatprep.subr.mxu0 0.0
      %4469 = vmatpush1.msra.mxu0 0.0
      %4470 = vmatprep.subr.mxu0 0.0
      %4471 = vmatpush1.msra.mxu0 0.0
      %4472 = vmatprep.subr.mxu0 0.0
      %4473 = vmatpush1.msra.mxu0 0.0
      %4474 = vmatprep.subr.mxu0 0.0
      %4475 = vmatpush1.msra.mxu0 0.0
      %4476 = vmatprep.subr.mxu0 0.0
      %4477 = vmatpush1.msra.mxu0 0.0
      %4478 = vmatprep.subr.mxu0 0.0
      %4479 = vmatpush1.msra.mxu0 0.0
      %4480 = vmatprep.subr.mxu0 0.0
      %4481 = vmatpush1.msra.mxu0 0.0
      %4482 = vmatprep.subr.mxu0 0.0
      %4483 = vmatpush1.msra.mxu0 0.0
      %4484 = vmatprep.subr.mxu0 0.0
      %4485 = vmatpush1.msra.mxu0 0.0
      %4486 = vmatprep.subr.mxu0 0.0
      %4487 = vmatpush1.msra.mxu0 0.0
      %4488 = vmatprep.subr.mxu0 0.0
      %4489 = vmatpush1.msra.mxu0 0.0
      %4490 = vmatprep.subr.mxu0 0.0
      %4491 = vmatpush1.msra.mxu0 0.0
      %4492 = vmatprep.subr.mxu0 0.0
      %4493 = vmatpush1.msra.mxu0 0.0
      %4494 = vmatprep.subr.mxu0 0.0
      %4495 = vmatpush1.msra.mxu0 0.0
      %4496 = vmatprep.subr.mxu0 0.0
      %4497 = vmatpush1.msra.mxu0 0.0
      %4498 = vmatprep.subr.mxu0 0.0
      %4499 = vmatpush1.msra.mxu0 0.0
      %4500 = vmatprep.subr.mxu0 0.0
      %4501 = vmatpush1.msra.mxu0 0.0
      %4502 = vmatprep.subr.mxu0 0.0
      %4503 = vmatpush1.msra.mxu0 0.0
      %4504 = vmatprep.subr.mxu0 0.0
      %4505 = vmatpush1.msra.mxu0 0.0
      %4506 = vmatprep.subr.mxu0 0.0
      %4507 = vmatpush1.msra.mxu0 0.0
      %4508 = vmatprep.subr.mxu0 0.0
      %4509 = vmatpush1.msra.mxu0 0.0
      %4510 = vmatprep.subr.mxu0 0.0
      %4511 = vmatpush1.msra.mxu0 0.0
      %4512 = vmatprep.subr.mxu0 0.0
      %4513 = vmatpush1.msra.mxu0 0.0
      %4514 = vmatprep.subr.mxu0 0.0
      %4515 = vmatpush1.msra.mxu0 0.0
      %4516 = vmatprep.mubr.f32.mxu0 0.0
      %v4517 = vand.u32 %v1369, 4294901760
      %4518 = vmatmul.mubr.f32.gmra.mrb[0].mxu0 %v4517
      %v4519 = vpop.f32.mrb[0].mxu0
      %v4520 = vadd.f32 %v4434, %v4519
      %v4521 = vpop.f32.mrb[0].mxu0
      %4522 = vmatprep.mubr.f32.mxu0 0.0
      %v4523 = vand.u32 %v1372, 4294901760
      %4524 = vmatmul.mubr.f32.gmra.mrb[0].mxu0 %v4523
      %v4525 = vpop.f32.mrb[0].mxu0
      %v4526 = vadd.f32 %v4444, %v4525
      %v4527 = vpop.f32.mrb[0].mxu0
      %4528 = vdwg.mxu0
      %4529 = vmatprep.subr.mxu0 0.0
      %v4530 = vand.u32 %v341, 4294901760
      %v4531 = vsub.f32 %v341, %v4530
      %4532 = vmatpush1.msra.mxu0 %v4531
      %4533 = vmatprep.subr.mxu0 0.0
      %4534 = vmatpush1.msra.mxu0 0.0
      %4535 = vmatprep.subr.mxu0 0.0
      %4536 = vmatpush1.msra.mxu0 0.0
      %4537 = vmatprep.subr.mxu0 0.0
      %4538 = vmatpush1.msra.mxu0 0.0
      %4539 = vmatprep.subr.mxu0 0.0
      %4540 = vmatpush1.msra.mxu0 0.0
      %4541 = vmatprep.subr.mxu0 0.0
      %4542 = vmatpush1.msra.mxu0 0.0
      %4543 = vmatprep.subr.mxu0 0.0
      %4544 = vmatpush1.msra.mxu0 0.0
      %4545 = vmatprep.subr.mxu0 0.0
      %4546 = vmatpush1.msra.mxu0 0.0
      %4547 = vmatprep.subr.mxu0 0.0
      %4548 = vmatpush1.msra.mxu0 0.0
      %4549 = vmatprep.subr.mxu0 0.0
      %4550 = vmatpush1.msra.mxu0 0.0
      %4551 = vmatprep.subr.mxu0 0.0
      %4552 = vmatpush1.msra.mxu0 0.0
      %4553 = vmatprep.subr.mxu0 0.0
      %4554 = vmatpush1.msra.mxu0 0.0
      %4555 = vmatprep.subr.mxu0 0.0
      %4556 = vmatpush1.msra.mxu0 0.0
      %4557 = vmatprep.subr.mxu0 0.0
      %4558 = vmatpush1.msra.mxu0 0.0
      %4559 = vmatprep.subr.mxu0 0.0
      %4560 = vmatpush1.msra.mxu0 0.0
      %4561 = vmatprep.subr.mxu0 0.0
      %4562 = vmatpush1.msra.mxu0 0.0
      %4563 = vmatprep.subr.mxu0 0.0
      %4564 = vmatpush1.msra.mxu0 0.0
      %4565 = vmatprep.subr.mxu0 0.0
      %4566 = vmatpush1.msra.mxu0 0.0
      %4567 = vmatprep.subr.mxu0 0.0
      %4568 = vmatpush1.msra.mxu0 0.0
      %4569 = vmatprep.subr.mxu0 0.0
      %4570 = vmatpush1.msra.mxu0 0.0
      %4571 = vmatprep.subr.mxu0 0.0
      %4572 = vmatpush1.msra.mxu0 0.0
      %4573 = vmatprep.subr.mxu0 0.0
      %4574 = vmatpush1.msra.mxu0 0.0
      %4575 = vmatprep.subr.mxu0 0.0
      %4576 = vmatpush1.msra.mxu0 0.0
      %4577 = vmatprep.subr.mxu0 0.0
      %4578 = vmatpush1.msra.mxu0 0.0
      %4579 = vmatprep.subr.mxu0 0.0
      %4580 = vmatpush1.msra.mxu0 0.0
      %4581 = vmatprep.subr.mxu0 0.0
      %4582 = vmatpush1.msra.mxu0 0.0
      %4583 = vmatprep.subr.mxu0 0.0
      %4584 = vmatpush1.msra.mxu0 0.0
      %4585 = vmatprep.subr.mxu0 0.0
      %4586 = vmatpush1.msra.mxu0 0.0
      %4587 = vmatprep.subr.mxu0 0.0
      %4588 = vmatpush1.msra.mxu0 0.0
      %4589 = vmatprep.subr.mxu0 0.0
      %4590 = vmatpush1.msra.mxu0 0.0
      %4591 = vmatprep.subr.mxu0 0.0
      %4592 = vmatpush1.msra.mxu0 0.0
      %4593 = vmatprep.subr.mxu0 0.0
      %4594 = vmatpush1.msra.mxu0 0.0
      %4595 = vmatprep.mubr.f32.mxu0 0.0
      %v4596 = vand.u32 %v1369, 4294901760
      %v4597 = vsub.f32 %v1369, %v4596
      %4598 = vmatmul.mubr.f32.gmra.mrb[0].mxu0 %v4597
      %v4599 = vpop.f32.mrb[0].mxu0
      %v4600 = vadd.f32 %v4520, %v4599
      %v4601 = vpop.f32.mrb[0].mxu0
      %4602 = vmatprep.mubr.f32.mxu0 0.0
      %v4603 = vand.u32 %v1372, 4294901760
      %v4604 = vsub.f32 %v1372, %v4603
      %4605 = vmatmul.mubr.f32.gmra.mrb[0].mxu0 %v4604
      %v4606 = vpop.f32.mrb[0].mxu0
      %v4607 = vadd.f32 %v4526, %v4606
      %v4608 = vpop.f32.mrb[0].mxu0
      %4609 = vdwg.mxu0
      %4610 = vmatprep.subr.mxu0 0.0
      %v4611 = vand.u32 %v341, 4294901760
      %4612 = vmatpush1.msra.mxu0 %v4611
      %4613 = vmatprep.subr.mxu0 0.0
      %4614 = vmatpush1.msra.mxu0 0.0
      %4615 = vmatprep.subr.mxu0 0.0
      %4616 = vmatpush1.msra.mxu0 0.0
      %4617 = vmatprep.subr.mxu0 0.0
      %4618 = vmatpush1.msra.mxu0 0.0
      %4619 = vmatprep.subr.mxu0 0.0
      %4620 = vmatpush1.msra.mxu0 0.0
      %4621 = vmatprep.subr.mxu0 0.0
      %4622 = vmatpush1.msra.mxu0 0.0
      %4623 = vmatprep.subr.mxu0 0.0
      %4624 = vmatpush1.msra.mxu0 0.0
      %4625 = vmatprep.subr.mxu0 0.0
      %4626 = vmatpush1.msra.mxu0 0.0
      %4627 = vmatprep.subr.mxu0 0.0
      %4628 = vmatpush1.msra.mxu0 0.0
      %4629 = vmatprep.subr.mxu0 0.0
      %4630 = vmatpush1.msra.mxu0 0.0
      %4631 = vmatprep.subr.mxu0 0.0
      %4632 = vmatpush1.msra.mxu0 0.0
      %4633 = vmatprep.subr.mxu0 0.0
      %4634 = vmatpush1.msra.mxu0 0.0
      %4635 = vmatprep.subr.mxu0 0.0
      %4636 = vmatpush1.msra.mxu0 0.0
      %4637 = vmatprep.subr.mxu0 0.0
      %4638 = vmatpush1.msra.mxu0 0.0
      %4639 = vmatprep.subr.mxu0 0.0
      %4640 = vmatpush1.msra.mxu0 0.0
      %4641 = vmatprep.subr.mxu0 0.0
      %4642 = vmatpush1.msra.mxu0 0.0
      %4643 = vmatprep.subr.mxu0 0.0
      %4644 = vmatpush1.msra.mxu0 0.0
      %4645 = vmatprep.subr.mxu0 0.0
      %4646 = vmatpush1.msra.mxu0 0.0
      %4647 = vmatprep.subr.mxu0 0.0
      %4648 = vmatpush1.msra.mxu0 0.0
      %4649 = vmatprep.subr.mxu0 0.0
      %4650 = vmatpush1.msra.mxu0 0.0
      %4651 = vmatprep.subr.mxu0 0.0
      %4652 = vmatpush1.msra.mxu0 0.0
      %4653 = vmatprep.subr.mxu0 0.0
      %4654 = vmatpush1.msra.mxu0 0.0
      %4655 = vmatprep.subr.mxu0 0.0
      %4656 = vmatpush1.msra.mxu0 0.0
      %4657 = vmatprep.subr.mxu0 0.0
      %4658 = vmatpush1.msra.mxu0 0.0
      %4659 = vmatprep.subr.mxu0 0.0
      %4660 = vmatpush1.msra.mxu0 0.0
      %4661 = vmatprep.subr.mxu0 0.0
      %4662 = vmatpush1.msra.mxu0 0.0
      %4663 = vmatprep.subr.mxu0 0.0
      %4664 = vmatpush1.msra.mxu0 0.0
      %4665 = vmatprep.subr.mxu0 0.0
      %4666 = vmatpush1.msra.mxu0 0.0
      %4667 = vmatprep.subr.mxu0 0.0
      %4668 = vmatpush1.msra.mxu0 0.0
      %4669 = vmatprep.subr.mxu0 0.0
      %4670 = vmatpush1.msra.mxu0 0.0
      %4671 = vmatprep.subr.mxu0 0.0
      %4672 = vmatpush1.msra.mxu0 0.0
      %4673 = vmatprep.subr.mxu0 0.0
      %4674 = vmatpush1.msra.mxu0 0.0
      %4675 = vmatprep.mubr.f32.mxu0 0.0
      %v4676 = vand.u32 %v1369, 4294901760
      %v4677 = vsub.f32 %v1369, %v4676
      %v4678 = vand.u32 %v4677, 4294901760
      %4679 = vmatmul.mubr.f32.gmra.mrb[0].mxu0 %v4678
      %v4680 = vpop.f32.mrb[0].mxu0
      %v4681 = vadd.f32 %v4600, %v4680
      %v4682 = vpop.f32.mrb[0].mxu0
      %4683 = vmatprep.mubr.f32.mxu0 0.0
      %v4684 = vand.u32 %v1372, 4294901760
      %v4685 = vsub.f32 %v1372, %v4684
      %v4686 = vand.u32 %v4685, 4294901760
      %4687 = vmatmul.mubr.f32.gmra.mrb[0].mxu0 %v4686
      %v4688 = vpop.f32.mrb[0].mxu0
      %v4689 = vadd.f32 %v4607, %v4688
      %v4690 = vpop.f32.mrb[0].mxu0
      %4691 = vdwg.mxu0
      %4692 = vmatprep.subr.mxu0 0.0
      %v4693 = vand.u32 %v341, 4294901760
      %v4694 = vsub.f32 %v341, %v4693
      %v4695 = vand.u32 %v4694, 4294901760
      %4696 = vmatpush1.msra.mxu0 %v4695
      %4697 = vmatprep.subr.mxu0 0.0
      %4698 = vmatpush1.msra.mxu0 0.0
      %4699 = vmatprep.subr.mxu0 0.0
      %4700 = vmatpush1.msra.mxu0 0.0
      %4701 = vmatprep.subr.mxu0 0.0
      %4702 = vmatpush1.msra.mxu0 0.0
      %4703 = vmatprep.subr.mxu0 0.0
      %4704 = vmatpush1.msra.mxu0 0.0
      %4705 = vmatprep.subr.mxu0 0.0
      %4706 = vmatpush1.msra.mxu0 0.0
      %4707 = vmatprep.subr.mxu0 0.0
      %4708 = vmatpush1.msra.mxu0 0.0
      %4709 = vmatprep.subr.mxu0 0.0
      %4710 = vmatpush1.msra.mxu0 0.0
      %4711 = vmatprep.subr.mxu0 0.0
      %4712 = vmatpush1.msra.mxu0 0.0
      %4713 = vmatprep.subr.mxu0 0.0
      %4714 = vmatpush1.msra.mxu0 0.0
      %4715 = vmatprep.subr.mxu0 0.0
      %4716 = vmatpush1.msra.mxu0 0.0
      %4717 = vmatprep.subr.mxu0 0.0
      %4718 = vmatpush1.msra.mxu0 0.0
      %4719 = vmatprep.subr.mxu0 0.0
      %4720 = vmatpush1.msra.mxu0 0.0
      %4721 = vmatprep.subr.mxu0 0.0
      %4722 = vmatpush1.msra.mxu0 0.0
      %4723 = vmatprep.subr.mxu0 0.0
      %4724 = vmatpush1.msra.mxu0 0.0
      %4725 = vmatprep.subr.mxu0 0.0
      %4726 = vmatpush1.msra.mxu0 0.0
      %4727 = vmatprep.subr.mxu0 0.0
      %4728 = vmatpush1.msra.mxu0 0.0
      %4729 = vmatprep.subr.mxu0 0.0
      %4730 = vmatpush1.msra.mxu0 0.0
      %4731 = vmatprep.subr.mxu0 0.0
      %4732 = vmatpush1.msra.mxu0 0.0
      %4733 = vmatprep.subr.mxu0 0.0
      %4734 = vmatpush1.msra.mxu0 0.0
      %4735 = vmatprep.subr.mxu0 0.0
      %4736 = vmatpush1.msra.mxu0 0.0
      %4737 = vmatprep.subr.mxu0 0.0
      %4738 = vmatpush1.msra.mxu0 0.0
      %4739 = vmatprep.subr.mxu0 0.0
      %4740 = vmatpush1.msra.mxu0 0.0
      %4741 = vmatprep.subr.mxu0 0.0
      %4742 = vmatpush1.msra.mxu0 0.0
      %4743 = vmatprep.subr.mxu0 0.0
      %4744 = vmatpush1.msra.mxu0 0.0
      %4745 = vmatprep.subr.mxu0 0.0
      %4746 = vmatpush1.msra.mxu0 0.0
      %4747 = vmatprep.subr.mxu0 0.0
      %4748 = vmatpush1.msra.mxu0 0.0
      %4749 = vmatprep.subr.mxu0 0.0
      %4750 = vmatpush1.msra.mxu0 0.0
      %4751 = vmatprep.subr.mxu0 0.0
      %4752 = vmatpush1.msra.mxu0 0.0
      %4753 = vmatprep.subr.mxu0 0.0
      %4754 = vmatpush1.msra.mxu0 0.0
      %4755 = vmatprep.subr.mxu0 0.0
      %4756 = vmatpush1.msra.mxu0 0.0
      %4757 = vmatprep.subr.mxu0 0.0
      %4758 = vmatpush1.msra.mxu0 0.0
      %4759 = vmatprep.mubr.f32.mxu0 0.0
      %v4760 = vand.u32 %v1369, 4294901760
      %4761 = vmatmul.mubr.f32.gmra.mrb[0].mxu0 %v4760
      %v4762 = vpop.f32.mrb[0].mxu0
      %v4763 = vadd.f32 %v4681, %v4762
      %v4764 = vpop.f32.mrb[0].mxu0
      %4765 = vmatprep.mubr.f32.mxu0 0.0
      %v4766 = vand.u32 %v1372, 4294901760
      %4767 = vmatmul.mubr.f32.gmra.mrb[0].mxu0 %v4766
      %v4768 = vpop.f32.mrb[0].mxu0
      %v4769 = vadd.f32 %v4689, %v4768
      %v4770 = vpop.f32.mrb[0].mxu0
      %4771 = vdwg.mxu0
      %4772 = vmatprep.subr.mxu0 0.0
      %v4773 = vand.u32 %v341, 4294901760
      %4774 = vmatpush1.msra.mxu0 %v4773
      %4775 = vmatprep.subr.mxu0 0.0
      %4776 = vmatpush1.msra.mxu0 0.0
      %4777 = vmatprep.subr.mxu0 0.0
      %4778 = vmatpush1.msra.mxu0 0.0
      %4779 = vmatprep.subr.mxu0 0.0
      %4780 = vmatpush1.msra.mxu0 0.0
      %4781 = vmatprep.subr.mxu0 0.0
      %4782 = vmatpush1.msra.mxu0 0.0
      %4783 = vmatprep.subr.mxu0 0.0
      %4784 = vmatpush1.msra.mxu0 0.0
      %4785 = vmatprep.subr.mxu0 0.0
      %4786 = vmatpush1.msra.mxu0 0.0
      %4787 = vmatprep.subr.mxu0 0.0
      %4788 = vmatpush1.msra.mxu0 0.0
      %4789 = vmatprep.subr.mxu0 0.0
      %4790 = vmatpush1.msra.mxu0 0.0
      %4791 = vmatprep.subr.mxu0 0.0
      %4792 = vmatpush1.msra.mxu0 0.0
      %4793 = vmatprep.subr.mxu0 0.0
      %4794 = vmatpush1.msra.mxu0 0.0
      %4795 = vmatprep.subr.mxu0 0.0
      %4796 = vmatpush1.msra.mxu0 0.0
      %4797 = vmatprep.subr.mxu0 0.0
      %4798 = vmatpush1.msra.mxu0 0.0
      %4799 = vmatprep.subr.mxu0 0.0
      %4800 = vmatpush1.msra.mxu0 0.0
      %4801 = vmatprep.subr.mxu0 0.0
      %4802 = vmatpush1.msra.mxu0 0.0
      %4803 = vmatprep.subr.mxu0 0.0
      %4804 = vmatpush1.msra.mxu0 0.0
      %4805 = vmatprep.subr.mxu0 0.0
      %4806 = vmatpush1.msra.mxu0 0.0
      %4807 = vmatprep.subr.mxu0 0.0
      %4808 = vmatpush1.msra.mxu0 0.0
      %4809 = vmatprep.subr.mxu0 0.0
      %4810 = vmatpush1.msra.mxu0 0.0
      %4811 = vmatprep.subr.mxu0 0.0
      %4812 = vmatpush1.msra.mxu0 0.0
      %4813 = vmatprep.subr.mxu0 0.0
      %4814 = vmatpush1.msra.mxu0 0.0
      %4815 = vmatprep.subr.mxu0 0.0
      %4816 = vmatpush1.msra.mxu0 0.0
      %4817 = vmatprep.subr.mxu0 0.0
      %4818 = vmatpush1.msra.mxu0 0.0
      %4819 = vmatprep.subr.mxu0 0.0
      %4820 = vmatpush1.msra.mxu0 0.0
      %4821 = vmatprep.subr.mxu0 0.0
      %4822 = vmatpush1.msra.mxu0 0.0
      %4823 = vmatprep.subr.mxu0 0.0
      %4824 = vmatpush1.msra.mxu0 0.0
      %4825 = vmatprep.subr.mxu0 0.0
      %4826 = vmatpush1.msra.mxu0 0.0
      %4827 = vmatprep.subr.mxu0 0.0
      %4828 = vmatpush1.msra.mxu0 0.0
      %4829 = vmatprep.subr.mxu0 0.0
      %4830 = vmatpush1.msra.mxu0 0.0
      %4831 = vmatprep.subr.mxu0 0.0
      %4832 = vmatpush1.msra.mxu0 0.0
      %4833 = vmatprep.subr.mxu0 0.0
      %4834 = vmatpush1.msra.mxu0 0.0
      %4835 = vmatprep.subr.mxu0 0.0
      %4836 = vmatpush1.msra.mxu0 0.0
      %4837 = vmatprep.mubr.f32.mxu0 0.0
      %v4838 = vand.u32 %v1369, 4294901760
      %4839 = vmatmul.mubr.f32.gmra.mrb[0].mxu0 %v4838
      %v4840 = vpop.f32.mrb[0].mxu0
      %v4841 = vadd.f32 %v4763, %v4840
      %v4842 = vpop.f32.mrb[0].mxu0
      %4843 = vmatprep.mubr.f32.mxu0 0.0
      %v4844 = vand.u32 %v1372, 4294901760
      %4845 = vmatmul.mubr.f32.gmra.mrb[0].mxu0 %v4844
      %v4846 = vpop.f32.mrb[0].mxu0
      %v4847 = vadd.f32 %v4769, %v4846
      %v4848 = vpop.f32.mrb[0].mxu0
      %4849 = vdwg.mxu0
      %v4850 = vadd.f32 %v3868, %v4841
      %v4851 = vadd.f32 %v3869, %v4847
      %4852 = vmatprep.subr.mxu0 0.0
      %v4853 = vand.u32 %v341, 4294901760
      %4854 = vmatpush1.msra.mxu0 %v4853
      %4855 = vmatprep.subr.mxu0 0.0
      %4856 = vmatpush1.msra.mxu0 0.0
      %4857 = vmatprep.subr.mxu0 0.0
      %4858 = vmatpush1.msra.mxu0 0.0
      %4859 = vmatprep.subr.mxu0 0.0
      %4860 = vmatpush1.msra.mxu0 0.0
      %4861 = vmatprep.subr.mxu0 0.0
      %4862 = vmatpush1.msra.mxu0 0.0
      %4863 = vmatprep.subr.mxu0 0.0
      %4864 = vmatpush1.msra.mxu0 0.0
      %4865 = vmatprep.subr.mxu0 0.0
      %4866 = vmatpush1.msra.mxu0 0.0
      %4867 = vmatprep.subr.mxu0 0.0
      %4868 = vmatpush1.msra.mxu0 0.0
      %4869 = vmatprep.subr.mxu0 0.0
      %4870 = vmatpush1.msra.mxu0 0.0
      %4871 = vmatprep.subr.mxu0 0.0
      %4872 = vmatpush1.msra.mxu0 0.0
      %4873 = vmatprep.subr.mxu0 0.0
      %4874 = vmatpush1.msra.mxu0 0.0
      %4875 = vmatprep.subr.mxu0 0.0
      %4876 = vmatpush1.msra.mxu0 0.0
      %4877 = vmatprep.subr.mxu0 0.0
      %4878 = vmatpush1.msra.mxu0 0.0
      %4879 = vmatprep.subr.mxu0 0.0
      %4880 = vmatpush1.msra.mxu0 0.0
      %4881 = vmatprep.subr.mxu0 0.0
      %4882 = vmatpush1.msra.mxu0 0.0
      %4883 = vmatprep.subr.mxu0 0.0
      %4884 = vmatpush1.msra.mxu0 0.0
      %4885 = vmatprep.subr.mxu0 0.0
      %4886 = vmatpush1.msra.mxu0 0.0
      %4887 = vmatprep.subr.mxu0 0.0
      %4888 = vmatpush1.msra.mxu0 0.0
      %4889 = vmatprep.subr.mxu0 0.0
      %4890 = vmatpush1.msra.mxu0 0.0
      %4891 = vmatprep.subr.mxu0 0.0
      %4892 = vmatpush1.msra.mxu0 0.0
      %4893 = vmatprep.subr.mxu0 0.0
      %4894 = vmatpush1.msra.mxu0 0.0
      %4895 = vmatprep.subr.mxu0 0.0
      %4896 = vmatpush1.msra.mxu0 0.0
      %4897 = vmatprep.subr.mxu0 0.0
      %4898 = vmatpush1.msra.mxu0 0.0
      %4899 = vmatprep.subr.mxu0 0.0
      %4900 = vmatpush1.msra.mxu0 0.0
      %4901 = vmatprep.subr.mxu0 0.0
      %4902 = vmatpush1.msra.mxu0 0.0
      %4903 = vmatprep.subr.mxu0 0.0
      %4904 = vmatpush1.msra.mxu0 0.0
      %4905 = vmatprep.subr.mxu0 0.0
      %4906 = vmatpush1.msra.mxu0 0.0
      %4907 = vmatprep.subr.mxu0 0.0
      %4908 = vmatpush1.msra.mxu0 0.0
      %4909 = vmatprep.subr.mxu0 0.0
      %4910 = vmatpush1.msra.mxu0 0.0
      %4911 = vmatprep.subr.mxu0 0.0
      %4912 = vmatpush1.msra.mxu0 0.0
      %4913 = vmatprep.subr.mxu0 0.0
      %4914 = vmatpush1.msra.mxu0 0.0
      %4915 = vmatprep.subr.mxu0 0.0
      %4916 = vmatpush1.msra.mxu0 0.0
      %4917 = vmatprep.mubr.f32.mxu0 0.0
      %v4918 = vand.u32 %v1869, 4294901760
      %v4919 = vsub.f32 %v1869, %v4918
      %v4920 = vand.u32 %v4919, 4294901760
      %v4921 = vsub.f32 %v4919, %v4920
      %v4922 = vand.u32 %v4921, 4294901760
      %4923 = vmatmul.mubr.f32.gmra.mrb[0].mxu0 %v4922
      %v4924 = vpop.f32.mrb[0].mxu0
      %v4925 = vadd.f32 0.0, %v4924
      %v4926 = vpop.f32.mrb[0].mxu0
      %4927 = vmatprep.mubr.f32.mxu0 0.0
      %v4928 = vand.u32 %v1872, 4294901760
      %v4929 = vsub.f32 %v1872, %v4928
      %v4930 = vand.u32 %v4929, 4294901760
      %v4931 = vsub.f32 %v4929, %v4930
      %v4932 = vand.u32 %v4931, 4294901760
      %4933 = vmatmul.mubr.f32.gmra.mrb[0].mxu0 %v4932
      %v4934 = vpop.f32.mrb[0].mxu0
      %v4935 = vadd.f32 0.0, %v4934
      %v4936 = vpop.f32.mrb[0].mxu0
      %4937 = vdwg.mxu0
      %4938 = vmatprep.subr.mxu0 0.0
      %v4939 = vand.u32 %v341, 4294901760
      %v4940 = vsub.f32 %v341, %v4939
      %v4941 = vand.u32 %v4940, 4294901760
      %v4942 = vsub.f32 %v4940, %v4941
      %v4943 = vand.u32 %v4942, 4294901760
      %4944 = vmatpush1.msra.mxu0 %v4943
      %4945 = vmatprep.subr.mxu0 0.0
      %4946 = vmatpush1.msra.mxu0 0.0
      %4947 = vmatprep.subr.mxu0 0.0
      %4948 = vmatpush1.msra.mxu0 0.0
      %4949 = vmatprep.subr.mxu0 0.0
      %4950 = vmatpush1.msra.mxu0 0.0
      %4951 = vmatprep.subr.mxu0 0.0
      %4952 = vmatpush1.msra.mxu0 0.0
      %4953 = vmatprep.subr.mxu0 0.0
      %4954 = vmatpush1.msra.mxu0 0.0
      %4955 = vmatprep.subr.mxu0 0.0
      %4956 = vmatpush1.msra.mxu0 0.0
      %4957 = vmatprep.subr.mxu0 0.0
      %4958 = vmatpush1.msra.mxu0 0.0
      %4959 = vmatprep.subr.mxu0 0.0
      %4960 = vmatpush1.msra.mxu0 0.0
      %4961 = vmatprep.subr.mxu0 0.0
      %4962 = vmatpush1.msra.mxu0 0.0
      %4963 = vmatprep.subr.mxu0 0.0
      %4964 = vmatpush1.msra.mxu0 0.0
      %4965 = vmatprep.subr.mxu0 0.0
      %4966 = vmatpush1.msra.mxu0 0.0
      %4967 = vmatprep.subr.mxu0 0.0
      %4968 = vmatpush1.msra.mxu0 0.0
      %4969 = vmatprep.subr.mxu0 0.0
      %4970 = vmatpush1.msra.mxu0 0.0
      %4971 = vmatprep.subr.mxu0 0.0
      %4972 = vmatpush1.msra.mxu0 0.0
      %4973 = vmatprep.subr.mxu0 0.0
      %4974 = vmatpush1.msra.mxu0 0.0
      %4975 = vmatprep.subr.mxu0 0.0
      %4976 = vmatpush1.msra.mxu0 0.0
      %4977 = vmatprep.subr.mxu0 0.0
      %4978 = vmatpush1.msra.mxu0 0.0
      %4979 = vmatprep.subr.mxu0 0.0
      %4980 = vmatpush1.msra.mxu0 0.0
      %4981 = vmatprep.subr.mxu0 0.0
      %4982 = vmatpush1.msra.mxu0 0.0
      %4983 = vmatprep.subr.mxu0 0.0
      %4984 = vmatpush1.msra.mxu0 0.0
      %4985 = vmatprep.subr.mxu0 0.0
      %4986 = vmatpush1.msra.mxu0 0.0
      %4987 = vmatprep.subr.mxu0 0.0
      %4988 = vmatpush1.msra.mxu0 0.0
      %4989 = vmatprep.subr.mxu0 0.0
      %4990 = vmatpush1.msra.mxu0 0.0
      %4991 = vmatprep.subr.mxu0 0.0
      %4992 = vmatpush1.msra.mxu0 0.0
      %4993 = vmatprep.subr.mxu0 0.0
      %4994 = vmatpush1.msra.mxu0 0.0
      %4995 = vmatprep.subr.mxu0 0.0
      %4996 = vmatpush1.msra.mxu0 0.0
      %4997 = vmatprep.subr.mxu0 0.0
      %4998 = vmatpush1.msra.mxu0 0.0
      %4999 = vmatprep.subr.mxu0 0.0
      %5000 = vmatpush1.msra.mxu0 0.0
      %5001 = vmatprep.subr.mxu0 0.0
      %5002 = vmatpush1.msra.mxu0 0.0
      %5003 = vmatprep.subr.mxu0 0.0
      %5004 = vmatpush1.msra.mxu0 0.0
      %5005 = vmatprep.subr.mxu0 0.0
      %5006 = vmatpush1.msra.mxu0 0.0
      %5007 = vmatprep.mubr.f32.mxu0 0.0
      %v5008 = vand.u32 %v1869, 4294901760
      %5009 = vmatmul.mubr.f32.gmra.mrb[0].mxu0 %v5008
      %v5010 = vpop.f32.mrb[0].mxu0
      %v5011 = vadd.f32 %v4925, %v5010
      %v5012 = vpop.f32.mrb[0].mxu0
      %5013 = vmatprep.mubr.f32.mxu0 0.0
      %v5014 = vand.u32 %v1872, 4294901760
      %5015 = vmatmul.mubr.f32.gmra.mrb[0].mxu0 %v5014
      %v5016 = vpop.f32.mrb[0].mxu0
      %v5017 = vadd.f32 %v4935, %v5016
      %v5018 = vpop.f32.mrb[0].mxu0
      %5019 = vdwg.mxu0
      %5020 = vmatprep.subr.mxu0 0.0
      %v5021 = vand.u32 %v341, 4294901760
      %v5022 = vsub.f32 %v341, %v5021
      %5023 = vmatpush1.msra.mxu0 %v5022
      %5024 = vmatprep.subr.mxu0 0.0
      %5025 = vmatpush1.msra.mxu0 0.0
      %5026 = vmatprep.subr.mxu0 0.0
      %5027 = vmatpush1.msra.mxu0 0.0
      %5028 = vmatprep.subr.mxu0 0.0
      %5029 = vmatpush1.msra.mxu0 0.0
      %5030 = vmatprep.subr.mxu0 0.0
      %5031 = vmatpush1.msra.mxu0 0.0
      %5032 = vmatprep.subr.mxu0 0.0
      %5033 = vmatpush1.msra.mxu0 0.0
      %5034 = vmatprep.subr.mxu0 0.0
      %5035 = vmatpush1.msra.mxu0 0.0
      %5036 = vmatprep.subr.mxu0 0.0
      %5037 = vmatpush1.msra.mxu0 0.0
      %5038 = vmatprep.subr.mxu0 0.0
      %5039 = vmatpush1.msra.mxu0 0.0
      %5040 = vmatprep.subr.mxu0 0.0
      %5041 = vmatpush1.msra.mxu0 0.0
      %5042 = vmatprep.subr.mxu0 0.0
      %5043 = vmatpush1.msra.mxu0 0.0
      %5044 = vmatprep.subr.mxu0 0.0
      %5045 = vmatpush1.msra.mxu0 0.0
      %5046 = vmatprep.subr.mxu0 0.0
      %5047 = vmatpush1.msra.mxu0 0.0
      %5048 = vmatprep.subr.mxu0 0.0
      %5049 = vmatpush1.msra.mxu0 0.0
      %5050 = vmatprep.subr.mxu0 0.0
      %5051 = vmatpush1.msra.mxu0 0.0
      %5052 = vmatprep.subr.mxu0 0.0
      %5053 = vmatpush1.msra.mxu0 0.0
      %5054 = vmatprep.subr.mxu0 0.0
      %5055 = vmatpush1.msra.mxu0 0.0
      %5056 = vmatprep.subr.mxu0 0.0
      %5057 = vmatpush1.msra.mxu0 0.0
      %5058 = vmatprep.subr.mxu0 0.0
      %5059 = vmatpush1.msra.mxu0 0.0
      %5060 = vmatprep.subr.mxu0 0.0
      %5061 = vmatpush1.msra.mxu0 0.0
      %5062 = vmatprep.subr.mxu0 0.0
      %5063 = vmatpush1.msra.mxu0 0.0
      %5064 = vmatprep.subr.mxu0 0.0
      %5065 = vmatpush1.msra.mxu0 0.0
      %5066 = vmatprep.subr.mxu0 0.0
      %5067 = vmatpush1.msra.mxu0 0.0
      %5068 = vmatprep.subr.mxu0 0.0
      %5069 = vmatpush1.msra.mxu0 0.0
      %5070 = vmatprep.subr.mxu0 0.0
      %5071 = vmatpush1.msra.mxu0 0.0
      %5072 = vmatprep.subr.mxu0 0.0
      %5073 = vmatpush1.msra.mxu0 0.0
      %5074 = vmatprep.subr.mxu0 0.0
      %5075 = vmatpush1.msra.mxu0 0.0
      %5076 = vmatprep.subr.mxu0 0.0
      %5077 = vmatpush1.msra.mxu0 0.0
      %5078 = vmatprep.subr.mxu0 0.0
      %5079 = vmatpush1.msra.mxu0 0.0
      %5080 = vmatprep.subr.mxu0 0.0
      %5081 = vmatpush1.msra.mxu0 0.0
      %5082 = vmatprep.subr.mxu0 0.0
      %5083 = vmatpush1.msra.mxu0 0.0
      %5084 = vmatprep.subr.mxu0 0.0
      %5085 = vmatpush1.msra.mxu0 0.0
      %5086 = vmatprep.mubr.f32.mxu0 0.0
      %v5087 = vand.u32 %v1869, 4294901760
      %v5088 = vsub.f32 %v1869, %v5087
      %5089 = vmatmul.mubr.f32.gmra.mrb[0].mxu0 %v5088
      %v5090 = vpop.f32.mrb[0].mxu0
      %v5091 = vadd.f32 %v5011, %v5090
      %v5092 = vpop.f32.mrb[0].mxu0
      %5093 = vmatprep.mubr.f32.mxu0 0.0
      %v5094 = vand.u32 %v1872, 4294901760
      %v5095 = vsub.f32 %v1872, %v5094
      %5096 = vmatmul.mubr.f32.gmra.mrb[0].mxu0 %v5095
      %v5097 = vpop.f32.mrb[0].mxu0
      %v5098 = vadd.f32 %v5017, %v5097
      %v5099 = vpop.f32.mrb[0].mxu0
      %5100 = vdwg.mxu0
      %5101 = vmatprep.subr.mxu0 0.0
      %v5102 = vand.u32 %v341, 4294901760
      %5103 = vmatpush1.msra.mxu0 %v5102
      %5104 = vmatprep.subr.mxu0 0.0
      %5105 = vmatpush1.msra.mxu0 0.0
      %5106 = vmatprep.subr.mxu0 0.0
      %5107 = vmatpush1.msra.mxu0 0.0
      %5108 = vmatprep.subr.mxu0 0.0
      %5109 = vmatpush1.msra.mxu0 0.0
      %5110 = vmatprep.subr.mxu0 0.0
      %5111 = vmatpush1.msra.mxu0 0.0
      %5112 = vmatprep.subr.mxu0 0.0
      %5113 = vmatpush1.msra.mxu0 0.0
      %5114 = vmatprep.subr.mxu0 0.0
      %5115 = vmatpush1.msra.mxu0 0.0
      %5116 = vmatprep.subr.mxu0 0.0
      %5117 = vmatpush1.msra.mxu0 0.0
      %5118 = vmatprep.subr.mxu0 0.0
      %5119 = vmatpush1.msra.mxu0 0.0
      %5120 = vmatprep.subr.mxu0 0.0
      %5121 = vmatpush1.msra.mxu0 0.0
      %5122 = vmatprep.subr.mxu0 0.0
      %5123 = vmatpush1.msra.mxu0 0.0
      %5124 = vmatprep.subr.mxu0 0.0
      %5125 = vmatpush1.msra.mxu0 0.0
      %5126 = vmatprep.subr.mxu0 0.0
      %5127 = vmatpush1.msra.mxu0 0.0
      %5128 = vmatprep.subr.mxu0 0.0
      %5129 = vmatpush1.msra.mxu0 0.0
      %5130 = vmatprep.subr.mxu0 0.0
      %5131 = vmatpush1.msra.mxu0 0.0
      %5132 = vmatprep.subr.mxu0 0.0
      %5133 = vmatpush1.msra.mxu0 0.0
      %5134 = vmatprep.subr.mxu0 0.0
      %5135 = vmatpush1.msra.mxu0 0.0
      %5136 = vmatprep.subr.mxu0 0.0
      %5137 = vmatpush1.msra.mxu0 0.0
      %5138 = vmatprep.subr.mxu0 0.0
      %5139 = vmatpush1.msra.mxu0 0.0
      %5140 = vmatprep.subr.mxu0 0.0
      %5141 = vmatpush1.msra.mxu0 0.0
      %5142 = vmatprep.subr.mxu0 0.0
      %5143 = vmatpush1.msra.mxu0 0.0
      %5144 = vmatprep.subr.mxu0 0.0
      %5145 = vmatpush1.msra.mxu0 0.0
      %5146 = vmatprep.subr.mxu0 0.0
      %5147 = vmatpush1.msra.mxu0 0.0
      %5148 = vmatprep.subr.mxu0 0.0
      %5149 = vmatpush1.msra.mxu0 0.0
      %5150 = vmatprep.subr.mxu0 0.0
      %5151 = vmatpush1.msra.mxu0 0.0
      %5152 = vmatprep.subr.mxu0 0.0
      %5153 = vmatpush1.msra.mxu0 0.0
      %5154 = vmatprep.subr.mxu0 0.0
      %5155 = vmatpush1.msra.mxu0 0.0
      %5156 = vmatprep.subr.mxu0 0.0
      %5157 = vmatpush1.msra.mxu0 0.0
      %5158 = vmatprep.subr.mxu0 0.0
      %5159 = vmatpush1.msra.mxu0 0.0
      %5160 = vmatprep.subr.mxu0 0.0
      %5161 = vmatpush1.msra.mxu0 0.0
      %5162 = vmatprep.subr.mxu0 0.0
      %5163 = vmatpush1.msra.mxu0 0.0
      %5164 = vmatprep.subr.mxu0 0.0
      %5165 = vmatpush1.msra.mxu0 0.0
      %5166 = vmatprep.mubr.f32.mxu0 0.0
      %v5167 = vand.u32 %v1869, 4294901760
      %v5168 = vsub.f32 %v1869, %v5167
      %v5169 = vand.u32 %v5168, 4294901760
      %5170 = vmatmul.mubr.f32.gmra.mrb[0].mxu0 %v5169
      %v5171 = vpop.f32.mrb[0].mxu0
      %v5172 = vadd.f32 %v5091, %v5171
      %v5173 = vpop.f32.mrb[0].mxu0
      %5174 = vmatprep.mubr.f32.mxu0 0.0
      %v5175 = vand.u32 %v1872, 4294901760
      %v5176 = vsub.f32 %v1872, %v5175
      %v5177 = vand.u32 %v5176, 4294901760
      %5178 = vmatmul.mubr.f32.gmra.mrb[0].mxu0 %v5177
      %v5179 = vpop.f32.mrb[0].mxu0
      %v5180 = vadd.f32 %v5098, %v5179
      %v5181 = vpop.f32.mrb[0].mxu0
      %5182 = vdwg.mxu0
      %5183 = vmatprep.subr.mxu0 0.0
      %v5184 = vand.u32 %v341, 4294901760
      %v5185 = vsub.f32 %v341, %v5184
      %v5186 = vand.u32 %v5185, 4294901760
      %5187 = vmatpush1.msra.mxu0 %v5186
      %5188 = vmatprep.subr.mxu0 0.0
      %5189 = vmatpush1.msra.mxu0 0.0
      %5190 = vmatprep.subr.mxu0 0.0
      %5191 = vmatpush1.msra.mxu0 0.0
      %5192 = vmatprep.subr.mxu0 0.0
      %5193 = vmatpush1.msra.mxu0 0.0
      %5194 = vmatprep.subr.mxu0 0.0
      %5195 = vmatpush1.msra.mxu0 0.0
      %5196 = vmatprep.subr.mxu0 0.0
      %5197 = vmatpush1.msra.mxu0 0.0
      %5198 = vmatprep.subr.mxu0 0.0
      %5199 = vmatpush1.msra.mxu0 0.0
      %5200 = vmatprep.subr.mxu0 0.0
      %5201 = vmatpush1.msra.mxu0 0.0
      %5202 = vmatprep.subr.mxu0 0.0
      %5203 = vmatpush1.msra.mxu0 0.0
      %5204 = vmatprep.subr.mxu0 0.0
      %5205 = vmatpush1.msra.mxu0 0.0
      %5206 = vmatprep.subr.mxu0 0.0
      %5207 = vmatpush1.msra.mxu0 0.0
      %5208 = vmatprep.subr.mxu0 0.0
      %5209 = vmatpush1.msra.mxu0 0.0
      %5210 = vmatprep.subr.mxu0 0.0
      %5211 = vmatpush1.msra.mxu0 0.0
      %5212 = vmatprep.subr.mxu0 0.0
      %5213 = vmatpush1.msra.mxu0 0.0
      %5214 = vmatprep.subr.mxu0 0.0
      %5215 = vmatpush1.msra.mxu0 0.0
      %5216 = vmatprep.subr.mxu0 0.0
      %5217 = vmatpush1.msra.mxu0 0.0
      %5218 = vmatprep.subr.mxu0 0.0
      %5219 = vmatpush1.msra.mxu0 0.0
      %5220 = vmatprep.subr.mxu0 0.0
      %5221 = vmatpush1.msra.mxu0 0.0
      %5222 = vmatprep.subr.mxu0 0.0
      %5223 = vmatpush1.msra.mxu0 0.0
      %5224 = vmatprep.subr.mxu0 0.0
      %5225 = vmatpush1.msra.mxu0 0.0
      %5226 = vmatprep.subr.mxu0 0.0
      %5227 = vmatpush1.msra.mxu0 0.0
      %5228 = vmatprep.subr.mxu0 0.0
      %5229 = vmatpush1.msra.mxu0 0.0
      %5230 = vmatprep.subr.mxu0 0.0
      %5231 = vmatpush1.msra.mxu0 0.0
      %5232 = vmatprep.subr.mxu0 0.0
      %5233 = vmatpush1.msra.mxu0 0.0
      %5234 = vmatprep.subr.mxu0 0.0
      %5235 = vmatpush1.msra.mxu0 0.0
      %5236 = vmatprep.subr.mxu0 0.0
      %5237 = vmatpush1.msra.mxu0 0.0
      %5238 = vmatprep.subr.mxu0 0.0
      %5239 = vmatpush1.msra.mxu0 0.0
      %5240 = vmatprep.subr.mxu0 0.0
      %5241 = vmatpush1.msra.mxu0 0.0
      %5242 = vmatprep.subr.mxu0 0.0
      %5243 = vmatpush1.msra.mxu0 0.0
      %5244 = vmatprep.subr.mxu0 0.0
      %5245 = vmatpush1.msra.mxu0 0.0
      %5246 = vmatprep.subr.mxu0 0.0
      %5247 = vmatpush1.msra.mxu0 0.0
      %5248 = vmatprep.subr.mxu0 0.0
      %5249 = vmatpush1.msra.mxu0 0.0
      %5250 = vmatprep.mubr.f32.mxu0 0.0
      %v5251 = vand.u32 %v1869, 4294901760
      %5252 = vmatmul.mubr.f32.gmra.mrb[0].mxu0 %v5251
      %v5253 = vpop.f32.mrb[0].mxu0
      %v5254 = vadd.f32 %v5172, %v5253
      %v5255 = vpop.f32.mrb[0].mxu0
      %5256 = vmatprep.mubr.f32.mxu0 0.0
      %v5257 = vand.u32 %v1872, 4294901760
      %5258 = vmatmul.mubr.f32.gmra.mrb[0].mxu0 %v5257
      %v5259 = vpop.f32.mrb[0].mxu0
      %v5260 = vadd.f32 %v5180, %v5259
      %v5261 = vpop.f32.mrb[0].mxu0
      %5262 = vdwg.mxu0
      %5263 = vmatprep.subr.mxu0 0.0
      %v5264 = vand.u32 %v341, 4294901760
      %5265 = vmatpush1.msra.mxu0 %v5264
      %5266 = vmatprep.subr.mxu0 0.0
      %5267 = vmatpush1.msra.mxu0 0.0
      %5268 = vmatprep.subr.mxu0 0.0
      %5269 = vmatpush1.msra.mxu0 0.0
      %5270 = vmatprep.subr.mxu0 0.0
      %5271 = vmatpush1.msra.mxu0 0.0
      %5272 = vmatprep.subr.mxu0 0.0
      %5273 = vmatpush1.msra.mxu0 0.0
      %5274 = vmatprep.subr.mxu0 0.0
      %5275 = vmatpush1.msra.mxu0 0.0
      %5276 = vmatprep.subr.mxu0 0.0
      %5277 = vmatpush1.msra.mxu0 0.0
      %5278 = vmatprep.subr.mxu0 0.0
      %5279 = vmatpush1.msra.mxu0 0.0
      %5280 = vmatprep.subr.mxu0 0.0
      %5281 = vmatpush1.msra.mxu0 0.0
      %5282 = vmatprep.subr.mxu0 0.0
      %5283 = vmatpush1.msra.mxu0 0.0
      %5284 = vmatprep.subr.mxu0 0.0
      %5285 = vmatpush1.msra.mxu0 0.0
      %5286 = vmatprep.subr.mxu0 0.0
      %5287 = vmatpush1.msra.mxu0 0.0
      %5288 = vmatprep.subr.mxu0 0.0
      %5289 = vmatpush1.msra.mxu0 0.0
      %5290 = vmatprep.subr.mxu0 0.0
      %5291 = vmatpush1.msra.mxu0 0.0
      %5292 = vmatprep.subr.mxu0 0.0
      %5293 = vmatpush1.msra.mxu0 0.0
      %5294 = vmatprep.subr.mxu0 0.0
      %5295 = vmatpush1.msra.mxu0 0.0
      %5296 = vmatprep.subr.mxu0 0.0
      %5297 = vmatpush1.msra.mxu0 0.0
      %5298 = vmatprep.subr.mxu0 0.0
      %5299 = vmatpush1.msra.mxu0 0.0
      %5300 = vmatprep.subr.mxu0 0.0
      %5301 = vmatpush1.msra.mxu0 0.0
      %5302 = vmatprep.subr.mxu0 0.0
      %5303 = vmatpush1.msra.mxu0 0.0
      %5304 = vmatprep.subr.mxu0 0.0
      %5305 = vmatpush1.msra.mxu0 0.0
      %5306 = vmatprep.subr.mxu0 0.0
      %5307 = vmatpush1.msra.mxu0 0.0
      %5308 = vmatprep.subr.mxu0 0.0
      %5309 = vmatpush1.msra.mxu0 0.0
      %5310 = vmatprep.subr.mxu0 0.0
      %5311 = vmatpush1.msra.mxu0 0.0
      %5312 = vmatprep.subr.mxu0 0.0
      %5313 = vmatpush1.msra.mxu0 0.0
      %5314 = vmatprep.subr.mxu0 0.0
      %5315 = vmatpush1.msra.mxu0 0.0
      %5316 = vmatprep.subr.mxu0 0.0
      %5317 = vmatpush1.msra.mxu0 0.0
      %5318 = vmatprep.subr.mxu0 0.0
      %5319 = vmatpush1.msra.mxu0 0.0
      %5320 = vmatprep.subr.mxu0 0.0
      %5321 = vmatpush1.msra.mxu0 0.0
      %5322 = vmatprep.subr.mxu0 0.0
      %5323 = vmatpush1.msra.mxu0 0.0
      %5324 = vmatprep.subr.mxu0 0.0
      %5325 = vmatpush1.msra.mxu0 0.0
      %5326 = vmatprep.subr.mxu0 0.0
      %5327 = vmatpush1.msra.mxu0 0.0
      %5328 = vmatprep.mubr.f32.mxu0 0.0
      %v5329 = vand.u32 %v1869, 4294901760
      %5330 = vmatmul.mubr.f32.gmra.mrb[0].mxu0 %v5329
      %v5331 = vpop.f32.mrb[0].mxu0
      %v5332 = vadd.f32 %v5254, %v5331
      %v5333 = vpop.f32.mrb[0].mxu0
      %5334 = vmatprep.mubr.f32.mxu0 0.0
      %v5335 = vand.u32 %v1872, 4294901760
      %5336 = vmatmul.mubr.f32.gmra.mrb[0].mxu0 %v5335
      %v5337 = vpop.f32.mrb[0].mxu0
      %v5338 = vadd.f32 %v5260, %v5337
      %v5339 = vpop.f32.mrb[0].mxu0
      %5340 = vdwg.mxu0
      %v5341 = vadd.f32 %v4359, %v5332
      %v5342 = vadd.f32 %v4360, %v5338
      %5344 = vrot.lane.b32.xlu0 %v335, 127
      %v5345 = vpop.permute.xlu0 %5344
      %5347 = vmatprep.subr.mxu0 0.0
      %v5348 = vand.u32 %v5345, 4294901760
      %5349 = vmatpush1.msra.mxu0 %v5348
      %5350 = vmatprep.subr.mxu0 0.0
      %5351 = vmatpush1.msra.mxu0 0.0
      %5352 = vmatprep.subr.mxu0 0.0
      %5353 = vmatpush1.msra.mxu0 0.0
      %5354 = vmatprep.subr.mxu0 0.0
      %5355 = vmatpush1.msra.mxu0 0.0
      %5356 = vmatprep.subr.mxu0 0.0
      %5357 = vmatpush1.msra.mxu0 0.0
      %5358 = vmatprep.subr.mxu0 0.0
      %5359 = vmatpush1.msra.mxu0 0.0
      %5360 = vmatprep.subr.mxu0 0.0
      %5361 = vmatpush1.msra.mxu0 0.0
      %5362 = vmatprep.subr.mxu0 0.0
      %5363 = vmatpush1.msra.mxu0 0.0
      %5364 = vmatprep.subr.mxu0 0.0
      %5365 = vmatpush1.msra.mxu0 0.0
      %5366 = vmatprep.subr.mxu0 0.0
      %5367 = vmatpush1.msra.mxu0 0.0
      %5368 = vmatprep.subr.mxu0 0.0
      %5369 = vmatpush1.msra.mxu0 0.0
      %5370 = vmatprep.subr.mxu0 0.0
      %5371 = vmatpush1.msra.mxu0 0.0
      %5372 = vmatprep.subr.mxu0 0.0
      %5373 = vmatpush1.msra.mxu0 0.0
      %5374 = vmatprep.subr.mxu0 0.0
      %5375 = vmatpush1.msra.mxu0 0.0
      %5376 = vmatprep.subr.mxu0 0.0
      %5377 = vmatpush1.msra.mxu0 0.0
      %5378 = vmatprep.subr.mxu0 0.0
      %5379 = vmatpush1.msra.mxu0 0.0
      %5380 = vmatprep.subr.mxu0 0.0
      %5381 = vmatpush1.msra.mxu0 0.0
      %5382 = vmatprep.subr.mxu0 0.0
      %5383 = vmatpush1.msra.mxu0 0.0
      %5384 = vmatprep.subr.mxu0 0.0
      %5385 = vmatpush1.msra.mxu0 0.0
      %5386 = vmatprep.subr.mxu0 0.0
      %5387 = vmatpush1.msra.mxu0 0.0
      %5388 = vmatprep.subr.mxu0 0.0
      %5389 = vmatpush1.msra.mxu0 0.0
      %5390 = vmatprep.subr.mxu0 0.0
      %5391 = vmatpush1.msra.mxu0 0.0
      %5392 = vmatprep.subr.mxu0 0.0
      %5393 = vmatpush1.msra.mxu0 0.0
      %5394 = vmatprep.subr.mxu0 0.0
      %5395 = vmatpush1.msra.mxu0 0.0
      %5396 = vmatprep.subr.mxu0 0.0
      %5397 = vmatpush1.msra.mxu0 0.0
      %5398 = vmatprep.subr.mxu0 0.0
      %5399 = vmatpush1.msra.mxu0 0.0
      %5400 = vmatprep.subr.mxu0 0.0
      %5401 = vmatpush1.msra.mxu0 0.0
      %5402 = vmatprep.subr.mxu0 0.0
      %5403 = vmatpush1.msra.mxu0 0.0
      %5404 = vmatprep.subr.mxu0 0.0
      %5405 = vmatpush1.msra.mxu0 0.0
      %5406 = vmatprep.subr.mxu0 0.0
      %5407 = vmatpush1.msra.mxu0 0.0
      %5408 = vmatprep.subr.mxu0 0.0
      %5409 = vmatpush1.msra.mxu0 0.0
      %5410 = vmatprep.subr.mxu0 0.0
      %5411 = vmatpush1.msra.mxu0 0.0
      %5412 = vmatprep.mubr.f32.mxu0 0.0
      %v5413 = vand.u32 %v2369, 4294901760
      %v5414 = vsub.f32 %v2369, %v5413
      %v5415 = vand.u32 %v5414, 4294901760
      %v5416 = vsub.f32 %v5414, %v5415
      %v5417 = vand.u32 %v5416, 4294901760
      %5418 = vmatmul.mubr.f32.gmra.mrb[0].mxu0 %v5417
      %v5419 = vpop.f32.mrb[0].mxu0
      %v5420 = vadd.f32 0.0, %v5419
      %v5421 = vpop.f32.mrb[0].mxu0
      %5422 = vmatprep.mubr.f32.mxu0 0.0
      %v5423 = vand.u32 %v2372, 4294901760
      %v5424 = vsub.f32 %v2372, %v5423
      %v5425 = vand.u32 %v5424, 4294901760
      %v5426 = vsub.f32 %v5424, %v5425
      %v5427 = vand.u32 %v5426, 4294901760
      %5428 = vmatmul.mubr.f32.gmra.mrb[0].mxu0 %v5427
      %v5429 = vpop.f32.mrb[0].mxu0
      %v5430 = vadd.f32 0.0, %v5429
      %v5431 = vpop.f32.mrb[0].mxu0
      %5432 = vdwg.mxu0
      %5433 = vmatprep.subr.mxu0 0.0
      %v5434 = vand.u32 %v5345, 4294901760
      %v5435 = vsub.f32 %v5345, %v5434
      %v5436 = vand.u32 %v5435, 4294901760
      %v5437 = vsub.f32 %v5435, %v5436
      %v5438 = vand.u32 %v5437, 4294901760
      %5439 = vmatpush1.msra.mxu0 %v5438
      %5440 = vmatprep.subr.mxu0 0.0
      %5441 = vmatpush1.msra.mxu0 0.0
      %5442 = vmatprep.subr.mxu0 0.0
      %5443 = vmatpush1.msra.mxu0 0.0
      %5444 = vmatprep.subr.mxu0 0.0
      %5445 = vmatpush1.msra.mxu0 0.0
      %5446 = vmatprep.subr.mxu0 0.0
      %5447 = vmatpush1.msra.mxu0 0.0
      %5448 = vmatprep.subr.mxu0 0.0
      %5449 = vmatpush1.msra.mxu0 0.0
      %5450 = vmatprep.subr.mxu0 0.0
      %5451 = vmatpush1.msra.mxu0 0.0
      %5452 = vmatprep.subr.mxu0 0.0
      %5453 = vmatpush1.msra.mxu0 0.0
      %5454 = vmatprep.subr.mxu0 0.0
      %5455 = vmatpush1.msra.mxu0 0.0
      %5456 = vmatprep.subr.mxu0 0.0
      %5457 = vmatpush1.msra.mxu0 0.0
      %5458 = vmatprep.subr.mxu0 0.0
      %5459 = vmatpush1.msra.mxu0 0.0
      %5460 = vmatprep.subr.mxu0 0.0
      %5461 = vmatpush1.msra.mxu0 0.0
      %5462 = vmatprep.subr.mxu0 0.0
      %5463 = vmatpush1.msra.mxu0 0.0
      %5464 = vmatprep.subr.mxu0 0.0
      %5465 = vmatpush1.msra.mxu0 0.0
      %5466 = vmatprep.subr.mxu0 0.0
      %5467 = vmatpush1.msra.mxu0 0.0
      %5468 = vmatprep.subr.mxu0 0.0
      %5469 = vmatpush1.msra.mxu0 0.0
      %5470 = vmatprep.subr.mxu0 0.0
      %5471 = vmatpush1.msra.mxu0 0.0
      %5472 = vmatprep.subr.mxu0 0.0
      %5473 = vmatpush1.msra.mxu0 0.0
      %5474 = vmatprep.subr.mxu0 0.0
      %5475 = vmatpush1.msra.mxu0 0.0
      %5476 = vmatprep.subr.mxu0 0.0
      %5477 = vmatpush1.msra.mxu0 0.0
      %5478 = vmatprep.subr.mxu0 0.0
      %5479 = vmatpush1.msra.mxu0 0.0
      %5480 = vmatprep.subr.mxu0 0.0
      %5481 = vmatpush1.msra.mxu0 0.0
      %5482 = vmatprep.subr.mxu0 0.0
      %5483 = vmatpush1.msra.mxu0 0.0
      %5484 = vmatprep.subr.mxu0 0.0
      %5485 = vmatpush1.msra.mxu0 0.0
      %5486 = vmatprep.subr.mxu0 0.0
      %5487 = vmatpush1.msra.mxu0 0.0
      %5488 = vmatprep.subr.mxu0 0.0
      %5489 = vmatpush1.msra.mxu0 0.0
      %5490 = vmatprep.subr.mxu0 0.0
      %5491 = vmatpush1.msra.mxu0 0.0
      %5492 = vmatprep.subr.mxu0 0.0
      %5493 = vmatpush1.msra.mxu0 0.0
      %5494 = vmatprep.subr.mxu0 0.0
      %5495 = vmatpush1.msra.mxu0 0.0
      %5496 = vmatprep.subr.mxu0 0.0
      %5497 = vmatpush1.msra.mxu0 0.0
      %5498 = vmatprep.subr.mxu0 0.0
      %5499 = vmatpush1.msra.mxu0 0.0
      %5500 = vmatprep.subr.mxu0 0.0
      %5501 = vmatpush1.msra.mxu0 0.0
      %5502 = vmatprep.mubr.f32.mxu0 0.0
      %v5503 = vand.u32 %v2369, 4294901760
      %5504 = vmatmul.mubr.f32.gmra.mrb[0].mxu0 %v5503
      %v5505 = vpop.f32.mrb[0].mxu0
      %v5506 = vadd.f32 %v5420, %v5505
      %v5507 = vpop.f32.mrb[0].mxu0
      %5508 = vmatprep.mubr.f32.mxu0 0.0
      %v5509 = vand.u32 %v2372, 4294901760
      %5510 = vmatmul.mubr.f32.gmra.mrb[0].mxu0 %v5509
      %v5511 = vpop.f32.mrb[0].mxu0
      %v5512 = vadd.f32 %v5430, %v5511
      %v5513 = vpop.f32.mrb[0].mxu0
      %5514 = vdwg.mxu0
      %5515 = vmatprep.subr.mxu0 0.0
      %v5516 = vand.u32 %v5345, 4294901760
      %v5517 = vsub.f32 %v5345, %v5516
      %5518 = vmatpush1.msra.mxu0 %v5517
      %5519 = vmatprep.subr.mxu0 0.0
      %5520 = vmatpush1.msra.mxu0 0.0
      %5521 = vmatprep.subr.mxu0 0.0
      %5522 = vmatpush1.msra.mxu0 0.0
      %5523 = vmatprep.subr.mxu0 0.0
      %5524 = vmatpush1.msra.mxu0 0.0
      %5525 = vmatprep.subr.mxu0 0.0
      %5526 = vmatpush1.msra.mxu0 0.0
      %5527 = vmatprep.subr.mxu0 0.0
      %5528 = vmatpush1.msra.mxu0 0.0
      %5529 = vmatprep.subr.mxu0 0.0
      %5530 = vmatpush1.msra.mxu0 0.0
      %5531 = vmatprep.subr.mxu0 0.0
      %5532 = vmatpush1.msra.mxu0 0.0
      %5533 = vmatprep.subr.mxu0 0.0
      %5534 = vmatpush1.msra.mxu0 0.0
      %5535 = vmatprep.subr.mxu0 0.0
      %5536 = vmatpush1.msra.mxu0 0.0
      %5537 = vmatprep.subr.mxu0 0.0
      %5538 = vmatpush1.msra.mxu0 0.0
      %5539 = vmatprep.subr.mxu0 0.0
      %5540 = vmatpush1.msra.mxu0 0.0
      %5541 = vmatprep.subr.mxu0 0.0
      %5542 = vmatpush1.msra.mxu0 0.0
      %5543 = vmatprep.subr.mxu0 0.0
      %5544 = vmatpush1.msra.mxu0 0.0
      %5545 = vmatprep.subr.mxu0 0.0
      %5546 = vmatpush1.msra.mxu0 0.0
      %5547 = vmatprep.subr.mxu0 0.0
      %5548 = vmatpush1.msra.mxu0 0.0
      %5549 = vmatprep.subr.mxu0 0.0
      %5550 = vmatpush1.msra.mxu0 0.0
      %5551 = vmatprep.subr.mxu0 0.0
      %5552 = vmatpush1.msra.mxu0 0.0
      %5553 = vmatprep.subr.mxu0 0.0
      %5554 = vmatpush1.msra.mxu0 0.0
      %5555 = vmatprep.subr.mxu0 0.0
      %5556 = vmatpush1.msra.mxu0 0.0
      %5557 = vmatprep.subr.mxu0 0.0
      %5558 = vmatpush1.msra.mxu0 0.0
      %5559 = vmatprep.subr.mxu0 0.0
      %5560 = vmatpush1.msra.mxu0 0.0
      %5561 = vmatprep.subr.mxu0 0.0
      %5562 = vmatpush1.msra.mxu0 0.0
      %5563 = vmatprep.subr.mxu0 0.0
      %5564 = vmatpush1.msra.mxu0 0.0
      %5565 = vmatprep.subr.mxu0 0.0
      %5566 = vmatpush1.msra.mxu0 0.0
      %5567 = vmatprep.subr.mxu0 0.0
      %5568 = vmatpush1.msra.mxu0 0.0
      %5569 = vmatprep.subr.mxu0 0.0
      %5570 = vmatpush1.msra.mxu0 0.0
      %5571 = vmatprep.subr.mxu0 0.0
      %5572 = vmatpush1.msra.mxu0 0.0
      %5573 = vmatprep.subr.mxu0 0.0
      %5574 = vmatpush1.msra.mxu0 0.0
      %5575 = vmatprep.subr.mxu0 0.0
      %5576 = vmatpush1.msra.mxu0 0.0
      %5577 = vmatprep.subr.mxu0 0.0
      %5578 = vmatpush1.msra.mxu0 0.0
      %5579 = vmatprep.subr.mxu0 0.0
      %5580 = vmatpush1.msra.mxu0 0.0
      %5581 = vmatprep.mubr.f32.mxu0 0.0
      %v5582 = vand.u32 %v2369, 4294901760
      %v5583 = vsub.f32 %v2369, %v5582
      %5584 = vmatmul.mubr.f32.gmra.mrb[0].mxu0 %v5583
      %v5585 = vpop.f32.mrb[0].mxu0
      %v5586 = vadd.f32 %v5506, %v5585
      %v5587 = vpop.f32.mrb[0].mxu0
      %5588 = vmatprep.mubr.f32.mxu0 0.0
      %v5589 = vand.u32 %v2372, 4294901760
      %v5590 = vsub.f32 %v2372, %v5589
      %5591 = vmatmul.mubr.f32.gmra.mrb[0].mxu0 %v5590
      %v5592 = vpop.f32.mrb[0].mxu0
      %v5593 = vadd.f32 %v5512, %v5592
      %v5594 = vpop.f32.mrb[0].mxu0
      %5595 = vdwg.mxu0
      %5596 = vmatprep.subr.mxu0 0.0
      %v5597 = vand.u32 %v5345, 4294901760
      %5598 = vmatpush1.msra.mxu0 %v5597
      %5599 = vmatprep.subr.mxu0 0.0
      %5600 = vmatpush1.msra.mxu0 0.0
      %5601 = vmatprep.subr.mxu0 0.0
      %5602 = vmatpush1.msra.mxu0 0.0
      %5603 = vmatprep.subr.mxu0 0.0
      %5604 = vmatpush1.msra.mxu0 0.0
      %5605 = vmatprep.subr.mxu0 0.0
      %5606 = vmatpush1.msra.mxu0 0.0
      %5607 = vmatprep.subr.mxu0 0.0
      %5608 = vmatpush1.msra.mxu0 0.0
      %5609 = vmatprep.subr.mxu0 0.0
      %5610 = vmatpush1.msra.mxu0 0.0
      %5611 = vmatprep.subr.mxu0 0.0
      %5612 = vmatpush1.msra.mxu0 0.0
      %5613 = vmatprep.subr.mxu0 0.0
      %5614 = vmatpush1.msra.mxu0 0.0
      %5615 = vmatprep.subr.mxu0 0.0
      %5616 = vmatpush1.msra.mxu0 0.0
      %5617 = vmatprep.subr.mxu0 0.0
      %5618 = vmatpush1.msra.mxu0 0.0
      %5619 = vmatprep.subr.mxu0 0.0
      %5620 = vmatpush1.msra.mxu0 0.0
      %5621 = vmatprep.subr.mxu0 0.0
      %5622 = vmatpush1.msra.mxu0 0.0
      %5623 = vmatprep.subr.mxu0 0.0
      %5624 = vmatpush1.msra.mxu0 0.0
      %5625 = vmatprep.subr.mxu0 0.0
      %5626 = vmatpush1.msra.mxu0 0.0
      %5627 = vmatprep.subr.mxu0 0.0
      %5628 = vmatpush1.msra.mxu0 0.0
      %5629 = vmatprep.subr.mxu0 0.0
      %5630 = vmatpush1.msra.mxu0 0.0
      %5631 = vmatprep.subr.mxu0 0.0
      %5632 = vmatpush1.msra.mxu0 0.0
      %5633 = vmatprep.subr.mxu0 0.0
      %5634 = vmatpush1.msra.mxu0 0.0
      %5635 = vmatprep.subr.mxu0 0.0
      %5636 = vmatpush1.msra.mxu0 0.0
      %5637 = vmatprep.subr.mxu0 0.0
      %5638 = vmatpush1.msra.mxu0 0.0
      %5639 = vmatprep.subr.mxu0 0.0
      %5640 = vmatpush1.msra.mxu0 0.0
      %5641 = vmatprep.subr.mxu0 0.0
      %5642 = vmatpush1.msra.mxu0 0.0
      %5643 = vmatprep.subr.mxu0 0.0
      %5644 = vmatpush1.msra.mxu0 0.0
      %5645 = vmatprep.subr.mxu0 0.0
      %5646 = vmatpush1.msra.mxu0 0.0
      %5647 = vmatprep.subr.mxu0 0.0
      %5648 = vmatpush1.msra.mxu0 0.0
      %5649 = vmatprep.subr.mxu0 0.0
      %5650 = vmatpush1.msra.mxu0 0.0
      %5651 = vmatprep.subr.mxu0 0.0
      %5652 = vmatpush1.msra.mxu0 0.0
      %5653 = vmatprep.subr.mxu0 0.0
      %5654 = vmatpush1.msra.mxu0 0.0
      %5655 = vmatprep.subr.mxu0 0.0
      %5656 = vmatpush1.msra.mxu0 0.0
      %5657 = vmatprep.subr.mxu0 0.0
      %5658 = vmatpush1.msra.mxu0 0.0
      %5659 = vmatprep.subr.mxu0 0.0
      %5660 = vmatpush1.msra.mxu0 0.0
      %5661 = vmatprep.mubr.f32.mxu0 0.0
      %v5662 = vand.u32 %v2369, 4294901760
      %v5663 = vsub.f32 %v2369, %v5662
      %v5664 = vand.u32 %v5663, 4294901760
      %5665 = vmatmul.mubr.f32.gmra.mrb[0].mxu0 %v5664
      %v5666 = vpop.f32.mrb[0].mxu0
      %v5667 = vadd.f32 %v5586, %v5666
      %v5668 = vpop.f32.mrb[0].mxu0
      %5669 = vmatprep.mubr.f32.mxu0 0.0
      %v5670 = vand.u32 %v2372, 4294901760
      %v5671 = vsub.f32 %v2372, %v5670
      %v5672 = vand.u32 %v5671, 4294901760
      %5673 = vmatmul.mubr.f32.gmra.mrb[0].mxu0 %v5672
      %v5674 = vpop.f32.mrb[0].mxu0
      %v5675 = vadd.f32 %v5593, %v5674
      %v5676 = vpop.f32.mrb[0].mxu0
      %5677 = vdwg.mxu0
      %5678 = vmatprep.subr.mxu0 0.0
      %v5679 = vand.u32 %v5345, 4294901760
      %v5680 = vsub.f32 %v5345, %v5679
      %v5681 = vand.u32 %v5680, 4294901760
      %5682 = vmatpush1.msra.mxu0 %v5681
      %5683 = vmatprep.subr.mxu0 0.0
      %5684 = vmatpush1.msra.mxu0 0.0
      %5685 = vmatprep.subr.mxu0 0.0
      %5686 = vmatpush1.msra.mxu0 0.0
      %5687 = vmatprep.subr.mxu0 0.0
      %5688 = vmatpush1.msra.mxu0 0.0
      %5689 = vmatprep.subr.mxu0 0.0
      %5690 = vmatpush1.msra.mxu0 0.0
      %5691 = vmatprep.subr.mxu0 0.0
      %5692 = vmatpush1.msra.mxu0 0.0
      %5693 = vmatprep.subr.mxu0 0.0
      %5694 = vmatpush1.msra.mxu0 0.0
      %5695 = vmatprep.subr.mxu0 0.0
      %5696 = vmatpush1.msra.mxu0 0.0
      %5697 = vmatprep.subr.mxu0 0.0
      %5698 = vmatpush1.msra.mxu0 0.0
      %5699 = vmatprep.subr.mxu0 0.0
      %5700 = vmatpush1.msra.mxu0 0.0
      %5701 = vmatprep.subr.mxu0 0.0
      %5702 = vmatpush1.msra.mxu0 0.0
      %5703 = vmatprep.subr.mxu0 0.0
      %5704 = vmatpush1.msra.mxu0 0.0
      %5705 = vmatprep.subr.mxu0 0.0
      %5706 = vmatpush1.msra.mxu0 0.0
      %5707 = vmatprep.subr.mxu0 0.0
      %5708 = vmatpush1.msra.mxu0 0.0
      %5709 = vmatprep.subr.mxu0 0.0
      %5710 = vmatpush1.msra.mxu0 0.0
      %5711 = vmatprep.subr.mxu0 0.0
      %5712 = vmatpush1.msra.mxu0 0.0
      %5713 = vmatprep.subr.mxu0 0.0
      %5714 = vmatpush1.msra.mxu0 0.0
      %5715 = vmatprep.subr.mxu0 0.0
      %5716 = vmatpush1.msra.mxu0 0.0
      %5717 = vmatprep.subr.mxu0 0.0
      %5718 = vmatpush1.msra.mxu0 0.0
      %5719 = vmatprep.subr.mxu0 0.0
      %5720 = vmatpush1.msra.mxu0 0.0
      %5721 = vmatprep.subr.mxu0 0.0
      %5722 = vmatpush1.msra.mxu0 0.0
      %5723 = vmatprep.subr.mxu0 0.0
      %5724 = vmatpush1.msra.mxu0 0.0
      %5725 = vmatprep.subr.mxu0 0.0
      %5726 = vmatpush1.msra.mxu0 0.0
      %5727 = vmatprep.subr.mxu0 0.0
      %5728 = vmatpush1.msra.mxu0 0.0
      %5729 = vmatprep.subr.mxu0 0.0
      %5730 = vmatpush1.msra.mxu0 0.0
      %5731 = vmatprep.subr.mxu0 0.0
      %5732 = vmatpush1.msra.mxu0 0.0
      %5733 = vmatprep.subr.mxu0 0.0
      %5734 = vmatpush1.msra.mxu0 0.0
      %5735 = vmatprep.subr.mxu0 0.0
      %5736 = vmatpush1.msra.mxu0 0.0
      %5737 = vmatprep.subr.mxu0 0.0
      %5738 = vmatpush1.msra.mxu0 0.0
      %5739 = vmatprep.subr.mxu0 0.0
      %5740 = vmatpush1.msra.mxu0 0.0
      %5741 = vmatprep.subr.mxu0 0.0
      %5742 = vmatpush1.msra.mxu0 0.0
      %5743 = vmatprep.subr.mxu0 0.0
      %5744 = vmatpush1.msra.mxu0 0.0
      %5745 = vmatprep.mubr.f32.mxu0 0.0
      %v5746 = vand.u32 %v2369, 4294901760
      %5747 = vmatmul.mubr.f32.gmra.mrb[0].mxu0 %v5746
      %v5748 = vpop.f32.mrb[0].mxu0
      %v5749 = vadd.f32 %v5667, %v5748
      %v5750 = vpop.f32.mrb[0].mxu0
      %5751 = vmatprep.mubr.f32.mxu0 0.0
      %v5752 = vand.u32 %v2372, 4294901760
      %5753 = vmatmul.mubr.f32.gmra.mrb[0].mxu0 %v5752
      %v5754 = vpop.f32.mrb[0].mxu0
      %v5755 = vadd.f32 %v5675, %v5754
      %v5756 = vpop.f32.mrb[0].mxu0
      %5757 = vdwg.mxu0
      %5758 = vmatprep.subr.mxu0 0.0
      %v5759 = vand.u32 %v5345, 4294901760
      %5760 = vmatpush1.msra.mxu0 %v5759
      %5761 = vmatprep.subr.mxu0 0.0
      %5762 = vmatpush1.msra.mxu0 0.0
      %5763 = vmatprep.subr.mxu0 0.0
      %5764 = vmatpush1.msra.mxu0 0.0
      %5765 = vmatprep.subr.mxu0 0.0
      %5766 = vmatpush1.msra.mxu0 0.0
      %5767 = vmatprep.subr.mxu0 0.0
      %5768 = vmatpush1.msra.mxu0 0.0
      %5769 = vmatprep.subr.mxu0 0.0
      %5770 = vmatpush1.msra.mxu0 0.0
      %5771 = vmatprep.subr.mxu0 0.0
      %5772 = vmatpush1.msra.mxu0 0.0
      %5773 = vmatprep.subr.mxu0 0.0
      %5774 = vmatpush1.msra.mxu0 0.0
      %5775 = vmatprep.subr.mxu0 0.0
      %5776 = vmatpush1.msra.mxu0 0.0
      %5777 = vmatprep.subr.mxu0 0.0
      %5778 = vmatpush1.msra.mxu0 0.0
      %5779 = vmatprep.subr.mxu0 0.0
      %5780 = vmatpush1.msra.mxu0 0.0
      %5781 = vmatprep.subr.mxu0 0.0
      %5782 = vmatpush1.msra.mxu0 0.0
      %5783 = vmatprep.subr.mxu0 0.0
      %5784 = vmatpush1.msra.mxu0 0.0
      %5785 = vmatprep.subr.mxu0 0.0
      %5786 = vmatpush1.msra.mxu0 0.0
      %5787 = vmatprep.subr.mxu0 0.0
      %5788 = vmatpush1.msra.mxu0 0.0
      %5789 = vmatprep.subr.mxu0 0.0
      %5790 = vmatpush1.msra.mxu0 0.0
      %5791 = vmatprep.subr.mxu0 0.0
      %5792 = vmatpush1.msra.mxu0 0.0
      %5793 = vmatprep.subr.mxu0 0.0
      %5794 = vmatpush1.msra.mxu0 0.0
      %5795 = vmatprep.subr.mxu0 0.0
      %5796 = vmatpush1.msra.mxu0 0.0
      %5797 = vmatprep.subr.mxu0 0.0
      %5798 = vmatpush1.msra.mxu0 0.0
      %5799 = vmatprep.subr.mxu0 0.0
      %5800 = vmatpush1.msra.mxu0 0.0
      %5801 = vmatprep.subr.mxu0 0.0
      %5802 = vmatpush1.msra.mxu0 0.0
      %5803 = vmatprep.subr.mxu0 0.0
      %5804 = vmatpush1.msra.mxu0 0.0
      %5805 = vmatprep.subr.mxu0 0.0
      %5806 = vmatpush1.msra.mxu0 0.0
      %5807 = vmatprep.subr.mxu0 0.0
      %5808 = vmatpush1.msra.mxu0 0.0
      %5809 = vmatprep.subr.mxu0 0.0
      %5810 = vmatpush1.msra.mxu0 0.0
      %5811 = vmatprep.subr.mxu0 0.0
      %5812 = vmatpush1.msra.mxu0 0.0
      %5813 = vmatprep.subr.mxu0 0.0
      %5814 = vmatpush1.msra.mxu0 0.0
      %5815 = vmatprep.subr.mxu0 0.0
      %5816 = vmatpush1.msra.mxu0 0.0
      %5817 = vmatprep.subr.mxu0 0.0
      %5818 = vmatpush1.msra.mxu0 0.0
      %5819 = vmatprep.subr.mxu0 0.0
      %5820 = vmatpush1.msra.mxu0 0.0
      %5821 = vmatprep.subr.mxu0 0.0
      %5822 = vmatpush1.msra.mxu0 0.0
      %5823 = vmatprep.mubr.f32.mxu0 0.0
      %v5824 = vand.u32 %v2369, 4294901760
      %5825 = vmatmul.mubr.f32.gmra.mrb[0].mxu0 %v5824
      %v5826 = vpop.f32.mrb[0].mxu0
      %v5827 = vadd.f32 %v5749, %v5826
      %v5828 = vpop.f32.mrb[0].mxu0
      %5829 = vmatprep.mubr.f32.mxu0 0.0
      %v5830 = vand.u32 %v2372, 4294901760
      %5831 = vmatmul.mubr.f32.gmra.mrb[0].mxu0 %v5830
      %v5832 = vpop.f32.mrb[0].mxu0
      %v5833 = vadd.f32 %v5755, %v5832
      %v5834 = vpop.f32.mrb[0].mxu0
      %5835 = vdwg.mxu0
      %v5836 = vadd.f32 %v4850, %v5827
      %v5837 = vadd.f32 %v4851, %v5833
      %5838 = vmatprep.subr.mxu0 0.0
      %v5839 = vand.u32 %v5345, 4294901760
      %5840 = vmatpush1.msra.mxu0 %v5839
      %5841 = vmatprep.subr.mxu0 0.0
      %5842 = vmatpush1.msra.mxu0 0.0
      %5843 = vmatprep.subr.mxu0 0.0
      %5844 = vmatpush1.msra.mxu0 0.0
      %5845 = vmatprep.subr.mxu0 0.0
      %5846 = vmatpush1.msra.mxu0 0.0
      %5847 = vmatprep.subr.mxu0 0.0
      %5848 = vmatpush1.msra.mxu0 0.0
      %5849 = vmatprep.subr.mxu0 0.0
      %5850 = vmatpush1.msra.mxu0 0.0
      %5851 = vmatprep.subr.mxu0 0.0
      %5852 = vmatpush1.msra.mxu0 0.0
      %5853 = vmatprep.subr.mxu0 0.0
      %5854 = vmatpush1.msra.mxu0 0.0
      %5855 = vmatprep.subr.mxu0 0.0
      %5856 = vmatpush1.msra.mxu0 0.0
      %5857 = vmatprep.subr.mxu0 0.0
      %5858 = vmatpush1.msra.mxu0 0.0
      %5859 = vmatprep.subr.mxu0 0.0
      %5860 = vmatpush1.msra.mxu0 0.0
      %5861 = vmatprep.subr.mxu0 0.0
      %5862 = vmatpush1.msra.mxu0 0.0
      %5863 = vmatprep.subr.mxu0 0.0
      %5864 = vmatpush1.msra.mxu0 0.0
      %5865 = vmatprep.subr.mxu0 0.0
      %5866 = vmatpush1.msra.mxu0 0.0
      %5867 = vmatprep.subr.mxu0 0.0
      %5868 = vmatpush1.msra.mxu0 0.0
      %5869 = vmatprep.subr.mxu0 0.0
      %5870 = vmatpush1.msra.mxu0 0.0
      %5871 = vmatprep.subr.mxu0 0.0
      %5872 = vmatpush1.msra.mxu0 0.0
      %5873 = vmatprep.subr.mxu0 0.0
      %5874 = vmatpush1.msra.mxu0 0.0
      %5875 = vmatprep.subr.mxu0 0.0
      %5876 = vmatpush1.msra.mxu0 0.0
      %5877 = vmatprep.subr.mxu0 0.0
      %5878 = vmatpush1.msra.mxu0 0.0
      %5879 = vmatprep.subr.mxu0 0.0
      %5880 = vmatpush1.msra.mxu0 0.0
      %5881 = vmatprep.subr.mxu0 0.0
      %5882 = vmatpush1.msra.mxu0 0.0
      %5883 = vmatprep.subr.mxu0 0.0
      %5884 = vmatpush1.msra.mxu0 0.0
      %5885 = vmatprep.subr.mxu0 0.0
      %5886 = vmatpush1.msra.mxu0 0.0
      %5887 = vmatprep.subr.mxu0 0.0
      %5888 = vmatpush1.msra.mxu0 0.0
      %5889 = vmatprep.subr.mxu0 0.0
      %5890 = vmatpush1.msra.mxu0 0.0
      %5891 = vmatprep.subr.mxu0 0.0
      %5892 = vmatpush1.msra.mxu0 0.0
      %5893 = vmatprep.subr.mxu0 0.0
      %5894 = vmatpush1.msra.mxu0 0.0
      %5895 = vmatprep.subr.mxu0 0.0
      %5896 = vmatpush1.msra.mxu0 0.0
      %5897 = vmatprep.subr.mxu0 0.0
      %5898 = vmatpush1.msra.mxu0 0.0
      %5899 = vmatprep.subr.mxu0 0.0
      %5900 = vmatpush1.msra.mxu0 0.0
      %5901 = vmatprep.subr.mxu0 0.0
      %5902 = vmatpush1.msra.mxu0 0.0
      %5903 = vmatprep.mubr.f32.mxu0 0.0
      %v5904 = vand.u32 %v2869, 4294901760
      %v5905 = vsub.f32 %v2869, %v5904
      %v5906 = vand.u32 %v5905, 4294901760
      %v5907 = vsub.f32 %v5905, %v5906
      %v5908 = vand.u32 %v5907, 4294901760
      %5909 = vmatmul.mubr.f32.gmra.mrb[0].mxu0 %v5908
      %v5910 = vpop.f32.mrb[0].mxu0
      %v5911 = vadd.f32 0.0, %v5910
      %v5912 = vpop.f32.mrb[0].mxu0
      %5913 = vmatprep.mubr.f32.mxu0 0.0
      %v5914 = vand.u32 %v2872, 4294901760
      %v5915 = vsub.f32 %v2872, %v5914
      %v5916 = vand.u32 %v5915, 4294901760
      %v5917 = vsub.f32 %v5915, %v5916
      %v5918 = vand.u32 %v5917, 4294901760
      %5919 = vmatmul.mubr.f32.gmra.mrb[0].mxu0 %v5918
      %v5920 = vpop.f32.mrb[0].mxu0
      %v5921 = vadd.f32 0.0, %v5920
      %v5922 = vpop.f32.mrb[0].mxu0
      %5923 = vdwg.mxu0
      %5924 = vmatprep.subr.mxu0 0.0
      %v5925 = vand.u32 %v5345, 4294901760
      %v5926 = vsub.f32 %v5345, %v5925
      %v5927 = vand.u32 %v5926, 4294901760
      %v5928 = vsub.f32 %v5926, %v5927
      %v5929 = vand.u32 %v5928, 4294901760
      %5930 = vmatpush1.msra.mxu0 %v5929
      %5931 = vmatprep.subr.mxu0 0.0
      %5932 = vmatpush1.msra.mxu0 0.0
      %5933 = vmatprep.subr.mxu0 0.0
      %5934 = vmatpush1.msra.mxu0 0.0
      %5935 = vmatprep.subr.mxu0 0.0
      %5936 = vmatpush1.msra.mxu0 0.0
      %5937 = vmatprep.subr.mxu0 0.0
      %5938 = vmatpush1.msra.mxu0 0.0
      %5939 = vmatprep.subr.mxu0 0.0
      %5940 = vmatpush1.msra.mxu0 0.0
      %5941 = vmatprep.subr.mxu0 0.0
      %5942 = vmatpush1.msra.mxu0 0.0
      %5943 = vmatprep.subr.mxu0 0.0
      %5944 = vmatpush1.msra.mxu0 0.0
      %5945 = vmatprep.subr.mxu0 0.0
      %5946 = vmatpush1.msra.mxu0 0.0
      %5947 = vmatprep.subr.mxu0 0.0
      %5948 = vmatpush1.msra.mxu0 0.0
      %5949 = vmatprep.subr.mxu0 0.0
      %5950 = vmatpush1.msra.mxu0 0.0
      %5951 = vmatprep.subr.mxu0 0.0
      %5952 = vmatpush1.msra.mxu0 0.0
      %5953 = vmatprep.subr.mxu0 0.0
      %5954 = vmatpush1.msra.mxu0 0.0
      %5955 = vmatprep.subr.mxu0 0.0
      %5956 = vmatpush1.msra.mxu0 0.0
      %5957 = vmatprep.subr.mxu0 0.0
      %5958 = vmatpush1.msra.mxu0 0.0
      %5959 = vmatprep.subr.mxu0 0.0
      %5960 = vmatpush1.msra.mxu0 0.0
      %5961 = vmatprep.subr.mxu0 0.0
      %5962 = vmatpush1.msra.mxu0 0.0
      %5963 = vmatprep.subr.mxu0 0.0
      %5964 = vmatpush1.msra.mxu0 0.0
      %5965 = vmatprep.subr.mxu0 0.0
      %5966 = vmatpush1.msra.mxu0 0.0
      %5967 = vmatprep.subr.mxu0 0.0
      %5968 = vmatpush1.msra.mxu0 0.0
      %5969 = vmatprep.subr.mxu0 0.0
      %5970 = vmatpush1.msra.mxu0 0.0
      %5971 = vmatprep.subr.mxu0 0.0
      %5972 = vmatpush1.msra.mxu0 0.0
      %5973 = vmatprep.subr.mxu0 0.0
      %5974 = vmatpush1.msra.mxu0 0.0
      %5975 = vmatprep.subr.mxu0 0.0
      %5976 = vmatpush1.msra.mxu0 0.0
      %5977 = vmatprep.subr.mxu0 0.0
      %5978 = vmatpush1.msra.mxu0 0.0
      %5979 = vmatprep.subr.mxu0 0.0
      %5980 = vmatpush1.msra.mxu0 0.0
      %5981 = vmatprep.subr.mxu0 0.0
      %5982 = vmatpush1.msra.mxu0 0.0
      %5983 = vmatprep.subr.mxu0 0.0
      %5984 = vmatpush1.msra.mxu0 0.0
      %5985 = vmatprep.subr.mxu0 0.0
      %5986 = vmatpush1.msra.mxu0 0.0
      %5987 = vmatprep.subr.mxu0 0.0
      %5988 = vmatpush1.msra.mxu0 0.0
      %5989 = vmatprep.subr.mxu0 0.0
      %5990 = vmatpush1.msra.mxu0 0.0
      %5991 = vmatprep.subr.mxu0 0.0
      %5992 = vmatpush1.msra.mxu0 0.0
      %5993 = vmatprep.mubr.f32.mxu0 0.0
      %v5994 = vand.u32 %v2869, 4294901760
      %5995 = vmatmul.mubr.f32.gmra.mrb[0].mxu0 %v5994
      %v5996 = vpop.f32.mrb[0].mxu0
      %v5997 = vadd.f32 %v5911, %v5996
      %v5998 = vpop.f32.mrb[0].mxu0
      %5999 = vmatprep.mubr.f32.mxu0 0.0
      %v6000 = vand.u32 %v2872, 4294901760
      %6001 = vmatmul.mubr.f32.gmra.mrb[0].mxu0 %v6000
      %v6002 = vpop.f32.mrb[0].mxu0
      %v6003 = vadd.f32 %v5921, %v6002
      %v6004 = vpop.f32.mrb[0].mxu0
      %6005 = vdwg.mxu0
      %6006 = vmatprep.subr.mxu0 0.0
      %v6007 = vand.u32 %v5345, 4294901760
      %v6008 = vsub.f32 %v5345, %v6007
      %6009 = vmatpush1.msra.mxu0 %v6008
      %6010 = vmatprep.subr.mxu0 0.0
      %6011 = vmatpush1.msra.mxu0 0.0
      %6012 = vmatprep.subr.mxu0 0.0
      %6013 = vmatpush1.msra.mxu0 0.0
      %6014 = vmatprep.subr.mxu0 0.0
      %6015 = vmatpush1.msra.mxu0 0.0
      %6016 = vmatprep.subr.mxu0 0.0
      %6017 = vmatpush1.msra.mxu0 0.0
      %6018 = vmatprep.subr.mxu0 0.0
      %6019 = vmatpush1.msra.mxu0 0.0
      %6020 = vmatprep.subr.mxu0 0.0
      %6021 = vmatpush1.msra.mxu0 0.0
      %6022 = vmatprep.subr.mxu0 0.0
      %6023 = vmatpush1.msra.mxu0 0.0
      %6024 = vmatprep.subr.mxu0 0.0
      %6025 = vmatpush1.msra.mxu0 0.0
      %6026 = vmatprep.subr.mxu0 0.0
      %6027 = vmatpush1.msra.mxu0 0.0
      %6028 = vmatprep.subr.mxu0 0.0
      %6029 = vmatpush1.msra.mxu0 0.0
      %6030 = vmatprep.subr.mxu0 0.0
      %6031 = vmatpush1.msra.mxu0 0.0
      %6032 = vmatprep.subr.mxu0 0.0
      %6033 = vmatpush1.msra.mxu0 0.0
      %6034 = vmatprep.subr.mxu0 0.0
      %6035 = vmatpush1.msra.mxu0 0.0
      %6036 = vmatprep.subr.mxu0 0.0
      %6037 = vmatpush1.msra.mxu0 0.0
      %6038 = vmatprep.subr.mxu0 0.0
      %6039 = vmatpush1.msra.mxu0 0.0
      %6040 = vmatprep.subr.mxu0 0.0
      %6041 = vmatpush1.msra.mxu0 0.0
      %6042 = vmatprep.subr.mxu0 0.0
      %6043 = vmatpush1.msra.mxu0 0.0
      %6044 = vmatprep.subr.mxu0 0.0
      %6045 = vmatpush1.msra.mxu0 0.0
      %6046 = vmatprep.subr.mxu0 0.0
      %6047 = vmatpush1.msra.mxu0 0.0
      %6048 = vmatprep.subr.mxu0 0.0
      %6049 = vmatpush1.msra.mxu0 0.0
      %6050 = vmatprep.subr.mxu0 0.0
      %6051 = vmatpush1.msra.mxu0 0.0
      %6052 = vmatprep.subr.mxu0 0.0
      %6053 = vmatpush1.msra.mxu0 0.0
      %6054 = vmatprep.subr.mxu0 0.0
      %6055 = vmatpush1.msra.mxu0 0.0
      %6056 = vmatprep.subr.mxu0 0.0
      %6057 = vmatpush1.msra.mxu0 0.0
      %6058 = vmatprep.subr.mxu0 0.0
      %6059 = vmatpush1.msra.mxu0 0.0
      %6060 = vmatprep.subr.mxu0 0.0
      %6061 = vmatpush1.msra.mxu0 0.0
      %6062 = vmatprep.subr.mxu0 0.0
      %6063 = vmatpush1.msra.mxu0 0.0
      %6064 = vmatprep.subr.mxu0 0.0
      %6065 = vmatpush1.msra.mxu0 0.0
      %6066 = vmatprep.subr.mxu0 0.0
      %6067 = vmatpush1.msra.mxu0 0.0
      %6068 = vmatprep.subr.mxu0 0.0
      %6069 = vmatpush1.msra.mxu0 0.0
      %6070 = vmatprep.subr.mxu0 0.0
      %6071 = vmatpush1.msra.mxu0 0.0
      %6072 = vmatprep.mubr.f32.mxu0 0.0
      %v6073 = vand.u32 %v2869, 4294901760
      %v6074 = vsub.f32 %v2869, %v6073
      %6075 = vmatmul.mubr.f32.gmra.mrb[0].mxu0 %v6074
      %v6076 = vpop.f32.mrb[0].mxu0
      %v6077 = vadd.f32 %v5997, %v6076
      %v6078 = vpop.f32.mrb[0].mxu0
      %6079 = vmatprep.mubr.f32.mxu0 0.0
      %v6080 = vand.u32 %v2872, 4294901760
      %v6081 = vsub.f32 %v2872, %v6080
      %6082 = vmatmul.mubr.f32.gmra.mrb[0].mxu0 %v6081
      %v6083 = vpop.f32.mrb[0].mxu0
      %v6084 = vadd.f32 %v6003, %v6083
      %v6085 = vpop.f32.mrb[0].mxu0
      %6086 = vdwg.mxu0
      %6087 = vmatprep.subr.mxu0 0.0
      %v6088 = vand.u32 %v5345, 4294901760
      %6089 = vmatpush1.msra.mxu0 %v6088
      %6090 = vmatprep.subr.mxu0 0.0
      %6091 = vmatpush1.msra.mxu0 0.0
      %6092 = vmatprep.subr.mxu0 0.0
      %6093 = vmatpush1.msra.mxu0 0.0
      %6094 = vmatprep.subr.mxu0 0.0
      %6095 = vmatpush1.msra.mxu0 0.0
      %6096 = vmatprep.subr.mxu0 0.0
      %6097 = vmatpush1.msra.mxu0 0.0
      %6098 = vmatprep.subr.mxu0 0.0
      %6099 = vmatpush1.msra.mxu0 0.0
      %6100 = vmatprep.subr.mxu0 0.0
      %6101 = vmatpush1.msra.mxu0 0.0
      %6102 = vmatprep.subr.mxu0 0.0
      %6103 = vmatpush1.msra.mxu0 0.0
      %6104 = vmatprep.subr.mxu0 0.0
      %6105 = vmatpush1.msra.mxu0 0.0
      %6106 = vmatprep.subr.mxu0 0.0
      %6107 = vmatpush1.msra.mxu0 0.0
      %6108 = vmatprep.subr.mxu0 0.0
      %6109 = vmatpush1.msra.mxu0 0.0
      %6110 = vmatprep.subr.mxu0 0.0
      %6111 = vmatpush1.msra.mxu0 0.0
      %6112 = vmatprep.subr.mxu0 0.0
      %6113 = vmatpush1.msra.mxu0 0.0
      %6114 = vmatprep.subr.mxu0 0.0
      %6115 = vmatpush1.msra.mxu0 0.0
      %6116 = vmatprep.subr.mxu0 0.0
      %6117 = vmatpush1.msra.mxu0 0.0
      %6118 = vmatprep.subr.mxu0 0.0
      %6119 = vmatpush1.msra.mxu0 0.0
      %6120 = vmatprep.subr.mxu0 0.0
      %6121 = vmatpush1.msra.mxu0 0.0
      %6122 = vmatprep.subr.mxu0 0.0
      %6123 = vmatpush1.msra.mxu0 0.0
      %6124 = vmatprep.subr.mxu0 0.0
      %6125 = vmatpush1.msra.mxu0 0.0
      %6126 = vmatprep.subr.mxu0 0.0
      %6127 = vmatpush1.msra.mxu0 0.0
      %6128 = vmatprep.subr.mxu0 0.0
      %6129 = vmatpush1.msra.mxu0 0.0
      %6130 = vmatprep.subr.mxu0 0.0
      %6131 = vmatpush1.msra.mxu0 0.0
      %6132 = vmatprep.subr.mxu0 0.0
      %6133 = vmatpush1.msra.mxu0 0.0
      %6134 = vmatprep.subr.mxu0 0.0
      %6135 = vmatpush1.msra.mxu0 0.0
      %6136 = vmatprep.subr.mxu0 0.0
      %6137 = vmatpush1.msra.mxu0 0.0
      %6138 = vmatprep.subr.mxu0 0.0
      %6139 = vmatpush1.msra.mxu0 0.0
      %6140 = vmatprep.subr.mxu0 0.0
      %6141 = vmatpush1.msra.mxu0 0.0
      %6142 = vmatprep.subr.mxu0 0.0
      %6143 = vmatpush1.msra.mxu0 0.0
      %6144 = vmatprep.subr.mxu0 0.0
      %6145 = vmatpush1.msra.mxu0 0.0
      %6146 = vmatprep.subr.mxu0 0.0
      %6147 = vmatpush1.msra.mxu0 0.0
      %6148 = vmatprep.subr.mxu0 0.0
      %6149 = vmatpush1.msra.mxu0 0.0
      %6150 = vmatprep.subr.mxu0 0.0
      %6151 = vmatpush1.msra.mxu0 0.0
      %6152 = vmatprep.mubr.f32.mxu0 0.0
      %v6153 = vand.u32 %v2869, 4294901760
      %v6154 = vsub.f32 %v2869, %v6153
      %v6155 = vand.u32 %v6154, 4294901760
      %6156 = vmatmul.mubr.f32.gmra.mrb[0].mxu0 %v6155
      %v6157 = vpop.f32.mrb[0].mxu0
      %v6158 = vadd.f32 %v6077, %v6157
      %v6159 = vpop.f32.mrb[0].mxu0
      %6160 = vmatprep.mubr.f32.mxu0 0.0
      %v6161 = vand.u32 %v2872, 4294901760
      %v6162 = vsub.f32 %v2872, %v6161
      %v6163 = vand.u32 %v6162, 4294901760
      %6164 = vmatmul.mubr.f32.gmra.mrb[0].mxu0 %v6163
      %v6165 = vpop.f32.mrb[0].mxu0
      %v6166 = vadd.f32 %v6084, %v6165
      %v6167 = vpop.f32.mrb[0].mxu0
      %6168 = vdwg.mxu0
      %6169 = vmatprep.subr.mxu0 0.0
      %v6170 = vand.u32 %v5345, 4294901760
      %v6171 = vsub.f32 %v5345, %v6170
      %v6172 = vand.u32 %v6171, 4294901760
      %6173 = vmatpush1.msra.mxu0 %v6172
      %6174 = vmatprep.subr.mxu0 0.0
      %6175 = vmatpush1.msra.mxu0 0.0
      %6176 = vmatprep.subr.mxu0 0.0
      %6177 = vmatpush1.msra.mxu0 0.0
      %6178 = vmatprep.subr.mxu0 0.0
      %6179 = vmatpush1.msra.mxu0 0.0
      %6180 = vmatprep.subr.mxu0 0.0
      %6181 = vmatpush1.msra.mxu0 0.0
      %6182 = vmatprep.subr.mxu0 0.0
      %6183 = vmatpush1.msra.mxu0 0.0
      %6184 = vmatprep.subr.mxu0 0.0
      %6185 = vmatpush1.msra.mxu0 0.0
      %6186 = vmatprep.subr.mxu0 0.0
      %6187 = vmatpush1.msra.mxu0 0.0
      %6188 = vmatprep.subr.mxu0 0.0
      %6189 = vmatpush1.msra.mxu0 0.0
      %6190 = vmatprep.subr.mxu0 0.0
      %6191 = vmatpush1.msra.mxu0 0.0
      %6192 = vmatprep.subr.mxu0 0.0
      %6193 = vmatpush1.msra.mxu0 0.0
      %6194 = vmatprep.subr.mxu0 0.0
      %6195 = vmatpush1.msra.mxu0 0.0
      %6196 = vmatprep.subr.mxu0 0.0
      %6197 = vmatpush1.msra.mxu0 0.0
      %6198 = vmatprep.subr.mxu0 0.0
      %6199 = vmatpush1.msra.mxu0 0.0
      %6200 = vmatprep.subr.mxu0 0.0
      %6201 = vmatpush1.msra.mxu0 0.0
      %6202 = vmatprep.subr.mxu0 0.0
      %6203 = vmatpush1.msra.mxu0 0.0
      %6204 = vmatprep.subr.mxu0 0.0
      %6205 = vmatpush1.msra.mxu0 0.0
      %6206 = vmatprep.subr.mxu0 0.0
      %6207 = vmatpush1.msra.mxu0 0.0
      %6208 = vmatprep.subr.mxu0 0.0
      %6209 = vmatpush1.msra.mxu0 0.0
      %6210 = vmatprep.subr.mxu0 0.0
      %6211 = vmatpush1.msra.mxu0 0.0
      %6212 = vmatprep.subr.mxu0 0.0
      %6213 = vmatpush1.msra.mxu0 0.0
      %6214 = vmatprep.subr.mxu0 0.0
      %6215 = vmatpush1.msra.mxu0 0.0
      %6216 = vmatprep.subr.mxu0 0.0
      %6217 = vmatpush1.msra.mxu0 0.0
      %6218 = vmatprep.subr.mxu0 0.0
      %6219 = vmatpush1.msra.mxu0 0.0
      %6220 = vmatprep.subr.mxu0 0.0
      %6221 = vmatpush1.msra.mxu0 0.0
      %6222 = vmatprep.subr.mxu0 0.0
      %6223 = vmatpush1.msra.mxu0 0.0
      %6224 = vmatprep.subr.mxu0 0.0
      %6225 = vmatpush1.msra.mxu0 0.0
      %6226 = vmatprep.subr.mxu0 0.0
      %6227 = vmatpush1.msra.mxu0 0.0
      %6228 = vmatprep.subr.mxu0 0.0
      %6229 = vmatpush1.msra.mxu0 0.0
      %6230 = vmatprep.subr.mxu0 0.0
      %6231 = vmatpush1.msra.mxu0 0.0
      %6232 = vmatprep.subr.mxu0 0.0
      %6233 = vmatpush1.msra.mxu0 0.0
      %6234 = vmatprep.subr.mxu0 0.0
      %6235 = vmatpush1.msra.mxu0 0.0
      %6236 = vmatprep.mubr.f32.mxu0 0.0
      %v6237 = vand.u32 %v2869, 4294901760
      %6238 = vmatmul.mubr.f32.gmra.mrb[0].mxu0 %v6237
      %v6239 = vpop.f32.mrb[0].mxu0
      %v6240 = vadd.f32 %v6158, %v6239
      %v6241 = vpop.f32.mrb[0].mxu0
      %6242 = vmatprep.mubr.f32.mxu0 0.0
      %v6243 = vand.u32 %v2872, 4294901760
      %6244 = vmatmul.mubr.f32.gmra.mrb[0].mxu0 %v6243
      %v6245 = vpop.f32.mrb[0].mxu0
      %v6246 = vadd.f32 %v6166, %v6245
      %v6247 = vpop.f32.mrb[0].mxu0
      %6248 = vdwg.mxu0
      %6249 = vmatprep.subr.mxu0 0.0
      %v6250 = vand.u32 %v5345, 4294901760
      %6251 = vmatpush1.msra.mxu0 %v6250
      %6252 = vmatprep.subr.mxu0 0.0
      %6253 = vmatpush1.msra.mxu0 0.0
      %6254 = vmatprep.subr.mxu0 0.0
      %6255 = vmatpush1.msra.mxu0 0.0
      %6256 = vmatprep.subr.mxu0 0.0
      %6257 = vmatpush1.msra.mxu0 0.0
      %6258 = vmatprep.subr.mxu0 0.0
      %6259 = vmatpush1.msra.mxu0 0.0
      %6260 = vmatprep.subr.mxu0 0.0
      %6261 = vmatpush1.msra.mxu0 0.0
      %6262 = vmatprep.subr.mxu0 0.0
      %6263 = vmatpush1.msra.mxu0 0.0
      %6264 = vmatprep.subr.mxu0 0.0
      %6265 = vmatpush1.msra.mxu0 0.0
      %6266 = vmatprep.subr.mxu0 0.0
      %6267 = vmatpush1.msra.mxu0 0.0
      %6268 = vmatprep.subr.mxu0 0.0
      %6269 = vmatpush1.msra.mxu0 0.0
      %6270 = vmatprep.subr.mxu0 0.0
      %6271 = vmatpush1.msra.mxu0 0.0
      %6272 = vmatprep.subr.mxu0 0.0
      %6273 = vmatpush1.msra.mxu0 0.0
      %6274 = vmatprep.subr.mxu0 0.0
      %6275 = vmatpush1.msra.mxu0 0.0
      %6276 = vmatprep.subr.mxu0 0.0
      %6277 = vmatpush1.msra.mxu0 0.0
      %6278 = vmatprep.subr.mxu0 0.0
      %6279 = vmatpush1.msra.mxu0 0.0
      %6280 = vmatprep.subr.mxu0 0.0
      %6281 = vmatpush1.msra.mxu0 0.0
      %6282 = vmatprep.subr.mxu0 0.0
      %6283 = vmatpush1.msra.mxu0 0.0
      %6284 = vmatprep.subr.mxu0 0.0
      %6285 = vmatpush1.msra.mxu0 0.0
      %6286 = vmatprep.subr.mxu0 0.0
      %6287 = vmatpush1.msra.mxu0 0.0
      %6288 = vmatprep.subr.mxu0 0.0
      %6289 = vmatpush1.msra.mxu0 0.0
      %6290 = vmatprep.subr.mxu0 0.0
      %6291 = vmatpush1.msra.mxu0 0.0
      %6292 = vmatprep.subr.mxu0 0.0
      %6293 = vmatpush1.msra.mxu0 0.0
      %6294 = vmatprep.subr.mxu0 0.0
      %6295 = vmatpush1.msra.mxu0 0.0
      %6296 = vmatprep.subr.mxu0 0.0
      %6297 = vmatpush1.msra.mxu0 0.0
      %6298 = vmatprep.subr.mxu0 0.0
      %6299 = vmatpush1.msra.mxu0 0.0
      %6300 = vmatprep.subr.mxu0 0.0
      %6301 = vmatpush1.msra.mxu0 0.0
      %6302 = vmatprep.subr.mxu0 0.0
      %6303 = vmatpush1.msra.mxu0 0.0
      %6304 = vmatprep.subr.mxu0 0.0
      %6305 = vmatpush1.msra.mxu0 0.0
      %6306 = vmatprep.subr.mxu0 0.0
      %6307 = vmatpush1.msra.mxu0 0.0
      %6308 = vmatprep.subr.mxu0 0.0
      %6309 = vmatpush1.msra.mxu0 0.0
      %6310 = vmatprep.subr.mxu0 0.0
      %6311 = vmatpush1.msra.mxu0 0.0
      %6312 = vmatprep.subr.mxu0 0.0
      %6313 = vmatpush1.msra.mxu0 0.0
      %6314 = vmatprep.mubr.f32.mxu0 0.0
      %v6315 = vand.u32 %v2869, 4294901760
      %6316 = vmatmul.mubr.f32.gmra.mrb[0].mxu0 %v6315
      %v6317 = vpop.f32.mrb[0].mxu0
      %v6318 = vadd.f32 %v6240, %v6317
      %v6319 = vpop.f32.mrb[0].mxu0
      %6320 = vmatprep.mubr.f32.mxu0 0.0
      %v6321 = vand.u32 %v2872, 4294901760
      %6322 = vmatmul.mubr.f32.gmra.mrb[0].mxu0 %v6321
      %v6323 = vpop.f32.mrb[0].mxu0
      %v6324 = vadd.f32 %v6246, %v6323
      %v6325 = vpop.f32.mrb[0].mxu0
      %6326 = vdwg.mxu0
      %v6327 = vadd.f32 %v5341, %v6318
      %v6328 = vadd.f32 %v5342, %v6324
      %v6329 = vxor.u32 %v6327, 2147483648
      %v6330 = vxor.u32 %v6328, 2147483648
      %v6331 = vmul.f32 %v6329, 1.442695
      %v6332 = vpow.pop %v6331
      %v6333 = vmul.f32 %v6330, 1.442695
      %v6334 = vpow.pop %v6333
      %v6335 = vadd.f32 %v6332, 1.0
      %v6336 = vadd.f32 %v6334, 1.0
      %v6337 = vrcp.pop %v6335
      %v6338 = vmul.f32 1.0, %v6337
      %v6339 = vrcp.pop %v6336
      %v6340 = vmul.f32 1.0, %v6339
      %v6341 = vmul.f32 %v5836, %v6338
      %v6342 = vmul.f32 %v5837, %v6340
      %vm6343 = vcmask 7168
      %6344 = vst.msk [vmem:[#allocation2] sm:$0xff] %vm6343, 0.0
      %6345 = vst.msk [vmem:[#allocation2 + $0x8] sm:$0xff] %vm6343, 0.0
      %6348 = vrot.lane.b32.xlu0 %v6341, 1
      %v6349 = vpop.permute.xlu0 %6348
      %6350 = vrot.lane.b32.xlu0 %v6342, 1
      %v6351 = vpop.permute.xlu0 %6350
      %vm6354 = vcmask 72712
      %6355 = vst.msk [vmem:[#allocation2] sm:$0xff] %vm6354, %v6349
      %6356 = vst.msk [vmem:[#allocation2 + $0x8] sm:$0xff] %vm6354, %v6351
      %v6357 = vld [vmem:[#allocation2] sm:$0xff]
      %v6358 = vld [vmem:[#allocation2 + $0x8] sm:$0xff]
      %v6359 = vld [vmem:[%s7] sm:$0xff]
      %v6360 = vld [vmem:[%s7 + $0x8] sm:$0xff]
      %v6361 = vld [vmem:[%s7 + $0x10] sm:$0xff]
      %v6362 = vld [vmem:[%s7 + $0x18] sm:$0xff]
      %v6363 = vld [vmem:[%s8] sm:$0xff]
      %v6364 = vld [vmem:[%s8 + $0x8] sm:$0xff]
      %v6365 = vld [vmem:[%s8 + $0x10] sm:$0xff]
      %v6366 = vld [vmem:[%s8 + $0x18] sm:$0xff]
      %v6367 = vld [vmem:[%s5] sm:$0xff]
      %v6368 = vld [vmem:[%s5 + $0x8] sm:$0xff]
      %v6369 = vld [vmem:[%s5 + $0x10] sm:$0xff]
      %v6370 = vld [vmem:[%s5 + $0x18] sm:$0xff]
      %vm6371 = vcmask 130048
      %v6373 = vsel %vm6371, %v6367, 0
      %v6376 = vsel %vm6371, %v6368, 0
      %v6379 = vsel %vm6371, %v6369, 0
      %v6382 = vsel %vm6371, %v6370, 0
      %6384 = vmatprep.subr.mxu0 0.0
      %v6385 = vand.u32 %v6357, 4294901760
      %6386 = vmatpush1.msra.mxu0 %v6385
      %6387 = vmatprep.subr.mxu0 0.0
      %v6388 = vand.u32 %v6358, 4294901760
      %6389 = vmatpush1.msra.mxu0 %v6388
      %6390 = vmatprep.subr.mxu0 0.0
      %6391 = vmatpush1.msra.mxu0 0.0
      %6392 = vmatprep.subr.mxu0 0.0
      %6393 = vmatpush1.msra.mxu0 0.0
      %6394 = vmatprep.subr.mxu0 0.0
      %6395 = vmatpush1.msra.mxu0 0.0
      %6396 = vmatprep.subr.mxu0 0.0
      %6397 = vmatpush1.msra.mxu0 0.0
      %6398 = vmatprep.subr.mxu0 0.0
      %6399 = vmatpush1.msra.mxu0 0.0
      %6400 = vmatprep.subr.mxu0 0.0
      %6401 = vmatpush1.msra.mxu0 0.0
      %6402 = vmatprep.subr.mxu0 0.0
      %6403 = vmatpush1.msra.mxu0 0.0
      %6404 = vmatprep.subr.mxu0 0.0
      %6405 = vmatpush1.msra.mxu0 0.0
      %6406 = vmatprep.subr.mxu0 0.0
      %6407 = vmatpush1.msra.mxu0 0.0
      %6408 = vmatprep.subr.mxu0 0.0
      %6409 = vmatpush1.msra.mxu0 0.0
      %6410 = vmatprep.subr.mxu0 0.0
      %6411 = vmatpush1.msra.mxu0 0.0
      %6412 = vmatprep.subr.mxu0 0.0
      %6413 = vmatpush1.msra.mxu0 0.0
      %6414 = vmatprep.subr.mxu0 0.0
      %6415 = vmatpush1.msra.mxu0 0.0
      %6416 = vmatprep.subr.mxu0 0.0
      %6417 = vmatpush1.msra.mxu0 0.0
      %6418 = vmatprep.subr.mxu0 0.0
      %6419 = vmatpush1.msra.mxu0 0.0
      %6420 = vmatprep.subr.mxu0 0.0
      %6421 = vmatpush1.msra.mxu0 0.0
      %6422 = vmatprep.subr.mxu0 0.0
      %6423 = vmatpush1.msra.mxu0 0.0
      %6424 = vmatprep.subr.mxu0 0.0
      %6425 = vmatpush1.msra.mxu0 0.0
      %6426 = vmatprep.subr.mxu0 0.0
      %6427 = vmatpush1.msra.mxu0 0.0
      %6428 = vmatprep.subr.mxu0 0.0
      %6429 = vmatpush1.msra.mxu0 0.0
      %6430 = vmatprep.subr.mxu0 0.0
      %6431 = vmatpush1.msra.mxu0 0.0
      %6432 = vmatprep.subr.mxu0 0.0
      %6433 = vmatpush1.msra.mxu0 0.0
      %6434 = vmatprep.subr.mxu0 0.0
      %6435 = vmatpush1.msra.mxu0 0.0
      %6436 = vmatprep.subr.mxu0 0.0
      %6437 = vmatpush1.msra.mxu0 0.0
      %6438 = vmatprep.subr.mxu0 0.0
      %6439 = vmatpush1.msra.mxu0 0.0
      %6440 = vmatprep.subr.mxu0 0.0
      %6441 = vmatpush1.msra.mxu0 0.0
      %6442 = vmatprep.subr.mxu0 0.0
      %6443 = vmatpush1.msra.mxu0 0.0
      %6444 = vmatprep.subr.mxu0 0.0
      %6445 = vmatpush1.msra.mxu0 0.0
      %6446 = vmatprep.subr.mxu0 0.0
      %6447 = vmatpush1.msra.mxu0 0.0
      %6448 = vmatprep.subr.mxu0 0.0
      %6449 = vmatpush1.msra.mxu0 0.0
      %6450 = vmatprep.mubr.f32.mxu0 0.0
      %v6451 = vand.u32 %v6373, 4294901760
      %v6452 = vsub.f32 %v6373, %v6451
      %v6453 = vand.u32 %v6452, 4294901760
      %v6454 = vsub.f32 %v6452, %v6453
      %v6455 = vand.u32 %v6454, 4294901760
      %6456 = vmatmul.mubr.f32.gmra.mrb[0].mxu0 %v6455
      %v6457 = vpop.f32.mrb[0].mxu0
      %v6458 = vadd.f32 0.0, %v6457
      %v6459 = vpop.f32.mrb[0].mxu0
      %6460 = vmatprep.mubr.f32.mxu0 0.0
      %v6461 = vand.u32 %v6376, 4294901760
      %v6462 = vsub.f32 %v6376, %v6461
      %v6463 = vand.u32 %v6462, 4294901760
      %v6464 = vsub.f32 %v6462, %v6463
      %v6465 = vand.u32 %v6464, 4294901760
      %6466 = vmatmul.mubr.f32.gmra.mrb[0].mxu0 %v6465
      %v6467 = vpop.f32.mrb[0].mxu0
      %v6468 = vadd.f32 0.0, %v6467
      %v6469 = vpop.f32.mrb[0].mxu0
      %6470 = vmatprep.mubr.f32.mxu0 0.0
      %v6471 = vand.u32 %v6379, 4294901760
      %v6472 = vsub.f32 %v6379, %v6471
      %v6473 = vand.u32 %v6472, 4294901760
      %v6474 = vsub.f32 %v6472, %v6473
      %v6475 = vand.u32 %v6474, 4294901760
      %6476 = vmatmul.mubr.f32.gmra.mrb[0].mxu0 %v6475
      %v6477 = vpop.f32.mrb[0].mxu0
      %v6478 = vadd.f32 0.0, %v6477
      %v6479 = vpop.f32.mrb[0].mxu0
      %6480 = vmatprep.mubr.f32.mxu0 0.0
      %v6481 = vand.u32 %v6382, 4294901760
      %v6482 = vsub.f32 %v6382, %v6481
      %v6483 = vand.u32 %v6482, 4294901760
      %v6484 = vsub.f32 %v6482, %v6483
      %v6485 = vand.u32 %v6484, 4294901760
      %6486 = vmatmul.mubr.f32.gmra.mrb[0].mxu0 %v6485
      %v6487 = vpop.f32.mrb[0].mxu0
      %v6488 = vadd.f32 0.0, %v6487
      %v6489 = vpop.f32.mrb[0].mxu0
      %6490 = vdwg.mxu0
      %6491 = vmatprep.subr.mxu0 0.0
      %v6492 = vand.u32 %v6357, 4294901760
      %v6493 = vsub.f32 %v6357, %v6492
      %v6494 = vand.u32 %v6493, 4294901760
      %v6495 = vsub.f32 %v6493, %v6494
      %v6496 = vand.u32 %v6495, 4294901760
      %6497 = vmatpush1.msra.mxu0 %v6496
      %6498 = vmatprep.subr.mxu0 0.0
      %v6499 = vand.u32 %v6358, 4294901760
      %v6500 = vsub.f32 %v6358, %v6499
      %v6501 = vand.u32 %v6500, 4294901760
      %v6502 = vsub.f32 %v6500, %v6501
      %v6503 = vand.u32 %v6502, 4294901760
      %6504 = vmatpush1.msra.mxu0 %v6503
      %6505 = vmatprep.subr.mxu0 0.0
      %6506 = vmatpush1.msra.mxu0 0.0
      %6507 = vmatprep.subr.mxu0 0.0
      %6508 = vmatpush1.msra.mxu0 0.0
      %6509 = vmatprep.subr.mxu0 0.0
      %6510 = vmatpush1.msra.mxu0 0.0
      %6511 = vmatprep.subr.mxu0 0.0
      %6512 = vmatpush1.msra.mxu0 0.0
      %6513 = vmatprep.subr.mxu0 0.0
      %6514 = vmatpush1.msra.mxu0 0.0
      %6515 = vmatprep.subr.mxu0 0.0
      %6516 = vmatpush1.msra.mxu0 0.0
      %6517 = vmatprep.subr.mxu0 0.0
      %6518 = vmatpush1.msra.mxu0 0.0
      %6519 = vmatprep.subr.mxu0 0.0
      %6520 = vmatpush1.msra.mxu0 0.0
      %6521 = vmatprep.subr.mxu0 0.0
      %6522 = vmatpush1.msra.mxu0 0.0
      %6523 = vmatprep.subr.mxu0 0.0
      %6524 = vmatpush1.msra.mxu0 0.0
      %6525 = vmatprep.subr.mxu0 0.0
      %6526 = vmatpush1.msra.mxu0 0.0
      %6527 = vmatprep.subr.mxu0 0.0
      %6528 = vmatpush1.msra.mxu0 0.0
      %6529 = vmatprep.subr.mxu0 0.0
      %6530 = vmatpush1.msra.mxu0 0.0
      %6531 = vmatprep.subr.mxu0 0.0
      %6532 = vmatpush1.msra.mxu0 0.0
      %6533 = vmatprep.subr.mxu0 0.0
      %6534 = vmatpush1.msra.mxu0 0.0
      %6535 = vmatprep.subr.mxu0 0.0
      %6536 = vmatpush1.msra.mxu0 0.0
      %6537 = vmatprep.subr.mxu0 0.0
      %6538 = vmatpush1.msra.mxu0 0.0
      %6539 = vmatprep.subr.mxu0 0.0
      %6540 = vmatpush1.msra.mxu0 0.0
      %6541 = vmatprep.subr.mxu0 0.0
      %6542 = vmatpush1.msra.mxu0 0.0
      %6543 = vmatprep.subr.mxu0 0.0
      %6544 = vmatpush1.msra.mxu0 0.0
      %6545 = vmatprep.subr.mxu0 0.0
      %6546 = vmatpush1.msra.mxu0 0.0
      %6547 = vmatprep.subr.mxu0 0.0
      %6548 = vmatpush1.msra.mxu0 0.0
      %6549 = vmatprep.subr.mxu0 0.0
      %6550 = vmatpush1.msra.mxu0 0.0
      %6551 = vmatprep.subr.mxu0 0.0
      %6552 = vmatpush1.msra.mxu0 0.0
      %6553 = vmatprep.subr.mxu0 0.0
      %6554 = vmatpush1.msra.mxu0 0.0
      %6555 = vmatprep.subr.mxu0 0.0
      %6556 = vmatpush1.msra.mxu0 0.0
      %6557 = vmatprep.subr.mxu0 0.0
      %6558 = vmatpush1.msra.mxu0 0.0
      %6559 = vmatprep.subr.mxu0 0.0
      %6560 = vmatpush1.msra.mxu0 0.0
      %6561 = vmatprep.subr.mxu0 0.0
      %6562 = vmatpush1.msra.mxu0 0.0
      %6563 = vmatprep.subr.mxu0 0.0
      %6564 = vmatpush1.msra.mxu0 0.0
      %6565 = vmatprep.mubr.f32.mxu0 0.0
      %v6566 = vand.u32 %v6373, 4294901760
      %6567 = vmatmul.mubr.f32.gmra.mrb[0].mxu0 %v6566
      %v6568 = vpop.f32.mrb[0].mxu0
      %v6569 = vadd.f32 %v6458, %v6568
      %v6570 = vpop.f32.mrb[0].mxu0
      %6571 = vmatprep.mubr.f32.mxu0 0.0
      %v6572 = vand.u32 %v6376, 4294901760
      %6573 = vmatmul.mubr.f32.gmra.mrb[0].mxu0 %v6572
      %v6574 = vpop.f32.mrb[0].mxu0
      %v6575 = vadd.f32 %v6468, %v6574
      %v6576 = vpop.f32.mrb[0].mxu0
      %6577 = vmatprep.mubr.f32.mxu0 0.0
      %v6578 = vand.u32 %v6379, 4294901760
      %6579 = vmatmul.mubr.f32.gmra.mrb[0].mxu0 %v6578
      %v6580 = vpop.f32.mrb[0].mxu0
      %v6581 = vadd.f32 %v6478, %v6580
      %v6582 = vpop.f32.mrb[0].mxu0
      %6583 = vmatprep.mubr.f32.mxu0 0.0
      %v6584 = vand.u32 %v6382, 4294901760
      %6585 = vmatmul.mubr.f32.gmra.mrb[0].mxu0 %v6584
      %v6586 = vpop.f32.mrb[0].mxu0
      %v6587 = vadd.f32 %v6488, %v6586
      %v6588 = vpop.f32.mrb[0].mxu0
      %6589 = vdwg.mxu0
      %6590 = vmatprep.subr.mxu0 0.0
      %v6591 = vand.u32 %v6357, 4294901760
      %v6592 = vsub.f32 %v6357, %v6591
      %6593 = vmatpush1.msra.mxu0 %v6592
      %6594 = vmatprep.subr.mxu0 0.0
      %v6595 = vand.u32 %v6358, 4294901760
      %v6596 = vsub.f32 %v6358, %v6595
      %6597 = vmatpush1.msra.mxu0 %v6596
      %6598 = vmatprep.subr.mxu0 0.0
      %6599 = vmatpush1.msra.mxu0 0.0
      %6600 = vmatprep.subr.mxu0 0.0
      %6601 = vmatpush1.msra.mxu0 0.0
      %6602 = vmatprep.subr.mxu0 0.0
      %6603 = vmatpush1.msra.mxu0 0.0
      %6604 = vmatprep.subr.mxu0 0.0
      %6605 = vmatpush1.msra.mxu0 0.0
      %6606 = vmatprep.subr.mxu0 0.0
      %6607 = vmatpush1.msra.mxu0 0.0
      %6608 = vmatprep.subr.mxu0 0.0
      %6609 = vmatpush1.msra.mxu0 0.0
      %6610 = vmatprep.subr.mxu0 0.0
      %6611 = vmatpush1.msra.mxu0 0.0
      %6612 = vmatprep.subr.mxu0 0.0
      %6613 = vmatpush1.msra.mxu0 0.0
      %6614 = vmatprep.subr.mxu0 0.0
      %6615 = vmatpush1.msra.mxu0 0.0
      %6616 = vmatprep.subr.mxu0 0.0
      %6617 = vmatpush1.msra.mxu0 0.0
      %6618 = vmatprep.subr.mxu0 0.0
      %6619 = vmatpush1.msra.mxu0 0.0
      %6620 = vmatprep.subr.mxu0 0.0
      %6621 = vmatpush1.msra.mxu0 0.0
      %6622 = vmatprep.subr.mxu0 0.0
      %6623 = vmatpush1.msra.mxu0 0.0
      %6624 = vmatprep.subr.mxu0 0.0
      %6625 = vmatpush1.msra.mxu0 0.0
      %6626 = vmatprep.subr.mxu0 0.0
      %6627 = vmatpush1.msra.mxu0 0.0
      %6628 = vmatprep.subr.mxu0 0.0
      %6629 = vmatpush1.msra.mxu0 0.0
      %6630 = vmatprep.subr.mxu0 0.0
      %6631 = vmatpush1.msra.mxu0 0.0
      %6632 = vmatprep.subr.mxu0 0.0
      %6633 = vmatpush1.msra.mxu0 0.0
      %6634 = vmatprep.subr.mxu0 0.0
      %6635 = vmatpush1.msra.mxu0 0.0
      %6636 = vmatprep.subr.mxu0 0.0
      %6637 = vmatpush1.msra.mxu0 0.0
      %6638 = vmatprep.subr.mxu0 0.0
      %6639 = vmatpush1.msra.mxu0 0.0
      %6640 = vmatprep.subr.mxu0 0.0
      %6641 = vmatpush1.msra.mxu0 0.0
      %6642 = vmatprep.subr.mxu0 0.0
      %6643 = vmatpush1.msra.mxu0 0.0
      %6644 = vmatprep.subr.mxu0 0.0
      %6645 = vmatpush1.msra.mxu0 0.0
      %6646 = vmatprep.subr.mxu0 0.0
      %6647 = vmatpush1.msra.mxu0 0.0
      %6648 = vmatprep.subr.mxu0 0.0
      %6649 = vmatpush1.msra.mxu0 0.0
      %6650 = vmatprep.subr.mxu0 0.0
      %6651 = vmatpush1.msra.mxu0 0.0
      %6652 = vmatprep.subr.mxu0 0.0
      %6653 = vmatpush1.msra.mxu0 0.0
      %6654 = vmatprep.subr.mxu0 0.0
      %6655 = vmatpush1.msra.mxu0 0.0
      %6656 = vmatprep.subr.mxu0 0.0
      %6657 = vmatpush1.msra.mxu0 0.0
      %6658 = vmatprep.mubr.f32.mxu0 0.0
      %v6659 = vand.u32 %v6373, 4294901760
      %v6660 = vsub.f32 %v6373, %v6659
      %6661 = vmatmul.mubr.f32.gmra.mrb[0].mxu0 %v6660
      %v6662 = vpop.f32.mrb[0].mxu0
      %v6663 = vadd.f32 %v6569, %v6662
      %v6664 = vpop.f32.mrb[0].mxu0
      %6665 = vmatprep.mubr.f32.mxu0 0.0
      %v6666 = vand.u32 %v6376, 4294901760
      %v6667 = vsub.f32 %v6376, %v6666
      %6668 = vmatmul.mubr.f32.gmra.mrb[0].mxu0 %v6667
      %v6669 = vpop.f32.mrb[0].mxu0
      %v6670 = vadd.f32 %v6575, %v6669
      %v6671 = vpop.f32.mrb[0].mxu0
      %6672 = vmatprep.mubr.f32.mxu0 0.0
      %v6673 = vand.u32 %v6379, 4294901760
      %v6674 = vsub.f32 %v6379, %v6673
      %6675 = vmatmul.mubr.f32.gmra.mrb[0].mxu0 %v6674
      %v6676 = vpop.f32.mrb[0].mxu0
      %v6677 = vadd.f32 %v6581, %v6676
      %v6678 = vpop.f32.mrb[0].mxu0
      %6679 = vmatprep.mubr.f32.mxu0 0.0
      %v6680 = vand.u32 %v6382, 4294901760
      %v6681 = vsub.f32 %v6382, %v6680
      %6682 = vmatmul.mubr.f32.gmra.mrb[0].mxu0 %v6681
      %v6683 = vpop.f32.mrb[0].mxu0
      %v6684 = vadd.f32 %v6587, %v6683
      %v6685 = vpop.f32.mrb[0].mxu0
      %6686 = vdwg.mxu0
      %6687 = vmatprep.subr.mxu0 0.0
      %v6688 = vand.u32 %v6357, 4294901760
      %6689 = vmatpush1.msra.mxu0 %v6688
      %6690 = vmatprep.subr.mxu0 0.0
      %v6691 = vand.u32 %v6358, 4294901760
      %6692 = vmatpush1.msra.mxu0 %v6691
      %6693 = vmatprep.subr.mxu0 0.0
      %6694 = vmatpush1.msra.mxu0 0.0
      %6695 = vmatprep.subr.mxu0 0.0
      %6696 = vmatpush1.msra.mxu0 0.0
      %6697 = vmatprep.subr.mxu0 0.0
      %6698 = vmatpush1.msra.mxu0 0.0
      %6699 = vmatprep.subr.mxu0 0.0
      %6700 = vmatpush1.msra.mxu0 0.0
      %6701 = vmatprep.subr.mxu0 0.0
      %6702 = vmatpush1.msra.mxu0 0.0
      %6703 = vmatprep.subr.mxu0 0.0
      %6704 = vmatpush1.msra.mxu0 0.0
      %6705 = vmatprep.subr.mxu0 0.0
      %6706 = vmatpush1.msra.mxu0 0.0
      %6707 = vmatprep.subr.mxu0 0.0
      %6708 = vmatpush1.msra.mxu0 0.0
      %6709 = vmatprep.subr.mxu0 0.0
      %6710 = vmatpush1.msra.mxu0 0.0
      %6711 = vmatprep.subr.mxu0 0.0
      %6712 = vmatpush1.msra.mxu0 0.0
      %6713 = vmatprep.subr.mxu0 0.0
      %6714 = vmatpush1.msra.mxu0 0.0
      %6715 = vmatprep.subr.mxu0 0.0
      %6716 = vmatpush1.msra.mxu0 0.0
      %6717 = vmatprep.subr.mxu0 0.0
      %6718 = vmatpush1.msra.mxu0 0.0
      %6719 = vmatprep.subr.mxu0 0.0
      %6720 = vmatpush1.msra.mxu0 0.0
      %6721 = vmatprep.subr.mxu0 0.0
      %6722 = vmatpush1.msra.mxu0 0.0
      %6723 = vmatprep.subr.mxu0 0.0
      %6724 = vmatpush1.msra.mxu0 0.0
      %6725 = vmatprep.subr.mxu0 0.0
      %6726 = vmatpush1.msra.mxu0 0.0
      %6727 = vmatprep.subr.mxu0 0.0
      %6728 = vmatpush1.msra.mxu0 0.0
      %6729 = vmatprep.subr.mxu0 0.0
      %6730 = vmatpush1.msra.mxu0 0.0
      %6731 = vmatprep.subr.mxu0 0.0
      %6732 = vmatpush1.msra.mxu0 0.0
      %6733 = vmatprep.subr.mxu0 0.0
      %6734 = vmatpush1.msra.mxu0 0.0
      %6735 = vmatprep.subr.mxu0 0.0
      %6736 = vmatpush1.msra.mxu0 0.0
      %6737 = vmatprep.subr.mxu0 0.0
      %6738 = vmatpush1.msra.mxu0 0.0
      %6739 = vmatprep.subr.mxu0 0.0
      %6740 = vmatpush1.msra.mxu0 0.0
      %6741 = vmatprep.subr.mxu0 0.0
      %6742 = vmatpush1.msra.mxu0 0.0
      %6743 = vmatprep.subr.mxu0 0.0
      %6744 = vmatpush1.msra.mxu0 0.0
      %6745 = vmatprep.subr.mxu0 0.0
      %6746 = vmatpush1.msra.mxu0 0.0
      %6747 = vmatprep.subr.mxu0 0.0
      %6748 = vmatpush1.msra.mxu0 0.0
      %6749 = vmatprep.subr.mxu0 0.0
      %6750 = vmatpush1.msra.mxu0 0.0
      %6751 = vmatprep.subr.mxu0 0.0
      %6752 = vmatpush1.msra.mxu0 0.0
      %6753 = vmatprep.mubr.f32.mxu0 0.0
      %v6754 = vand.u32 %v6373, 4294901760
      %v6755 = vsub.f32 %v6373, %v6754
      %v6756 = vand.u32 %v6755, 4294901760
      %6757 = vmatmul.mubr.f32.gmra.mrb[0].mxu0 %v6756
      %v6758 = vpop.f32.mrb[0].mxu0
      %v6759 = vadd.f32 %v6663, %v6758
      %v6760 = vpop.f32.mrb[0].mxu0
      %6761 = vmatprep.mubr.f32.mxu0 0.0
      %v6762 = vand.u32 %v6376, 4294901760
      %v6763 = vsub.f32 %v6376, %v6762
      %v6764 = vand.u32 %v6763, 4294901760
      %6765 = vmatmul.mubr.f32.gmra.mrb[0].mxu0 %v6764
      %v6766 = vpop.f32.mrb[0].mxu0
      %v6767 = vadd.f32 %v6670, %v6766
      %v6768 = vpop.f32.mrb[0].mxu0
      %6769 = vmatprep.mubr.f32.mxu0 0.0
      %v6770 = vand.u32 %v6379, 4294901760
      %v6771 = vsub.f32 %v6379, %v6770
      %v6772 = vand.u32 %v6771, 4294901760
      %6773 = vmatmul.mubr.f32.gmra.mrb[0].mxu0 %v6772
      %v6774 = vpop.f32.mrb[0].mxu0
      %v6775 = vadd.f32 %v6677, %v6774
      %v6776 = vpop.f32.mrb[0].mxu0
      %6777 = vmatprep.mubr.f32.mxu0 0.0
      %v6778 = vand.u32 %v6382, 4294901760
      %v6779 = vsub.f32 %v6382, %v6778
      %v6780 = vand.u32 %v6779, 4294901760
      %6781 = vmatmul.mubr.f32.gmra.mrb[0].mxu0 %v6780
      %v6782 = vpop.f32.mrb[0].mxu0
      %v6783 = vadd.f32 %v6684, %v6782
      %v6784 = vpop.f32.mrb[0].mxu0
      %6785 = vdwg.mxu0
      %6786 = vmatprep.subr.mxu0 0.0
      %v6787 = vand.u32 %v6357, 4294901760
      %v6788 = vsub.f32 %v6357, %v6787
      %v6789 = vand.u32 %v6788, 4294901760
      %6790 = vmatpush1.msra.mxu0 %v6789
      %6791 = vmatprep.subr.mxu0 0.0
      %v6792 = vand.u32 %v6358, 4294901760
      %v6793 = vsub.f32 %v6358, %v6792
      %v6794 = vand.u32 %v6793, 4294901760
      %6795 = vmatpush1.msra.mxu0 %v6794
      %6796 = vmatprep.subr.mxu0 0.0
      %6797 = vmatpush1.msra.mxu0 0.0
      %6798 = vmatprep.subr.mxu0 0.0
      %6799 = vmatpush1.msra.mxu0 0.0
      %6800 = vmatprep.subr.mxu0 0.0
      %6801 = vmatpush1.msra.mxu0 0.0
      %6802 = vmatprep.subr.mxu0 0.0
      %6803 = vmatpush1.msra.mxu0 0.0
      %6804 = vmatprep.subr.mxu0 0.0
      %6805 = vmatpush1.msra.mxu0 0.0
      %6806 = vmatprep.subr.mxu0 0.0
      %6807 = vmatpush1.msra.mxu0 0.0
      %6808 = vmatprep.subr.mxu0 0.0
      %6809 = vmatpush1.msra.mxu0 0.0
      %6810 = vmatprep.subr.mxu0 0.0
      %6811 = vmatpush1.msra.mxu0 0.0
      %6812 = vmatprep.subr.mxu0 0.0
      %6813 = vmatpush1.msra.mxu0 0.0
      %6814 = vmatprep.subr.mxu0 0.0
      %6815 = vmatpush1.msra.mxu0 0.0
      %6816 = vmatprep.subr.mxu0 0.0
      %6817 = vmatpush1.msra.mxu0 0.0
      %6818 = vmatprep.subr.mxu0 0.0
      %6819 = vmatpush1.msra.mxu0 0.0
      %6820 = vmatprep.subr.mxu0 0.0
      %6821 = vmatpush1.msra.mxu0 0.0
      %6822 = vmatprep.subr.mxu0 0.0
      %6823 = vmatpush1.msra.mxu0 0.0
      %6824 = vmatprep.subr.mxu0 0.0
      %6825 = vmatpush1.msra.mxu0 0.0
      %6826 = vmatprep.subr.mxu0 0.0
      %6827 = vmatpush1.msra.mxu0 0.0
      %6828 = vmatprep.subr.mxu0 0.0
      %6829 = vmatpush1.msra.mxu0 0.0
      %6830 = vmatprep.subr.mxu0 0.0
      %6831 = vmatpush1.msra.mxu0 0.0
      %6832 = vmatprep.subr.mxu0 0.0
      %6833 = vmatpush1.msra.mxu0 0.0
      %6834 = vmatprep.subr.mxu0 0.0
      %6835 = vmatpush1.msra.mxu0 0.0
      %6836 = vmatprep.subr.mxu0 0.0
      %6837 = vmatpush1.msra.mxu0 0.0
      %6838 = vmatprep.subr.mxu0 0.0
      %6839 = vmatpush1.msra.mxu0 0.0
      %6840 = vmatprep.subr.mxu0 0.0
      %6841 = vmatpush1.msra.mxu0 0.0
      %6842 = vmatprep.subr.mxu0 0.0
      %6843 = vmatpush1.msra.mxu0 0.0
      %6844 = vmatprep.subr.mxu0 0.0
      %6845 = vmatpush1.msra.mxu0 0.0
      %6846 = vmatprep.subr.mxu0 0.0
      %6847 = vmatpush1.msra.mxu0 0.0
      %6848 = vmatprep.subr.mxu0 0.0
      %6849 = vmatpush1.msra.mxu0 0.0
      %6850 = vmatprep.subr.mxu0 0.0
      %6851 = vmatpush1.msra.mxu0 0.0
      %6852 = vmatprep.subr.mxu0 0.0
      %6853 = vmatpush1.msra.mxu0 0.0
      %6854 = vmatprep.subr.mxu0 0.0
      %6855 = vmatpush1.msra.mxu0 0.0
      %6856 = vmatprep.mubr.f32.mxu0 0.0
      %v6857 = vand.u32 %v6373, 4294901760
      %6858 = vmatmul.mubr.f32.gmra.mrb[0].mxu0 %v6857
      %v6859 = vpop.f32.mrb[0].mxu0
      %v6860 = vadd.f32 %v6759, %v6859
      %v6861 = vpop.f32.mrb[0].mxu0
      %6862 = vmatprep.mubr.f32.mxu0 0.0
      %v6863 = vand.u32 %v6376, 4294901760
      %6864 = vmatmul.mubr.f32.gmra.mrb[0].mxu0 %v6863
      %v6865 = vpop.f32.mrb[0].mxu0
      %v6866 = vadd.f32 %v6767, %v6865
      %v6867 = vpop.f32.mrb[0].mxu0
      %6868 = vmatprep.mubr.f32.mxu0 0.0
      %v6869 = vand.u32 %v6379, 4294901760
      %6870 = vmatmul.mubr.f32.gmra.mrb[0].mxu0 %v6869
      %v6871 = vpop.f32.mrb[0].mxu0
      %v6872 = vadd.f32 %v6775, %v6871
      %v6873 = vpop.f32.mrb[0].mxu0
      %6874 = vmatprep.mubr.f32.mxu0 0.0
      %v6875 = vand.u32 %v6382, 4294901760
      %6876 = vmatmul.mubr.f32.gmra.mrb[0].mxu0 %v6875
      %v6877 = vpop.f32.mrb[0].mxu0
      %v6878 = vadd.f32 %v6783, %v6877
      %v6879 = vpop.f32.mrb[0].mxu0
      %6880 = vdwg.mxu0
      %6881 = vmatprep.subr.mxu0 0.0
      %v6882 = vand.u32 %v6357, 4294901760
      %6883 = vmatpush1.msra.mxu0 %v6882
      %6884 = vmatprep.subr.mxu0 0.0
      %v6885 = vand.u32 %v6358, 4294901760
      %6886 = vmatpush1.msra.mxu0 %v6885
      %6887 = vmatprep.subr.mxu0 0.0
      %6888 = vmatpush1.msra.mxu0 0.0
      %6889 = vmatprep.subr.mxu0 0.0
      %6890 = vmatpush1.msra.mxu0 0.0
      %6891 = vmatprep.subr.mxu0 0.0
      %6892 = vmatpush1.msra.mxu0 0.0
      %6893 = vmatprep.subr.mxu0 0.0
      %6894 = vmatpush1.msra.mxu0 0.0
      %6895 = vmatprep.subr.mxu0 0.0
      %6896 = vmatpush1.msra.mxu0 0.0
      %6897 = vmatprep.subr.mxu0 0.0
      %6898 = vmatpush1.msra.mxu0 0.0
      %6899 = vmatprep.subr.mxu0 0.0
      %6900 = vmatpush1.msra.mxu0 0.0
      %6901 = vmatprep.subr.mxu0 0.0
      %6902 = vmatpush1.msra.mxu0 0.0
      %6903 = vmatprep.subr.mxu0 0.0
      %6904 = vmatpush1.msra.mxu0 0.0
      %6905 = vmatprep.subr.mxu0 0.0
      %6906 = vmatpush1.msra.mxu0 0.0
      %6907 = vmatprep.subr.mxu0 0.0
      %6908 = vmatpush1.msra.mxu0 0.0
      %6909 = vmatprep.subr.mxu0 0.0
      %6910 = vmatpush1.msra.mxu0 0.0
      %6911 = vmatprep.subr.mxu0 0.0
      %6912 = vmatpush1.msra.mxu0 0.0
      %6913 = vmatprep.subr.mxu0 0.0
      %6914 = vmatpush1.msra.mxu0 0.0
      %6915 = vmatprep.subr.mxu0 0.0
      %6916 = vmatpush1.msra.mxu0 0.0
      %6917 = vmatprep.subr.mxu0 0.0
      %6918 = vmatpush1.msra.mxu0 0.0
      %6919 = vmatprep.subr.mxu0 0.0
      %6920 = vmatpush1.msra.mxu0 0.0
      %6921 = vmatprep.subr.mxu0 0.0
      %6922 = vmatpush1.msra.mxu0 0.0
      %6923 = vmatprep.subr.mxu0 0.0
      %6924 = vmatpush1.msra.mxu0 0.0
      %6925 = vmatprep.subr.mxu0 0.0
      %6926 = vmatpush1.msra.mxu0 0.0
      %6927 = vmatprep.subr.mxu0 0.0
      %6928 = vmatpush1.msra.mxu0 0.0
      %6929 = vmatprep.subr.mxu0 0.0
      %6930 = vmatpush1.msra.mxu0 0.0
      %6931 = vmatprep.subr.mxu0 0.0
      %6932 = vmatpush1.msra.mxu0 0.0
      %6933 = vmatprep.subr.mxu0 0.0
      %6934 = vmatpush1.msra.mxu0 0.0
      %6935 = vmatprep.subr.mxu0 0.0
      %6936 = vmatpush1.msra.mxu0 0.0
      %6937 = vmatprep.subr.mxu0 0.0
      %6938 = vmatpush1.msra.mxu0 0.0
      %6939 = vmatprep.subr.mxu0 0.0
      %6940 = vmatpush1.msra.mxu0 0.0
      %6941 = vmatprep.subr.mxu0 0.0
      %6942 = vmatpush1.msra.mxu0 0.0
      %6943 = vmatprep.subr.mxu0 0.0
      %6944 = vmatpush1.msra.mxu0 0.0
      %6945 = vmatprep.subr.mxu0 0.0
      %6946 = vmatpush1.msra.mxu0 0.0
      %6947 = vmatprep.mubr.f32.mxu0 0.0
      %v6948 = vand.u32 %v6373, 4294901760
      %6949 = vmatmul.mubr.f32.gmra.mrb[0].mxu0 %v6948
      %v6950 = vpop.f32.mrb[0].mxu0
      %v6951 = vadd.f32 %v6860, %v6950
      %v6952 = vpop.f32.mrb[0].mxu0
      %6953 = vmatprep.mubr.f32.mxu0 0.0
      %v6954 = vand.u32 %v6376, 4294901760
      %6955 = vmatmul.mubr.f32.gmra.mrb[0].mxu0 %v6954
      %v6956 = vpop.f32.mrb[0].mxu0
      %v6957 = vadd.f32 %v6866, %v6956
      %v6958 = vpop.f32.mrb[0].mxu0
      %6959 = vmatprep.mubr.f32.mxu0 0.0
      %v6960 = vand.u32 %v6379, 4294901760
      %6961 = vmatmul.mubr.f32.gmra.mrb[0].mxu0 %v6960
      %v6962 = vpop.f32.mrb[0].mxu0
      %v6963 = vadd.f32 %v6872, %v6962
      %v6964 = vpop.f32.mrb[0].mxu0
      %6965 = vmatprep.mubr.f32.mxu0 0.0
      %v6966 = vand.u32 %v6382, 4294901760
      %6967 = vmatmul.mubr.f32.gmra.mrb[0].mxu0 %v6966
      %v6968 = vpop.f32.mrb[0].mxu0
      %v6969 = vadd.f32 %v6878, %v6968
      %v6970 = vpop.f32.mrb[0].mxu0
      %6971 = vdwg.mxu0
      %6973 = vset.pattern.permute.xlu0 0
      %6974 = vperm.xlu0 %6973, %v6359
      %v6975 = vpop.permute.xlu0 %6974
      %6978 = vset.pattern.permute.xlu0 0
      %6979 = vperm.xlu0 %6978, %v6360
      %v6980 = vpop.permute.xlu0 %6979
      %6983 = vset.pattern.permute.xlu0 0
      %6984 = vperm.xlu0 %6983, %v6361
      %v6985 = vpop.permute.xlu0 %6984
      %6988 = vset.pattern.permute.xlu0 0
      %6989 = vperm.xlu0 %6988, %v6362
      %v6990 = vpop.permute.xlu0 %6989
      %v6992 = vadd.f32 %v6975, %v6951
      %v6993 = vadd.f32 %v6980, %v6957
      %v6994 = vadd.f32 %v6985, %v6963
      %v6995 = vadd.f32 %v6990, %v6969
      %v6996 = vld [vmem:[%s6] sm:$0xff]
      %v6997 = vld [vmem:[%s6 + $0x8] sm:$0xff]
      %v6998 = vld [vmem:[%s6 + $0x10] sm:$0xff]
      %v6999 = vld [vmem:[%s6 + $0x18] sm:$0xff]
      %v7001 = vsel %vm6371, %v6996, 0
      %v7004 = vsel %vm6371, %v6997, 0
      %v7007 = vsel %vm6371, %v6998, 0
      %v7010 = vsel %vm6371, %v6999, 0
      %7012 = vmatprep.subr.mxu0 0.0
      %v7013 = vand.u32 %v6357, 4294901760
      %7014 = vmatpush1.msra.mxu0 %v7013
      %7015 = vmatprep.subr.mxu0 0.0
      %v7016 = vand.u32 %v6358, 4294901760
      %7017 = vmatpush1.msra.mxu0 %v7016
      %7018 = vmatprep.subr.mxu0 0.0
      %7019 = vmatpush1.msra.mxu0 0.0
      %7020 = vmatprep.subr.mxu0 0.0
      %7021 = vmatpush1.msra.mxu0 0.0
      %7022 = vmatprep.subr.mxu0 0.0
      %7023 = vmatpush1.msra.mxu0 0.0
      %7024 = vmatprep.subr.mxu0 0.0
      %7025 = vmatpush1.msra.mxu0 0.0
      %7026 = vmatprep.subr.mxu0 0.0
      %7027 = vmatpush1.msra.mxu0 0.0
      %7028 = vmatprep.subr.mxu0 0.0
      %7029 = vmatpush1.msra.mxu0 0.0
      %7030 = vmatprep.subr.mxu0 0.0
      %7031 = vmatpush1.msra.mxu0 0.0
      %7032 = vmatprep.subr.mxu0 0.0
      %7033 = vmatpush1.msra.mxu0 0.0
      %7034 = vmatprep.subr.mxu0 0.0
      %7035 = vmatpush1.msra.mxu0 0.0
      %7036 = vmatprep.subr.mxu0 0.0
      %7037 = vmatpush1.msra.mxu0 0.0
      %7038 = vmatprep.subr.mxu0 0.0
      %7039 = vmatpush1.msra.mxu0 0.0
      %7040 = vmatprep.subr.mxu0 0.0
      %7041 = vmatpush1.msra.mxu0 0.0
      %7042 = vmatprep.subr.mxu0 0.0
      %7043 = vmatpush1.msra.mxu0 0.0
      %7044 = vmatprep.subr.mxu0 0.0
      %7045 = vmatpush1.msra.mxu0 0.0
      %7046 = vmatprep.subr.mxu0 0.0
      %7047 = vmatpush1.msra.mxu0 0.0
      %7048 = vmatprep.subr.mxu0 0.0
      %7049 = vmatpush1.msra.mxu0 0.0
      %7050 = vmatprep.subr.mxu0 0.0
      %7051 = vmatpush1.msra.mxu0 0.0
      %7052 = vmatprep.subr.mxu0 0.0
      %7053 = vmatpush1.msra.mxu0 0.0
      %7054 = vmatprep.subr.mxu0 0.0
      %7055 = vmatpush1.msra.mxu0 0.0
      %7056 = vmatprep.subr.mxu0 0.0
      %7057 = vmatpush1.msra.mxu0 0.0
      %7058 = vmatprep.subr.mxu0 0.0
      %7059 = vmatpush1.msra.mxu0 0.0
      %7060 = vmatprep.subr.mxu0 0.0
      %7061 = vmatpush1.msra.mxu0 0.0
      %7062 = vmatprep.subr.mxu0 0.0
      %7063 = vmatpush1.msra.mxu0 0.0
      %7064 = vmatprep.subr.mxu0 0.0
      %7065 = vmatpush1.msra.mxu0 0.0
      %7066 = vmatprep.subr.mxu0 0.0
      %7067 = vmatpush1.msra.mxu0 0.0
      %7068 = vmatprep.subr.mxu0 0.0
      %7069 = vmatpush1.msra.mxu0 0.0
      %7070 = vmatprep.subr.mxu0 0.0
      %7071 = vmatpush1.msra.mxu0 0.0
      %7072 = vmatprep.subr.mxu0 0.0
      %7073 = vmatpush1.msra.mxu0 0.0
      %7074 = vmatprep.subr.mxu0 0.0
      %7075 = vmatpush1.msra.mxu0 0.0
      %7076 = vmatprep.subr.mxu0 0.0
      %7077 = vmatpush1.msra.mxu0 0.0
      %7078 = vmatprep.mubr.f32.mxu0 0.0
      %v7079 = vand.u32 %v7001, 4294901760
      %v7080 = vsub.f32 %v7001, %v7079
      %v7081 = vand.u32 %v7080, 4294901760
      %v7082 = vsub.f32 %v7080, %v7081
      %v7083 = vand.u32 %v7082, 4294901760
      %7084 = vmatmul.mubr.f32.gmra.mrb[0].mxu0 %v7083
      %v7085 = vpop.f32.mrb[0].mxu0
      %v7086 = vadd.f32 0.0, %v7085
      %v7087 = vpop.f32.mrb[0].mxu0
      %7088 = vmatprep.mubr.f32.mxu0 0.0
      %v7089 = vand.u32 %v7004, 4294901760
      %v7090 = vsub.f32 %v7004, %v7089
      %v7091 = vand.u32 %v7090, 4294901760
      %v7092 = vsub.f32 %v7090, %v7091
      %v7093 = vand.u32 %v7092, 4294901760
      %7094 = vmatmul.mubr.f32.gmra.mrb[0].mxu0 %v7093
      %v7095 = vpop.f32.mrb[0].mxu0
      %v7096 = vadd.f32 0.0, %v7095
      %v7097 = vpop.f32.mrb[0].mxu0
      %7098 = vmatprep.mubr.f32.mxu0 0.0
      %v7099 = vand.u32 %v7007, 4294901760
      %v7100 = vsub.f32 %v7007, %v7099
      %v7101 = vand.u32 %v7100, 4294901760
      %v7102 = vsub.f32 %v7100, %v7101
      %v7103 = vand.u32 %v7102, 4294901760
      %7104 = vmatmul.mubr.f32.gmra.mrb[0].mxu0 %v7103
      %v7105 = vpop.f32.mrb[0].mxu0
      %v7106 = vadd.f32 0.0, %v7105
      %v7107 = vpop.f32.mrb[0].mxu0
      %7108 = vmatprep.mubr.f32.mxu0 0.0
      %v7109 = vand.u32 %v7010, 4294901760
      %v7110 = vsub.f32 %v7010, %v7109
      %v7111 = vand.u32 %v7110, 4294901760
      %v7112 = vsub.f32 %v7110, %v7111
      %v7113 = vand.u32 %v7112, 4294901760
      %7114 = vmatmul.mubr.f32.gmra.mrb[0].mxu0 %v7113
      %v7115 = vpop.f32.mrb[0].mxu0
      %v7116 = vadd.f32 0.0, %v7115
      %v7117 = vpop.f32.mrb[0].mxu0
      %7118 = vdwg.mxu0
      %7119 = vmatprep.subr.mxu0 0.0
      %v7120 = vand.u32 %v6357, 4294901760
      %v7121 = vsub.f32 %v6357, %v7120
      %v7122 = vand.u32 %v7121, 4294901760
      %v7123 = vsub.f32 %v7121, %v7122
      %v7124 = vand.u32 %v7123, 4294901760
      %7125 = vmatpush1.msra.mxu0 %v7124
      %7126 = vmatprep.subr.mxu0 0.0
      %v7127 = vand.u32 %v6358, 4294901760
      %v7128 = vsub.f32 %v6358, %v7127
      %v7129 = vand.u32 %v7128, 4294901760
      %v7130 = vsub.f32 %v7128, %v7129
      %v7131 = vand.u32 %v7130, 4294901760
      %7132 = vmatpush1.msra.mxu0 %v7131
      %7133 = vmatprep.subr.mxu0 0.0
      %7134 = vmatpush1.msra.mxu0 0.0
      %7135 = vmatprep.subr.mxu0 0.0
      %7136 = vmatpush1.msra.mxu0 0.0
      %7137 = vmatprep.subr.mxu0 0.0
      %7138 = vmatpush1.msra.mxu0 0.0
      %7139 = vmatprep.subr.mxu0 0.0
      %7140 = vmatpush1.msra.mxu0 0.0
      %7141 = vmatprep.subr.mxu0 0.0
      %7142 = vmatpush1.msra.mxu0 0.0
      %7143 = vmatprep.subr.mxu0 0.0
      %7144 = vmatpush1.msra.mxu0 0.0
      %7145 = vmatprep.subr.mxu0 0.0
      %7146 = vmatpush1.msra.mxu0 0.0
      %7147 = vmatprep.subr.mxu0 0.0
      %7148 = vmatpush1.msra.mxu0 0.0
      %7149 = vmatprep.subr.mxu0 0.0
      %7150 = vmatpush1.msra.mxu0 0.0
      %7151 = vmatprep.subr.mxu0 0.0
      %7152 = vmatpush1.msra.mxu0 0.0
      %7153 = vmatprep.subr.mxu0 0.0
      %7154 = vmatpush1.msra.mxu0 0.0
      %7155 = vmatprep.subr.mxu0 0.0
      %7156 = vmatpush1.msra.mxu0 0.0
      %7157 = vmatprep.subr.mxu0 0.0
      %7158 = vmatpush1.msra.mxu0 0.0
      %7159 = vmatprep.subr.mxu0 0.0
      %7160 = vmatpush1.msra.mxu0 0.0
      %7161 = vmatprep.subr.mxu0 0.0
      %7162 = vmatpush1.msra.mxu0 0.0
      %7163 = vmatprep.subr.mxu0 0.0
      %7164 = vmatpush1.msra.mxu0 0.0
      %7165 = vmatprep.subr.mxu0 0.0
      %7166 = vmatpush1.msra.mxu0 0.0
      %7167 = vmatprep.subr.mxu0 0.0
      %7168 = vmatpush1.msra.mxu0 0.0
      %7169 = vmatprep.subr.mxu0 0.0
      %7170 = vmatpush1.msra.mxu0 0.0
      %7171 = vmatprep.subr.mxu0 0.0
      %7172 = vmatpush1.msra.mxu0 0.0
      %7173 = vmatprep.subr.mxu0 0.0
      %7174 = vmatpush1.msra.mxu0 0.0
      %7175 = vmatprep.subr.mxu0 0.0
      %7176 = vmatpush1.msra.mxu0 0.0
      %7177 = vmatprep.subr.mxu0 0.0
      %7178 = vmatpush1.msra.mxu0 0.0
      %7179 = vmatprep.subr.mxu0 0.0
      %7180 = vmatpush1.msra.mxu0 0.0
      %7181 = vmatprep.subr.mxu0 0.0
      %7182 = vmatpush1.msra.mxu0 0.0
      %7183 = vmatprep.subr.mxu0 0.0
      %7184 = vmatpush1.msra.mxu0 0.0
      %7185 = vmatprep.subr.mxu0 0.0
      %7186 = vmatpush1.msra.mxu0 0.0
      %7187 = vmatprep.subr.mxu0 0.0
      %7188 = vmatpush1.msra.mxu0 0.0
      %7189 = vmatprep.subr.mxu0 0.0
      %7190 = vmatpush1.msra.mxu0 0.0
      %7191 = vmatprep.subr.mxu0 0.0
      %7192 = vmatpush1.msra.mxu0 0.0
      %7193 = vmatprep.mubr.f32.mxu0 0.0
      %v7194 = vand.u32 %v7001, 4294901760
      %7195 = vmatmul.mubr.f32.gmra.mrb[0].mxu0 %v7194
      %v7196 = vpop.f32.mrb[0].mxu0
      %v7197 = vadd.f32 %v7086, %v7196
      %v7198 = vpop.f32.mrb[0].mxu0
      %7199 = vmatprep.mubr.f32.mxu0 0.0
      %v7200 = vand.u32 %v7004, 4294901760
      %7201 = vmatmul.mubr.f32.gmra.mrb[0].mxu0 %v7200
      %v7202 = vpop.f32.mrb[0].mxu0
      %v7203 = vadd.f32 %v7096, %v7202
      %v7204 = vpop.f32.mrb[0].mxu0
      %7205 = vmatprep.mubr.f32.mxu0 0.0
      %v7206 = vand.u32 %v7007, 4294901760
      %7207 = vmatmul.mubr.f32.gmra.mrb[0].mxu0 %v7206
      %v7208 = vpop.f32.mrb[0].mxu0
      %v7209 = vadd.f32 %v7106, %v7208
      %v7210 = vpop.f32.mrb[0].mxu0
      %7211 = vmatprep.mubr.f32.mxu0 0.0
      %v7212 = vand.u32 %v7010, 4294901760
      %7213 = vmatmul.mubr.f32.gmra.mrb[0].mxu0 %v7212
      %v7214 = vpop.f32.mrb[0].mxu0
      %v7215 = vadd.f32 %v7116, %v7214
      %v7216 = vpop.f32.mrb[0].mxu0
      %7217 = vdwg.mxu0
      %7218 = vmatprep.subr.mxu0 0.0
      %v7219 = vand.u32 %v6357, 4294901760
      %v7220 = vsub.f32 %v6357, %v7219
      %7221 = vmatpush1.msra.mxu0 %v7220
      %7222 = vmatprep.subr.mxu0 0.0
      %v7223 = vand.u32 %v6358, 4294901760
      %v7224 = vsub.f32 %v6358, %v7223
      %7225 = vmatpush1.msra.mxu0 %v7224
      %7226 = vmatprep.subr.mxu0 0.0
      %7227 = vmatpush1.msra.mxu0 0.0
      %7228 = vmatprep.subr.mxu0 0.0
      %7229 = vmatpush1.msra.mxu0 0.0
      %7230 = vmatprep.subr.mxu0 0.0
      %7231 = vmatpush1.msra.mxu0 0.0
      %7232 = vmatprep.subr.mxu0 0.0
      %7233 = vmatpush1.msra.mxu0 0.0
      %7234 = vmatprep.subr.mxu0 0.0
      %7235 = vmatpush1.msra.mxu0 0.0
      %7236 = vmatprep.subr.mxu0 0.0
      %7237 = vmatpush1.msra.mxu0 0.0
      %7238 = vmatprep.subr.mxu0 0.0
      %7239 = vmatpush1.msra.mxu0 0.0
      %7240 = vmatprep.subr.mxu0 0.0
      %7241 = vmatpush1.msra.mxu0 0.0
      %7242 = vmatprep.subr.mxu0 0.0
      %7243 = vmatpush1.msra.mxu0 0.0
      %7244 = vmatprep.subr.mxu0 0.0
      %7245 = vmatpush1.msra.mxu0 0.0
      %7246 = vmatprep.subr.mxu0 0.0
      %7247 = vmatpush1.msra.mxu0 0.0
      %7248 = vmatprep.subr.mxu0 0.0
      %7249 = vmatpush1.msra.mxu0 0.0
      %7250 = vmatprep.subr.mxu0 0.0
      %7251 = vmatpush1.msra.mxu0 0.0
      %7252 = vmatprep.subr.mxu0 0.0
      %7253 = vmatpush1.msra.mxu0 0.0
      %7254 = vmatprep.subr.mxu0 0.0
      %7255 = vmatpush1.msra.mxu0 0.0
      %7256 = vmatprep.subr.mxu0 0.0
      %7257 = vmatpush1.msra.mxu0 0.0
      %7258 = vmatprep.subr.mxu0 0.0
      %7259 = vmatpush1.msra.mxu0 0.0
      %7260 = vmatprep.subr.mxu0 0.0
      %7261 = vmatpush1.msra.mxu0 0.0
      %7262 = vmatprep.subr.mxu0 0.0
      %7263 = vmatpush1.msra.mxu0 0.0
      %7264 = vmatprep.subr.mxu0 0.0
      %7265 = vmatpush1.msra.mxu0 0.0
      %7266 = vmatprep.subr.mxu0 0.0
      %7267 = vmatpush1.msra.mxu0 0.0
      %7268 = vmatprep.subr.mxu0 0.0
      %7269 = vmatpush1.msra.mxu0 0.0
      %7270 = vmatprep.subr.mxu0 0.0
      %7271 = vmatpush1.msra.mxu0 0.0
      %7272 = vmatprep.subr.mxu0 0.0
      %7273 = vmatpush1.msra.mxu0 0.0
      %7274 = vmatprep.subr.mxu0 0.0
      %7275 = vmatpush1.msra.mxu0 0.0
      %7276 = vmatprep.subr.mxu0 0.0
      %7277 = vmatpush1.msra.mxu0 0.0
      %7278 = vmatprep.subr.mxu0 0.0
      %7279 = vmatpush1.msra.mxu0 0.0
      %7280 = vmatprep.subr.mxu0 0.0
      %7281 = vmatpush1.msra.mxu0 0.0
      %7282 = vmatprep.subr.mxu0 0.0
      %7283 = vmatpush1.msra.mxu0 0.0
      %7284 = vmatprep.subr.mxu0 0.0
      %7285 = vmatpush1.msra.mxu0 0.0
      %7286 = vmatprep.mubr.f32.mxu0 0.0
      %v7287 = vand.u32 %v7001, 4294901760
      %v7288 = vsub.f32 %v7001, %v7287
      %7289 = vmatmul.mubr.f32.gmra.mrb[0].mxu0 %v7288
      %v7290 = vpop.f32.mrb[0].mxu0
      %v7291 = vadd.f32 %v7197, %v7290
      %v7292 = vpop.f32.mrb[0].mxu0
      %7293 = vmatprep.mubr.f32.mxu0 0.0
      %v7294 = vand.u32 %v7004, 4294901760
      %v7295 = vsub.f32 %v7004, %v7294
      %7296 = vmatmul.mubr.f32.gmra.mrb[0].mxu0 %v7295
      %v7297 = vpop.f32.mrb[0].mxu0
      %v7298 = vadd.f32 %v7203, %v7297
      %v7299 = vpop.f32.mrb[0].mxu0
      %7300 = vmatprep.mubr.f32.mxu0 0.0
      %v7301 = vand.u32 %v7007, 4294901760
      %v7302 = vsub.f32 %v7007, %v7301
      %7303 = vmatmul.mubr.f32.gmra.mrb[0].mxu0 %v7302
      %v7304 = vpop.f32.mrb[0].mxu0
      %v7305 = vadd.f32 %v7209, %v7304
      %v7306 = vpop.f32.mrb[0].mxu0
      %7307 = vmatprep.mubr.f32.mxu0 0.0
      %v7308 = vand.u32 %v7010, 4294901760
      %v7309 = vsub.f32 %v7010, %v7308
      %7310 = vmatmul.mubr.f32.gmra.mrb[0].mxu0 %v7309
      %v7311 = vpop.f32.mrb[0].mxu0
      %v7312 = vadd.f32 %v7215, %v7311
      %v7313 = vpop.f32.mrb[0].mxu0
      %7314 = vdwg.mxu0
      %7315 = vmatprep.subr.mxu0 0.0
      %v7316 = vand.u32 %v6357, 4294901760
      %7317 = vmatpush1.msra.mxu0 %v7316
      %7318 = vmatprep.subr.mxu0 0.0
      %v7319 = vand.u32 %v6358, 4294901760
      %7320 = vmatpush1.msra.mxu0 %v7319
      %7321 = vmatprep.subr.mxu0 0.0
      %7322 = vmatpush1.msra.mxu0 0.0
      %7323 = vmatprep.subr.mxu0 0.0
      %7324 = vmatpush1.msra.mxu0 0.0
      %7325 = vmatprep.subr.mxu0 0.0
      %7326 = vmatpush1.msra.mxu0 0.0
      %7327 = vmatprep.subr.mxu0 0.0
      %7328 = vmatpush1.msra.mxu0 0.0
      %7329 = vmatprep.subr.mxu0 0.0
      %7330 = vmatpush1.msra.mxu0 0.0
      %7331 = vmatprep.subr.mxu0 0.0
      %7332 = vmatpush1.msra.mxu0 0.0
      %7333 = vmatprep.subr.mxu0 0.0
      %7334 = vmatpush1.msra.mxu0 0.0
      %7335 = vmatprep.subr.mxu0 0.0
      %7336 = vmatpush1.msra.mxu0 0.0
      %7337 = vmatprep.subr.mxu0 0.0
      %7338 = vmatpush1.msra.mxu0 0.0
      %7339 = vmatprep.subr.mxu0 0.0
      %7340 = vmatpush1.msra.mxu0 0.0
      %7341 = vmatprep.subr.mxu0 0.0
      %7342 = vmatpush1.msra.mxu0 0.0
      %7343 = vmatprep.subr.mxu0 0.0
      %7344 = vmatpush1.msra.mxu0 0.0
      %7345 = vmatprep.subr.mxu0 0.0
      %7346 = vmatpush1.msra.mxu0 0.0
      %7347 = vmatprep.subr.mxu0 0.0
      %7348 = vmatpush1.msra.mxu0 0.0
      %7349 = vmatprep.subr.mxu0 0.0
      %7350 = vmatpush1.msra.mxu0 0.0
      %7351 = vmatprep.subr.mxu0 0.0
      %7352 = vmatpush1.msra.mxu0 0.0
      %7353 = vmatprep.subr.mxu0 0.0
      %7354 = vmatpush1.msra.mxu0 0.0
      %7355 = vmatprep.subr.mxu0 0.0
      %7356 = vmatpush1.msra.mxu0 0.0
      %7357 = vmatprep.subr.mxu0 0.0
      %7358 = vmatpush1.msra.mxu0 0.0
      %7359 = vmatprep.subr.mxu0 0.0
      %7360 = vmatpush1.msra.mxu0 0.0
      %7361 = vmatprep.subr.mxu0 0.0
      %7362 = vmatpush1.msra.mxu0 0.0
      %7363 = vmatprep.subr.mxu0 0.0
      %7364 = vmatpush1.msra.mxu0 0.0
      %7365 = vmatprep.subr.mxu0 0.0
      %7366 = vmatpush1.msra.mxu0 0.0
      %7367 = vmatprep.subr.mxu0 0.0
      %7368 = vmatpush1.msra.mxu0 0.0
      %7369 = vmatprep.subr.mxu0 0.0
      %7370 = vmatpush1.msra.mxu0 0.0
      %7371 = vmatprep.subr.mxu0 0.0
      %7372 = vmatpush1.msra.mxu0 0.0
      %7373 = vmatprep.subr.mxu0 0.0
      %7374 = vmatpush1.msra.mxu0 0.0
      %7375 = vmatprep.subr.mxu0 0.0
      %7376 = vmatpush1.msra.mxu0 0.0
      %7377 = vmatprep.subr.mxu0 0.0
      %7378 = vmatpush1.msra.mxu0 0.0
      %7379 = vmatprep.subr.mxu0 0.0
      %7380 = vmatpush1.msra.mxu0 0.0
      %7381 = vmatprep.mubr.f32.mxu0 0.0
      %v7382 = vand.u32 %v7001, 4294901760
      %v7383 = vsub.f32 %v7001, %v7382
      %v7384 = vand.u32 %v7383, 4294901760
      %7385 = vmatmul.mubr.f32.gmra.mrb[0].mxu0 %v7384
      %v7386 = vpop.f32.mrb[0].mxu0
      %v7387 = vadd.f32 %v7291, %v7386
      %v7388 = vpop.f32.mrb[0].mxu0
      %7389 = vmatprep.mubr.f32.mxu0 0.0
      %v7390 = vand.u32 %v7004, 4294901760
      %v7391 = vsub.f32 %v7004, %v7390
      %v7392 = vand.u32 %v7391, 4294901760
      %7393 = vmatmul.mubr.f32.gmra.mrb[0].mxu0 %v7392
      %v7394 = vpop.f32.mrb[0].mxu0
      %v7395 = vadd.f32 %v7298, %v7394
      %v7396 = vpop.f32.mrb[0].mxu0
      %7397 = vmatprep.mubr.f32.mxu0 0.0
      %v7398 = vand.u32 %v7007, 4294901760
      %v7399 = vsub.f32 %v7007, %v7398
      %v7400 = vand.u32 %v7399, 4294901760
      %7401 = vmatmul.mubr.f32.gmra.mrb[0].mxu0 %v7400
      %v7402 = vpop.f32.mrb[0].mxu0
      %v7403 = vadd.f32 %v7305, %v7402
      %v7404 = vpop.f32.mrb[0].mxu0
      %7405 = vmatprep.mubr.f32.mxu0 0.0
      %v7406 = vand.u32 %v7010, 4294901760
      %v7407 = vsub.f32 %v7010, %v7406
      %v7408 = vand.u32 %v7407, 4294901760
      %7409 = vmatmul.mubr.f32.gmra.mrb[0].mxu0 %v7408
      %v7410 = vpop.f32.mrb[0].mxu0
      %v7411 = vadd.f32 %v7312, %v7410
      %v7412 = vpop.f32.mrb[0].mxu0
      %7413 = vdwg.mxu0
      %7414 = vmatprep.subr.mxu0 0.0
      %v7415 = vand.u32 %v6357, 4294901760
      %v7416 = vsub.f32 %v6357, %v7415
      %v7417 = vand.u32 %v7416, 4294901760
      %7418 = vmatpush1.msra.mxu0 %v7417
      %7419 = vmatprep.subr.mxu0 0.0
      %v7420 = vand.u32 %v6358, 4294901760
      %v7421 = vsub.f32 %v6358, %v7420
      %v7422 = vand.u32 %v7421, 4294901760
      %7423 = vmatpush1.msra.mxu0 %v7422
      %7424 = vmatprep.subr.mxu0 0.0
      %7425 = vmatpush1.msra.mxu0 0.0
      %7426 = vmatprep.subr.mxu0 0.0
      %7427 = vmatpush1.msra.mxu0 0.0
      %7428 = vmatprep.subr.mxu0 0.0
      %7429 = vmatpush1.msra.mxu0 0.0
      %7430 = vmatprep.subr.mxu0 0.0
      %7431 = vmatpush1.msra.mxu0 0.0
      %7432 = vmatprep.subr.mxu0 0.0
      %7433 = vmatpush1.msra.mxu0 0.0
      %7434 = vmatprep.subr.mxu0 0.0
      %7435 = vmatpush1.msra.mxu0 0.0
      %7436 = vmatprep.subr.mxu0 0.0
      %7437 = vmatpush1.msra.mxu0 0.0
      %7438 = vmatprep.subr.mxu0 0.0
      %7439 = vmatpush1.msra.mxu0 0.0
      %7440 = vmatprep.subr.mxu0 0.0
      %7441 = vmatpush1.msra.mxu0 0.0
      %7442 = vmatprep.subr.mxu0 0.0
      %7443 = vmatpush1.msra.mxu0 0.0
      %7444 = vmatprep.subr.mxu0 0.0
      %7445 = vmatpush1.msra.mxu0 0.0
      %7446 = vmatprep.subr.mxu0 0.0
      %7447 = vmatpush1.msra.mxu0 0.0
      %7448 = vmatprep.subr.mxu0 0.0
      %7449 = vmatpush1.msra.mxu0 0.0
      %7450 = vmatprep.subr.mxu0 0.0
      %7451 = vmatpush1.msra.mxu0 0.0
      %7452 = vmatprep.subr.mxu0 0.0
      %7453 = vmatpush1.msra.mxu0 0.0
      %7454 = vmatprep.subr.mxu0 0.0
      %7455 = vmatpush1.msra.mxu0 0.0
      %7456 = vmatprep.subr.mxu0 0.0
      %7457 = vmatpush1.msra.mxu0 0.0
      %7458 = vmatprep.subr.mxu0 0.0
      %7459 = vmatpush1.msra.mxu0 0.0
      %7460 = vmatprep.subr.mxu0 0.0
      %7461 = vmatpush1.msra.mxu0 0.0
      %7462 = vmatprep.subr.mxu0 0.0
      %7463 = vmatpush1.msra.mxu0 0.0
      %7464 = vmatprep.subr.mxu0 0.0
      %7465 = vmatpush1.msra.mxu0 0.0
      %7466 = vmatprep.subr.mxu0 0.0
      %7467 = vmatpush1.msra.mxu0 0.0
      %7468 = vmatprep.subr.mxu0 0.0
      %7469 = vmatpush1.msra.mxu0 0.0
      %7470 = vmatprep.subr.mxu0 0.0
      %7471 = vmatpush1.msra.mxu0 0.0
      %7472 = vmatprep.subr.mxu0 0.0
      %7473 = vmatpush1.msra.mxu0 0.0
      %7474 = vmatprep.subr.mxu0 0.0
      %7475 = vmatpush1.msra.mxu0 0.0
      %7476 = vmatprep.subr.mxu0 0.0
      %7477 = vmatpush1.msra.mxu0 0.0
      %7478 = vmatprep.subr.mxu0 0.0
      %7479 = vmatpush1.msra.mxu0 0.0
      %7480 = vmatprep.subr.mxu0 0.0
      %7481 = vmatpush1.msra.mxu0 0.0
      %7482 = vmatprep.subr.mxu0 0.0
      %7483 = vmatpush1.msra.mxu0 0.0
      %7484 = vmatprep.mubr.f32.mxu0 0.0
      %v7485 = vand.u32 %v7001, 4294901760
      %7486 = vmatmul.mubr.f32.gmra.mrb[0].mxu0 %v7485
      %v7487 = vpop.f32.mrb[0].mxu0
      %v7488 = vadd.f32 %v7387, %v7487
      %v7489 = vpop.f32.mrb[0].mxu0
      %7490 = vmatprep.mubr.f32.mxu0 0.0
      %v7491 = vand.u32 %v7004, 4294901760
      %7492 = vmatmul.mubr.f32.gmra.mrb[0].mxu0 %v7491
      %v7493 = vpop.f32.mrb[0].mxu0
      %v7494 = vadd.f32 %v7395, %v7493
      %v7495 = vpop.f32.mrb[0].mxu0
      %7496 = vmatprep.mubr.f32.mxu0 0.0
      %v7497 = vand.u32 %v7007, 4294901760
      %7498 = vmatmul.mubr.f32.gmra.mrb[0].mxu0 %v7497
      %v7499 = vpop.f32.mrb[0].mxu0
      %v7500 = vadd.f32 %v7403, %v7499
      %v7501 = vpop.f32.mrb[0].mxu0
      %7502 = vmatprep.mubr.f32.mxu0 0.0
      %v7503 = vand.u32 %v7010, 4294901760
      %7504 = vmatmul.mubr.f32.gmra.mrb[0].mxu0 %v7503
      %v7505 = vpop.f32.mrb[0].mxu0
      %v7506 = vadd.f32 %v7411, %v7505
      %v7507 = vpop.f32.mrb[0].mxu0
      %7508 = vdwg.mxu0
      %7509 = vmatprep.subr.mxu0 0.0
      %v7510 = vand.u32 %v6357, 4294901760
      %7511 = vmatpush1.msra.mxu0 %v7510
      %7512 = vmatprep.subr.mxu0 0.0
      %v7513 = vand.u32 %v6358, 4294901760
      %7514 = vmatpush1.msra.mxu0 %v7513
      %7515 = vmatprep.subr.mxu0 0.0
      %7516 = vmatpush1.msra.mxu0 0.0
      %7517 = vmatprep.subr.mxu0 0.0
      %7518 = vmatpush1.msra.mxu0 0.0
      %7519 = vmatprep.subr.mxu0 0.0
      %7520 = vmatpush1.msra.mxu0 0.0
      %7521 = vmatprep.subr.mxu0 0.0
      %7522 = vmatpush1.msra.mxu0 0.0
      %7523 = vmatprep.subr.mxu0 0.0
      %7524 = vmatpush1.msra.mxu0 0.0
      %7525 = vmatprep.subr.mxu0 0.0
      %7526 = vmatpush1.msra.mxu0 0.0
      %7527 = vmatprep.subr.mxu0 0.0
      %7528 = vmatpush1.msra.mxu0 0.0
      %7529 = vmatprep.subr.mxu0 0.0
      %7530 = vmatpush1.msra.mxu0 0.0
      %7531 = vmatprep.subr.mxu0 0.0
      %7532 = vmatpush1.msra.mxu0 0.0
      %7533 = vmatprep.subr.mxu0 0.0
      %7534 = vmatpush1.msra.mxu0 0.0
      %7535 = vmatprep.subr.mxu0 0.0
      %7536 = vmatpush1.msra.mxu0 0.0
      %7537 = vmatprep.subr.mxu0 0.0
      %7538 = vmatpush1.msra.mxu0 0.0
      %7539 = vmatprep.subr.mxu0 0.0
      %7540 = vmatpush1.msra.mxu0 0.0
      %7541 = vmatprep.subr.mxu0 0.0
      %7542 = vmatpush1.msra.mxu0 0.0
      %7543 = vmatprep.subr.mxu0 0.0
      %7544 = vmatpush1.msra.mxu0 0.0
      %7545 = vmatprep.subr.mxu0 0.0
      %7546 = vmatpush1.msra.mxu0 0.0
      %7547 = vmatprep.subr.mxu0 0.0
      %7548 = vmatpush1.msra.mxu0 0.0
      %7549 = vmatprep.subr.mxu0 0.0
      %7550 = vmatpush1.msra.mxu0 0.0
      %7551 = vmatprep.subr.mxu0 0.0
      %7552 = vmatpush1.msra.mxu0 0.0
      %7553 = vmatprep.subr.mxu0 0.0
      %7554 = vmatpush1.msra.mxu0 0.0
      %7555 = vmatprep.subr.mxu0 0.0
      %7556 = vmatpush1.msra.mxu0 0.0
      %7557 = vmatprep.subr.mxu0 0.0
      %7558 = vmatpush1.msra.mxu0 0.0
      %7559 = vmatprep.subr.mxu0 0.0
      %7560 = vmatpush1.msra.mxu0 0.0
      %7561 = vmatprep.subr.mxu0 0.0
      %7562 = vmatpush1.msra.mxu0 0.0
      %7563 = vmatprep.subr.mxu0 0.0
      %7564 = vmatpush1.msra.mxu0 0.0
      %7565 = vmatprep.subr.mxu0 0.0
      %7566 = vmatpush1.msra.mxu0 0.0
      %7567 = vmatprep.subr.mxu0 0.0
      %7568 = vmatpush1.msra.mxu0 0.0
      %7569 = vmatprep.subr.mxu0 0.0
      %7570 = vmatpush1.msra.mxu0 0.0
      %7571 = vmatprep.subr.mxu0 0.0
      %7572 = vmatpush1.msra.mxu0 0.0
      %7573 = vmatprep.subr.mxu0 0.0
      %7574 = vmatpush1.msra.mxu0 0.0
      %7575 = vmatprep.mubr.f32.mxu0 0.0
      %v7576 = vand.u32 %v7001, 4294901760
      %7577 = vmatmul.mubr.f32.gmra.mrb[0].mxu0 %v7576
      %v7578 = vpop.f32.mrb[0].mxu0
      %v7579 = vadd.f32 %v7488, %v7578
      %v7580 = vpop.f32.mrb[0].mxu0
      %7581 = vmatprep.mubr.f32.mxu0 0.0
      %v7582 = vand.u32 %v7004, 4294901760
      %7583 = vmatmul.mubr.f32.gmra.mrb[0].mxu0 %v7582
      %v7584 = vpop.f32.mrb[0].mxu0
      %v7585 = vadd.f32 %v7494, %v7584
      %v7586 = vpop.f32.mrb[0].mxu0
      %7587 = vmatprep.mubr.f32.mxu0 0.0
      %v7588 = vand.u32 %v7007, 4294901760
      %7589 = vmatmul.mubr.f32.gmra.mrb[0].mxu0 %v7588
      %v7590 = vpop.f32.mrb[0].mxu0
      %v7591 = vadd.f32 %v7500, %v7590
      %v7592 = vpop.f32.mrb[0].mxu0
      %7593 = vmatprep.mubr.f32.mxu0 0.0
      %v7594 = vand.u32 %v7010, 4294901760
      %7595 = vmatmul.mubr.f32.gmra.mrb[0].mxu0 %v7594
      %v7596 = vpop.f32.mrb[0].mxu0
      %v7597 = vadd.f32 %v7506, %v7596
      %v7598 = vpop.f32.mrb[0].mxu0
      %7599 = vdwg.mxu0
      %7601 = vset.pattern.permute.xlu0 0
      %7602 = vperm.xlu0 %7601, %v6363
      %v7603 = vpop.permute.xlu0 %7602
      %7606 = vset.pattern.permute.xlu0 0
      %7607 = vperm.xlu0 %7606, %v6364
      %v7608 = vpop.permute.xlu0 %7607
      %7611 = vset.pattern.permute.xlu0 0
      %7612 = vperm.xlu0 %7611, %v6365
      %v7613 = vpop.permute.xlu0 %7612
      %7616 = vset.pattern.permute.xlu0 0
      %7617 = vperm.xlu0 %7616, %v6366
      %v7618 = vpop.permute.xlu0 %7617
      %v7620 = vadd.f32 %v7603, %v7579
      %v7621 = vadd.f32 %v7608, %v7585
      %v7622 = vadd.f32 %v7613, %v7591
      %v7623 = vadd.f32 %v7618, %v7597
      %s7624 = scalar_lea.vmem %s5, 32
      %v7625 = vld [vmem:[%s7624] sm:$0xff]
      %v7626 = vld [vmem:[%s7624 + $0x8] sm:$0xff]
      %v7627 = vld [vmem:[%s7624 + $0x10] sm:$0xff]
      %v7628 = vld [vmem:[%s7624 + $0x18] sm:$0xff]
      %v7630 = vsel %vm6371, %v7625, 0
      %v7633 = vsel %vm6371, %v7626, 0
      %v7636 = vsel %vm6371, %v7627, 0
      %v7639 = vsel %vm6371, %v7628, 0
      %7641 = vmatprep.subr.mxu0 0.0
      %v7642 = vand.u32 %v3377, 4294901760
      %7643 = vmatpush1.msra.mxu0 %v7642
      %7644 = vmatprep.subr.mxu0 0.0
      %v7645 = vand.u32 %v3378, 4294901760
      %7646 = vmatpush1.msra.mxu0 %v7645
      %7647 = vmatprep.subr.mxu0 0.0
      %7648 = vmatpush1.msra.mxu0 0.0
      %7649 = vmatprep.subr.mxu0 0.0
      %7650 = vmatpush1.msra.mxu0 0.0
      %7651 = vmatprep.subr.mxu0 0.0
      %7652 = vmatpush1.msra.mxu0 0.0
      %7653 = vmatprep.subr.mxu0 0.0
      %7654 = vmatpush1.msra.mxu0 0.0
      %7655 = vmatprep.subr.mxu0 0.0
      %7656 = vmatpush1.msra.mxu0 0.0
      %7657 = vmatprep.subr.mxu0 0.0
      %7658 = vmatpush1.msra.mxu0 0.0
      %7659 = vmatprep.subr.mxu0 0.0
      %7660 = vmatpush1.msra.mxu0 0.0
      %7661 = vmatprep.subr.mxu0 0.0
      %7662 = vmatpush1.msra.mxu0 0.0
      %7663 = vmatprep.subr.mxu0 0.0
      %7664 = vmatpush1.msra.mxu0 0.0
      %7665 = vmatprep.subr.mxu0 0.0
      %7666 = vmatpush1.msra.mxu0 0.0
      %7667 = vmatprep.subr.mxu0 0.0
      %7668 = vmatpush1.msra.mxu0 0.0
      %7669 = vmatprep.subr.mxu0 0.0
      %7670 = vmatpush1.msra.mxu0 0.0
      %7671 = vmatprep.subr.mxu0 0.0
      %7672 = vmatpush1.msra.mxu0 0.0
      %7673 = vmatprep.subr.mxu0 0.0
      %7674 = vmatpush1.msra.mxu0 0.0
      %7675 = vmatprep.subr.mxu0 0.0
      %7676 = vmatpush1.msra.mxu0 0.0
      %7677 = vmatprep.subr.mxu0 0.0
      %7678 = vmatpush1.msra.mxu0 0.0
      %7679 = vmatprep.subr.mxu0 0.0
      %7680 = vmatpush1.msra.mxu0 0.0
      %7681 = vmatprep.subr.mxu0 0.0
      %7682 = vmatpush1.msra.mxu0 0.0
      %7683 = vmatprep.subr.mxu0 0.0
      %7684 = vmatpush1.msra.mxu0 0.0
      %7685 = vmatprep.subr.mxu0 0.0
      %7686 = vmatpush1.msra.mxu0 0.0
      %7687 = vmatprep.subr.mxu0 0.0
      %7688 = vmatpush1.msra.mxu0 0.0
      %7689 = vmatprep.subr.mxu0 0.0
      %7690 = vmatpush1.msra.mxu0 0.0
      %7691 = vmatprep.subr.mxu0 0.0
      %7692 = vmatpush1.msra.mxu0 0.0
      %7693 = vmatprep.subr.mxu0 0.0
      %7694 = vmatpush1.msra.mxu0 0.0
      %7695 = vmatprep.subr.mxu0 0.0
      %7696 = vmatpush1.msra.mxu0 0.0
      %7697 = vmatprep.subr.mxu0 0.0
      %7698 = vmatpush1.msra.mxu0 0.0
      %7699 = vmatprep.subr.mxu0 0.0
      %7700 = vmatpush1.msra.mxu0 0.0
      %7701 = vmatprep.subr.mxu0 0.0
      %7702 = vmatpush1.msra.mxu0 0.0
      %7703 = vmatprep.subr.mxu0 0.0
      %7704 = vmatpush1.msra.mxu0 0.0
      %7705 = vmatprep.subr.mxu0 0.0
      %7706 = vmatpush1.msra.mxu0 0.0
      %7707 = vmatprep.mubr.f32.mxu0 0.0
      %v7708 = vand.u32 %v7630, 4294901760
      %v7709 = vsub.f32 %v7630, %v7708
      %v7710 = vand.u32 %v7709, 4294901760
      %v7711 = vsub.f32 %v7709, %v7710
      %v7712 = vand.u32 %v7711, 4294901760
      %7713 = vmatmul.mubr.f32.gmra.mrb[0].mxu0 %v7712
      %v7714 = vpop.f32.mrb[0].mxu0
      %v7715 = vadd.f32 0.0, %v7714
      %v7716 = vpop.f32.mrb[0].mxu0
      %7717 = vmatprep.mubr.f32.mxu0 0.0
      %v7718 = vand.u32 %v7633, 4294901760
      %v7719 = vsub.f32 %v7633, %v7718
      %v7720 = vand.u32 %v7719, 4294901760
      %v7721 = vsub.f32 %v7719, %v7720
      %v7722 = vand.u32 %v7721, 4294901760
      %7723 = vmatmul.mubr.f32.gmra.mrb[0].mxu0 %v7722
      %v7724 = vpop.f32.mrb[0].mxu0
      %v7725 = vadd.f32 0.0, %v7724
      %v7726 = vpop.f32.mrb[0].mxu0
      %7727 = vmatprep.mubr.f32.mxu0 0.0
      %v7728 = vand.u32 %v7636, 4294901760
      %v7729 = vsub.f32 %v7636, %v7728
      %v7730 = vand.u32 %v7729, 4294901760
      %v7731 = vsub.f32 %v7729, %v7730
      %v7732 = vand.u32 %v7731, 4294901760
      %7733 = vmatmul.mubr.f32.gmra.mrb[0].mxu0 %v7732
      %v7734 = vpop.f32.mrb[0].mxu0
      %v7735 = vadd.f32 0.0, %v7734
      %v7736 = vpop.f32.mrb[0].mxu0
      %7737 = vmatprep.mubr.f32.mxu0 0.0
      %v7738 = vand.u32 %v7639, 4294901760
      %v7739 = vsub.f32 %v7639, %v7738
      %v7740 = vand.u32 %v7739, 4294901760
      %v7741 = vsub.f32 %v7739, %v7740
      %v7742 = vand.u32 %v7741, 4294901760
      %7743 = vmatmul.mubr.f32.gmra.mrb[0].mxu0 %v7742
      %v7744 = vpop.f32.mrb[0].mxu0
      %v7745 = vadd.f32 0.0, %v7744
      %v7746 = vpop.f32.mrb[0].mxu0
      %7747 = vdwg.mxu0
      %7748 = vmatprep.subr.mxu0 0.0
      %v7749 = vand.u32 %v3377, 4294901760
      %v7750 = vsub.f32 %v3377, %v7749
      %v7751 = vand.u32 %v7750, 4294901760
      %v7752 = vsub.f32 %v7750, %v7751
      %v7753 = vand.u32 %v7752, 4294901760
      %7754 = vmatpush1.msra.mxu0 %v7753
      %7755 = vmatprep.subr.mxu0 0.0
      %v7756 = vand.u32 %v3378, 4294901760
      %v7757 = vsub.f32 %v3378, %v7756
      %v7758 = vand.u32 %v7757, 4294901760
      %v7759 = vsub.f32 %v7757, %v7758
      %v7760 = vand.u32 %v7759, 4294901760
      %7761 = vmatpush1.msra.mxu0 %v7760
      %7762 = vmatprep.subr.mxu0 0.0
      %7763 = vmatpush1.msra.mxu0 0.0
      %7764 = vmatprep.subr.mxu0 0.0
      %7765 = vmatpush1.msra.mxu0 0.0
      %7766 = vmatprep.subr.mxu0 0.0
      %7767 = vmatpush1.msra.mxu0 0.0
      %7768 = vmatprep.subr.mxu0 0.0
      %7769 = vmatpush1.msra.mxu0 0.0
      %7770 = vmatprep.subr.mxu0 0.0
      %7771 = vmatpush1.msra.mxu0 0.0
      %7772 = vmatprep.subr.mxu0 0.0
      %7773 = vmatpush1.msra.mxu0 0.0
      %7774 = vmatprep.subr.mxu0 0.0
      %7775 = vmatpush1.msra.mxu0 0.0
      %7776 = vmatprep.subr.mxu0 0.0
      %7777 = vmatpush1.msra.mxu0 0.0
      %7778 = vmatprep.subr.mxu0 0.0
      %7779 = vmatpush1.msra.mxu0 0.0
      %7780 = vmatprep.subr.mxu0 0.0
      %7781 = vmatpush1.msra.mxu0 0.0
      %7782 = vmatprep.subr.mxu0 0.0
      %7783 = vmatpush1.msra.mxu0 0.0
      %7784 = vmatprep.subr.mxu0 0.0
      %7785 = vmatpush1.msra.mxu0 0.0
      %7786 = vmatprep.subr.mxu0 0.0
      %7787 = vmatpush1.msra.mxu0 0.0
      %7788 = vmatprep.subr.mxu0 0.0
      %7789 = vmatpush1.msra.mxu0 0.0
      %7790 = vmatprep.subr.mxu0 0.0
      %7791 = vmatpush1.msra.mxu0 0.0
      %7792 = vmatprep.subr.mxu0 0.0
      %7793 = vmatpush1.msra.mxu0 0.0
      %7794 = vmatprep.subr.mxu0 0.0
      %7795 = vmatpush1.msra.mxu0 0.0
      %7796 = vmatprep.subr.mxu0 0.0
      %7797 = vmatpush1.msra.mxu0 0.0
      %7798 = vmatprep.subr.mxu0 0.0
      %7799 = vmatpush1.msra.mxu0 0.0
      %7800 = vmatprep.subr.mxu0 0.0
      %7801 = vmatpush1.msra.mxu0 0.0
      %7802 = vmatprep.subr.mxu0 0.0
      %7803 = vmatpush1.msra.mxu0 0.0
      %7804 = vmatprep.subr.mxu0 0.0
      %7805 = vmatpush1.msra.mxu0 0.0
      %7806 = vmatprep.subr.mxu0 0.0
      %7807 = vmatpush1.msra.mxu0 0.0
      %7808 = vmatprep.subr.mxu0 0.0
      %7809 = vmatpush1.msra.mxu0 0.0
      %7810 = vmatprep.subr.mxu0 0.0
      %7811 = vmatpush1.msra.mxu0 0.0
      %7812 = vmatprep.subr.mxu0 0.0
      %7813 = vmatpush1.msra.mxu0 0.0
      %7814 = vmatprep.subr.mxu0 0.0
      %7815 = vmatpush1.msra.mxu0 0.0
      %7816 = vmatprep.subr.mxu0 0.0
      %7817 = vmatpush1.msra.mxu0 0.0
      %7818 = vmatprep.subr.mxu0 0.0
      %7819 = vmatpush1.msra.mxu0 0.0
      %7820 = vmatprep.subr.mxu0 0.0
      %7821 = vmatpush1.msra.mxu0 0.0
      %7822 = vmatprep.mubr.f32.mxu0 0.0
      %v7823 = vand.u32 %v7630, 4294901760
      %7824 = vmatmul.mubr.f32.gmra.mrb[0].mxu0 %v7823
      %v7825 = vpop.f32.mrb[0].mxu0
      %v7826 = vadd.f32 %v7715, %v7825
      %v7827 = vpop.f32.mrb[0].mxu0
      %7828 = vmatprep.mubr.f32.mxu0 0.0
      %v7829 = vand.u32 %v7633, 4294901760
      %7830 = vmatmul.mubr.f32.gmra.mrb[0].mxu0 %v7829
      %v7831 = vpop.f32.mrb[0].mxu0
      %v7832 = vadd.f32 %v7725, %v7831
      %v7833 = vpop.f32.mrb[0].mxu0
      %7834 = vmatprep.mubr.f32.mxu0 0.0
      %v7835 = vand.u32 %v7636, 4294901760
      %7836 = vmatmul.mubr.f32.gmra.mrb[0].mxu0 %v7835
      %v7837 = vpop.f32.mrb[0].mxu0
      %v7838 = vadd.f32 %v7735, %v7837
      %v7839 = vpop.f32.mrb[0].mxu0
      %7840 = vmatprep.mubr.f32.mxu0 0.0
      %v7841 = vand.u32 %v7639, 4294901760
      %7842 = vmatmul.mubr.f32.gmra.mrb[0].mxu0 %v7841
      %v7843 = vpop.f32.mrb[0].mxu0
      %v7844 = vadd.f32 %v7745, %v7843
      %v7845 = vpop.f32.mrb[0].mxu0
      %7846 = vdwg.mxu0
      %7847 = vmatprep.subr.mxu0 0.0
      %v7848 = vand.u32 %v3377, 4294901760
      %v7849 = vsub.f32 %v3377, %v7848
      %7850 = vmatpush1.msra.mxu0 %v7849
      %7851 = vmatprep.subr.mxu0 0.0
      %v7852 = vand.u32 %v3378, 4294901760
      %v7853 = vsub.f32 %v3378, %v7852
      %7854 = vmatpush1.msra.mxu0 %v7853
      %7855 = vmatprep.subr.mxu0 0.0
      %7856 = vmatpush1.msra.mxu0 0.0
      %7857 = vmatprep.subr.mxu0 0.0
      %7858 = vmatpush1.msra.mxu0 0.0
      %7859 = vmatprep.subr.mxu0 0.0
      %7860 = vmatpush1.msra.mxu0 0.0
      %7861 = vmatprep.subr.mxu0 0.0
      %7862 = vmatpush1.msra.mxu0 0.0
      %7863 = vmatprep.subr.mxu0 0.0
      %7864 = vmatpush1.msra.mxu0 0.0
      %7865 = vmatprep.subr.mxu0 0.0
      %7866 = vmatpush1.msra.mxu0 0.0
      %7867 = vmatprep.subr.mxu0 0.0
      %7868 = vmatpush1.msra.mxu0 0.0
      %7869 = vmatprep.subr.mxu0 0.0
      %7870 = vmatpush1.msra.mxu0 0.0
      %7871 = vmatprep.subr.mxu0 0.0
      %7872 = vmatpush1.msra.mxu0 0.0
      %7873 = vmatprep.subr.mxu0 0.0
      %7874 = vmatpush1.msra.mxu0 0.0
      %7875 = vmatprep.subr.mxu0 0.0
      %7876 = vmatpush1.msra.mxu0 0.0
      %7877 = vmatprep.subr.mxu0 0.0
      %7878 = vmatpush1.msra.mxu0 0.0
      %7879 = vmatprep.subr.mxu0 0.0
      %7880 = vmatpush1.msra.mxu0 0.0
      %7881 = vmatprep.subr.mxu0 0.0
      %7882 = vmatpush1.msra.mxu0 0.0
      %7883 = vmatprep.subr.mxu0 0.0
      %7884 = vmatpush1.msra.mxu0 0.0
      %7885 = vmatprep.subr.mxu0 0.0
      %7886 = vmatpush1.msra.mxu0 0.0
      %7887 = vmatprep.subr.mxu0 0.0
      %7888 = vmatpush1.msra.mxu0 0.0
      %7889 = vmatprep.subr.mxu0 0.0
      %7890 = vmatpush1.msra.mxu0 0.0
      %7891 = vmatprep.subr.mxu0 0.0
      %7892 = vmatpush1.msra.mxu0 0.0
      %7893 = vmatprep.subr.mxu0 0.0
      %7894 = vmatpush1.msra.mxu0 0.0
      %7895 = vmatprep.subr.mxu0 0.0
      %7896 = vmatpush1.msra.mxu0 0.0
      %7897 = vmatprep.subr.mxu0 0.0
      %7898 = vmatpush1.msra.mxu0 0.0
      %7899 = vmatprep.subr.mxu0 0.0
      %7900 = vmatpush1.msra.mxu0 0.0
      %7901 = vmatprep.subr.mxu0 0.0
      %7902 = vmatpush1.msra.mxu0 0.0
      %7903 = vmatprep.subr.mxu0 0.0
      %7904 = vmatpush1.msra.mxu0 0.0
      %7905 = vmatprep.subr.mxu0 0.0
      %7906 = vmatpush1.msra.mxu0 0.0
      %7907 = vmatprep.subr.mxu0 0.0
      %7908 = vmatpush1.msra.mxu0 0.0
      %7909 = vmatprep.subr.mxu0 0.0
      %7910 = vmatpush1.msra.mxu0 0.0
      %7911 = vmatprep.subr.mxu0 0.0
      %7912 = vmatpush1.msra.mxu0 0.0
      %7913 = vmatprep.subr.mxu0 0.0
      %7914 = vmatpush1.msra.mxu0 0.0
      %7915 = vmatprep.mubr.f32.mxu0 0.0
      %v7916 = vand.u32 %v7630, 4294901760
      %v7917 = vsub.f32 %v7630, %v7916
      %7918 = vmatmul.mubr.f32.gmra.mrb[0].mxu0 %v7917
      %v7919 = vpop.f32.mrb[0].mxu0
      %v7920 = vadd.f32 %v7826, %v7919
      %v7921 = vpop.f32.mrb[0].mxu0
      %7922 = vmatprep.mubr.f32.mxu0 0.0
      %v7923 = vand.u32 %v7633, 4294901760
      %v7924 = vsub.f32 %v7633, %v7923
      %7925 = vmatmul.mubr.f32.gmra.mrb[0].mxu0 %v7924
      %v7926 = vpop.f32.mrb[0].mxu0
      %v7927 = vadd.f32 %v7832, %v7926
      %v7928 = vpop.f32.mrb[0].mxu0
      %7929 = vmatprep.mubr.f32.mxu0 0.0
      %v7930 = vand.u32 %v7636, 4294901760
      %v7931 = vsub.f32 %v7636, %v7930
      %7932 = vmatmul.mubr.f32.gmra.mrb[0].mxu0 %v7931
      %v7933 = vpop.f32.mrb[0].mxu0
      %v7934 = vadd.f32 %v7838, %v7933
      %v7935 = vpop.f32.mrb[0].mxu0
      %7936 = vmatprep.mubr.f32.mxu0 0.0
      %v7937 = vand.u32 %v7639, 4294901760
      %v7938 = vsub.f32 %v7639, %v7937
      %7939 = vmatmul.mubr.f32.gmra.mrb[0].mxu0 %v7938
      %v7940 = vpop.f32.mrb[0].mxu0
      %v7941 = vadd.f32 %v7844, %v7940
      %v7942 = vpop.f32.mrb[0].mxu0
      %7943 = vdwg.mxu0
      %7944 = vmatprep.subr.mxu0 0.0
      %v7945 = vand.u32 %v3377, 4294901760
      %7946 = vmatpush1.msra.mxu0 %v7945
      %7947 = vmatprep.subr.mxu0 0.0
      %v7948 = vand.u32 %v3378, 4294901760
      %7949 = vmatpush1.msra.mxu0 %v7948
      %7950 = vmatprep.subr.mxu0 0.0
      %7951 = vmatpush1.msra.mxu0 0.0
      %7952 = vmatprep.subr.mxu0 0.0
      %7953 = vmatpush1.msra.mxu0 0.0
      %7954 = vmatprep.subr.mxu0 0.0
      %7955 = vmatpush1.msra.mxu0 0.0
      %7956 = vmatprep.subr.mxu0 0.0
      %7957 = vmatpush1.msra.mxu0 0.0
      %7958 = vmatprep.subr.mxu0 0.0
      %7959 = vmatpush1.msra.mxu0 0.0
      %7960 = vmatprep.subr.mxu0 0.0
      %7961 = vmatpush1.msra.mxu0 0.0
      %7962 = vmatprep.subr.mxu0 0.0
      %7963 = vmatpush1.msra.mxu0 0.0
      %7964 = vmatprep.subr.mxu0 0.0
      %7965 = vmatpush1.msra.mxu0 0.0
      %7966 = vmatprep.subr.mxu0 0.0
      %7967 = vmatpush1.msra.mxu0 0.0
      %7968 = vmatprep.subr.mxu0 0.0
      %7969 = vmatpush1.msra.mxu0 0.0
      %7970 = vmatprep.subr.mxu0 0.0
      %7971 = vmatpush1.msra.mxu0 0.0
      %7972 = vmatprep.subr.mxu0 0.0
      %7973 = vmatpush1.msra.mxu0 0.0
      %7974 = vmatprep.subr.mxu0 0.0
      %7975 = vmatpush1.msra.mxu0 0.0
      %7976 = vmatprep.subr.mxu0 0.0
      %7977 = vmatpush1.msra.mxu0 0.0
      %7978 = vmatprep.subr.mxu0 0.0
      %7979 = vmatpush1.msra.mxu0 0.0
      %7980 = vmatprep.subr.mxu0 0.0
      %7981 = vmatpush1.msra.mxu0 0.0
      %7982 = vmatprep.subr.mxu0 0.0
      %7983 = vmatpush1.msra.mxu0 0.0
      %7984 = vmatprep.subr.mxu0 0.0
      %7985 = vmatpush1.msra.mxu0 0.0
      %7986 = vmatprep.subr.mxu0 0.0
      %7987 = vmatpush1.msra.mxu0 0.0
      %7988 = vmatprep.subr.mxu0 0.0
      %7989 = vmatpush1.msra.mxu0 0.0
      %7990 = vmatprep.subr.mxu0 0.0
      %7991 = vmatpush1.msra.mxu0 0.0
      %7992 = vmatprep.subr.mxu0 0.0
      %7993 = vmatpush1.msra.mxu0 0.0
      %7994 = vmatprep.subr.mxu0 0.0
      %7995 = vmatpush1.msra.mxu0 0.0
      %7996 = vmatprep.subr.mxu0 0.0
      %7997 = vmatpush1.msra.mxu0 0.0
      %7998 = vmatprep.subr.mxu0 0.0
      %7999 = vmatpush1.msra.mxu0 0.0
      %8000 = vmatprep.subr.mxu0 0.0
      %8001 = vmatpush1.msra.mxu0 0.0
      %8002 = vmatprep.subr.mxu0 0.0
      %8003 = vmatpush1.msra.mxu0 0.0
      %8004 = vmatprep.subr.mxu0 0.0
      %8005 = vmatpush1.msra.mxu0 0.0
      %8006 = vmatprep.subr.mxu0 0.0
      %8007 = vmatpush1.msra.mxu0 0.0
      %8008 = vmatprep.subr.mxu0 0.0
      %8009 = vmatpush1.msra.mxu0 0.0
      %8010 = vmatprep.mubr.f32.mxu0 0.0
      %v8011 = vand.u32 %v7630, 4294901760
      %v8012 = vsub.f32 %v7630, %v8011
      %v8013 = vand.u32 %v8012, 4294901760
      %8014 = vmatmul.mubr.f32.gmra.mrb[0].mxu0 %v8013
      %v8015 = vpop.f32.mrb[0].mxu0
      %v8016 = vadd.f32 %v7920, %v8015
      %v8017 = vpop.f32.mrb[0].mxu0
      %8018 = vmatprep.mubr.f32.mxu0 0.0
      %v8019 = vand.u32 %v7633, 4294901760
      %v8020 = vsub.f32 %v7633, %v8019
      %v8021 = vand.u32 %v8020, 4294901760
      %8022 = vmatmul.mubr.f32.gmra.mrb[0].mxu0 %v8021
      %v8023 = vpop.f32.mrb[0].mxu0
      %v8024 = vadd.f32 %v7927, %v8023
      %v8025 = vpop.f32.mrb[0].mxu0
      %8026 = vmatprep.mubr.f32.mxu0 0.0
      %v8027 = vand.u32 %v7636, 4294901760
      %v8028 = vsub.f32 %v7636, %v8027
      %v8029 = vand.u32 %v8028, 4294901760
      %8030 = vmatmul.mubr.f32.gmra.mrb[0].mxu0 %v8029
      %v8031 = vpop.f32.mrb[0].mxu0
      %v8032 = vadd.f32 %v7934, %v8031
      %v8033 = vpop.f32.mrb[0].mxu0
      %8034 = vmatprep.mubr.f32.mxu0 0.0
      %v8035 = vand.u32 %v7639, 4294901760
      %v8036 = vsub.f32 %v7639, %v8035
      %v8037 = vand.u32 %v8036, 4294901760
      %8038 = vmatmul.mubr.f32.gmra.mrb[0].mxu0 %v8037
      %v8039 = vpop.f32.mrb[0].mxu0
      %v8040 = vadd.f32 %v7941, %v8039
      %v8041 = vpop.f32.mrb[0].mxu0
      %8042 = vdwg.mxu0
      %8043 = vmatprep.subr.mxu0 0.0
      %v8044 = vand.u32 %v3377, 4294901760
      %v8045 = vsub.f32 %v3377, %v8044
      %v8046 = vand.u32 %v8045, 4294901760
      %8047 = vmatpush1.msra.mxu0 %v8046
      %8048 = vmatprep.subr.mxu0 0.0
      %v8049 = vand.u32 %v3378, 4294901760
      %v8050 = vsub.f32 %v3378, %v8049
      %v8051 = vand.u32 %v8050, 4294901760
      %8052 = vmatpush1.msra.mxu0 %v8051
      %8053 = vmatprep.subr.mxu0 0.0
      %8054 = vmatpush1.msra.mxu0 0.0
      %8055 = vmatprep.subr.mxu0 0.0
      %8056 = vmatpush1.msra.mxu0 0.0
      %8057 = vmatprep.subr.mxu0 0.0
      %8058 = vmatpush1.msra.mxu0 0.0
      %8059 = vmatprep.subr.mxu0 0.0
      %8060 = vmatpush1.msra.mxu0 0.0
      %8061 = vmatprep.subr.mxu0 0.0
      %8062 = vmatpush1.msra.mxu0 0.0
      %8063 = vmatprep.subr.mxu0 0.0
      %8064 = vmatpush1.msra.mxu0 0.0
      %8065 = vmatprep.subr.mxu0 0.0
      %8066 = vmatpush1.msra.mxu0 0.0
      %8067 = vmatprep.subr.mxu0 0.0
      %8068 = vmatpush1.msra.mxu0 0.0
      %8069 = vmatprep.subr.mxu0 0.0
      %8070 = vmatpush1.msra.mxu0 0.0
      %8071 = vmatprep.subr.mxu0 0.0
      %8072 = vmatpush1.msra.mxu0 0.0
      %8073 = vmatprep.subr.mxu0 0.0
      %8074 = vmatpush1.msra.mxu0 0.0
      %8075 = vmatprep.subr.mxu0 0.0
      %8076 = vmatpush1.msra.mxu0 0.0
      %8077 = vmatprep.subr.mxu0 0.0
      %8078 = vmatpush1.msra.mxu0 0.0
      %8079 = vmatprep.subr.mxu0 0.0
      %8080 = vmatpush1.msra.mxu0 0.0
      %8081 = vmatprep.subr.mxu0 0.0
      %8082 = vmatpush1.msra.mxu0 0.0
      %8083 = vmatprep.subr.mxu0 0.0
      %8084 = vmatpush1.msra.mxu0 0.0
      %8085 = vmatprep.subr.mxu0 0.0
      %8086 = vmatpush1.msra.mxu0 0.0
      %8087 = vmatprep.subr.mxu0 0.0
      %8088 = vmatpush1.msra.mxu0 0.0
      %8089 = vmatprep.subr.mxu0 0.0
      %8090 = vmatpush1.msra.mxu0 0.0
      %8091 = vmatprep.subr.mxu0 0.0
      %8092 = vmatpush1.msra.mxu0 0.0
      %8093 = vmatprep.subr.mxu0 0.0
      %8094 = vmatpush1.msra.mxu0 0.0
      %8095 = vmatprep.subr.mxu0 0.0
      %8096 = vmatpush1.msra.mxu0 0.0
      %8097 = vmatprep.subr.mxu0 0.0
      %8098 = vmatpush1.msra.mxu0 0.0
      %8099 = vmatprep.subr.mxu0 0.0
      %8100 = vmatpush1.msra.mxu0 0.0
      %8101 = vmatprep.subr.mxu0 0.0
      %8102 = vmatpush1.msra.mxu0 0.0
      %8103 = vmatprep.subr.mxu0 0.0
      %8104 = vmatpush1.msra.mxu0 0.0
      %8105 = vmatprep.subr.mxu0 0.0
      %8106 = vmatpush1.msra.mxu0 0.0
      %8107 = vmatprep.subr.mxu0 0.0
      %8108 = vmatpush1.msra.mxu0 0.0
      %8109 = vmatprep.subr.mxu0 0.0
      %8110 = vmatpush1.msra.mxu0 0.0
      %8111 = vmatprep.subr.mxu0 0.0
      %8112 = vmatpush1.msra.mxu0 0.0
      %8113 = vmatprep.mubr.f32.mxu0 0.0
      %v8114 = vand.u32 %v7630, 4294901760
      %8115 = vmatmul.mubr.f32.gmra.mrb[0].mxu0 %v8114
      %v8116 = vpop.f32.mrb[0].mxu0
      %v8117 = vadd.f32 %v8016, %v8116
      %v8118 = vpop.f32.mrb[0].mxu0
      %8119 = vmatprep.mubr.f32.mxu0 0.0
      %v8120 = vand.u32 %v7633, 4294901760
      %8121 = vmatmul.mubr.f32.gmra.mrb[0].mxu0 %v8120
      %v8122 = vpop.f32.mrb[0].mxu0
      %v8123 = vadd.f32 %v8024, %v8122
      %v8124 = vpop.f32.mrb[0].mxu0
      %8125 = vmatprep.mubr.f32.mxu0 0.0
      %v8126 = vand.u32 %v7636, 4294901760
      %8127 = vmatmul.mubr.f32.gmra.mrb[0].mxu0 %v8126
      %v8128 = vpop.f32.mrb[0].mxu0
      %v8129 = vadd.f32 %v8032, %v8128
      %v8130 = vpop.f32.mrb[0].mxu0
      %8131 = vmatprep.mubr.f32.mxu0 0.0
      %v8132 = vand.u32 %v7639, 4294901760
      %8133 = vmatmul.mubr.f32.gmra.mrb[0].mxu0 %v8132
      %v8134 = vpop.f32.mrb[0].mxu0
      %v8135 = vadd.f32 %v8040, %v8134
      %v8136 = vpop.f32.mrb[0].mxu0
      %8137 = vdwg.mxu0
      %8138 = vmatprep.subr.mxu0 0.0
      %v8139 = vand.u32 %v3377, 4294901760
      %8140 = vmatpush1.msra.mxu0 %v8139
      %8141 = vmatprep.subr.mxu0 0.0
      %v8142 = vand.u32 %v3378, 4294901760
      %8143 = vmatpush1.msra.mxu0 %v8142
      %8144 = vmatprep.subr.mxu0 0.0
      %8145 = vmatpush1.msra.mxu0 0.0
      %8146 = vmatprep.subr.mxu0 0.0
      %8147 = vmatpush1.msra.mxu0 0.0
      %8148 = vmatprep.subr.mxu0 0.0
      %8149 = vmatpush1.msra.mxu0 0.0
      %8150 = vmatprep.subr.mxu0 0.0
      %8151 = vmatpush1.msra.mxu0 0.0
      %8152 = vmatprep.subr.mxu0 0.0
      %8153 = vmatpush1.msra.mxu0 0.0
      %8154 = vmatprep.subr.mxu0 0.0
      %8155 = vmatpush1.msra.mxu0 0.0
      %8156 = vmatprep.subr.mxu0 0.0
      %8157 = vmatpush1.msra.mxu0 0.0
      %8158 = vmatprep.subr.mxu0 0.0
      %8159 = vmatpush1.msra.mxu0 0.0
      %8160 = vmatprep.subr.mxu0 0.0
      %8161 = vmatpush1.msra.mxu0 0.0
      %8162 = vmatprep.subr.mxu0 0.0
      %8163 = vmatpush1.msra.mxu0 0.0
      %8164 = vmatprep.subr.mxu0 0.0
      %8165 = vmatpush1.msra.mxu0 0.0
      %8166 = vmatprep.subr.mxu0 0.0
      %8167 = vmatpush1.msra.mxu0 0.0
      %8168 = vmatprep.subr.mxu0 0.0
      %8169 = vmatpush1.msra.mxu0 0.0
      %8170 = vmatprep.subr.mxu0 0.0
      %8171 = vmatpush1.msra.mxu0 0.0
      %8172 = vmatprep.subr.mxu0 0.0
      %8173 = vmatpush1.msra.mxu0 0.0
      %8174 = vmatprep.subr.mxu0 0.0
      %8175 = vmatpush1.msra.mxu0 0.0
      %8176 = vmatprep.subr.mxu0 0.0
      %8177 = vmatpush1.msra.mxu0 0.0
      %8178 = vmatprep.subr.mxu0 0.0
      %8179 = vmatpush1.msra.mxu0 0.0
      %8180 = vmatprep.subr.mxu0 0.0
      %8181 = vmatpush1.msra.mxu0 0.0
      %8182 = vmatprep.subr.mxu0 0.0
      %8183 = vmatpush1.msra.mxu0 0.0
      %8184 = vmatprep.subr.mxu0 0.0
      %8185 = vmatpush1.msra.mxu0 0.0
      %8186 = vmatprep.subr.mxu0 0.0
      %8187 = vmatpush1.msra.mxu0 0.0
      %8188 = vmatprep.subr.mxu0 0.0
      %8189 = vmatpush1.msra.mxu0 0.0
      %8190 = vmatprep.subr.mxu0 0.0
      %8191 = vmatpush1.msra.mxu0 0.0
      %8192 = vmatprep.subr.mxu0 0.0
      %8193 = vmatpush1.msra.mxu0 0.0
      %8194 = vmatprep.subr.mxu0 0.0
      %8195 = vmatpush1.msra.mxu0 0.0
      %8196 = vmatprep.subr.mxu0 0.0
      %8197 = vmatpush1.msra.mxu0 0.0
      %8198 = vmatprep.subr.mxu0 0.0
      %8199 = vmatpush1.msra.mxu0 0.0
      %8200 = vmatprep.subr.mxu0 0.0
      %8201 = vmatpush1.msra.mxu0 0.0
      %8202 = vmatprep.subr.mxu0 0.0
      %8203 = vmatpush1.msra.mxu0 0.0
      %8204 = vmatprep.mubr.f32.mxu0 0.0
      %v8205 = vand.u32 %v7630, 4294901760
      %8206 = vmatmul.mubr.f32.gmra.mrb[0].mxu0 %v8205
      %v8207 = vpop.f32.mrb[0].mxu0
      %v8208 = vadd.f32 %v8117, %v8207
      %v8209 = vpop.f32.mrb[0].mxu0
      %8210 = vmatprep.mubr.f32.mxu0 0.0
      %v8211 = vand.u32 %v7633, 4294901760
      %8212 = vmatmul.mubr.f32.gmra.mrb[0].mxu0 %v8211
      %v8213 = vpop.f32.mrb[0].mxu0
      %v8214 = vadd.f32 %v8123, %v8213
      %v8215 = vpop.f32.mrb[0].mxu0
      %8216 = vmatprep.mubr.f32.mxu0 0.0
      %v8217 = vand.u32 %v7636, 4294901760
      %8218 = vmatmul.mubr.f32.gmra.mrb[0].mxu0 %v8217
      %v8219 = vpop.f32.mrb[0].mxu0
      %v8220 = vadd.f32 %v8129, %v8219
      %v8221 = vpop.f32.mrb[0].mxu0
      %8222 = vmatprep.mubr.f32.mxu0 0.0
      %v8223 = vand.u32 %v7639, 4294901760
      %8224 = vmatmul.mubr.f32.gmra.mrb[0].mxu0 %v8223
      %v8225 = vpop.f32.mrb[0].mxu0
      %v8226 = vadd.f32 %v8135, %v8225
      %v8227 = vpop.f32.mrb[0].mxu0
      %8228 = vdwg.mxu0
      %v8229 = vadd.f32 %v6992, %v8208
      %v8230 = vadd.f32 %v6993, %v8214
      %v8231 = vadd.f32 %v6994, %v8220
      %v8232 = vadd.f32 %v6995, %v8226
      %s8233 = scalar_lea.vmem %s6, 32
      %v8234 = vld [vmem:[%s8233] sm:$0xff]
      %v8235 = vld [vmem:[%s8233 + $0x8] sm:$0xff]
      %v8236 = vld [vmem:[%s8233 + $0x10] sm:$0xff]
      %v8237 = vld [vmem:[%s8233 + $0x18] sm:$0xff]
      %v8239 = vsel %vm6371, %v8234, 0
      %v8242 = vsel %vm6371, %v8235, 0
      %v8245 = vsel %vm6371, %v8236, 0
      %v8248 = vsel %vm6371, %v8237, 0
      %8250 = vmatprep.subr.mxu0 0.0
      %v8251 = vand.u32 %v3377, 4294901760
      %8252 = vmatpush1.msra.mxu0 %v8251
      %8253 = vmatprep.subr.mxu0 0.0
      %v8254 = vand.u32 %v3378, 4294901760
      %8255 = vmatpush1.msra.mxu0 %v8254
      %8256 = vmatprep.subr.mxu0 0.0
      %8257 = vmatpush1.msra.mxu0 0.0
      %8258 = vmatprep.subr.mxu0 0.0
      %8259 = vmatpush1.msra.mxu0 0.0
      %8260 = vmatprep.subr.mxu0 0.0
      %8261 = vmatpush1.msra.mxu0 0.0
      %8262 = vmatprep.subr.mxu0 0.0
      %8263 = vmatpush1.msra.mxu0 0.0
      %8264 = vmatprep.subr.mxu0 0.0
      %8265 = vmatpush1.msra.mxu0 0.0
      %8266 = vmatprep.subr.mxu0 0.0
      %8267 = vmatpush1.msra.mxu0 0.0
      %8268 = vmatprep.subr.mxu0 0.0
      %8269 = vmatpush1.msra.mxu0 0.0
      %8270 = vmatprep.subr.mxu0 0.0
      %8271 = vmatpush1.msra.mxu0 0.0
      %8272 = vmatprep.subr.mxu0 0.0
      %8273 = vmatpush1.msra.mxu0 0.0
      %8274 = vmatprep.subr.mxu0 0.0
      %8275 = vmatpush1.msra.mxu0 0.0
      %8276 = vmatprep.subr.mxu0 0.0
      %8277 = vmatpush1.msra.mxu0 0.0
      %8278 = vmatprep.subr.mxu0 0.0
      %8279 = vmatpush1.msra.mxu0 0.0
      %8280 = vmatprep.subr.mxu0 0.0
      %8281 = vmatpush1.msra.mxu0 0.0
      %8282 = vmatprep.subr.mxu0 0.0
      %8283 = vmatpush1.msra.mxu0 0.0
      %8284 = vmatprep.subr.mxu0 0.0
      %8285 = vmatpush1.msra.mxu0 0.0
      %8286 = vmatprep.subr.mxu0 0.0
      %8287 = vmatpush1.msra.mxu0 0.0
      %8288 = vmatprep.subr.mxu0 0.0
      %8289 = vmatpush1.msra.mxu0 0.0
      %8290 = vmatprep.subr.mxu0 0.0
      %8291 = vmatpush1.msra.mxu0 0.0
      %8292 = vmatprep.subr.mxu0 0.0
      %8293 = vmatpush1.msra.mxu0 0.0
      %8294 = vmatprep.subr.mxu0 0.0
      %8295 = vmatpush1.msra.mxu0 0.0
      %8296 = vmatprep.subr.mxu0 0.0
      %8297 = vmatpush1.msra.mxu0 0.0
      %8298 = vmatprep.subr.mxu0 0.0
      %8299 = vmatpush1.msra.mxu0 0.0
      %8300 = vmatprep.subr.mxu0 0.0
      %8301 = vmatpush1.msra.mxu0 0.0
      %8302 = vmatprep.subr.mxu0 0.0
      %8303 = vmatpush1.msra.mxu0 0.0
      %8304 = vmatprep.subr.mxu0 0.0
      %8305 = vmatpush1.msra.mxu0 0.0
      %8306 = vmatprep.subr.mxu0 0.0
      %8307 = vmatpush1.msra.mxu0 0.0
      %8308 = vmatprep.subr.mxu0 0.0
      %8309 = vmatpush1.msra.mxu0 0.0
      %8310 = vmatprep.subr.mxu0 0.0
      %8311 = vmatpush1.msra.mxu0 0.0
      %8312 = vmatprep.subr.mxu0 0.0
      %8313 = vmatpush1.msra.mxu0 0.0
      %8314 = vmatprep.subr.mxu0 0.0
      %8315 = vmatpush1.msra.mxu0 0.0
      %8316 = vmatprep.mubr.f32.mxu0 0.0
      %v8317 = vand.u32 %v8239, 4294901760
      %v8318 = vsub.f32 %v8239, %v8317
      %v8319 = vand.u32 %v8318, 4294901760
      %v8320 = vsub.f32 %v8318, %v8319
      %v8321 = vand.u32 %v8320, 4294901760
      %8322 = vmatmul.mubr.f32.gmra.mrb[0].mxu0 %v8321
      %v8323 = vpop.f32.mrb[0].mxu0
      %v8324 = vadd.f32 0.0, %v8323
      %v8325 = vpop.f32.mrb[0].mxu0
      %8326 = vmatprep.mubr.f32.mxu0 0.0
      %v8327 = vand.u32 %v8242, 4294901760
      %v8328 = vsub.f32 %v8242, %v8327
      %v8329 = vand.u32 %v8328, 4294901760
      %v8330 = vsub.f32 %v8328, %v8329
      %v8331 = vand.u32 %v8330, 4294901760
      %8332 = vmatmul.mubr.f32.gmra.mrb[0].mxu0 %v8331
      %v8333 = vpop.f32.mrb[0].mxu0
      %v8334 = vadd.f32 0.0, %v8333
      %v8335 = vpop.f32.mrb[0].mxu0
      %8336 = vmatprep.mubr.f32.mxu0 0.0
      %v8337 = vand.u32 %v8245, 4294901760
      %v8338 = vsub.f32 %v8245, %v8337
      %v8339 = vand.u32 %v8338, 4294901760
      %v8340 = vsub.f32 %v8338, %v8339
      %v8341 = vand.u32 %v8340, 4294901760
      %8342 = vmatmul.mubr.f32.gmra.mrb[0].mxu0 %v8341
      %v8343 = vpop.f32.mrb[0].mxu0
      %v8344 = vadd.f32 0.0, %v8343
      %v8345 = vpop.f32.mrb[0].mxu0
      %8346 = vmatprep.mubr.f32.mxu0 0.0
      %v8347 = vand.u32 %v8248, 4294901760
      %v8348 = vsub.f32 %v8248, %v8347
      %v8349 = vand.u32 %v8348, 4294901760
      %v8350 = vsub.f32 %v8348, %v8349
      %v8351 = vand.u32 %v8350, 4294901760
      %8352 = vmatmul.mubr.f32.gmra.mrb[0].mxu0 %v8351
      %v8353 = vpop.f32.mrb[0].mxu0
      %v8354 = vadd.f32 0.0, %v8353
      %v8355 = vpop.f32.mrb[0].mxu0
      %8356 = vdwg.mxu0
      %8357 = vmatprep.subr.mxu0 0.0
      %v8358 = vand.u32 %v3377, 4294901760
      %v8359 = vsub.f32 %v3377, %v8358
      %v8360 = vand.u32 %v8359, 4294901760
      %v8361 = vsub.f32 %v8359, %v8360
      %v8362 = vand.u32 %v8361, 4294901760
      %8363 = vmatpush1.msra.mxu0 %v8362
      %8364 = vmatprep.subr.mxu0 0.0
      %v8365 = vand.u32 %v3378, 4294901760
      %v8366 = vsub.f32 %v3378, %v8365
      %v8367 = vand.u32 %v8366, 4294901760
      %v8368 = vsub.f32 %v8366, %v8367
      %v8369 = vand.u32 %v8368, 4294901760
      %8370 = vmatpush1.msra.mxu0 %v8369
      %8371 = vmatprep.subr.mxu0 0.0
      %8372 = vmatpush1.msra.mxu0 0.0
      %8373 = vmatprep.subr.mxu0 0.0
      %8374 = vmatpush1.msra.mxu0 0.0
      %8375 = vmatprep.subr.mxu0 0.0
      %8376 = vmatpush1.msra.mxu0 0.0
      %8377 = vmatprep.subr.mxu0 0.0
      %8378 = vmatpush1.msra.mxu0 0.0
      %8379 = vmatprep.subr.mxu0 0.0
      %8380 = vmatpush1.msra.mxu0 0.0
      %8381 = vmatprep.subr.mxu0 0.0
      %8382 = vmatpush1.msra.mxu0 0.0
      %8383 = vmatprep.subr.mxu0 0.0
      %8384 = vmatpush1.msra.mxu0 0.0
      %8385 = vmatprep.subr.mxu0 0.0
      %8386 = vmatpush1.msra.mxu0 0.0
      %8387 = vmatprep.subr.mxu0 0.0
      %8388 = vmatpush1.msra.mxu0 0.0
      %8389 = vmatprep.subr.mxu0 0.0
      %8390 = vmatpush1.msra.mxu0 0.0
      %8391 = vmatprep.subr.mxu0 0.0
      %8392 = vmatpush1.msra.mxu0 0.0
      %8393 = vmatprep.subr.mxu0 0.0
      %8394 = vmatpush1.msra.mxu0 0.0
      %8395 = vmatprep.subr.mxu0 0.0
      %8396 = vmatpush1.msra.mxu0 0.0
      %8397 = vmatprep.subr.mxu0 0.0
      %8398 = vmatpush1.msra.mxu0 0.0
      %8399 = vmatprep.subr.mxu0 0.0
      %8400 = vmatpush1.msra.mxu0 0.0
      %8401 = vmatprep.subr.mxu0 0.0
      %8402 = vmatpush1.msra.mxu0 0.0
      %8403 = vmatprep.subr.mxu0 0.0
      %8404 = vmatpush1.msra.mxu0 0.0
      %8405 = vmatprep.subr.mxu0 0.0
      %8406 = vmatpush1.msra.mxu0 0.0
      %8407 = vmatprep.subr.mxu0 0.0
      %8408 = vmatpush1.msra.mxu0 0.0
      %8409 = vmatprep.subr.mxu0 0.0
      %8410 = vmatpush1.msra.mxu0 0.0
      %8411 = vmatprep.subr.mxu0 0.0
      %8412 = vmatpush1.msra.mxu0 0.0
      %8413 = vmatprep.subr.mxu0 0.0
      %8414 = vmatpush1.msra.mxu0 0.0
      %8415 = vmatprep.subr.mxu0 0.0
      %8416 = vmatpush1.msra.mxu0 0.0
      %8417 = vmatprep.subr.mxu0 0.0
      %8418 = vmatpush1.msra.mxu0 0.0
      %8419 = vmatprep.subr.mxu0 0.0
      %8420 = vmatpush1.msra.mxu0 0.0
      %8421 = vmatprep.subr.mxu0 0.0
      %8422 = vmatpush1.msra.mxu0 0.0
      %8423 = vmatprep.subr.mxu0 0.0
      %8424 = vmatpush1.msra.mxu0 0.0
      %8425 = vmatprep.subr.mxu0 0.0
      %8426 = vmatpush1.msra.mxu0 0.0
      %8427 = vmatprep.subr.mxu0 0.0
      %8428 = vmatpush1.msra.mxu0 0.0
      %8429 = vmatprep.subr.mxu0 0.0
      %8430 = vmatpush1.msra.mxu0 0.0
      %8431 = vmatprep.mubr.f32.mxu0 0.0
      %v8432 = vand.u32 %v8239, 4294901760
      %8433 = vmatmul.mubr.f32.gmra.mrb[0].mxu0 %v8432
      %v8434 = vpop.f32.mrb[0].mxu0
      %v8435 = vadd.f32 %v8324, %v8434
      %v8436 = vpop.f32.mrb[0].mxu0
      %8437 = vmatprep.mubr.f32.mxu0 0.0
      %v8438 = vand.u32 %v8242, 4294901760
      %8439 = vmatmul.mubr.f32.gmra.mrb[0].mxu0 %v8438
      %v8440 = vpop.f32.mrb[0].mxu0
      %v8441 = vadd.f32 %v8334, %v8440
      %v8442 = vpop.f32.mrb[0].mxu0
      %8443 = vmatprep.mubr.f32.mxu0 0.0
      %v8444 = vand.u32 %v8245, 4294901760
      %8445 = vmatmul.mubr.f32.gmra.mrb[0].mxu0 %v8444
      %v8446 = vpop.f32.mrb[0].mxu0
      %v8447 = vadd.f32 %v8344, %v8446
      %v8448 = vpop.f32.mrb[0].mxu0
      %8449 = vmatprep.mubr.f32.mxu0 0.0
      %v8450 = vand.u32 %v8248, 4294901760
      %8451 = vmatmul.mubr.f32.gmra.mrb[0].mxu0 %v8450
      %v8452 = vpop.f32.mrb[0].mxu0
      %v8453 = vadd.f32 %v8354, %v8452
      %v8454 = vpop.f32.mrb[0].mxu0
      %8455 = vdwg.mxu0
      %8456 = vmatprep.subr.mxu0 0.0
      %v8457 = vand.u32 %v3377, 4294901760
      %v8458 = vsub.f32 %v3377, %v8457
      %8459 = vmatpush1.msra.mxu0 %v8458
      %8460 = vmatprep.subr.mxu0 0.0
      %v8461 = vand.u32 %v3378, 4294901760
      %v8462 = vsub.f32 %v3378, %v8461
      %8463 = vmatpush1.msra.mxu0 %v8462
      %8464 = vmatprep.subr.mxu0 0.0
      %8465 = vmatpush1.msra.mxu0 0.0
      %8466 = vmatprep.subr.mxu0 0.0
      %8467 = vmatpush1.msra.mxu0 0.0
      %8468 = vmatprep.subr.mxu0 0.0
      %8469 = vmatpush1.msra.mxu0 0.0
      %8470 = vmatprep.subr.mxu0 0.0
      %8471 = vmatpush1.msra.mxu0 0.0
      %8472 = vmatprep.subr.mxu0 0.0
      %8473 = vmatpush1.msra.mxu0 0.0
      %8474 = vmatprep.subr.mxu0 0.0
      %8475 = vmatpush1.msra.mxu0 0.0
      %8476 = vmatprep.subr.mxu0 0.0
      %8477 = vmatpush1.msra.mxu0 0.0
      %8478 = vmatprep.subr.mxu0 0.0
      %8479 = vmatpush1.msra.mxu0 0.0
      %8480 = vmatprep.subr.mxu0 0.0
      %8481 = vmatpush1.msra.mxu0 0.0
      %8482 = vmatprep.subr.mxu0 0.0
      %8483 = vmatpush1.msra.mxu0 0.0
      %8484 = vmatprep.subr.mxu0 0.0
      %8485 = vmatpush1.msra.mxu0 0.0
      %8486 = vmatprep.subr.mxu0 0.0
      %8487 = vmatpush1.msra.mxu0 0.0
      %8488 = vmatprep.subr.mxu0 0.0
      %8489 = vmatpush1.msra.mxu0 0.0
      %8490 = vmatprep.subr.mxu0 0.0
      %8491 = vmatpush1.msra.mxu0 0.0
      %8492 = vmatprep.subr.mxu0 0.0
      %8493 = vmatpush1.msra.mxu0 0.0
      %8494 = vmatprep.subr.mxu0 0.0
      %8495 = vmatpush1.msra.mxu0 0.0
      %8496 = vmatprep.subr.mxu0 0.0
      %8497 = vmatpush1.msra.mxu0 0.0
      %8498 = vmatprep.subr.mxu0 0.0
      %8499 = vmatpush1.msra.mxu0 0.0
      %8500 = vmatprep.subr.mxu0 0.0
      %8501 = vmatpush1.msra.mxu0 0.0
      %8502 = vmatprep.subr.mxu0 0.0
      %8503 = vmatpush1.msra.mxu0 0.0
      %8504 = vmatprep.subr.mxu0 0.0
      %8505 = vmatpush1.msra.mxu0 0.0
      %8506 = vmatprep.subr.mxu0 0.0
      %8507 = vmatpush1.msra.mxu0 0.0
      %8508 = vmatprep.subr.mxu0 0.0
      %8509 = vmatpush1.msra.mxu0 0.0
      %8510 = vmatprep.subr.mxu0 0.0
      %8511 = vmatpush1.msra.mxu0 0.0
      %8512 = vmatprep.subr.mxu0 0.0
      %8513 = vmatpush1.msra.mxu0 0.0
      %8514 = vmatprep.subr.mxu0 0.0
      %8515 = vmatpush1.msra.mxu0 0.0
      %8516 = vmatprep.subr.mxu0 0.0
      %8517 = vmatpush1.msra.mxu0 0.0
      %8518 = vmatprep.subr.mxu0 0.0
      %8519 = vmatpush1.msra.mxu0 0.0
      %8520 = vmatprep.subr.mxu0 0.0
      %8521 = vmatpush1.msra.mxu0 0.0
      %8522 = vmatprep.subr.mxu0 0.0
      %8523 = vmatpush1.msra.mxu0 0.0
      %8524 = vmatprep.mubr.f32.mxu0 0.0
      %v8525 = vand.u32 %v8239, 4294901760
      %v8526 = vsub.f32 %v8239, %v8525
      %8527 = vmatmul.mubr.f32.gmra.mrb[0].mxu0 %v8526
      %v8528 = vpop.f32.mrb[0].mxu0
      %v8529 = vadd.f32 %v8435, %v8528
      %v8530 = vpop.f32.mrb[0].mxu0
      %8531 = vmatprep.mubr.f32.mxu0 0.0
      %v8532 = vand.u32 %v8242, 4294901760
      %v8533 = vsub.f32 %v8242, %v8532
      %8534 = vmatmul.mubr.f32.gmra.mrb[0].mxu0 %v8533
      %v8535 = vpop.f32.mrb[0].mxu0
      %v8536 = vadd.f32 %v8441, %v8535
      %v8537 = vpop.f32.mrb[0].mxu0
      %8538 = vmatprep.mubr.f32.mxu0 0.0
      %v8539 = vand.u32 %v8245, 4294901760
      %v8540 = vsub.f32 %v8245, %v8539
      %8541 = vmatmul.mubr.f32.gmra.mrb[0].mxu0 %v8540
      %v8542 = vpop.f32.mrb[0].mxu0
      %v8543 = vadd.f32 %v8447, %v8542
      %v8544 = vpop.f32.mrb[0].mxu0
      %8545 = vmatprep.mubr.f32.mxu0 0.0
      %v8546 = vand.u32 %v8248, 4294901760
      %v8547 = vsub.f32 %v8248, %v8546
      %8548 = vmatmul.mubr.f32.gmra.mrb[0].mxu0 %v8547
      %v8549 = vpop.f32.mrb[0].mxu0
      %v8550 = vadd.f32 %v8453, %v8549
      %v8551 = vpop.f32.mrb[0].mxu0
      %8552 = vdwg.mxu0
      %8553 = vmatprep.subr.mxu0 0.0
      %v8554 = vand.u32 %v3377, 4294901760
      %8555 = vmatpush1.msra.mxu0 %v8554
      %8556 = vmatprep.subr.mxu0 0.0
      %v8557 = vand.u32 %v3378, 4294901760
      %8558 = vmatpush1.msra.mxu0 %v8557
      %8559 = vmatprep.subr.mxu0 0.0
      %8560 = vmatpush1.msra.mxu0 0.0
      %8561 = vmatprep.subr.mxu0 0.0
      %8562 = vmatpush1.msra.mxu0 0.0
      %8563 = vmatprep.subr.mxu0 0.0
      %8564 = vmatpush1.msra.mxu0 0.0
      %8565 = vmatprep.subr.mxu0 0.0
      %8566 = vmatpush1.msra.mxu0 0.0
      %8567 = vmatprep.subr.mxu0 0.0
      %8568 = vmatpush1.msra.mxu0 0.0
      %8569 = vmatprep.subr.mxu0 0.0
      %8570 = vmatpush1.msra.mxu0 0.0
      %8571 = vmatprep.subr.mxu0 0.0
      %8572 = vmatpush1.msra.mxu0 0.0
      %8573 = vmatprep.subr.mxu0 0.0
      %8574 = vmatpush1.msra.mxu0 0.0
      %8575 = vmatprep.subr.mxu0 0.0
      %8576 = vmatpush1.msra.mxu0 0.0
      %8577 = vmatprep.subr.mxu0 0.0
      %8578 = vmatpush1.msra.mxu0 0.0
      %8579 = vmatprep.subr.mxu0 0.0
      %8580 = vmatpush1.msra.mxu0 0.0
      %8581 = vmatprep.subr.mxu0 0.0
      %8582 = vmatpush1.msra.mxu0 0.0
      %8583 = vmatprep.subr.mxu0 0.0
      %8584 = vmatpush1.msra.mxu0 0.0
      %8585 = vmatprep.subr.mxu0 0.0
      %8586 = vmatpush1.msra.mxu0 0.0
      %8587 = vmatprep.subr.mxu0 0.0
      %8588 = vmatpush1.msra.mxu0 0.0
      %8589 = vmatprep.subr.mxu0 0.0
      %8590 = vmatpush1.msra.mxu0 0.0
      %8591 = vmatprep.subr.mxu0 0.0
      %8592 = vmatpush1.msra.mxu0 0.0
      %8593 = vmatprep.subr.mxu0 0.0
      %8594 = vmatpush1.msra.mxu0 0.0
      %8595 = vmatprep.subr.mxu0 0.0
      %8596 = vmatpush1.msra.mxu0 0.0
      %8597 = vmatprep.subr.mxu0 0.0
      %8598 = vmatpush1.msra.mxu0 0.0
      %8599 = vmatprep.subr.mxu0 0.0
      %8600 = vmatpush1.msra.mxu0 0.0
      %8601 = vmatprep.subr.mxu0 0.0
      %8602 = vmatpush1.msra.mxu0 0.0
      %8603 = vmatprep.subr.mxu0 0.0
      %8604 = vmatpush1.msra.mxu0 0.0
      %8605 = vmatprep.subr.mxu0 0.0
      %8606 = vmatpush1.msra.mxu0 0.0
      %8607 = vmatprep.subr.mxu0 0.0
      %8608 = vmatpush1.msra.mxu0 0.0
      %8609 = vmatprep.subr.mxu0 0.0
      %8610 = vmatpush1.msra.mxu0 0.0
      %8611 = vmatprep.subr.mxu0 0.0
      %8612 = vmatpush1.msra.mxu0 0.0
      %8613 = vmatprep.subr.mxu0 0.0
      %8614 = vmatpush1.msra.mxu0 0.0
      %8615 = vmatprep.subr.mxu0 0.0
      %8616 = vmatpush1.msra.mxu0 0.0
      %8617 = vmatprep.subr.mxu0 0.0
      %8618 = vmatpush1.msra.mxu0 0.0
      %8619 = vmatprep.mubr.f32.mxu0 0.0
      %v8620 = vand.u32 %v8239, 4294901760
      %v8621 = vsub.f32 %v8239, %v8620
      %v8622 = vand.u32 %v8621, 4294901760
      %8623 = vmatmul.mubr.f32.gmra.mrb[0].mxu0 %v8622
      %v8624 = vpop.f32.mrb[0].mxu0
      %v8625 = vadd.f32 %v8529, %v8624
      %v8626 = vpop.f32.mrb[0].mxu0
      %8627 = vmatprep.mubr.f32.mxu0 0.0
      %v8628 = vand.u32 %v8242, 4294901760
      %v8629 = vsub.f32 %v8242, %v8628
      %v8630 = vand.u32 %v8629, 4294901760
      %8631 = vmatmul.mubr.f32.gmra.mrb[0].mxu0 %v8630
      %v8632 = vpop.f32.mrb[0].mxu0
      %v8633 = vadd.f32 %v8536, %v8632
      %v8634 = vpop.f32.mrb[0].mxu0
      %8635 = vmatprep.mubr.f32.mxu0 0.0
      %v8636 = vand.u32 %v8245, 4294901760
      %v8637 = vsub.f32 %v8245, %v8636
      %v8638 = vand.u32 %v8637, 4294901760
      %8639 = vmatmul.mubr.f32.gmra.mrb[0].mxu0 %v8638
      %v8640 = vpop.f32.mrb[0].mxu0
      %v8641 = vadd.f32 %v8543, %v8640
      %v8642 = vpop.f32.mrb[0].mxu0
      %8643 = vmatprep.mubr.f32.mxu0 0.0
      %v8644 = vand.u32 %v8248, 4294901760
      %v8645 = vsub.f32 %v8248, %v8644
      %v8646 = vand.u32 %v8645, 4294901760
      %8647 = vmatmul.mubr.f32.gmra.mrb[0].mxu0 %v8646
      %v8648 = vpop.f32.mrb[0].mxu0
      %v8649 = vadd.f32 %v8550, %v8648
      %v8650 = vpop.f32.mrb[0].mxu0
      %8651 = vdwg.mxu0
      %8652 = vmatprep.subr.mxu0 0.0
      %v8653 = vand.u32 %v3377, 4294901760
      %v8654 = vsub.f32 %v3377, %v8653
      %v8655 = vand.u32 %v8654, 4294901760
      %8656 = vmatpush1.msra.mxu0 %v8655
      %8657 = vmatprep.subr.mxu0 0.0
      %v8658 = vand.u32 %v3378, 4294901760
      %v8659 = vsub.f32 %v3378, %v8658
      %v8660 = vand.u32 %v8659, 4294901760
      %8661 = vmatpush1.msra.mxu0 %v8660
      %8662 = vmatprep.subr.mxu0 0.0
      %8663 = vmatpush1.msra.mxu0 0.0
      %8664 = vmatprep.subr.mxu0 0.0
      %8665 = vmatpush1.msra.mxu0 0.0
      %8666 = vmatprep.subr.mxu0 0.0
      %8667 = vmatpush1.msra.mxu0 0.0
      %8668 = vmatprep.subr.mxu0 0.0
      %8669 = vmatpush1.msra.mxu0 0.0
      %8670 = vmatprep.subr.mxu0 0.0
      %8671 = vmatpush1.msra.mxu0 0.0
      %8672 = vmatprep.subr.mxu0 0.0
      %8673 = vmatpush1.msra.mxu0 0.0
      %8674 = vmatprep.subr.mxu0 0.0
      %8675 = vmatpush1.msra.mxu0 0.0
      %8676 = vmatprep.subr.mxu0 0.0
      %8677 = vmatpush1.msra.mxu0 0.0
      %8678 = vmatprep.subr.mxu0 0.0
      %8679 = vmatpush1.msra.mxu0 0.0
      %8680 = vmatprep.subr.mxu0 0.0
      %8681 = vmatpush1.msra.mxu0 0.0
      %8682 = vmatprep.subr.mxu0 0.0
      %8683 = vmatpush1.msra.mxu0 0.0
      %8684 = vmatprep.subr.mxu0 0.0
      %8685 = vmatpush1.msra.mxu0 0.0
      %8686 = vmatprep.subr.mxu0 0.0
      %8687 = vmatpush1.msra.mxu0 0.0
      %8688 = vmatprep.subr.mxu0 0.0
      %8689 = vmatpush1.msra.mxu0 0.0
      %8690 = vmatprep.subr.mxu0 0.0
      %8691 = vmatpush1.msra.mxu0 0.0
      %8692 = vmatprep.subr.mxu0 0.0
      %8693 = vmatpush1.msra.mxu0 0.0
      %8694 = vmatprep.subr.mxu0 0.0
      %8695 = vmatpush1.msra.mxu0 0.0
      %8696 = vmatprep.subr.mxu0 0.0
      %8697 = vmatpush1.msra.mxu0 0.0
      %8698 = vmatprep.subr.mxu0 0.0
      %8699 = vmatpush1.msra.mxu0 0.0
      %8700 = vmatprep.subr.mxu0 0.0
      %8701 = vmatpush1.msra.mxu0 0.0
      %8702 = vmatprep.subr.mxu0 0.0
      %8703 = vmatpush1.msra.mxu0 0.0
      %8704 = vmatprep.subr.mxu0 0.0
      %8705 = vmatpush1.msra.mxu0 0.0
      %8706 = vmatprep.subr.mxu0 0.0
      %8707 = vmatpush1.msra.mxu0 0.0
      %8708 = vmatprep.subr.mxu0 0.0
      %8709 = vmatpush1.msra.mxu0 0.0
      %8710 = vmatprep.subr.mxu0 0.0
      %8711 = vmatpush1.msra.mxu0 0.0
      %8712 = vmatprep.subr.mxu0 0.0
      %8713 = vmatpush1.msra.mxu0 0.0
      %8714 = vmatprep.subr.mxu0 0.0
      %8715 = vmatpush1.msra.mxu0 0.0
      %8716 = vmatprep.subr.mxu0 0.0
      %8717 = vmatpush1.msra.mxu0 0.0
      %8718 = vmatprep.subr.mxu0 0.0
      %8719 = vmatpush1.msra.mxu0 0.0
      %8720 = vmatprep.subr.mxu0 0.0
      %8721 = vmatpush1.msra.mxu0 0.0
      %8722 = vmatprep.mubr.f32.mxu0 0.0
      %v8723 = vand.u32 %v8239, 4294901760
      %8724 = vmatmul.mubr.f32.gmra.mrb[0].mxu0 %v8723
      %v8725 = vpop.f32.mrb[0].mxu0
      %v8726 = vadd.f32 %v8625, %v8725
      %v8727 = vpop.f32.mrb[0].mxu0
      %8728 = vmatprep.mubr.f32.mxu0 0.0
      %v8729 = vand.u32 %v8242, 4294901760
      %8730 = vmatmul.mubr.f32.gmra.mrb[0].mxu0 %v8729
      %v8731 = vpop.f32.mrb[0].mxu0
      %v8732 = vadd.f32 %v8633, %v8731
      %v8733 = vpop.f32.mrb[0].mxu0
      %8734 = vmatprep.mubr.f32.mxu0 0.0
      %v8735 = vand.u32 %v8245, 4294901760
      %8736 = vmatmul.mubr.f32.gmra.mrb[0].mxu0 %v8735
      %v8737 = vpop.f32.mrb[0].mxu0
      %v8738 = vadd.f32 %v8641, %v8737
      %v8739 = vpop.f32.mrb[0].mxu0
      %8740 = vmatprep.mubr.f32.mxu0 0.0
      %v8741 = vand.u32 %v8248, 4294901760
      %8742 = vmatmul.mubr.f32.gmra.mrb[0].mxu0 %v8741
      %v8743 = vpop.f32.mrb[0].mxu0
      %v8744 = vadd.f32 %v8649, %v8743
      %v8745 = vpop.f32.mrb[0].mxu0
      %8746 = vdwg.mxu0
      %8747 = vmatprep.subr.mxu0 0.0
      %v8748 = vand.u32 %v3377, 4294901760
      %8749 = vmatpush1.msra.mxu0 %v8748
      %8750 = vmatprep.subr.mxu0 0.0
      %v8751 = vand.u32 %v3378, 4294901760
      %8752 = vmatpush1.msra.mxu0 %v8751
      %8753 = vmatprep.subr.mxu0 0.0
      %8754 = vmatpush1.msra.mxu0 0.0
      %8755 = vmatprep.subr.mxu0 0.0
      %8756 = vmatpush1.msra.mxu0 0.0
      %8757 = vmatprep.subr.mxu0 0.0
      %8758 = vmatpush1.msra.mxu0 0.0
      %8759 = vmatprep.subr.mxu0 0.0
      %8760 = vmatpush1.msra.mxu0 0.0
      %8761 = vmatprep.subr.mxu0 0.0
      %8762 = vmatpush1.msra.mxu0 0.0
      %8763 = vmatprep.subr.mxu0 0.0
      %8764 = vmatpush1.msra.mxu0 0.0
      %8765 = vmatprep.subr.mxu0 0.0
      %8766 = vmatpush1.msra.mxu0 0.0
      %8767 = vmatprep.subr.mxu0 0.0
      %8768 = vmatpush1.msra.mxu0 0.0
      %8769 = vmatprep.subr.mxu0 0.0
      %8770 = vmatpush1.msra.mxu0 0.0
      %8771 = vmatprep.subr.mxu0 0.0
      %8772 = vmatpush1.msra.mxu0 0.0
      %8773 = vmatprep.subr.mxu0 0.0
      %8774 = vmatpush1.msra.mxu0 0.0
      %8775 = vmatprep.subr.mxu0 0.0
      %8776 = vmatpush1.msra.mxu0 0.0
      %8777 = vmatprep.subr.mxu0 0.0
      %8778 = vmatpush1.msra.mxu0 0.0
      %8779 = vmatprep.subr.mxu0 0.0
      %8780 = vmatpush1.msra.mxu0 0.0
      %8781 = vmatprep.subr.mxu0 0.0
      %8782 = vmatpush1.msra.mxu0 0.0
      %8783 = vmatprep.subr.mxu0 0.0
      %8784 = vmatpush1.msra.mxu0 0.0
      %8785 = vmatprep.subr.mxu0 0.0
      %8786 = vmatpush1.msra.mxu0 0.0
      %8787 = vmatprep.subr.mxu0 0.0
      %8788 = vmatpush1.msra.mxu0 0.0
      %8789 = vmatprep.subr.mxu0 0.0
      %8790 = vmatpush1.msra.mxu0 0.0
      %8791 = vmatprep.subr.mxu0 0.0
      %8792 = vmatpush1.msra.mxu0 0.0
      %8793 = vmatprep.subr.mxu0 0.0
      %8794 = vmatpush1.msra.mxu0 0.0
      %8795 = vmatprep.subr.mxu0 0.0
      %8796 = vmatpush1.msra.mxu0 0.0
      %8797 = vmatprep.subr.mxu0 0.0
      %8798 = vmatpush1.msra.mxu0 0.0
      %8799 = vmatprep.subr.mxu0 0.0
      %8800 = vmatpush1.msra.mxu0 0.0
      %8801 = vmatprep.subr.mxu0 0.0
      %8802 = vmatpush1.msra.mxu0 0.0
      %8803 = vmatprep.subr.mxu0 0.0
      %8804 = vmatpush1.msra.mxu0 0.0
      %8805 = vmatprep.subr.mxu0 0.0
      %8806 = vmatpush1.msra.mxu0 0.0
      %8807 = vmatprep.subr.mxu0 0.0
      %8808 = vmatpush1.msra.mxu0 0.0
      %8809 = vmatprep.subr.mxu0 0.0
      %8810 = vmatpush1.msra.mxu0 0.0
      %8811 = vmatprep.subr.mxu0 0.0
      %8812 = vmatpush1.msra.mxu0 0.0
      %8813 = vmatprep.mubr.f32.mxu0 0.0
      %v8814 = vand.u32 %v8239, 4294901760
      %8815 = vmatmul.mubr.f32.gmra.mrb[0].mxu0 %v8814
      %v8816 = vpop.f32.mrb[0].mxu0
      %v8817 = vadd.f32 %v8726, %v8816
      %v8818 = vpop.f32.mrb[0].mxu0
      %8819 = vmatprep.mubr.f32.mxu0 0.0
      %v8820 = vand.u32 %v8242, 4294901760
      %8821 = vmatmul.mubr.f32.gmra.mrb[0].mxu0 %v8820
      %v8822 = vpop.f32.mrb[0].mxu0
      %v8823 = vadd.f32 %v8732, %v8822
      %v8824 = vpop.f32.mrb[0].mxu0
      %8825 = vmatprep.mubr.f32.mxu0 0.0
      %v8826 = vand.u32 %v8245, 4294901760
      %8827 = vmatmul.mubr.f32.gmra.mrb[0].mxu0 %v8826
      %v8828 = vpop.f32.mrb[0].mxu0
      %v8829 = vadd.f32 %v8738, %v8828
      %v8830 = vpop.f32.mrb[0].mxu0
      %8831 = vmatprep.mubr.f32.mxu0 0.0
      %v8832 = vand.u32 %v8248, 4294901760
      %8833 = vmatmul.mubr.f32.gmra.mrb[0].mxu0 %v8832
      %v8834 = vpop.f32.mrb[0].mxu0
      %v8835 = vadd.f32 %v8744, %v8834
      %v8836 = vpop.f32.mrb[0].mxu0
      %8837 = vdwg.mxu0
      %v8838 = vadd.f32 %v7620, %v8817
      %v8839 = vadd.f32 %v7621, %v8823
      %v8840 = vadd.f32 %v7622, %v8829
      %v8841 = vadd.f32 %v7623, %v8835
      %s8842 = scalar_lea.vmem %s5, 64
      %v8843 = vld [vmem:[%s8842] sm:$0xff]
      %v8844 = vld [vmem:[%s8842 + $0x8] sm:$0xff]
      %v8845 = vld [vmem:[%s8842 + $0x10] sm:$0xff]
      %v8846 = vld [vmem:[%s8842 + $0x18] sm:$0xff]
      %v8848 = vsel %vm6371, %v8843, 0
      %v8851 = vsel %vm6371, %v8844, 0
      %v8854 = vsel %vm6371, %v8845, 0
      %v8857 = vsel %vm6371, %v8846, 0
      %8859 = vmatprep.subr.mxu0 0.0
      %v8860 = vand.u32 %v6341, 4294901760
      %8861 = vmatpush1.msra.mxu0 %v8860
      %8862 = vmatprep.subr.mxu0 0.0
      %v8863 = vand.u32 %v6342, 4294901760
      %8864 = vmatpush1.msra.mxu0 %v8863
      %8865 = vmatprep.subr.mxu0 0.0
      %8866 = vmatpush1.msra.mxu0 0.0
      %8867 = vmatprep.subr.mxu0 0.0
      %8868 = vmatpush1.msra.mxu0 0.0
      %8869 = vmatprep.subr.mxu0 0.0
      %8870 = vmatpush1.msra.mxu0 0.0
      %8871 = vmatprep.subr.mxu0 0.0
      %8872 = vmatpush1.msra.mxu0 0.0
      %8873 = vmatprep.subr.mxu0 0.0
      %8874 = vmatpush1.msra.mxu0 0.0
      %8875 = vmatprep.subr.mxu0 0.0
      %8876 = vmatpush1.msra.mxu0 0.0
      %8877 = vmatprep.subr.mxu0 0.0
      %8878 = vmatpush1.msra.mxu0 0.0
      %8879 = vmatprep.subr.mxu0 0.0
      %8880 = vmatpush1.msra.mxu0 0.0
      %8881 = vmatprep.subr.mxu0 0.0
      %8882 = vmatpush1.msra.mxu0 0.0
      %8883 = vmatprep.subr.mxu0 0.0
      %8884 = vmatpush1.msra.mxu0 0.0
      %8885 = vmatprep.subr.mxu0 0.0
      %8886 = vmatpush1.msra.mxu0 0.0
      %8887 = vmatprep.subr.mxu0 0.0
      %8888 = vmatpush1.msra.mxu0 0.0
      %8889 = vmatprep.subr.mxu0 0.0
      %8890 = vmatpush1.msra.mxu0 0.0
      %8891 = vmatprep.subr.mxu0 0.0
      %8892 = vmatpush1.msra.mxu0 0.0
      %8893 = vmatprep.subr.mxu0 0.0
      %8894 = vmatpush1.msra.mxu0 0.0
      %8895 = vmatprep.subr.mxu0 0.0
      %8896 = vmatpush1.msra.mxu0 0.0
      %8897 = vmatprep.subr.mxu0 0.0
      %8898 = vmatpush1.msra.mxu0 0.0
      %8899 = vmatprep.subr.mxu0 0.0
      %8900 = vmatpush1.msra.mxu0 0.0
      %8901 = vmatprep.subr.mxu0 0.0
      %8902 = vmatpush1.msra.mxu0 0.0
      %8903 = vmatprep.subr.mxu0 0.0
      %8904 = vmatpush1.msra.mxu0 0.0
      %8905 = vmatprep.subr.mxu0 0.0
      %8906 = vmatpush1.msra.mxu0 0.0
      %8907 = vmatprep.subr.mxu0 0.0
      %8908 = vmatpush1.msra.mxu0 0.0
      %8909 = vmatprep.subr.mxu0 0.0
      %8910 = vmatpush1.msra.mxu0 0.0
      %8911 = vmatprep.subr.mxu0 0.0
      %8912 = vmatpush1.msra.mxu0 0.0
      %8913 = vmatprep.subr.mxu0 0.0
      %8914 = vmatpush1.msra.mxu0 0.0
      %8915 = vmatprep.subr.mxu0 0.0
      %8916 = vmatpush1.msra.mxu0 0.0
      %8917 = vmatprep.subr.mxu0 0.0
      %8918 = vmatpush1.msra.mxu0 0.0
      %8919 = vmatprep.subr.mxu0 0.0
      %8920 = vmatpush1.msra.mxu0 0.0
      %8921 = vmatprep.subr.mxu0 0.0
      %8922 = vmatpush1.msra.mxu0 0.0
      %8923 = vmatprep.subr.mxu0 0.0
      %8924 = vmatpush1.msra.mxu0 0.0
      %8925 = vmatprep.mubr.f32.mxu0 0.0
      %v8926 = vand.u32 %v8848, 4294901760
      %v8927 = vsub.f32 %v8848, %v8926
      %v8928 = vand.u32 %v8927, 4294901760
      %v8929 = vsub.f32 %v8927, %v8928
      %v8930 = vand.u32 %v8929, 4294901760
      %8931 = vmatmul.mubr.f32.gmra.mrb[0].mxu0 %v8930
      %v8932 = vpop.f32.mrb[0].mxu0
      %v8933 = vadd.f32 0.0, %v8932
      %v8934 = vpop.f32.mrb[0].mxu0
      %8935 = vmatprep.mubr.f32.mxu0 0.0
      %v8936 = vand.u32 %v8851, 4294901760
      %v8937 = vsub.f32 %v8851, %v8936
      %v8938 = vand.u32 %v8937, 4294901760
      %v8939 = vsub.f32 %v8937, %v8938
      %v8940 = vand.u32 %v8939, 4294901760
      %8941 = vmatmul.mubr.f32.gmra.mrb[0].mxu0 %v8940
      %v8942 = vpop.f32.mrb[0].mxu0
      %v8943 = vadd.f32 0.0, %v8942
      %v8944 = vpop.f32.mrb[0].mxu0
      %8945 = vmatprep.mubr.f32.mxu0 0.0
      %v8946 = vand.u32 %v8854, 4294901760
      %v8947 = vsub.f32 %v8854, %v8946
      %v8948 = vand.u32 %v8947, 4294901760
      %v8949 = vsub.f32 %v8947, %v8948
      %v8950 = vand.u32 %v8949, 4294901760
      %8951 = vmatmul.mubr.f32.gmra.mrb[0].mxu0 %v8950
      %v8952 = vpop.f32.mrb[0].mxu0
      %v8953 = vadd.f32 0.0, %v8952
      %v8954 = vpop.f32.mrb[0].mxu0
      %8955 = vmatprep.mubr.f32.mxu0 0.0
      %v8956 = vand.u32 %v8857, 4294901760
      %v8957 = vsub.f32 %v8857, %v8956
      %v8958 = vand.u32 %v8957, 4294901760
      %v8959 = vsub.f32 %v8957, %v8958
      %v8960 = vand.u32 %v8959, 4294901760
      %8961 = vmatmul.mubr.f32.gmra.mrb[0].mxu0 %v8960
      %v8962 = vpop.f32.mrb[0].mxu0
      %v8963 = vadd.f32 0.0, %v8962
      %v8964 = vpop.f32.mrb[0].mxu0
      %8965 = vdwg.mxu0
      %8966 = vmatprep.subr.mxu0 0.0
      %v8967 = vand.u32 %v6341, 4294901760
      %v8968 = vsub.f32 %v6341, %v8967
      %v8969 = vand.u32 %v8968, 4294901760
      %v8970 = vsub.f32 %v8968, %v8969
      %v8971 = vand.u32 %v8970, 4294901760
      %8972 = vmatpush1.msra.mxu0 %v8971
      %8973 = vmatprep.subr.mxu0 0.0
      %v8974 = vand.u32 %v6342, 4294901760
      %v8975 = vsub.f32 %v6342, %v8974
      %v8976 = vand.u32 %v8975, 4294901760
      %v8977 = vsub.f32 %v8975, %v8976
      %v8978 = vand.u32 %v8977, 4294901760
      %8979 = vmatpush1.msra.mxu0 %v8978
      %8980 = vmatprep.subr.mxu0 0.0
      %8981 = vmatpush1.msra.mxu0 0.0
      %8982 = vmatprep.subr.mxu0 0.0
      %8983 = vmatpush1.msra.mxu0 0.0
      %8984 = vmatprep.subr.mxu0 0.0
      %8985 = vmatpush1.msra.mxu0 0.0
      %8986 = vmatprep.subr.mxu0 0.0
      %8987 = vmatpush1.msra.mxu0 0.0
      %8988 = vmatprep.subr.mxu0 0.0
      %8989 = vmatpush1.msra.mxu0 0.0
      %8990 = vmatprep.subr.mxu0 0.0
      %8991 = vmatpush1.msra.mxu0 0.0
      %8992 = vmatprep.subr.mxu0 0.0
      %8993 = vmatpush1.msra.mxu0 0.0
      %8994 = vmatprep.subr.mxu0 0.0
      %8995 = vmatpush1.msra.mxu0 0.0
      %8996 = vmatprep.subr.mxu0 0.0
      %8997 = vmatpush1.msra.mxu0 0.0
      %8998 = vmatprep.subr.mxu0 0.0
      %8999 = vmatpush1.msra.mxu0 0.0
      %9000 = vmatprep.subr.mxu0 0.0
      %9001 = vmatpush1.msra.mxu0 0.0
      %9002 = vmatprep.subr.mxu0 0.0
      %9003 = vmatpush1.msra.mxu0 0.0
      %9004 = vmatprep.subr.mxu0 0.0
      %9005 = vmatpush1.msra.mxu0 0.0
      %9006 = vmatprep.subr.mxu0 0.0
      %9007 = vmatpush1.msra.mxu0 0.0
      %9008 = vmatprep.subr.mxu0 0.0
      %9009 = vmatpush1.msra.mxu0 0.0
      %9010 = vmatprep.subr.mxu0 0.0
      %9011 = vmatpush1.msra.mxu0 0.0
      %9012 = vmatprep.subr.mxu0 0.0
      %9013 = vmatpush1.msra.mxu0 0.0
      %9014 = vmatprep.subr.mxu0 0.0
      %9015 = vmatpush1.msra.mxu0 0.0
      %9016 = vmatprep.subr.mxu0 0.0
      %9017 = vmatpush1.msra.mxu0 0.0
      %9018 = vmatprep.subr.mxu0 0.0
      %9019 = vmatpush1.msra.mxu0 0.0
      %9020 = vmatprep.subr.mxu0 0.0
      %9021 = vmatpush1.msra.mxu0 0.0
      %9022 = vmatprep.subr.mxu0 0.0
      %9023 = vmatpush1.msra.mxu0 0.0
      %9024 = vmatprep.subr.mxu0 0.0
      %9025 = vmatpush1.msra.mxu0 0.0
      %9026 = vmatprep.subr.mxu0 0.0
      %9027 = vmatpush1.msra.mxu0 0.0
      %9028 = vmatprep.subr.mxu0 0.0
      %9029 = vmatpush1.msra.mxu0 0.0
      %9030 = vmatprep.subr.mxu0 0.0
      %9031 = vmatpush1.msra.mxu0 0.0
      %9032 = vmatprep.subr.mxu0 0.0
      %9033 = vmatpush1.msra.mxu0 0.0
      %9034 = vmatprep.subr.mxu0 0.0
      %9035 = vmatpush1.msra.mxu0 0.0
      %9036 = vmatprep.subr.mxu0 0.0
      %9037 = vmatpush1.msra.mxu0 0.0
      %9038 = vmatprep.subr.mxu0 0.0
      %9039 = vmatpush1.msra.mxu0 0.0
      %9040 = vmatprep.mubr.f32.mxu0 0.0
      %v9041 = vand.u32 %v8848, 4294901760
      %9042 = vmatmul.mubr.f32.gmra.mrb[0].mxu0 %v9041
      %v9043 = vpop.f32.mrb[0].mxu0
      %v9044 = vadd.f32 %v8933, %v9043
      %v9045 = vpop.f32.mrb[0].mxu0
      %9046 = vmatprep.mubr.f32.mxu0 0.0
      %v9047 = vand.u32 %v8851, 4294901760
      %9048 = vmatmul.mubr.f32.gmra.mrb[0].mxu0 %v9047
      %v9049 = vpop.f32.mrb[0].mxu0
      %v9050 = vadd.f32 %v8943, %v9049
      %v9051 = vpop.f32.mrb[0].mxu0
      %9052 = vmatprep.mubr.f32.mxu0 0.0
      %v9053 = vand.u32 %v8854, 4294901760
      %9054 = vmatmul.mubr.f32.gmra.mrb[0].mxu0 %v9053
      %v9055 = vpop.f32.mrb[0].mxu0
      %v9056 = vadd.f32 %v8953, %v9055
      %v9057 = vpop.f32.mrb[0].mxu0
      %9058 = vmatprep.mubr.f32.mxu0 0.0
      %v9059 = vand.u32 %v8857, 4294901760
      %9060 = vmatmul.mubr.f32.gmra.mrb[0].mxu0 %v9059
      %v9061 = vpop.f32.mrb[0].mxu0
      %v9062 = vadd.f32 %v8963, %v9061
      %v9063 = vpop.f32.mrb[0].mxu0
      %9064 = vdwg.mxu0
      %9065 = vmatprep.subr.mxu0 0.0
      %v9066 = vand.u32 %v6341, 4294901760
      %v9067 = vsub.f32 %v6341, %v9066
      %9068 = vmatpush1.msra.mxu0 %v9067
      %9069 = vmatprep.subr.mxu0 0.0
      %v9070 = vand.u32 %v6342, 4294901760
      %v9071 = vsub.f32 %v6342, %v9070
      %9072 = vmatpush1.msra.mxu0 %v9071
      %9073 = vmatprep.subr.mxu0 0.0
      %9074 = vmatpush1.msra.mxu0 0.0
      %9075 = vmatprep.subr.mxu0 0.0
      %9076 = vmatpush1.msra.mxu0 0.0
      %9077 = vmatprep.subr.mxu0 0.0
      %9078 = vmatpush1.msra.mxu0 0.0
      %9079 = vmatprep.subr.mxu0 0.0
      %9080 = vmatpush1.msra.mxu0 0.0
      %9081 = vmatprep.subr.mxu0 0.0
      %9082 = vmatpush1.msra.mxu0 0.0
      %9083 = vmatprep.subr.mxu0 0.0
      %9084 = vmatpush1.msra.mxu0 0.0
      %9085 = vmatprep.subr.mxu0 0.0
      %9086 = vmatpush1.msra.mxu0 0.0
      %9087 = vmatprep.subr.mxu0 0.0
      %9088 = vmatpush1.msra.mxu0 0.0
      %9089 = vmatprep.subr.mxu0 0.0
      %9090 = vmatpush1.msra.mxu0 0.0
      %9091 = vmatprep.subr.mxu0 0.0
      %9092 = vmatpush1.msra.mxu0 0.0
      %9093 = vmatprep.subr.mxu0 0.0
      %9094 = vmatpush1.msra.mxu0 0.0
      %9095 = vmatprep.subr.mxu0 0.0
      %9096 = vmatpush1.msra.mxu0 0.0
      %9097 = vmatprep.subr.mxu0 0.0
      %9098 = vmatpush1.msra.mxu0 0.0
      %9099 = vmatprep.subr.mxu0 0.0
      %9100 = vmatpush1.msra.mxu0 0.0
      %9101 = vmatprep.subr.mxu0 0.0
      %9102 = vmatpush1.msra.mxu0 0.0
      %9103 = vmatprep.subr.mxu0 0.0
      %9104 = vmatpush1.msra.mxu0 0.0
      %9105 = vmatprep.subr.mxu0 0.0
      %9106 = vmatpush1.msra.mxu0 0.0
      %9107 = vmatprep.subr.mxu0 0.0
      %9108 = vmatpush1.msra.mxu0 0.0
      %9109 = vmatprep.subr.mxu0 0.0
      %9110 = vmatpush1.msra.mxu0 0.0
      %9111 = vmatprep.subr.mxu0 0.0
      %9112 = vmatpush1.msra.mxu0 0.0
      %9113 = vmatprep.subr.mxu0 0.0
      %9114 = vmatpush1.msra.mxu0 0.0
      %9115 = vmatprep.subr.mxu0 0.0
      %9116 = vmatpush1.msra.mxu0 0.0
      %9117 = vmatprep.subr.mxu0 0.0
      %9118 = vmatpush1.msra.mxu0 0.0
      %9119 = vmatprep.subr.mxu0 0.0
      %9120 = vmatpush1.msra.mxu0 0.0
      %9121 = vmatprep.subr.mxu0 0.0
      %9122 = vmatpush1.msra.mxu0 0.0
      %9123 = vmatprep.subr.mxu0 0.0
      %9124 = vmatpush1.msra.mxu0 0.0
      %9125 = vmatprep.subr.mxu0 0.0
      %9126 = vmatpush1.msra.mxu0 0.0
      %9127 = vmatprep.subr.mxu0 0.0
      %9128 = vmatpush1.msra.mxu0 0.0
      %9129 = vmatprep.subr.mxu0 0.0
      %9130 = vmatpush1.msra.mxu0 0.0
      %9131 = vmatprep.subr.mxu0 0.0
      %9132 = vmatpush1.msra.mxu0 0.0
      %9133 = vmatprep.mubr.f32.mxu0 0.0
      %v9134 = vand.u32 %v8848, 4294901760
      %v9135 = vsub.f32 %v8848, %v9134
      %9136 = vmatmul.mubr.f32.gmra.mrb[0].mxu0 %v9135
      %v9137 = vpop.f32.mrb[0].mxu0
      %v9138 = vadd.f32 %v9044, %v9137
      %v9139 = vpop.f32.mrb[0].mxu0
      %9140 = vmatprep.mubr.f32.mxu0 0.0
      %v9141 = vand.u32 %v8851, 4294901760
      %v9142 = vsub.f32 %v8851, %v9141
      %9143 = vmatmul.mubr.f32.gmra.mrb[0].mxu0 %v9142
      %v9144 = vpop.f32.mrb[0].mxu0
      %v9145 = vadd.f32 %v9050, %v9144
      %v9146 = vpop.f32.mrb[0].mxu0
      %9147 = vmatprep.mubr.f32.mxu0 0.0
      %v9148 = vand.u32 %v8854, 4294901760
      %v9149 = vsub.f32 %v8854, %v9148
      %9150 = vmatmul.mubr.f32.gmra.mrb[0].mxu0 %v9149
      %v9151 = vpop.f32.mrb[0].mxu0
      %v9152 = vadd.f32 %v9056, %v9151
      %v9153 = vpop.f32.mrb[0].mxu0
      %9154 = vmatprep.mubr.f32.mxu0 0.0
      %v9155 = vand.u32 %v8857, 4294901760
      %v9156 = vsub.f32 %v8857, %v9155
      %9157 = vmatmul.mubr.f32.gmra.mrb[0].mxu0 %v9156
      %v9158 = vpop.f32.mrb[0].mxu0
      %v9159 = vadd.f32 %v9062, %v9158
      %v9160 = vpop.f32.mrb[0].mxu0
      %9161 = vdwg.mxu0
      %9162 = vmatprep.subr.mxu0 0.0
      %v9163 = vand.u32 %v6341, 4294901760
      %9164 = vmatpush1.msra.mxu0 %v9163
      %9165 = vmatprep.subr.mxu0 0.0
      %v9166 = vand.u32 %v6342, 4294901760
      %9167 = vmatpush1.msra.mxu0 %v9166
      %9168 = vmatprep.subr.mxu0 0.0
      %9169 = vmatpush1.msra.mxu0 0.0
      %9170 = vmatprep.subr.mxu0 0.0
      %9171 = vmatpush1.msra.mxu0 0.0
      %9172 = vmatprep.subr.mxu0 0.0
      %9173 = vmatpush1.msra.mxu0 0.0
      %9174 = vmatprep.subr.mxu0 0.0
      %9175 = vmatpush1.msra.mxu0 0.0
      %9176 = vmatprep.subr.mxu0 0.0
      %9177 = vmatpush1.msra.mxu0 0.0
      %9178 = vmatprep.subr.mxu0 0.0
      %9179 = vmatpush1.msra.mxu0 0.0
      %9180 = vmatprep.subr.mxu0 0.0
      %9181 = vmatpush1.msra.mxu0 0.0
      %9182 = vmatprep.subr.mxu0 0.0
      %9183 = vmatpush1.msra.mxu0 0.0
      %9184 = vmatprep.subr.mxu0 0.0
      %9185 = vmatpush1.msra.mxu0 0.0
      %9186 = vmatprep.subr.mxu0 0.0
      %9187 = vmatpush1.msra.mxu0 0.0
      %9188 = vmatprep.subr.mxu0 0.0
      %9189 = vmatpush1.msra.mxu0 0.0
      %9190 = vmatprep.subr.mxu0 0.0
      %9191 = vmatpush1.msra.mxu0 0.0
      %9192 = vmatprep.subr.mxu0 0.0
      %9193 = vmatpush1.msra.mxu0 0.0
      %9194 = vmatprep.subr.mxu0 0.0
      %9195 = vmatpush1.msra.mxu0 0.0
      %9196 = vmatprep.subr.mxu0 0.0
      %9197 = vmatpush1.msra.mxu0 0.0
      %9198 = vmatprep.subr.mxu0 0.0
      %9199 = vmatpush1.msra.mxu0 0.0
      %9200 = vmatprep.subr.mxu0 0.0
      %9201 = vmatpush1.msra.mxu0 0.0
      %9202 = vmatprep.subr.mxu0 0.0
      %9203 = vmatpush1.msra.mxu0 0.0
      %9204 = vmatprep.subr.mxu0 0.0
      %9205 = vmatpush1.msra.mxu0 0.0
      %9206 = vmatprep.subr.mxu0 0.0
      %9207 = vmatpush1.msra.mxu0 0.0
      %9208 = vmatprep.subr.mxu0 0.0
      %9209 = vmatpush1.msra.mxu0 0.0
      %9210 = vmatprep.subr.mxu0 0.0
      %9211 = vmatpush1.msra.mxu0 0.0
      %9212 = vmatprep.subr.mxu0 0.0
      %9213 = vmatpush1.msra.mxu0 0.0
      %9214 = vmatprep.subr.mxu0 0.0
      %9215 = vmatpush1.msra.mxu0 0.0
      %9216 = vmatprep.subr.mxu0 0.0
      %9217 = vmatpush1.msra.mxu0 0.0
      %9218 = vmatprep.subr.mxu0 0.0
      %9219 = vmatpush1.msra.mxu0 0.0
      %9220 = vmatprep.subr.mxu0 0.0
      %9221 = vmatpush1.msra.mxu0 0.0
      %9222 = vmatprep.subr.mxu0 0.0
      %9223 = vmatpush1.msra.mxu0 0.0
      %9224 = vmatprep.subr.mxu0 0.0
      %9225 = vmatpush1.msra.mxu0 0.0
      %9226 = vmatprep.subr.mxu0 0.0
      %9227 = vmatpush1.msra.mxu0 0.0
      %9228 = vmatprep.mubr.f32.mxu0 0.0
      %v9229 = vand.u32 %v8848, 4294901760
      %v9230 = vsub.f32 %v8848, %v9229
      %v9231 = vand.u32 %v9230, 4294901760
      %9232 = vmatmul.mubr.f32.gmra.mrb[0].mxu0 %v9231
      %v9233 = vpop.f32.mrb[0].mxu0
      %v9234 = vadd.f32 %v9138, %v9233
      %v9235 = vpop.f32.mrb[0].mxu0
      %9236 = vmatprep.mubr.f32.mxu0 0.0
      %v9237 = vand.u32 %v8851, 4294901760
      %v9238 = vsub.f32 %v8851, %v9237
      %v9239 = vand.u32 %v9238, 4294901760
      %9240 = vmatmul.mubr.f32.gmra.mrb[0].mxu0 %v9239
      %v9241 = vpop.f32.mrb[0].mxu0
      %v9242 = vadd.f32 %v9145, %v9241
      %v9243 = vpop.f32.mrb[0].mxu0
      %9244 = vmatprep.mubr.f32.mxu0 0.0
      %v9245 = vand.u32 %v8854, 4294901760
      %v9246 = vsub.f32 %v8854, %v9245
      %v9247 = vand.u32 %v9246, 4294901760
      %9248 = vmatmul.mubr.f32.gmra.mrb[0].mxu0 %v9247
      %v9249 = vpop.f32.mrb[0].mxu0
      %v9250 = vadd.f32 %v9152, %v9249
      %v9251 = vpop.f32.mrb[0].mxu0
      %9252 = vmatprep.mubr.f32.mxu0 0.0
      %v9253 = vand.u32 %v8857, 4294901760
      %v9254 = vsub.f32 %v8857, %v9253
      %v9255 = vand.u32 %v9254, 4294901760
      %9256 = vmatmul.mubr.f32.gmra.mrb[0].mxu0 %v9255
      %v9257 = vpop.f32.mrb[0].mxu0
      %v9258 = vadd.f32 %v9159, %v9257
      %v9259 = vpop.f32.mrb[0].mxu0
      %9260 = vdwg.mxu0
      %9261 = vmatprep.subr.mxu0 0.0
      %v9262 = vand.u32 %v6341, 4294901760
      %v9263 = vsub.f32 %v6341, %v9262
      %v9264 = vand.u32 %v9263, 4294901760
      %9265 = vmatpush1.msra.mxu0 %v9264
      %9266 = vmatprep.subr.mxu0 0.0
      %v9267 = vand.u32 %v6342, 4294901760
      %v9268 = vsub.f32 %v6342, %v9267
      %v9269 = vand.u32 %v9268, 4294901760
      %9270 = vmatpush1.msra.mxu0 %v9269
      %9271 = vmatprep.subr.mxu0 0.0
      %9272 = vmatpush1.msra.mxu0 0.0
      %9273 = vmatprep.subr.mxu0 0.0
      %9274 = vmatpush1.msra.mxu0 0.0
      %9275 = vmatprep.subr.mxu0 0.0
      %9276 = vmatpush1.msra.mxu0 0.0
      %9277 = vmatprep.subr.mxu0 0.0
      %9278 = vmatpush1.msra.mxu0 0.0
      %9279 = vmatprep.subr.mxu0 0.0
      %9280 = vmatpush1.msra.mxu0 0.0
      %9281 = vmatprep.subr.mxu0 0.0
      %9282 = vmatpush1.msra.mxu0 0.0
      %9283 = vmatprep.subr.mxu0 0.0
      %9284 = vmatpush1.msra.mxu0 0.0
      %9285 = vmatprep.subr.mxu0 0.0
      %9286 = vmatpush1.msra.mxu0 0.0
      %9287 = vmatprep.subr.mxu0 0.0
      %9288 = vmatpush1.msra.mxu0 0.0
      %9289 = vmatprep.subr.mxu0 0.0
      %9290 = vmatpush1.msra.mxu0 0.0
      %9291 = vmatprep.subr.mxu0 0.0
      %9292 = vmatpush1.msra.mxu0 0.0
      %9293 = vmatprep.subr.mxu0 0.0
      %9294 = vmatpush1.msra.mxu0 0.0
      %9295 = vmatprep.subr.mxu0 0.0
      %9296 = vmatpush1.msra.mxu0 0.0
      %9297 = vmatprep.subr.mxu0 0.0
      %9298 = vmatpush1.msra.mxu0 0.0
      %9299 = vmatprep.subr.mxu0 0.0
      %9300 = vmatpush1.msra.mxu0 0.0
      %9301 = vmatprep.subr.mxu0 0.0
      %9302 = vmatpush1.msra.mxu0 0.0
      %9303 = vmatprep.subr.mxu0 0.0
      %9304 = vmatpush1.msra.mxu0 0.0
      %9305 = vmatprep.subr.mxu0 0.0
      %9306 = vmatpush1.msra.mxu0 0.0
      %9307 = vmatprep.subr.mxu0 0.0
      %9308 = vmatpush1.msra.mxu0 0.0
      %9309 = vmatprep.subr.mxu0 0.0
      %9310 = vmatpush1.msra.mxu0 0.0
      %9311 = vmatprep.subr.mxu0 0.0
      %9312 = vmatpush1.msra.mxu0 0.0
      %9313 = vmatprep.subr.mxu0 0.0
      %9314 = vmatpush1.msra.mxu0 0.0
      %9315 = vmatprep.subr.mxu0 0.0
      %9316 = vmatpush1.msra.mxu0 0.0
      %9317 = vmatprep.subr.mxu0 0.0
      %9318 = vmatpush1.msra.mxu0 0.0
      %9319 = vmatprep.subr.mxu0 0.0
      %9320 = vmatpush1.msra.mxu0 0.0
      %9321 = vmatprep.subr.mxu0 0.0
      %9322 = vmatpush1.msra.mxu0 0.0
      %9323 = vmatprep.subr.mxu0 0.0
      %9324 = vmatpush1.msra.mxu0 0.0
      %9325 = vmatprep.subr.mxu0 0.0
      %9326 = vmatpush1.msra.mxu0 0.0
      %9327 = vmatprep.subr.mxu0 0.0
      %9328 = vmatpush1.msra.mxu0 0.0
      %9329 = vmatprep.subr.mxu0 0.0
      %9330 = vmatpush1.msra.mxu0 0.0
      %9331 = vmatprep.mubr.f32.mxu0 0.0
      %v9332 = vand.u32 %v8848, 4294901760
      %9333 = vmatmul.mubr.f32.gmra.mrb[0].mxu0 %v9332
      %v9334 = vpop.f32.mrb[0].mxu0
      %v9335 = vadd.f32 %v9234, %v9334
      %v9336 = vpop.f32.mrb[0].mxu0
      %9337 = vmatprep.mubr.f32.mxu0 0.0
      %v9338 = vand.u32 %v8851, 4294901760
      %9339 = vmatmul.mubr.f32.gmra.mrb[0].mxu0 %v9338
      %v9340 = vpop.f32.mrb[0].mxu0
      %v9341 = vadd.f32 %v9242, %v9340
      %v9342 = vpop.f32.mrb[0].mxu0
      %9343 = vmatprep.mubr.f32.mxu0 0.0
      %v9344 = vand.u32 %v8854, 4294901760
      %9345 = vmatmul.mubr.f32.gmra.mrb[0].mxu0 %v9344
      %v9346 = vpop.f32.mrb[0].mxu0
      %v9347 = vadd.f32 %v9250, %v9346
      %v9348 = vpop.f32.mrb[0].mxu0
      %9349 = vmatprep.mubr.f32.mxu0 0.0
      %v9350 = vand.u32 %v8857, 4294901760
      %9351 = vmatmul.mubr.f32.gmra.mrb[0].mxu0 %v9350
      %v9352 = vpop.f32.mrb[0].mxu0
      %v9353 = vadd.f32 %v9258, %v9352
      %v9354 = vpop.f32.mrb[0].mxu0
      %9355 = vdwg.mxu0
      %9356 = vmatprep.subr.mxu0 0.0
      %v9357 = vand.u32 %v6341, 4294901760
      %9358 = vmatpush1.msra.mxu0 %v9357
      %9359 = vmatprep.subr.mxu0 0.0
      %v9360 = vand.u32 %v6342, 4294901760
      %9361 = vmatpush1.msra.mxu0 %v9360
      %9362 = vmatprep.subr.mxu0 0.0
      %9363 = vmatpush1.msra.mxu0 0.0
      %9364 = vmatprep.subr.mxu0 0.0
      %9365 = vmatpush1.msra.mxu0 0.0
      %9366 = vmatprep.subr.mxu0 0.0
      %9367 = vmatpush1.msra.mxu0 0.0
      %9368 = vmatprep.subr.mxu0 0.0
      %9369 = vmatpush1.msra.mxu0 0.0
      %9370 = vmatprep.subr.mxu0 0.0
      %9371 = vmatpush1.msra.mxu0 0.0
      %9372 = vmatprep.subr.mxu0 0.0
      %9373 = vmatpush1.msra.mxu0 0.0
      %9374 = vmatprep.subr.mxu0 0.0
      %9375 = vmatpush1.msra.mxu0 0.0
      %9376 = vmatprep.subr.mxu0 0.0
      %9377 = vmatpush1.msra.mxu0 0.0
      %9378 = vmatprep.subr.mxu0 0.0
      %9379 = vmatpush1.msra.mxu0 0.0
      %9380 = vmatprep.subr.mxu0 0.0
      %9381 = vmatpush1.msra.mxu0 0.0
      %9382 = vmatprep.subr.mxu0 0.0
      %9383 = vmatpush1.msra.mxu0 0.0
      %9384 = vmatprep.subr.mxu0 0.0
      %9385 = vmatpush1.msra.mxu0 0.0
      %9386 = vmatprep.subr.mxu0 0.0
      %9387 = vmatpush1.msra.mxu0 0.0
      %9388 = vmatprep.subr.mxu0 0.0
      %9389 = vmatpush1.msra.mxu0 0.0
      %9390 = vmatprep.subr.mxu0 0.0
      %9391 = vmatpush1.msra.mxu0 0.0
      %9392 = vmatprep.subr.mxu0 0.0
      %9393 = vmatpush1.msra.mxu0 0.0
      %9394 = vmatprep.subr.mxu0 0.0
      %9395 = vmatpush1.msra.mxu0 0.0
      %9396 = vmatprep.subr.mxu0 0.0
      %9397 = vmatpush1.msra.mxu0 0.0
      %9398 = vmatprep.subr.mxu0 0.0
      %9399 = vmatpush1.msra.mxu0 0.0
      %9400 = vmatprep.subr.mxu0 0.0
      %9401 = vmatpush1.msra.mxu0 0.0
      %9402 = vmatprep.subr.mxu0 0.0
      %9403 = vmatpush1.msra.mxu0 0.0
      %9404 = vmatprep.subr.mxu0 0.0
      %9405 = vmatpush1.msra.mxu0 0.0
      %9406 = vmatprep.subr.mxu0 0.0
      %9407 = vmatpush1.msra.mxu0 0.0
      %9408 = vmatprep.subr.mxu0 0.0
      %9409 = vmatpush1.msra.mxu0 0.0
      %9410 = vmatprep.subr.mxu0 0.0
      %9411 = vmatpush1.msra.mxu0 0.0
      %9412 = vmatprep.subr.mxu0 0.0
      %9413 = vmatpush1.msra.mxu0 0.0
      %9414 = vmatprep.subr.mxu0 0.0
      %9415 = vmatpush1.msra.mxu0 0.0
      %9416 = vmatprep.subr.mxu0 0.0
      %9417 = vmatpush1.msra.mxu0 0.0
      %9418 = vmatprep.subr.mxu0 0.0
      %9419 = vmatpush1.msra.mxu0 0.0
      %9420 = vmatprep.subr.mxu0 0.0
      %9421 = vmatpush1.msra.mxu0 0.0
      %9422 = vmatprep.mubr.f32.mxu0 0.0
      %v9423 = vand.u32 %v8848, 4294901760
      %9424 = vmatmul.mubr.f32.gmra.mrb[0].mxu0 %v9423
      %v9425 = vpop.f32.mrb[0].mxu0
      %v9426 = vadd.f32 %v9335, %v9425
      %v9427 = vpop.f32.mrb[0].mxu0
      %9428 = vmatprep.mubr.f32.mxu0 0.0
      %v9429 = vand.u32 %v8851, 4294901760
      %9430 = vmatmul.mubr.f32.gmra.mrb[0].mxu0 %v9429
      %v9431 = vpop.f32.mrb[0].mxu0
      %v9432 = vadd.f32 %v9341, %v9431
      %v9433 = vpop.f32.mrb[0].mxu0
      %9434 = vmatprep.mubr.f32.mxu0 0.0
      %v9435 = vand.u32 %v8854, 4294901760
      %9436 = vmatmul.mubr.f32.gmra.mrb[0].mxu0 %v9435
      %v9437 = vpop.f32.mrb[0].mxu0
      %v9438 = vadd.f32 %v9347, %v9437
      %v9439 = vpop.f32.mrb[0].mxu0
      %9440 = vmatprep.mubr.f32.mxu0 0.0
      %v9441 = vand.u32 %v8857, 4294901760
      %9442 = vmatmul.mubr.f32.gmra.mrb[0].mxu0 %v9441
      %v9443 = vpop.f32.mrb[0].mxu0
      %v9444 = vadd.f32 %v9353, %v9443
      %v9445 = vpop.f32.mrb[0].mxu0
      %9446 = vdwg.mxu0
      %v9447 = vadd.f32 %v8229, %v9426
      %v9448 = vadd.f32 %v8230, %v9432
      %v9449 = vadd.f32 %v8231, %v9438
      %v9450 = vadd.f32 %v8232, %v9444
      %s9451 = scalar_lea.vmem %s6, 64
      %v9452 = vld [vmem:[%s9451] sm:$0xff]
      %v9453 = vld [vmem:[%s9451 + $0x8] sm:$0xff]
      %v9454 = vld [vmem:[%s9451 + $0x10] sm:$0xff]
      %v9455 = vld [vmem:[%s9451 + $0x18] sm:$0xff]
      %v9457 = vsel %vm6371, %v9452, 0
      %v9460 = vsel %vm6371, %v9453, 0
      %v9463 = vsel %vm6371, %v9454, 0
      %v9466 = vsel %vm6371, %v9455, 0
      %9468 = vmatprep.subr.mxu0 0.0
      %v9469 = vand.u32 %v6341, 4294901760
      %9470 = vmatpush1.msra.mxu0 %v9469
      %9471 = vmatprep.subr.mxu0 0.0
      %v9472 = vand.u32 %v6342, 4294901760
      %9473 = vmatpush1.msra.mxu0 %v9472
      %9474 = vmatprep.subr.mxu0 0.0
      %9475 = vmatpush1.msra.mxu0 0.0
      %9476 = vmatprep.subr.mxu0 0.0
      %9477 = vmatpush1.msra.mxu0 0.0
      %9478 = vmatprep.subr.mxu0 0.0
      %9479 = vmatpush1.msra.mxu0 0.0
      %9480 = vmatprep.subr.mxu0 0.0
      %9481 = vmatpush1.msra.mxu0 0.0
      %9482 = vmatprep.subr.mxu0 0.0
      %9483 = vmatpush1.msra.mxu0 0.0
      %9484 = vmatprep.subr.mxu0 0.0
      %9485 = vmatpush1.msra.mxu0 0.0
      %9486 = vmatprep.subr.mxu0 0.0
      %9487 = vmatpush1.msra.mxu0 0.0
      %9488 = vmatprep.subr.mxu0 0.0
      %9489 = vmatpush1.msra.mxu0 0.0
      %9490 = vmatprep.subr.mxu0 0.0
      %9491 = vmatpush1.msra.mxu0 0.0
      %9492 = vmatprep.subr.mxu0 0.0
      %9493 = vmatpush1.msra.mxu0 0.0
      %9494 = vmatprep.subr.mxu0 0.0
      %9495 = vmatpush1.msra.mxu0 0.0
      %9496 = vmatprep.subr.mxu0 0.0
      %9497 = vmatpush1.msra.mxu0 0.0
      %9498 = vmatprep.subr.mxu0 0.0
      %9499 = vmatpush1.msra.mxu0 0.0
      %9500 = vmatprep.subr.mxu0 0.0
      %9501 = vmatpush1.msra.mxu0 0.0
      %9502 = vmatprep.subr.mxu0 0.0
      %9503 = vmatpush1.msra.mxu0 0.0
      %9504 = vmatprep.subr.mxu0 0.0
      %9505 = vmatpush1.msra.mxu0 0.0
      %9506 = vmatprep.subr.mxu0 0.0
      %9507 = vmatpush1.msra.mxu0 0.0
      %9508 = vmatprep.subr.mxu0 0.0
      %9509 = vmatpush1.msra.mxu0 0.0
      %9510 = vmatprep.subr.mxu0 0.0
      %9511 = vmatpush1.msra.mxu0 0.0
      %9512 = vmatprep.subr.mxu0 0.0
      %9513 = vmatpush1.msra.mxu0 0.0
      %9514 = vmatprep.subr.mxu0 0.0
      %9515 = vmatpush1.msra.mxu0 0.0
      %9516 = vmatprep.subr.mxu0 0.0
      %9517 = vmatpush1.msra.mxu0 0.0
      %9518 = vmatprep.subr.mxu0 0.0
      %9519 = vmatpush1.msra.mxu0 0.0
      %9520 = vmatprep.subr.mxu0 0.0
      %9521 = vmatpush1.msra.mxu0 0.0
      %9522 = vmatprep.subr.mxu0 0.0
      %9523 = vmatpush1.msra.mxu0 0.0
      %9524 = vmatprep.subr.mxu0 0.0
      %9525 = vmatpush1.msra.mxu0 0.0
      %9526 = vmatprep.subr.mxu0 0.0
      %9527 = vmatpush1.msra.mxu0 0.0
      %9528 = vmatprep.subr.mxu0 0.0
      %9529 = vmatpush1.msra.mxu0 0.0
      %9530 = vmatprep.subr.mxu0 0.0
      %9531 = vmatpush1.msra.mxu0 0.0
      %9532 = vmatprep.subr.mxu0 0.0
      %9533 = vmatpush1.msra.mxu0 0.0
      %9534 = vmatprep.mubr.f32.mxu0 0.0
      %v9535 = vand.u32 %v9457, 4294901760
      %v9536 = vsub.f32 %v9457, %v9535
      %v9537 = vand.u32 %v9536, 4294901760
      %v9538 = vsub.f32 %v9536, %v9537
      %v9539 = vand.u32 %v9538, 4294901760
      %9540 = vmatmul.mubr.f32.gmra.mrb[0].mxu0 %v9539
      %v9541 = vpop.f32.mrb[0].mxu0
      %v9542 = vadd.f32 0.0, %v9541
      %v9543 = vpop.f32.mrb[0].mxu0
      %9544 = vmatprep.mubr.f32.mxu0 0.0
      %v9545 = vand.u32 %v9460, 4294901760
      %v9546 = vsub.f32 %v9460, %v9545
      %v9547 = vand.u32 %v9546, 4294901760
      %v9548 = vsub.f32 %v9546, %v9547
      %v9549 = vand.u32 %v9548, 4294901760
      %9550 = vmatmul.mubr.f32.gmra.mrb[0].mxu0 %v9549
      %v9551 = vpop.f32.mrb[0].mxu0
      %v9552 = vadd.f32 0.0, %v9551
      %v9553 = vpop.f32.mrb[0].mxu0
      %9554 = vmatprep.mubr.f32.mxu0 0.0
      %v9555 = vand.u32 %v9463, 4294901760
      %v9556 = vsub.f32 %v9463, %v9555
      %v9557 = vand.u32 %v9556, 4294901760
      %v9558 = vsub.f32 %v9556, %v9557
      %v9559 = vand.u32 %v9558, 4294901760
      %9560 = vmatmul.mubr.f32.gmra.mrb[0].mxu0 %v9559
      %v9561 = vpop.f32.mrb[0].mxu0
      %v9562 = vadd.f32 0.0, %v9561
      %v9563 = vpop.f32.mrb[0].mxu0
      %9564 = vmatprep.mubr.f32.mxu0 0.0
      %v9565 = vand.u32 %v9466, 4294901760
      %v9566 = vsub.f32 %v9466, %v9565
      %v9567 = vand.u32 %v9566, 4294901760
      %v9568 = vsub.f32 %v9566, %v9567
      %v9569 = vand.u32 %v9568, 4294901760
      %9570 = vmatmul.mubr.f32.gmra.mrb[0].mxu0 %v9569
      %v9571 = vpop.f32.mrb[0].mxu0
      %v9572 = vadd.f32 0.0, %v9571
      %v9573 = vpop.f32.mrb[0].mxu0
      %9574 = vdwg.mxu0
      %9575 = vmatprep.subr.mxu0 0.0
      %v9576 = vand.u32 %v6341, 4294901760
      %v9577 = vsub.f32 %v6341, %v9576
      %v9578 = vand.u32 %v9577, 4294901760
      %v9579 = vsub.f32 %v9577, %v9578
      %v9580 = vand.u32 %v9579, 4294901760
      %9581 = vmatpush1.msra.mxu0 %v9580
      %9582 = vmatprep.subr.mxu0 0.0
      %v9583 = vand.u32 %v6342, 4294901760
      %v9584 = vsub.f32 %v6342, %v9583
      %v9585 = vand.u32 %v9584, 4294901760
      %v9586 = vsub.f32 %v9584, %v9585
      %v9587 = vand.u32 %v9586, 4294901760
      %9588 = vmatpush1.msra.mxu0 %v9587
      %9589 = vmatprep.subr.mxu0 0.0
      %9590 = vmatpush1.msra.mxu0 0.0
      %9591 = vmatprep.subr.mxu0 0.0
      %9592 = vmatpush1.msra.mxu0 0.0
      %9593 = vmatprep.subr.mxu0 0.0
      %9594 = vmatpush1.msra.mxu0 0.0
      %9595 = vmatprep.subr.mxu0 0.0
      %9596 = vmatpush1.msra.mxu0 0.0
      %9597 = vmatprep.subr.mxu0 0.0
      %9598 = vmatpush1.msra.mxu0 0.0
      %9599 = vmatprep.subr.mxu0 0.0
      %9600 = vmatpush1.msra.mxu0 0.0
      %9601 = vmatprep.subr.mxu0 0.0
      %9602 = vmatpush1.msra.mxu0 0.0
      %9603 = vmatprep.subr.mxu0 0.0
      %9604 = vmatpush1.msra.mxu0 0.0
      %9605 = vmatprep.subr.mxu0 0.0
      %9606 = vmatpush1.msra.mxu0 0.0
      %9607 = vmatprep.subr.mxu0 0.0
      %9608 = vmatpush1.msra.mxu0 0.0
      %9609 = vmatprep.subr.mxu0 0.0
      %9610 = vmatpush1.msra.mxu0 0.0
      %9611 = vmatprep.subr.mxu0 0.0
      %9612 = vmatpush1.msra.mxu0 0.0
      %9613 = vmatprep.subr.mxu0 0.0
      %9614 = vmatpush1.msra.mxu0 0.0
      %9615 = vmatprep.subr.mxu0 0.0
      %9616 = vmatpush1.msra.mxu0 0.0
      %9617 = vmatprep.subr.mxu0 0.0
      %9618 = vmatpush1.msra.mxu0 0.0
      %9619 = vmatprep.subr.mxu0 0.0
      %9620 = vmatpush1.msra.mxu0 0.0
      %9621 = vmatprep.subr.mxu0 0.0
      %9622 = vmatpush1.msra.mxu0 0.0
      %9623 = vmatprep.subr.mxu0 0.0
      %9624 = vmatpush1.msra.mxu0 0.0
      %9625 = vmatprep.subr.mxu0 0.0
      %9626 = vmatpush1.msra.mxu0 0.0
      %9627 = vmatprep.subr.mxu0 0.0
      %9628 = vmatpush1.msra.mxu0 0.0
      %9629 = vmatprep.subr.mxu0 0.0
      %9630 = vmatpush1.msra.mxu0 0.0
      %9631 = vmatprep.subr.mxu0 0.0
      %9632 = vmatpush1.msra.mxu0 0.0
      %9633 = vmatprep.subr.mxu0 0.0
      %9634 = vmatpush1.msra.mxu0 0.0
      %9635 = vmatprep.subr.mxu0 0.0
      %9636 = vmatpush1.msra.mxu0 0.0
      %9637 = vmatprep.subr.mxu0 0.0
      %9638 = vmatpush1.msra.mxu0 0.0
      %9639 = vmatprep.subr.mxu0 0.0
      %9640 = vmatpush1.msra.mxu0 0.0
      %9641 = vmatprep.subr.mxu0 0.0
      %9642 = vmatpush1.msra.mxu0 0.0
      %9643 = vmatprep.subr.mxu0 0.0
      %9644 = vmatpush1.msra.mxu0 0.0
      %9645 = vmatprep.subr.mxu0 0.0
      %9646 = vmatpush1.msra.mxu0 0.0
      %9647 = vmatprep.subr.mxu0 0.0
      %9648 = vmatpush1.msra.mxu0 0.0
      %9649 = vmatprep.mubr.f32.mxu0 0.0
      %v9650 = vand.u32 %v9457, 4294901760
      %9651 = vmatmul.mubr.f32.gmra.mrb[0].mxu0 %v9650
      %v9652 = vpop.f32.mrb[0].mxu0
      %v9653 = vadd.f32 %v9542, %v9652
      %v9654 = vpop.f32.mrb[0].mxu0
      %9655 = vmatprep.mubr.f32.mxu0 0.0
      %v9656 = vand.u32 %v9460, 4294901760
      %9657 = vmatmul.mubr.f32.gmra.mrb[0].mxu0 %v9656
      %v9658 = vpop.f32.mrb[0].mxu0
      %v9659 = vadd.f32 %v9552, %v9658
      %v9660 = vpop.f32.mrb[0].mxu0
      %9661 = vmatprep.mubr.f32.mxu0 0.0
      %v9662 = vand.u32 %v9463, 4294901760
      %9663 = vmatmul.mubr.f32.gmra.mrb[0].mxu0 %v9662
      %v9664 = vpop.f32.mrb[0].mxu0
      %v9665 = vadd.f32 %v9562, %v9664
      %v9666 = vpop.f32.mrb[0].mxu0
      %9667 = vmatprep.mubr.f32.mxu0 0.0
      %v9668 = vand.u32 %v9466, 4294901760
      %9669 = vmatmul.mubr.f32.gmra.mrb[0].mxu0 %v9668
      %v9670 = vpop.f32.mrb[0].mxu0
      %v9671 = vadd.f32 %v9572, %v9670
      %v9672 = vpop.f32.mrb[0].mxu0
      %9673 = vdwg.mxu0
      %9674 = vmatprep.subr.mxu0 0.0
      %v9675 = vand.u32 %v6341, 4294901760
      %v9676 = vsub.f32 %v6341, %v9675
      %9677 = vmatpush1.msra.mxu0 %v9676
      %9678 = vmatprep.subr.mxu0 0.0
      %v9679 = vand.u32 %v6342, 4294901760
      %v9680 = vsub.f32 %v6342, %v9679
      %9681 = vmatpush1.msra.mxu0 %v9680
      %9682 = vmatprep.subr.mxu0 0.0
      %9683 = vmatpush1.msra.mxu0 0.0
      %9684 = vmatprep.subr.mxu0 0.0
      %9685 = vmatpush1.msra.mxu0 0.0
      %9686 = vmatprep.subr.mxu0 0.0
      %9687 = vmatpush1.msra.mxu0 0.0
      %9688 = vmatprep.subr.mxu0 0.0
      %9689 = vmatpush1.msra.mxu0 0.0
      %9690 = vmatprep.subr.mxu0 0.0
      %9691 = vmatpush1.msra.mxu0 0.0
      %9692 = vmatprep.subr.mxu0 0.0
      %9693 = vmatpush1.msra.mxu0 0.0
      %9694 = vmatprep.subr.mxu0 0.0
      %9695 = vmatpush1.msra.mxu0 0.0
      %9696 = vmatprep.subr.mxu0 0.0
      %9697 = vmatpush1.msra.mxu0 0.0
      %9698 = vmatprep.subr.mxu0 0.0
      %9699 = vmatpush1.msra.mxu0 0.0
      %9700 = vmatprep.subr.mxu0 0.0
      %9701 = vmatpush1.msra.mxu0 0.0
      %9702 = vmatprep.subr.mxu0 0.0
      %9703 = vmatpush1.msra.mxu0 0.0
      %9704 = vmatprep.subr.mxu0 0.0
      %9705 = vmatpush1.msra.mxu0 0.0
      %9706 = vmatprep.subr.mxu0 0.0
      %9707 = vmatpush1.msra.mxu0 0.0
      %9708 = vmatprep.subr.mxu0 0.0
      %9709 = vmatpush1.msra.mxu0 0.0
      %9710 = vmatprep.subr.mxu0 0.0
      %9711 = vmatpush1.msra.mxu0 0.0
      %9712 = vmatprep.subr.mxu0 0.0
      %9713 = vmatpush1.msra.mxu0 0.0
      %9714 = vmatprep.subr.mxu0 0.0
      %9715 = vmatpush1.msra.mxu0 0.0
      %9716 = vmatprep.subr.mxu0 0.0
      %9717 = vmatpush1.msra.mxu0 0.0
      %9718 = vmatprep.subr.mxu0 0.0
      %9719 = vmatpush1.msra.mxu0 0.0
      %9720 = vmatprep.subr.mxu0 0.0
      %9721 = vmatpush1.msra.mxu0 0.0
      %9722 = vmatprep.subr.mxu0 0.0
      %9723 = vmatpush1.msra.mxu0 0.0
      %9724 = vmatprep.subr.mxu0 0.0
      %9725 = vmatpush1.msra.mxu0 0.0
      %9726 = vmatprep.subr.mxu0 0.0
      %9727 = vmatpush1.msra.mxu0 0.0
      %9728 = vmatprep.subr.mxu0 0.0
      %9729 = vmatpush1.msra.mxu0 0.0
      %9730 = vmatprep.subr.mxu0 0.0
      %9731 = vmatpush1.msra.mxu0 0.0
      %9732 = vmatprep.subr.mxu0 0.0
      %9733 = vmatpush1.msra.mxu0 0.0
      %9734 = vmatprep.subr.mxu0 0.0
      %9735 = vmatpush1.msra.mxu0 0.0
      %9736 = vmatprep.subr.mxu0 0.0
      %9737 = vmatpush1.msra.mxu0 0.0
      %9738 = vmatprep.subr.mxu0 0.0
      %9739 = vmatpush1.msra.mxu0 0.0
      %9740 = vmatprep.subr.mxu0 0.0
      %9741 = vmatpush1.msra.mxu0 0.0
      %9742 = vmatprep.mubr.f32.mxu0 0.0
      %v9743 = vand.u32 %v9457, 4294901760
      %v9744 = vsub.f32 %v9457, %v9743
      %9745 = vmatmul.mubr.f32.gmra.mrb[0].mxu0 %v9744
      %v9746 = vpop.f32.mrb[0].mxu0
      %v9747 = vadd.f32 %v9653, %v9746
      %v9748 = vpop.f32.mrb[0].mxu0
      %9749 = vmatprep.mubr.f32.mxu0 0.0
      %v9750 = vand.u32 %v9460, 4294901760
      %v9751 = vsub.f32 %v9460, %v9750
      %9752 = vmatmul.mubr.f32.gmra.mrb[0].mxu0 %v9751
      %v9753 = vpop.f32.mrb[0].mxu0
      %v9754 = vadd.f32 %v9659, %v9753
      %v9755 = vpop.f32.mrb[0].mxu0
      %9756 = vmatprep.mubr.f32.mxu0 0.0
      %v9757 = vand.u32 %v9463, 4294901760
      %v9758 = vsub.f32 %v9463, %v9757
      %9759 = vmatmul.mubr.f32.gmra.mrb[0].mxu0 %v9758
      %v9760 = vpop.f32.mrb[0].mxu0
      %v9761 = vadd.f32 %v9665, %v9760
      %v9762 = vpop.f32.mrb[0].mxu0
      %9763 = vmatprep.mubr.f32.mxu0 0.0
      %v9764 = vand.u32 %v9466, 4294901760
      %v9765 = vsub.f32 %v9466, %v9764
      %9766 = vmatmul.mubr.f32.gmra.mrb[0].mxu0 %v9765
      %v9767 = vpop.f32.mrb[0].mxu0
      %v9768 = vadd.f32 %v9671, %v9767
      %v9769 = vpop.f32.mrb[0].mxu0
      %9770 = vdwg.mxu0
      %9771 = vmatprep.subr.mxu0 0.0
      %v9772 = vand.u32 %v6341, 4294901760
      %9773 = vmatpush1.msra.mxu0 %v9772
      %9774 = vmatprep.subr.mxu0 0.0
      %v9775 = vand.u32 %v6342, 4294901760
      %9776 = vmatpush1.msra.mxu0 %v9775
      %9777 = vmatprep.subr.mxu0 0.0
      %9778 = vmatpush1.msra.mxu0 0.0
      %9779 = vmatprep.subr.mxu0 0.0
      %9780 = vmatpush1.msra.mxu0 0.0
      %9781 = vmatprep.subr.mxu0 0.0
      %9782 = vmatpush1.msra.mxu0 0.0
      %9783 = vmatprep.subr.mxu0 0.0
      %9784 = vmatpush1.msra.mxu0 0.0
      %9785 = vmatprep.subr.mxu0 0.0
      %9786 = vmatpush1.msra.mxu0 0.0
      %9787 = vmatprep.subr.mxu0 0.0
      %9788 = vmatpush1.msra.mxu0 0.0
      %9789 = vmatprep.subr.mxu0 0.0
      %9790 = vmatpush1.msra.mxu0 0.0
      %9791 = vmatprep.subr.mxu0 0.0
      %9792 = vmatpush1.msra.mxu0 0.0
      %9793 = vmatprep.subr.mxu0 0.0
      %9794 = vmatpush1.msra.mxu0 0.0
      %9795 = vmatprep.subr.mxu0 0.0
      %9796 = vmatpush1.msra.mxu0 0.0
      %9797 = vmatprep.subr.mxu0 0.0
      %9798 = vmatpush1.msra.mxu0 0.0
      %9799 = vmatprep.subr.mxu0 0.0
      %9800 = vmatpush1.msra.mxu0 0.0
      %9801 = vmatprep.subr.mxu0 0.0
      %9802 = vmatpush1.msra.mxu0 0.0
      %9803 = vmatprep.subr.mxu0 0.0
      %9804 = vmatpush1.msra.mxu0 0.0
      %9805 = vmatprep.subr.mxu0 0.0
      %9806 = vmatpush1.msra.mxu0 0.0
      %9807 = vmatprep.subr.mxu0 0.0
      %9808 = vmatpush1.msra.mxu0 0.0
      %9809 = vmatprep.subr.mxu0 0.0
      %9810 = vmatpush1.msra.mxu0 0.0
      %9811 = vmatprep.subr.mxu0 0.0
      %9812 = vmatpush1.msra.mxu0 0.0
      %9813 = vmatprep.subr.mxu0 0.0
      %9814 = vmatpush1.msra.mxu0 0.0
      %9815 = vmatprep.subr.mxu0 0.0
      %9816 = vmatpush1.msra.mxu0 0.0
      %9817 = vmatprep.subr.mxu0 0.0
      %9818 = vmatpush1.msra.mxu0 0.0
      %9819 = vmatprep.subr.mxu0 0.0
      %9820 = vmatpush1.msra.mxu0 0.0
      %9821 = vmatprep.subr.mxu0 0.0
      %9822 = vmatpush1.msra.mxu0 0.0
      %9823 = vmatprep.subr.mxu0 0.0
      %9824 = vmatpush1.msra.mxu0 0.0
      %9825 = vmatprep.subr.mxu0 0.0
      %9826 = vmatpush1.msra.mxu0 0.0
      %9827 = vmatprep.subr.mxu0 0.0
      %9828 = vmatpush1.msra.mxu0 0.0
      %9829 = vmatprep.subr.mxu0 0.0
      %9830 = vmatpush1.msra.mxu0 0.0
      %9831 = vmatprep.subr.mxu0 0.0
      %9832 = vmatpush1.msra.mxu0 0.0
      %9833 = vmatprep.subr.mxu0 0.0
      %9834 = vmatpush1.msra.mxu0 0.0
      %9835 = vmatprep.subr.mxu0 0.0
      %9836 = vmatpush1.msra.mxu0 0.0
      %9837 = vmatprep.mubr.f32.mxu0 0.0
      %v9838 = vand.u32 %v9457, 4294901760
      %v9839 = vsub.f32 %v9457, %v9838
      %v9840 = vand.u32 %v9839, 4294901760
      %9841 = vmatmul.mubr.f32.gmra.mrb[0].mxu0 %v9840
      %v9842 = vpop.f32.mrb[0].mxu0
      %v9843 = vadd.f32 %v9747, %v9842
      %v9844 = vpop.f32.mrb[0].mxu0
      %9845 = vmatprep.mubr.f32.mxu0 0.0
      %v9846 = vand.u32 %v9460, 4294901760
      %v9847 = vsub.f32 %v9460, %v9846
      %v9848 = vand.u32 %v9847, 4294901760
      %9849 = vmatmul.mubr.f32.gmra.mrb[0].mxu0 %v9848
      %v9850 = vpop.f32.mrb[0].mxu0
      %v9851 = vadd.f32 %v9754, %v9850
      %v9852 = vpop.f32.mrb[0].mxu0
      %9853 = vmatprep.mubr.f32.mxu0 0.0
      %v9854 = vand.u32 %v9463, 4294901760
      %v9855 = vsub.f32 %v9463, %v9854
      %v9856 = vand.u32 %v9855, 4294901760
      %9857 = vmatmul.mubr.f32.gmra.mrb[0].mxu0 %v9856
      %v9858 = vpop.f32.mrb[0].mxu0
      %v9859 = vadd.f32 %v9761, %v9858
      %v9860 = vpop.f32.mrb[0].mxu0
      %9861 = vmatprep.mubr.f32.mxu0 0.0
      %v9862 = vand.u32 %v9466, 4294901760
      %v9863 = vsub.f32 %v9466, %v9862
      %v9864 = vand.u32 %v9863, 4294901760
      %9865 = vmatmul.mubr.f32.gmra.mrb[0].mxu0 %v9864
      %v9866 = vpop.f32.mrb[0].mxu0
      %v9867 = vadd.f32 %v9768, %v9866
      %v9868 = vpop.f32.mrb[0].mxu0
      %9869 = vdwg.mxu0
      %9870 = vmatprep.subr.mxu0 0.0
      %v9871 = vand.u32 %v6341, 4294901760
      %v9872 = vsub.f32 %v6341, %v9871
      %v9873 = vand.u32 %v9872, 4294901760
      %9874 = vmatpush1.msra.mxu0 %v9873
      %9875 = vmatprep.subr.mxu0 0.0
      %v9876 = vand.u32 %v6342, 4294901760
      %v9877 = vsub.f32 %v6342, %v9876
      %v9878 = vand.u32 %v9877, 4294901760
      %9879 = vmatpush1.msra.mxu0 %v9878
      %9880 = vmatprep.subr.mxu0 0.0
      %9881 = vmatpush1.msra.mxu0 0.0
      %9882 = vmatprep.subr.mxu0 0.0
      %9883 = vmatpush1.msra.mxu0 0.0
      %9884 = vmatprep.subr.mxu0 0.0
      %9885 = vmatpush1.msra.mxu0 0.0
      %9886 = vmatprep.subr.mxu0 0.0
      %9887 = vmatpush1.msra.mxu0 0.0
      %9888 = vmatprep.subr.mxu0 0.0
      %9889 = vmatpush1.msra.mxu0 0.0
      %9890 = vmatprep.subr.mxu0 0.0
      %9891 = vmatpush1.msra.mxu0 0.0
      %9892 = vmatprep.subr.mxu0 0.0
      %9893 = vmatpush1.msra.mxu0 0.0
      %9894 = vmatprep.subr.mxu0 0.0
      %9895 = vmatpush1.msra.mxu0 0.0
      %9896 = vmatprep.subr.mxu0 0.0
      %9897 = vmatpush1.msra.mxu0 0.0
      %9898 = vmatprep.subr.mxu0 0.0
      %9899 = vmatpush1.msra.mxu0 0.0
      %9900 = vmatprep.subr.mxu0 0.0
      %9901 = vmatpush1.msra.mxu0 0.0
      %9902 = vmatprep.subr.mxu0 0.0
      %9903 = vmatpush1.msra.mxu0 0.0
      %9904 = vmatprep.subr.mxu0 0.0
      %9905 = vmatpush1.msra.mxu0 0.0
      %9906 = vmatprep.subr.mxu0 0.0
      %9907 = vmatpush1.msra.mxu0 0.0
      %9908 = vmatprep.subr.mxu0 0.0
      %9909 = vmatpush1.msra.mxu0 0.0
      %9910 = vmatprep.subr.mxu0 0.0
      %9911 = vmatpush1.msra.mxu0 0.0
      %9912 = vmatprep.subr.mxu0 0.0
      %9913 = vmatpush1.msra.mxu0 0.0
      %9914 = vmatprep.subr.mxu0 0.0
      %9915 = vmatpush1.msra.mxu0 0.0
      %9916 = vmatprep.subr.mxu0 0.0
      %9917 = vmatpush1.msra.mxu0 0.0
      %9918 = vmatprep.subr.mxu0 0.0
      %9919 = vmatpush1.msra.mxu0 0.0
      %9920 = vmatprep.subr.mxu0 0.0
      %9921 = vmatpush1.msra.mxu0 0.0
      %9922 = vmatprep.subr.mxu0 0.0
      %9923 = vmatpush1.msra.mxu0 0.0
      %9924 = vmatprep.subr.mxu0 0.0
      %9925 = vmatpush1.msra.mxu0 0.0
      %9926 = vmatprep.subr.mxu0 0.0
      %9927 = vmatpush1.msra.mxu0 0.0
      %9928 = vmatprep.subr.mxu0 0.0
      %9929 = vmatpush1.msra.mxu0 0.0
      %9930 = vmatprep.subr.mxu0 0.0
      %9931 = vmatpush1.msra.mxu0 0.0
      %9932 = vmatprep.subr.mxu0 0.0
      %9933 = vmatpush1.msra.mxu0 0.0
      %9934 = vmatprep.subr.mxu0 0.0
      %9935 = vmatpush1.msra.mxu0 0.0
      %9936 = vmatprep.subr.mxu0 0.0
      %9937 = vmatpush1.msra.mxu0 0.0
      %9938 = vmatprep.subr.mxu0 0.0
      %9939 = vmatpush1.msra.mxu0 0.0
      %9940 = vmatprep.mubr.f32.mxu0 0.0
      %v9941 = vand.u32 %v9457, 4294901760
      %9942 = vmatmul.mubr.f32.gmra.mrb[0].mxu0 %v9941
      %v9943 = vpop.f32.mrb[0].mxu0
      %v9944 = vadd.f32 %v9843, %v9943
      %v9945 = vpop.f32.mrb[0].mxu0
      %9946 = vmatprep.mubr.f32.mxu0 0.0
      %v9947 = vand.u32 %v9460, 4294901760
      %9948 = vmatmul.mubr.f32.gmra.mrb[0].mxu0 %v9947
      %v9949 = vpop.f32.mrb[0].mxu0
      %v9950 = vadd.f32 %v9851, %v9949
      %v9951 = vpop.f32.mrb[0].mxu0
      %9952 = vmatprep.mubr.f32.mxu0 0.0
      %v9953 = vand.u32 %v9463, 4294901760
      %9954 = vmatmul.mubr.f32.gmra.mrb[0].mxu0 %v9953
      %v9955 = vpop.f32.mrb[0].mxu0
      %v9956 = vadd.f32 %v9859, %v9955
      %v9957 = vpop.f32.mrb[0].mxu0
      %9958 = vmatprep.mubr.f32.mxu0 0.0
      %v9959 = vand.u32 %v9466, 4294901760
      %9960 = vmatmul.mubr.f32.gmra.mrb[0].mxu0 %v9959
      %v9961 = vpop.f32.mrb[0].mxu0
      %v9962 = vadd.f32 %v9867, %v9961
      %v9963 = vpop.f32.mrb[0].mxu0
      %9964 = vdwg.mxu0
      %9965 = vmatprep.subr.mxu0 0.0
      %v9966 = vand.u32 %v6341, 4294901760
      %9967 = vmatpush1.msra.mxu0 %v9966
      %9968 = vmatprep.subr.mxu0 0.0
      %v9969 = vand.u32 %v6342, 4294901760
      %9970 = vmatpush1.msra.mxu0 %v9969
      %9971 = vmatprep.subr.mxu0 0.0
      %9972 = vmatpush1.msra.mxu0 0.0
      %9973 = vmatprep.subr.mxu0 0.0
      %9974 = vmatpush1.msra.mxu0 0.0
      %9975 = vmatprep.subr.mxu0 0.0
      %9976 = vmatpush1.msra.mxu0 0.0
      %9977 = vmatprep.subr.mxu0 0.0
      %9978 = vmatpush1.msra.mxu0 0.0
      %9979 = vmatprep.subr.mxu0 0.0
      %9980 = vmatpush1.msra.mxu0 0.0
      %9981 = vmatprep.subr.mxu0 0.0
      %9982 = vmatpush1.msra.mxu0 0.0
      %9983 = vmatprep.subr.mxu0 0.0
      %9984 = vmatpush1.msra.mxu0 0.0
      %9985 = vmatprep.subr.mxu0 0.0
      %9986 = vmatpush1.msra.mxu0 0.0
      %9987 = vmatprep.subr.mxu0 0.0
      %9988 = vmatpush1.msra.mxu0 0.0
      %9989 = vmatprep.subr.mxu0 0.0
      %9990 = vmatpush1.msra.mxu0 0.0
      %9991 = vmatprep.subr.mxu0 0.0
      %9992 = vmatpush1.msra.mxu0 0.0
      %9993 = vmatprep.subr.mxu0 0.0
      %9994 = vmatpush1.msra.mxu0 0.0
      %9995 = vmatprep.subr.mxu0 0.0
      %9996 = vmatpush1.msra.mxu0 0.0
      %9997 = vmatprep.subr.mxu0 0.0
      %9998 = vmatpush1.msra.mxu0 0.0
      %9999 = vmatprep.subr.mxu0 0.0
      %10000 = vmatpush1.msra.mxu0 0.0
      %10001 = vmatprep.subr.mxu0 0.0
      %10002 = vmatpush1.msra.mxu0 0.0
      %10003 = vmatprep.subr.mxu0 0.0
      %10004 = vmatpush1.msra.mxu0 0.0
      %10005 = vmatprep.subr.mxu0 0.0
      %10006 = vmatpush1.msra.mxu0 0.0
      %10007 = vmatprep.subr.mxu0 0.0
      %10008 = vmatpush1.msra.mxu0 0.0
      %10009 = vmatprep.subr.mxu0 0.0
      %10010 = vmatpush1.msra.mxu0 0.0
      %10011 = vmatprep.subr.mxu0 0.0
      %10012 = vmatpush1.msra.mxu0 0.0
      %10013 = vmatprep.subr.mxu0 0.0
      %10014 = vmatpush1.msra.mxu0 0.0
      %10015 = vmatprep.subr.mxu0 0.0
      %10016 = vmatpush1.msra.mxu0 0.0
      %10017 = vmatprep.subr.mxu0 0.0
      %10018 = vmatpush1.msra.mxu0 0.0
      %10019 = vmatprep.subr.mxu0 0.0
      %10020 = vmatpush1.msra.mxu0 0.0
      %10021 = vmatprep.subr.mxu0 0.0
      %10022 = vmatpush1.msra.mxu0 0.0
      %10023 = vmatprep.subr.mxu0 0.0
      %10024 = vmatpush1.msra.mxu0 0.0
      %10025 = vmatprep.subr.mxu0 0.0
      %10026 = vmatpush1.msra.mxu0 0.0
      %10027 = vmatprep.subr.mxu0 0.0
      %10028 = vmatpush1.msra.mxu0 0.0
      %10029 = vmatprep.subr.mxu0 0.0
      %10030 = vmatpush1.msra.mxu0 0.0
      %10031 = vmatprep.mubr.f32.mxu0 0.0
      %v10032 = vand.u32 %v9457, 4294901760
      %10033 = vmatmul.mubr.f32.gmra.mrb[0].mxu0 %v10032
      %v10034 = vpop.f32.mrb[0].mxu0
      %v10035 = vadd.f32 %v9944, %v10034
      %v10036 = vpop.f32.mrb[0].mxu0
      %10037 = vmatprep.mubr.f32.mxu0 0.0
      %v10038 = vand.u32 %v9460, 4294901760
      %10039 = vmatmul.mubr.f32.gmra.mrb[0].mxu0 %v10038
      %v10040 = vpop.f32.mrb[0].mxu0
      %v10041 = vadd.f32 %v9950, %v10040
      %v10042 = vpop.f32.mrb[0].mxu0
      %10043 = vmatprep.mubr.f32.mxu0 0.0
      %v10044 = vand.u32 %v9463, 4294901760
      %10045 = vmatmul.mubr.f32.gmra.mrb[0].mxu0 %v10044
      %v10046 = vpop.f32.mrb[0].mxu0
      %v10047 = vadd.f32 %v9956, %v10046
      %v10048 = vpop.f32.mrb[0].mxu0
      %10049 = vmatprep.mubr.f32.mxu0 0.0
      %v10050 = vand.u32 %v9466, 4294901760
      %10051 = vmatmul.mubr.f32.gmra.mrb[0].mxu0 %v10050
      %v10052 = vpop.f32.mrb[0].mxu0
      %v10053 = vadd.f32 %v9962, %v10052
      %v10054 = vpop.f32.mrb[0].mxu0
      %10055 = vdwg.mxu0
      %v10056 = vadd.f32 %v8838, %v10035
      %v10057 = vadd.f32 %v8839, %v10041
      %v10058 = vadd.f32 %v8840, %v10047
      %v10059 = vadd.f32 %v8841, %v10053
      %v10060 = vxor.u32 %v10056, 2147483648
      %v10061 = vxor.u32 %v10057, 2147483648
      %v10062 = vxor.u32 %v10058, 2147483648
      %v10063 = vxor.u32 %v10059, 2147483648
      %v10064 = vmul.f32 %v10060, 1.442695
      %v10065 = vpow.pop %v10064
      %v10066 = vmul.f32 %v10061, 1.442695
      %v10067 = vpow.pop %v10066
      %v10068 = vmul.f32 %v10062, 1.442695
      %v10069 = vpow.pop %v10068
      %v10070 = vmul.f32 %v10063, 1.442695
      %v10071 = vpow.pop %v10070
      %v10072 = vadd.f32 %v10065, 1.0
      %v10073 = vadd.f32 %v10067, 1.0
      %v10074 = vadd.f32 %v10069, 1.0
      %v10075 = vadd.f32 %v10071, 1.0
      %v10076 = vrcp.pop %v10072
      %v10077 = vmul.f32 1.0, %v10076
      %v10078 = vrcp.pop %v10073
      %v10079 = vmul.f32 1.0, %v10078
      %v10080 = vrcp.pop %v10074
      %v10081 = vmul.f32 1.0, %v10080
      %v10082 = vrcp.pop %v10075
      %v10083 = vmul.f32 1.0, %v10082
      %v10084 = vmul.f32 %v9447, %v10077
      %v10085 = vmul.f32 %v9448, %v10079
      %v10086 = vmul.f32 %v9449, %v10081
      %v10087 = vmul.f32 %v9450, %v10083
      %10088 = vst.msk [vmem:[%s334] sm:$0xff] %vm348, %v10084
      %10089 = vst.msk [vmem:[%s334 + $0x8] sm:$0xff] %vm348, %v10085
      %10090 = vst.msk [vmem:[%s334 + $0x10] sm:$0xff] %vm348, %v10086
      %10091 = vst.msk [vmem:[%s334 + $0x18] sm:$0xff] %vm348, %v10087
      %p10092 = scmp.lt.s32.totalorder %s20, 1
      %s10093 = scalar_select %p10092, %s20, 1
      %s10094 = smul.addr %s10093, 4
      %s10095 = smul.addr %s10094, 8
      %s10096 = scalar_lea.vmem %s9, %s10095
      // Predicated region
      $region57: #{tpu_custom_call.1} parent=55 // pred_check
        %p10097 = pneg %p232
      $region58: #{tpu_custom_call.1} parent=55 // pred_check_branch
        %10099 = sbr.rel (%p10097) target = $region60
      $region59: #{tpu_custom_call.1} parent=55 // pred_region
        _
      $region60: #{tpu_custom_call.1} parent=55 // pred_fallthru
        _
    $region56: #{tpu_custom_call.1} parent=5 // pred_fallthru
      _
    %p10100 = scmp.le.s32.totalorder 2, %s15
    // Predicated region
    $region61: #{tpu_custom_call.1} parent=5 // pred_check
      %p10101 = pneg %p10100
    $region62: #{tpu_custom_call.1} parent=5 // pred_check_branch
      %10103 = sbr.rel (%p10101) target = $region64
    $region63: #{tpu_custom_call.1} parent=5 // pred_region
      %s10104 = ssub.s32 %s15, 2
      // Predicated region
      $region65: #{tpu_custom_call.1} parent=63 // pred_check
        %p10105 = pneg %p238
      $region66: #{tpu_custom_call.1} parent=63 // pred_check_branch
        %10107 = sbr.rel (%p10105) target = $region68
      $region67: #{tpu_custom_call.1} parent=63 // pred_region
        %p10108 = scmp.lt.s32.totalorder %s21, 1
        %s10109 = scalar_select %p10108, %s21, 1
        %s10110 = smul.addr %s10109, 4
        %s10111 = smul.addr %s10110, 8
        %s10112 = scalar_lea.vmem %s9, %s10111
      $region68: #{tpu_custom_call.1} parent=63 // pred_fallthru
        _
    $region64: #{tpu_custom_call.1} parent=5 // pred_fallthru
      _
  $region6: #{tpu_custom_call.1} parent=0 // loop_footer
    %s19 = sadd.s32 1, %s15
  $region7: #{tpu_custom_call.1} parent=0 // loop_footer_branch
    %14 = sbr.rel target = $region3
  $region8: #{tpu_custom_call.1} parent=0 // loop_exit
    _

</llo_original>
